<compile_context>
chip_gen: v5e
topology: v5e:2x2
jax: 0.10.0
libtpu: 0.0.40
codegen_flags: <defaults>
</compile_context>

<pallas_src>
from functools import partial

import jax
import jax.numpy as jnp
from jax.experimental import pallas as pl
from jax.experimental.pallas import tpu as pltpu


def _tc_parallel_blocks(batch):
    """2 parallel grid steps on v7x (2 TensorCores/chip), else a single step."""
    try:
        kind = jax.devices()[0].device_kind.lower()
    except Exception:
        return 1
    if batch % 2 == 0 and ("v7" in kind or "7x" in kind):
        return 2
    return 1


# ----------------------------------------------------------------------------
# Kernel 1: fused ConvBLK1 + ConvBLK2
#   (pad=1 -> conv k=2 -> ReLU -> maxpool k=2,s=1) x 2, everything in VMEM.
# ----------------------------------------------------------------------------
def conv_stack_kernel(x_ref, w1_ref, b1_ref, w2_ref, b2_ref, o_ref, acc_ref):
    # x_ref : (bb*H*W, Cin) f32  one row per input pixel, NHWC order
    # w1_ref: (Cin, 4*C1)   bf16 conv1 taps side by side, col block k = 2*di+dj
    # b1_ref: (1, C1)       f32
    # w2_ref: (C1, 4*C1)    bf16 conv2 taps, same column order
    # b2_ref: (1, C1)       f32
    # o_ref : (bb, H, W, C1) bf16 pooled NHWC output of block 2
    # acc_ref: (bb, H+1, W+1, C1) f32 scratch, reused by both conv blocks
    bb, H, W, C1 = o_ref.shape
    Hc, Wc = H + 1, W + 1                 # conv output size (= maxpool input)
    shifts = ((0, 0), (0, 1), (1, 0), (1, 1))

    def conv_relu_pool(lhs_2d, w_ref, b_ref):
        # One lane-dense matmul: every pixel against all 4 taps at once.
        y = jnp.dot(lhs_2d, w_ref[...], preferred_element_type=jnp.float32)
        y = y.reshape(bb, H, W, 4 * C1)   # free split of the pixel-row axis

        # conv-with-padding=1 as a scatter: input pixel (a,b) with tap (di,dj)
        # contributes to output (a+1-di, b+1-dj); bias is added once via init.
        acc_ref[...] = jnp.broadcast_to(
            b_ref[...].reshape(1, 1, 1, C1), acc_ref.shape)
        for k, (di, dj) in enumerate(shifts):
            r0, c0 = 1 - di, 1 - dj
            acc_ref[:, r0:r0 + H, c0:c0 + W, :] += y[..., k * C1:(k + 1) * C1]

        z = jnp.maximum(acc_ref[...], 0.0)           # ReLU, (bb, Hc, Wc, C1)
        # MaxPool2d(kernel=2, stride=1): (Hc, Wc) -> (H, W)
        return jnp.maximum(jnp.maximum(z[:, :H, :W, :], z[:, 1:, :W, :]),
                           jnp.maximum(z[:, :H, 1:, :], z[:, 1:, 1:, :]))

    # ---- ConvBLK1: single cast of the input, K = Cin matmul, N = 128 -------
    a1 = conv_relu_pool(x_ref[...].astype(jnp.bfloat16), w1_ref, b1_ref)
    # ---- ConvBLK2: single cast of a1, K = 32 matmul, N = 128 ---------------
    a2 = conv_relu_pool(a1.reshape(bb * H * W, C1).astype(jnp.bfloat16),
                        w2_ref, b2_ref)
    o_ref[...] = a2.astype(o_ref.dtype)


def conv_stack(x2d, B, H, W, w1, b1, w2, b2):
    Cin = x2d.shape[-1]
    C1 = b1.shape[-1]
    nb = _tc_parallel_blocks(B)           # 1 step (v5e/v6e) or 2 parallel (v7x)
    bb = B // nb
    # TODO(synk): at the original 128x128 input the per-step f32 intermediates
    # grow to ~10+ MiB; tile H into row strips with a 1-row halo before
    # restoring that size (and re-check vmem_limit_bytes on v7x's 64 MiB VMEM).
    return pl.pallas_call(
        conv_stack_kernel,
        out_shape=jax.ShapeDtypeStruct((B, H, W, C1), jnp.bfloat16),
        grid=(nb,),
        in_specs=[
            pl.BlockSpec((bb * H * W, Cin), lambda b: (b, 0)),
            pl.BlockSpec((Cin, 4 * C1), lambda b: (0, 0)),
            pl.BlockSpec((1, C1), lambda b: (0, 0)),
            pl.BlockSpec((C1, 4 * C1), lambda b: (0, 0)),
            pl.BlockSpec((1, C1), lambda b: (0, 0)),
        ],
        out_specs=pl.BlockSpec((bb, H, W, C1), lambda b: (b, 0, 0, 0)),
        scratch_shapes=[pltpu.VMEM((bb, H + 1, W + 1, C1), jnp.float32)],
        compiler_params=pltpu.CompilerParams(
            dimension_semantics=("parallel",)),
    )(x2d, w1, b1, w2, b2)


# ----------------------------------------------------------------------------
# Kernel 2: fused classifier (Linear+ReLU -> Linear+ReLU -> Linear), all VMEM.
# ----------------------------------------------------------------------------
# TODO(synk): if the original 128x128 input is restored (in_features=524288),
# lw1 is 32 MiB bf16 and must NOT be a whole-array VMEM operand: grid fc1 over
# K blocks (reduction axis last, "arbitrary", tk ~ 4096-8192 rows) with a
# (B, 32) f32 accumulator scratch so the weight DMA pipelines behind the MXU.
def mlp_kernel(x_ref, w1_ref, b1_ref, w2_ref, b2_ref, w3_ref, b3_ref, o_ref):
    h1 = jnp.dot(x_ref[...], w1_ref[...],
                 preferred_element_type=jnp.float32) + b1_ref[...]
    h1 = jnp.maximum(h1, 0.0).astype(jnp.bfloat16)
    h2 = jnp.dot(h1, w2_ref[...],
                 preferred_element_type=jnp.float32) + b2_ref[...]
    h2 = jnp.maximum(h2, 0.0).astype(jnp.bfloat16)
    # w3/b3 are zero-padded to 128 output lanes -> full-lane (unmasked) store.
    o_ref[...] = jnp.dot(h2, w3_ref[...],
                         preferred_element_type=jnp.float32) + b3_ref[...]


def mlp(x, w1, b1, w2, b2, w3, b3):
    vmem = pl.BlockSpec(memory_space=pltpu.MemorySpace.VMEM)
    return pl.pallas_call(
        mlp_kernel,
        out_shape=jax.ShapeDtypeStruct((x.shape[0], w3.shape[-1]), jnp.float32),
        in_specs=[vmem] * 7,
        out_specs=vmem,
    )(x, w1, b1, w2, b2, w3, b3)


# ----------------------------------------------------------------------------
# Full forward pass
# ----------------------------------------------------------------------------
@partial(jax.jit, static_argnames=("n_classes",))
def currency_model_forward(x_nchw, kp, *, n_classes):
    B, _, H, W = x_nchw.shape
    # NCHW -> NHWC, one row per pixel (tiny input; one fused XLA copy).
    x2d = jnp.transpose(x_nchw, (0, 2, 3, 1)).reshape(B * H * W, -1)
    f = conv_stack(x2d, B, H, W,
                   kp["cw1"], kp["cb1"], kp["cw2"], kp["cb2"])   # (B,H,W,32)
    flat = f.reshape(B, -1)                   # free row-major NHWC flatten
    logits = mlp(flat, kp["lw1"], kp["lb1"], kp["lw2"], kp["lb2"],
                 kp["lw3"], kp["lb3"])        # (B, 128) padded logits
    return logits[:, :n_classes]


# ----------------------------------------------------------------------------
# Parameters: PyTorch-layout init, one-time offline re-layout for the kernels
# ----------------------------------------------------------------------------
def init_torch_params(key, in_ch=3, h=16, w=16, n_classes=7):
    """PyTorch-default uniform(+-1/sqrt(fan_in)) params in torch layouts."""
    ks = jax.random.split(key, 10)

    def uni(k, shape, fan_in):
        b = 1.0 / jnp.sqrt(jnp.float32(fan_in))
        return jax.random.uniform(k, shape, jnp.float32, -b, b)

    flat = 32 * h * w    # module hard-codes 524288 (=32*128*128); scaled here
    return {
        "conv1_w": uni(ks[0], (32, in_ch, 2, 2), in_ch * 4),    # OIHW
        "conv1_b": uni(ks[1], (32,), in_ch * 4),
        "conv2_w": uni(ks[2], (32, 32, 2, 2), 32 * 4),
        "conv2_b": uni(ks[3], (32,), 32 * 4),
        "fc1_w": uni(ks[4], (32, flat), flat),                  # (out, in)
        "fc1_b": uni(ks[5], (32,), flat),
        "fc2_w": uni(ks[6], (16, 32), 32),
        "fc2_b": uni(ks[7], (16,), 32),
        "fc3_w": uni(ks[8], (n_classes, 16), 16),
        "fc3_b": uni(ks[9], (n_classes,), 16),
    }


def prepare_kernel_params(p, h, w, pad_logits_to=128):
    """One-time weight re-layout:
       * conv taps -> one (K, 4*32) slab, column block k = 2*di + dj,
       * fc1 rows permuted from torch (C,H,W) flatten order to NHWC (H,W,C),
       * fc3 zero-padded to 128 output columns (lane-dense logits store)."""
    c1 = p["conv1_w"].shape[0]          # 32 channels
    cin = p["conv1_w"].shape[1]
    n_out = p["fc3_w"].shape[0]
    bf16 = jnp.bfloat16

    cw1 = jnp.transpose(p["conv1_w"], (1, 2, 3, 0)).reshape(cin, 4 * c1)
    cw2 = jnp.transpose(p["conv2_w"], (1, 2, 3, 0)).reshape(c1, 4 * c1)

    lw1 = jnp.transpose(p["fc1_w"], (1, 0)).reshape(c1, h, w, -1)
    lw1 = jnp.transpose(lw1, (1, 2, 0, 3)).reshape(h * w * c1, -1)

    lw3 = jnp.transpose(p["fc3_w"], (1, 0))                     # (16, n_out)
    lw3p = jnp.zeros((lw3.shape[0], pad_logits_to),
                     jnp.float32).at[:, :n_out].set(lw3)
    lb3p = jnp.zeros((1, pad_logits_to),
                     jnp.float32).at[0, :n_out].set(p["fc3_b"])

    return {
        "cw1": cw1.astype(bf16), "cb1": p["conv1_b"].reshape(1, -1),
        "cw2": cw2.astype(bf16), "cb2": p["conv2_b"].reshape(1, -1),
        "lw1": lw1.astype(bf16), "lb1": p["fc1_b"].reshape(1, -1),
        "lw2": jnp.transpose(p["fc2_w"], (1, 0)).astype(bf16),
        "lb2": p["fc2_b"].reshape(1, -1),
        "lw3": lw3p.astype(bf16), "lb3": lb3p,
    }


if __name__ == "__main__":
    key = jax.random.PRNGKey(0)
    kx, kw = jax.random.split(key)

    B, C, H, W, NUM_CLASSES = 2, 3, 16, 16, 7
    x = jax.random.normal(kx, (B, C, H, W), jnp.float32)
    torch_params = init_torch_params(kw, in_ch=C, h=H, w=W,
                                     n_classes=NUM_CLASSES)
    kparams = prepare_kernel_params(torch_params, H, W)

    out = jax.block_until_ready(
        currency_model_forward(x, kparams, n_classes=NUM_CLASSES))
    assert out.shape == (B, NUM_CLASSES), out.shape
    assert bool(jnp.all(jnp.isfinite(out))), "non-finite output"
    print("KERNEL_OK")
</pallas_src>

<mosaic_0001>
module attributes {stable_mosaic.version = 11 : i64} {
  func.func @conv_stack_kernel(%arg0: i32, %arg1: memref<512x3xf32, #tpu.memory_space<vmem>>, %arg2: memref<3x128xbf16, #tpu.memory_space<vmem>>, %arg3: memref<1x32xf32, #tpu.memory_space<vmem>>, %arg4: memref<32x128xbf16, #tpu.memory_space<vmem>>, %arg5: memref<1x32xf32, #tpu.memory_space<vmem>>, %arg6: memref<2x16x16x32xbf16, #tpu.memory_space<vmem>>, %arg7: memref<2x17x17x32xf32, #tpu.memory_space<vmem>>) attributes {dimension_semantics = [#tpu.dimension_semantics<parallel>], iteration_bounds = array<i64: 1>, scalar_prefetch = 0 : i64, scratch_operands = 1 : i64, tpu.core_type = #tpu.core_type<tc>, window_params = [{transform_indices = @transform_0, window_bounds = array<i64: 512, 3>}, {pipeline_mode = #tpu.pipeline_mode<synchronous>, transform_indices = @transform_1, window_bounds = array<i64: 3, 128>}, {pipeline_mode = #tpu.pipeline_mode<synchronous>, transform_indices = @transform_2, window_bounds = array<i64: 1, 32>}, {pipeline_mode = #tpu.pipeline_mode<synchronous>, transform_indices = @transform_3, window_bounds = array<i64: 32, 128>}, {pipeline_mode = #tpu.pipeline_mode<synchronous>, transform_indices = @transform_4, window_bounds = array<i64: 1, 32>}, {transform_indices = @transform_5, window_bounds = array<i64: 2, 16, 16, 32>}]} {
    %c0 = arith.constant 0 : index
    %c0_0 = arith.constant 0 : index
    %0 = vector.load %arg1[%c0, %c0_0] : memref<512x3xf32, #tpu.memory_space<vmem>>, vector<512x3xf32>
    %1 = arith.truncf %0 : vector<512x3xf32> to vector<512x3xbf16>
    %c0_1 = arith.constant 0 : index
    %c0_2 = arith.constant 0 : index
    %2 = vector.load %arg2[%c0_1, %c0_2] : memref<3x128xbf16, #tpu.memory_space<vmem>>, vector<3x128xbf16>
    %cst = arith.constant dense<0.000000e+00> : vector<512x128xf32>
    %3 = tpu.matmul %1, %2, %cst {dimension_numbers = #tpu.dot_dimension_numbers<[1], [0], [0], [1], [0, 0, 1, 1], [], []>} : vector<512x3xbf16>, vector<3x128xbf16>, vector<512x128xf32> -> vector<512x128xf32>
    %4 = vector.shape_cast %3 : vector<512x128xf32> to vector<2x16x16x128xf32>
    %c0_3 = arith.constant 0 : index
    %c0_4 = arith.constant 0 : index
    %5 = vector.load %arg3[%c0_3, %c0_4] : memref<1x32xf32, #tpu.memory_space<vmem>>, vector<1x32xf32>
    %6 = vector.shape_cast %5 : vector<1x32xf32> to vector<1x1x1x32xf32>
    %7 = vector.shape_cast %6 : vector<1x1x1x32xf32> to vector<1x1x1x32xf32>
    %8 = vector.broadcast %7 : vector<1x1x1x32xf32> to vector<2x17x17x32xf32>
    %c0_5 = arith.constant 0 : index
    %c0_6 = arith.constant 0 : index
    %c0_7 = arith.constant 0 : index
    %c0_8 = arith.constant 0 : index
    %9 = vector.load %arg7[%c0_5, %c0_6, %c0_7, %c0_8] : memref<2x17x17x32xf32, #tpu.memory_space<vmem>>, vector<2x17x17x32xf32>
    tpu.vector_store %arg7[%c0_5, %c0_6, %c0_7, %c0_8], %8 {strides = array<i32>} : memref<2x17x17x32xf32, #tpu.memory_space<vmem>>, vector<2x17x17x32xf32>,
    %c0_9 = arith.constant 0 : index
    %c1 = arith.constant 1 : index
    %c1_10 = arith.constant 1 : index
    %c0_11 = arith.constant 0 : index
    %10 = vector.load %arg7[%c0_9, %c1, %c1_10, %c0_11] : memref<2x17x17x32xf32, #tpu.memory_space<vmem>>, vector<2x16x16x32xf32>
    %11 = vector.extract_strided_slice %4 {offsets = [0, 0, 0, 0], sizes = [2, 16, 16, 32], strides = [1, 1, 1, 1]} : vector<2x16x16x128xf32> to vector<2x16x16x32xf32>
    %12 = arith.addf %10, %11 : vector<2x16x16x32xf32>
    %c0_12 = arith.constant 0 : index
    %c1_13 = arith.constant 1 : index
    %c1_14 = arith.constant 1 : index
    %c0_15 = arith.constant 0 : index
    %13 = vector.load %arg7[%c0_12, %c1_13, %c1_14, %c0_15] : memref<2x17x17x32xf32, #tpu.memory_space<vmem>>, vector<2x16x16x32xf32>
    tpu.vector_store %arg7[%c0_12, %c1_13, %c1_14, %c0_15], %12 {strides = array<i32>} : memref<2x17x17x32xf32, #tpu.memory_space<vmem>>, vector<2x16x16x32xf32>,
    %c0_16 = arith.constant 0 : index
    %c1_17 = arith.constant 1 : index
    %c0_18 = arith.constant 0 : index
    %c0_19 = arith.constant 0 : index
    %14 = vector.load %arg7[%c0_16, %c1_17, %c0_18, %c0_19] : memref<2x17x17x32xf32, #tpu.memory_space<vmem>>, vector<2x16x16x32xf32>
    %15 = vector.extract_strided_slice %4 {offsets = [0, 0, 0, 32], sizes = [2, 16, 16, 32], strides = [1, 1, 1, 1]} : vector<2x16x16x128xf32> to vector<2x16x16x32xf32>
    %16 = arith.addf %14, %15 : vector<2x16x16x32xf32>
    %c0_20 = arith.constant 0 : index
    %c1_21 = arith.constant 1 : index
    %c0_22 = arith.constant 0 : index
    %c0_23 = arith.constant 0 : index
    %17 = vector.load %arg7[%c0_20, %c1_21, %c0_22, %c0_23] : memref<2x17x17x32xf32, #tpu.memory_space<vmem>>, vector<2x16x16x32xf32>
    tpu.vector_store %arg7[%c0_20, %c1_21, %c0_22, %c0_23], %16 {strides = array<i32>} : memref<2x17x17x32xf32, #tpu.memory_space<vmem>>, vector<2x16x16x32xf32>,
    %c0_24 = arith.constant 0 : index
    %c0_25 = arith.constant 0 : index
    %c1_26 = arith.constant 1 : index
    %c0_27 = arith.constant 0 : index
    %18 = vector.load %arg7[%c0_24, %c0_25, %c1_26, %c0_27] : memref<2x17x17x32xf32, #tpu.memory_space<vmem>>, vector<2x16x16x32xf32>
    %19 = vector.extract_strided_slice %4 {offsets = [0, 0, 0, 64], sizes = [2, 16, 16, 32], strides = [1, 1, 1, 1]} : vector<2x16x16x128xf32> to vector<2x16x16x32xf32>
    %20 = arith.addf %18, %19 : vector<2x16x16x32xf32>
    %c0_28 = arith.constant 0 : index
    %c0_29 = arith.constant 0 : index
    %c1_30 = arith.constant 1 : index
    %c0_31 = arith.constant 0 : index
    %21 = vector.load %arg7[%c0_28, %c0_29, %c1_30, %c0_31] : memref<2x17x17x32xf32, #tpu.memory_space<vmem>>, vector<2x16x16x32xf32>
    tpu.vector_store %arg7[%c0_28, %c0_29, %c1_30, %c0_31], %20 {strides = array<i32>} : memref<2x17x17x32xf32, #tpu.memory_space<vmem>>, vector<2x16x16x32xf32>,
    %c0_32 = arith.constant 0 : index
    %c0_33 = arith.constant 0 : index
    %c0_34 = arith.constant 0 : index
    %c0_35 = arith.constant 0 : index
    %22 = vector.load %arg7[%c0_32, %c0_33, %c0_34, %c0_35] : memref<2x17x17x32xf32, #tpu.memory_space<vmem>>, vector<2x16x16x32xf32>
    %23 = vector.extract_strided_slice %4 {offsets = [0, 0, 0, 96], sizes = [2, 16, 16, 32], strides = [1, 1, 1, 1]} : vector<2x16x16x128xf32> to vector<2x16x16x32xf32>
    %24 = arith.addf %22, %23 : vector<2x16x16x32xf32>
    %c0_36 = arith.constant 0 : index
    %c0_37 = arith.constant 0 : index
    %c0_38 = arith.constant 0 : index
    %c0_39 = arith.constant 0 : index
    %25 = vector.load %arg7[%c0_36, %c0_37, %c0_38, %c0_39] : memref<2x17x17x32xf32, #tpu.memory_space<vmem>>, vector<2x16x16x32xf32>
    tpu.vector_store %arg7[%c0_36, %c0_37, %c0_38, %c0_39], %24 {strides = array<i32>} : memref<2x17x17x32xf32, #tpu.memory_space<vmem>>, vector<2x16x16x32xf32>,
    %c0_40 = arith.constant 0 : index
    %c0_41 = arith.constant 0 : index
    %c0_42 = arith.constant 0 : index
    %c0_43 = arith.constant 0 : index
    %26 = vector.load %arg7[%c0_40, %c0_41, %c0_42, %c0_43] : memref<2x17x17x32xf32, #tpu.memory_space<vmem>>, vector<2x17x17x32xf32>
    %cst_44 = arith.constant 0.000000e+00 : f32
    %27 = vector.broadcast %cst_44 : f32 to vector<2x17x17x32xf32>
    %28 = arith.maximumf %26, %27 : vector<2x17x17x32xf32>
    %29 = vector.extract_strided_slice %28 {offsets = [0, 0, 0, 0], sizes = [2, 16, 16, 32], strides = [1, 1, 1, 1]} : vector<2x17x17x32xf32> to vector<2x16x16x32xf32>
    %30 = vector.extract_strided_slice %28 {offsets = [0, 1, 0, 0], sizes = [2, 16, 16, 32], strides = [1, 1, 1, 1]} : vector<2x17x17x32xf32> to vector<2x16x16x32xf32>
    %31 = arith.maximumf %29, %30 : vector<2x16x16x32xf32>
    %32 = vector.extract_strided_slice %28 {offsets = [0, 0, 1, 0], sizes = [2, 16, 16, 32], strides = [1, 1, 1, 1]} : vector<2x17x17x32xf32> to vector<2x16x16x32xf32>
    %33 = vector.extract_strided_slice %28 {offsets = [0, 1, 1, 0], sizes = [2, 16, 16, 32], strides = [1, 1, 1, 1]} : vector<2x17x17x32xf32> to vector<2x16x16x32xf32>
    %34 = arith.maximumf %32, %33 : vector<2x16x16x32xf32>
    %35 = arith.maximumf %31, %34 : vector<2x16x16x32xf32>
    %36 = vector.shape_cast %35 : vector<2x16x16x32xf32> to vector<512x32xf32>
    %37 = arith.truncf %36 : vector<512x32xf32> to vector<512x32xbf16>
    %c0_45 = arith.constant 0 : index
    %c0_46 = arith.constant 0 : index
    %38 = vector.load %arg4[%c0_45, %c0_46] : memref<32x128xbf16, #tpu.memory_space<vmem>>, vector<32x128xbf16>
    %cst_47 = arith.constant dense<0.000000e+00> : vector<512x128xf32>
    %39 = tpu.matmul %37, %38, %cst_47 {dimension_numbers = #tpu.dot_dimension_numbers<[1], [0], [0], [1], [0, 0, 1, 1], [], []>} : vector<512x32xbf16>, vector<32x128xbf16>, vector<512x128xf32> -> vector<512x128xf32>
    %40 = vector.shape_cast %39 : vector<512x128xf32> to vector<2x16x16x128xf32>
    %c0_48 = arith.constant 0 : index
    %c0_49 = arith.constant 0 : index
    %41 = vector.load %arg5[%c0_48, %c0_49] : memref<1x32xf32, #tpu.memory_space<vmem>>, vector<1x32xf32>
    %42 = vector.shape_cast %41 : vector<1x32xf32> to vector<1x1x1x32xf32>
    %43 = vector.shape_cast %42 : vector<1x1x1x32xf32> to vector<1x1x1x32xf32>
    %44 = vector.broadcast %43 : vector<1x1x1x32xf32> to vector<2x17x17x32xf32>
    %c0_50 = arith.constant 0 : index
    %c0_51 = arith.constant 0 : index
    %c0_52 = arith.constant 0 : index
    %c0_53 = arith.constant 0 : index
    %45 = vector.load %arg7[%c0_50, %c0_51, %c0_52, %c0_53] : memref<2x17x17x32xf32, #tpu.memory_space<vmem>>, vector<2x17x17x32xf32>
    tpu.vector_store %arg7[%c0_50, %c0_51, %c0_52, %c0_53], %44 {strides = array<i32>} : memref<2x17x17x32xf32, #tpu.memory_space<vmem>>, vector<2x17x17x32xf32>,
    %c0_54 = arith.constant 0 : index
    %c1_55 = arith.constant 1 : index
    %c1_56 = arith.constant 1 : index
    %c0_57 = arith.constant 0 : index
    %46 = vector.load %arg7[%c0_54, %c1_55, %c1_56, %c0_57] : memref<2x17x17x32xf32, #tpu.memory_space<vmem>>, vector<2x16x16x32xf32>
    %47 = vector.extract_strided_slice %40 {offsets = [0, 0, 0, 0], sizes = [2, 16, 16, 32], strides = [1, 1, 1, 1]} : vector<2x16x16x128xf32> to vector<2x16x16x32xf32>
    %48 = arith.addf %46, %47 : vector<2x16x16x32xf32>
    %c0_58 = arith.constant 0 : index
    %c1_59 = arith.constant 1 : index
    %c1_60 = arith.constant 1 : index
    %c0_61 = arith.constant 0 : index
    %49 = vector.load %arg7[%c0_58, %c1_59, %c1_60, %c0_61] : memref<2x17x17x32xf32, #tpu.memory_space<vmem>>, vector<2x16x16x32xf32>
    tpu.vector_store %arg7[%c0_58, %c1_59, %c1_60, %c0_61], %48 {strides = array<i32>} : memref<2x17x17x32xf32, #tpu.memory_space<vmem>>, vector<2x16x16x32xf32>,
    %c0_62 = arith.constant 0 : index
    %c1_63 = arith.constant 1 : index
    %c0_64 = arith.constant 0 : index
    %c0_65 = arith.constant 0 : index
    %50 = vector.load %arg7[%c0_62, %c1_63, %c0_64, %c0_65] : memref<2x17x17x32xf32, #tpu.memory_space<vmem>>, vector<2x16x16x32xf32>
    %51 = vector.extract_strided_slice %40 {offsets = [0, 0, 0, 32], sizes = [2, 16, 16, 32], strides = [1, 1, 1, 1]} : vector<2x16x16x128xf32> to vector<2x16x16x32xf32>
    %52 = arith.addf %50, %51 : vector<2x16x16x32xf32>
    %c0_66 = arith.constant 0 : index
    %c1_67 = arith.constant 1 : index
    %c0_68 = arith.constant 0 : index
    %c0_69 = arith.constant 0 : index
    %53 = vector.load %arg7[%c0_66, %c1_67, %c0_68, %c0_69] : memref<2x17x17x32xf32, #tpu.memory_space<vmem>>, vector<2x16x16x32xf32>
    tpu.vector_store %arg7[%c0_66, %c1_67, %c0_68, %c0_69], %52 {strides = array<i32>} : memref<2x17x17x32xf32, #tpu.memory_space<vmem>>, vector<2x16x16x32xf32>,
    %c0_70 = arith.constant 0 : index
    %c0_71 = arith.constant 0 : index
    %c1_72 = arith.constant 1 : index
    %c0_73 = arith.constant 0 : index
    %54 = vector.load %arg7[%c0_70, %c0_71, %c1_72, %c0_73] : memref<2x17x17x32xf32, #tpu.memory_space<vmem>>, vector<2x16x16x32xf32>
    %55 = vector.extract_strided_slice %40 {offsets = [0, 0, 0, 64], sizes = [2, 16, 16, 32], strides = [1, 1, 1, 1]} : vector<2x16x16x128xf32> to vector<2x16x16x32xf32>
    %56 = arith.addf %54, %55 : vector<2x16x16x32xf32>
    %c0_74 = arith.constant 0 : index
    %c0_75 = arith.constant 0 : index
    %c1_76 = arith.constant 1 : index
    %c0_77 = arith.constant 0 : index
    %57 = vector.load %arg7[%c0_74, %c0_75, %c1_76, %c0_77] : memref<2x17x17x32xf32, #tpu.memory_space<vmem>>, vector<2x16x16x32xf32>
    tpu.vector_store %arg7[%c0_74, %c0_75, %c1_76, %c0_77], %56 {strides = array<i32>} : memref<2x17x17x32xf32, #tpu.memory_space<vmem>>, vector<2x16x16x32xf32>,
    %c0_78 = arith.constant 0 : index
    %c0_79 = arith.constant 0 : index
    %c0_80 = arith.constant 0 : index
    %c0_81 = arith.constant 0 : index
    %58 = vector.load %arg7[%c0_78, %c0_79, %c0_80, %c0_81] : memref<2x17x17x32xf32, #tpu.memory_space<vmem>>, vector<2x16x16x32xf32>
    %59 = vector.extract_strided_slice %40 {offsets = [0, 0, 0, 96], sizes = [2, 16, 16, 32], strides = [1, 1, 1, 1]} : vector<2x16x16x128xf32> to vector<2x16x16x32xf32>
    %60 = arith.addf %58, %59 : vector<2x16x16x32xf32>
    %c0_82 = arith.constant 0 : index
    %c0_83 = arith.constant 0 : index
    %c0_84 = arith.constant 0 : index
    %c0_85 = arith.constant 0 : index
    %61 = vector.load %arg7[%c0_82, %c0_83, %c0_84, %c0_85] : memref<2x17x17x32xf32, #tpu.memory_space<vmem>>, vector<2x16x16x32xf32>
    tpu.vector_store %arg7[%c0_82, %c0_83, %c0_84, %c0_85], %60 {strides = array<i32>} : memref<2x17x17x32xf32, #tpu.memory_space<vmem>>, vector<2x16x16x32xf32>,
    %c0_86 = arith.constant 0 : index
    %c0_87 = arith.constant 0 : index
    %c0_88 = arith.constant 0 : index
    %c0_89 = arith.constant 0 : index
    %62 = vector.load %arg7[%c0_86, %c0_87, %c0_88, %c0_89] : memref<2x17x17x32xf32, #tpu.memory_space<vmem>>, vector<2x17x17x32xf32>
    %cst_90 = arith.constant 0.000000e+00 : f32
    %63 = vector.broadcast %cst_90 : f32 to vector<2x17x17x32xf32>
    %64 = arith.maximumf %62, %63 : vector<2x17x17x32xf32>
    %65 = vector.extract_strided_slice %64 {offsets = [0, 0, 0, 0], sizes = [2, 16, 16, 32], strides = [1, 1, 1, 1]} : vector<2x17x17x32xf32> to vector<2x16x16x32xf32>
    %66 = vector.extract_strided_slice %64 {offsets = [0, 1, 0, 0], sizes = [2, 16, 16, 32], strides = [1, 1, 1, 1]} : vector<2x17x17x32xf32> to vector<2x16x16x32xf32>
    %67 = arith.maximumf %65, %66 : vector<2x16x16x32xf32>
    %68 = vector.extract_strided_slice %64 {offsets = [0, 0, 1, 0], sizes = [2, 16, 16, 32], strides = [1, 1, 1, 1]} : vector<2x17x17x32xf32> to vector<2x16x16x32xf32>
    %69 = vector.extract_strided_slice %64 {offsets = [0, 1, 1, 0], sizes = [2, 16, 16, 32], strides = [1, 1, 1, 1]} : vector<2x17x17x32xf32> to vector<2x16x16x32xf32>
    %70 = arith.maximumf %68, %69 : vector<2x16x16x32xf32>
    %71 = arith.maximumf %67, %70 : vector<2x16x16x32xf32>
    %72 = arith.truncf %71 : vector<2x16x16x32xf32> to vector<2x16x16x32xbf16>
    %c0_91 = arith.constant 0 : index
    %c0_92 = arith.constant 0 : index
    %c0_93 = arith.constant 0 : index
    %c0_94 = arith.constant 0 : index
    %73 = vector.load %arg6[%c0_91, %c0_92, %c0_93, %c0_94] : memref<2x16x16x32xbf16, #tpu.memory_space<vmem>>, vector<2x16x16x32xbf16>
    tpu.vector_store %arg6[%c0_91, %c0_92, %c0_93, %c0_94], %72 {strides = array<i32>} : memref<2x16x16x32xbf16, #tpu.memory_space<vmem>>, vector<2x16x16x32xbf16>,
    return
  }
  func.func @transform_0(%arg0: i32) -> (i32, i32) {
    %c0_i32 = arith.constant 0 : i32
    %c0_i32_0 = arith.constant 0 : i32
    return %arg0, %c0_i32 : i32, i32
  }
  func.func @transform_1(%arg0: i32) -> (i32, i32) {
    %c0_i32 = arith.constant 0 : i32
    %c0_i32_0 = arith.constant 0 : i32
    %c0_i32_1 = arith.constant 0 : i32
    return %c0_i32, %c0_i32_0 : i32, i32
  }
  func.func @transform_2(%arg0: i32) -> (i32, i32) {
    %c0_i32 = arith.constant 0 : i32
    %c0_i32_0 = arith.constant 0 : i32
    %c0_i32_1 = arith.constant 0 : i32
    return %c0_i32, %c0_i32_0 : i32, i32
  }
  func.func @transform_3(%arg0: i32) -> (i32, i32) {
    %c0_i32 = arith.constant 0 : i32
    %c0_i32_0 = arith.constant 0 : i32
    %c0_i32_1 = arith.constant 0 : i32
    return %c0_i32, %c0_i32_0 : i32, i32
  }
  func.func @transform_4(%arg0: i32) -> (i32, i32) {
    %c0_i32 = arith.constant 0 : i32
    %c0_i32_0 = arith.constant 0 : i32
    %c0_i32_1 = arith.constant 0 : i32
    return %c0_i32, %c0_i32_0 : i32, i32
  }
  func.func @transform_5(%arg0: i32) -> (i32, i32, i32, i32) {
    %c0_i32 = arith.constant 0 : i32
    %c0_i32_0 = arith.constant 0 : i32
    %c0_i32_1 = arith.constant 0 : i32
    %c0_i32_2 = arith.constant 0 : i32
    return %arg0, %c0_i32, %c0_i32_0, %c0_i32_1 : i32, i32, i32, i32
  }
}

module attributes {stable_mosaic.version = 11 : i64} {
  func.func @mlp_kernel(%arg0: memref<2x8192xbf16, #tpu.memory_space<vmem>>, %arg1: memref<8192x32xbf16, #tpu.memory_space<vmem>>, %arg2: memref<1x32xf32, #tpu.memory_space<vmem>>, %arg3: memref<32x16xbf16, #tpu.memory_space<vmem>>, %arg4: memref<1x16xf32, #tpu.memory_space<vmem>>, %arg5: memref<16x128xbf16, #tpu.memory_space<vmem>>, %arg6: memref<1x128xf32, #tpu.memory_space<vmem>>, %arg7: memref<2x128xf32, #tpu.memory_space<vmem>>) attributes {dimension_semantics = [], scalar_prefetch = 0 : i64, scratch_operands = 0 : i64, tpu.core_type = #tpu.core_type<tc>} {
    %c0 = arith.constant 0 : index
    %c0_0 = arith.constant 0 : index
    %0 = vector.load %arg0[%c0, %c0_0] : memref<2x8192xbf16, #tpu.memory_space<vmem>>, vector<2x8192xbf16>
    %c0_1 = arith.constant 0 : index
    %c0_2 = arith.constant 0 : index
    %1 = vector.load %arg1[%c0_1, %c0_2] : memref<8192x32xbf16, #tpu.memory_space<vmem>>, vector<8192x32xbf16>
    %cst = arith.constant dense<0.000000e+00> : vector<2x32xf32>
    %2 = tpu.matmul %0, %1, %cst {dimension_numbers = #tpu.dot_dimension_numbers<[1], [0], [0], [1], [0, 0, 1, 1], [], []>} : vector<2x8192xbf16>, vector<8192x32xbf16>, vector<2x32xf32> -> vector<2x32xf32>
    %c0_3 = arith.constant 0 : index
    %c0_4 = arith.constant 0 : index
    %3 = vector.load %arg2[%c0_3, %c0_4] : memref<1x32xf32, #tpu.memory_space<vmem>>, vector<1x32xf32>
    %4 = vector.broadcast %3 : vector<1x32xf32> to vector<2x32xf32>
    %5 = arith.addf %2, %4 : vector<2x32xf32>
    %cst_5 = arith.constant 0.000000e+00 : f32
    %6 = vector.broadcast %cst_5 : f32 to vector<2x32xf32>
    %7 = arith.maximumf %5, %6 : vector<2x32xf32>
    %8 = arith.truncf %7 : vector<2x32xf32> to vector<2x32xbf16>
    %c0_6 = arith.constant 0 : index
    %c0_7 = arith.constant 0 : index
    %9 = vector.load %arg3[%c0_6, %c0_7] : memref<32x16xbf16, #tpu.memory_space<vmem>>, vector<32x16xbf16>
    %cst_8 = arith.constant dense<0.000000e+00> : vector<2x16xf32>
    %10 = tpu.matmul %8, %9, %cst_8 {dimension_numbers = #tpu.dot_dimension_numbers<[1], [0], [0], [1], [0, 0, 1, 1], [], []>} : vector<2x32xbf16>, vector<32x16xbf16>, vector<2x16xf32> -> vector<2x16xf32>
    %c0_9 = arith.constant 0 : index
    %c0_10 = arith.constant 0 : index
    %11 = vector.load %arg4[%c0_9, %c0_10] : memref<1x16xf32, #tpu.memory_space<vmem>>, vector<1x16xf32>
    %12 = vector.broadcast %11 : vector<1x16xf32> to vector<2x16xf32>
    %13 = arith.addf %10, %12 : vector<2x16xf32>
    %cst_11 = arith.constant 0.000000e+00 : f32
    %14 = vector.broadcast %cst_11 : f32 to vector<2x16xf32>
    %15 = arith.maximumf %13, %14 : vector<2x16xf32>
    %16 = arith.truncf %15 : vector<2x16xf32> to vector<2x16xbf16>
    %c0_12 = arith.constant 0 : index
    %c0_13 = arith.constant 0 : index
    %17 = vector.load %arg5[%c0_12, %c0_13] : memref<16x128xbf16, #tpu.memory_space<vmem>>, vector<16x128xbf16>
    %cst_14 = arith.constant dense<0.000000e+00> : vector<2x128xf32>
    %18 = tpu.matmul %16, %17, %cst_14 {dimension_numbers = #tpu.dot_dimension_numbers<[1], [0], [0], [1], [0, 0, 1, 1], [], []>} : vector<2x16xbf16>, vector<16x128xbf16>, vector<2x128xf32> -> vector<2x128xf32>
    %c0_15 = arith.constant 0 : index
    %c0_16 = arith.constant 0 : index
    %19 = vector.load %arg6[%c0_15, %c0_16] : memref<1x128xf32, #tpu.memory_space<vmem>>, vector<1x128xf32>
    %20 = vector.broadcast %19 : vector<1x128xf32> to vector<2x128xf32>
    %21 = arith.addf %18, %20 : vector<2x128xf32>
    %c0_17 = arith.constant 0 : index
    %c0_18 = arith.constant 0 : index
    %22 = vector.load %arg7[%c0_17, %c0_18] : memref<2x128xf32, #tpu.memory_space<vmem>>, vector<2x128xf32>
    tpu.vector_store %arg7[%c0_17, %c0_18], %21 {strides = array<i32>} : memref<2x128xf32, #tpu.memory_space<vmem>>, vector<2x128xf32>,
    return
  }
}

</mosaic_0001>

<llo_original>
// kernel: currency_model_forward.3
$region0: #{currency_model_forward.3}
  #allocation0 [shape = 'u32[]', space=smem, size = 0x4, offset = 0x4, fixed_abs, tag = 'smem constant byte address 0x4 - core index']
  #allocation1 [shape = 'u32[72,128]{1,0:T(1,128)}', space=vmem, size = 0x9000, scoped, tag = 'internal scratch']
  %s0 = inlined_call_operand.vmem [shape: bf16[2,8192], index: 0, kind: input, shape index: {}]
  %s1 = inlined_call_operand.vmem [shape: bf16[8192,32], index: 1, kind: input, shape index: {}]
  %s2 = inlined_call_operand.vmem [shape: f32[1,32], index: 2, kind: input, shape index: {}]
  %s3 = inlined_call_operand.vmem [shape: bf16[32,16], index: 3, kind: input, shape index: {}]
  %s4 = inlined_call_operand.vmem [shape: f32[1,16], index: 4, kind: input, shape index: {}]
  %s5 = inlined_call_operand.vmem [shape: bf16[16,128], index: 5, kind: input, shape index: {}]
  %s6 = inlined_call_operand.vmem [shape: f32[1,128], index: 6, kind: input, shape index: {}]
  %s7 = inlined_call_operand.hbm [shape: f32[2,128], index: 7, kind: output, shape index: {}]
  %s8 = sld [smem:[#allocation0]]
  $region38: #{currency_model_forward.3} parent=0
    _
  %s10 = ssub.s32 1, %s8
  %s11 = scalar_select 0, %s10, %s8
  $region1: #{currency_model_forward.3} parent=0
    #allocation2 [shape = 'u8[1024]{0}', space=vmem, size = 0x400, scoped, tag = 'output window, operand 0, single buffered']
    #allocation3 [shape = 's32[1]{0}', space=sflag, size = 0x4, scoped, tag = 'scoped memory for currency_model_forward.3']
    %12 = vsyncpa [#allocation3], 0
    // Predicated region
    $region2: #{currency_model_forward.3} parent=1 // pred_check
      _
    $region3: #{currency_model_forward.3} parent=1 // pred_check_branch
      %14 = sbr.rel (0) target = $region5
    $region4: #{currency_model_forward.3} parent=1 // pred_region
      _
    $region5: #{currency_model_forward.3} parent=1 // pred_fallthru
      _
    // Predicated region
    $region6: #{currency_model_forward.3} parent=1 // pred_check
      _
    $region7: #{currency_model_forward.3} parent=1 // pred_check_branch
      %16 = sbr.rel (0) target = $region9
    $region8: #{currency_model_forward.3} parent=1 // pred_region
      _
    $region9: #{currency_model_forward.3} parent=1 // pred_fallthru
      _
    // Predicated region
    $region10: #{currency_model_forward.3} parent=1 // pred_check
      _
    $region11: #{currency_model_forward.3} parent=1 // pred_check_branch
      %18 = sbr.rel (0) target = $region13
    $region12: #{currency_model_forward.3} parent=1 // pred_region
      _
    $region13: #{currency_model_forward.3} parent=1 // pred_fallthru
      _
    // Predicated region
    $region14: #{currency_model_forward.3} parent=1 // pred_check
      _
    $region15: #{currency_model_forward.3} parent=1 // pred_check_branch
      %20 = sbr.rel (0) target = $region17
    $region16: #{currency_model_forward.3} parent=1 // pred_region
      _
    $region17: #{currency_model_forward.3} parent=1 // pred_fallthru
      _
    // Predicated region
    $region18: #{currency_model_forward.3} parent=1 // pred_check
      _
    $region19: #{currency_model_forward.3} parent=1 // pred_check_branch
      %22 = sbr.rel (0) target = $region21
    $region20: #{currency_model_forward.3} parent=1 // pred_region
      _
    $region21: #{currency_model_forward.3} parent=1 // pred_fallthru
      _
    // Predicated region
    $region22: #{currency_model_forward.3} parent=1 // pred_check
      _
    $region23: #{currency_model_forward.3} parent=1 // pred_check_branch
      %24 = sbr.rel (0) target = $region25
    $region24: #{currency_model_forward.3} parent=1 // pred_region
      _
    $region25: #{currency_model_forward.3} parent=1 // pred_fallthru
      _
    // Predicated region
    $region26: #{currency_model_forward.3} parent=1 // pred_check
      _
    $region27: #{currency_model_forward.3} parent=1 // pred_check_branch
      %26 = sbr.rel (0) target = $region29
    $region28: #{currency_model_forward.3} parent=1 // pred_region
      _
    $region29: #{currency_model_forward.3} parent=1 // pred_fallthru
      _
    %v28 = vld [vmem:[%s0] sm:$0xff]
    %v29 = vld [vmem:[%s0 + $0x8] sm:$0xff]
    %v30 = vld [vmem:[%s0 + $0x10] sm:$0xff]
    %v31 = vld [vmem:[%s0 + $0x18] sm:$0xff]
    %v32 = vld [vmem:[%s0 + $0x20] sm:$0xff]
    %v33 = vld [vmem:[%s0 + $0x28] sm:$0xff]
    %v34 = vld [vmem:[%s0 + $0x30] sm:$0xff]
    %v35 = vld [vmem:[%s0 + $0x38] sm:$0xff]
    %v36 = vld [vmem:[%s1] sm:$0xf]
    %v37 = vld [vmem:[%s1 + $0x4] sm:$0xf]
    %v38 = vld [vmem:[%s1 + $0x8] sm:$0xf]
    %v39 = vld [vmem:[%s1 + $0xc] sm:$0xf]
    %v40 = vld [vmem:[%s1 + $0x10] sm:$0xf]
    %v41 = vld [vmem:[%s1 + $0x14] sm:$0xf]
    %v42 = vld [vmem:[%s1 + $0x18] sm:$0xf]
    %v43 = vld [vmem:[%s1 + $0x1c] sm:$0xf]
    %v44 = vld [vmem:[%s1 + $0x20] sm:$0xf]
    %v45 = vld [vmem:[%s1 + $0x24] sm:$0xf]
    %v46 = vld [vmem:[%s1 + $0x28] sm:$0xf]
    %v47 = vld [vmem:[%s1 + $0x2c] sm:$0xf]
    %v48 = vld [vmem:[%s1 + $0x30] sm:$0xf]
    %v49 = vld [vmem:[%s1 + $0x34] sm:$0xf]
    %v50 = vld [vmem:[%s1 + $0x38] sm:$0xf]
    %v51 = vld [vmem:[%s1 + $0x3c] sm:$0xf]
    %v52 = vld [vmem:[%s1 + $0x40] sm:$0xf]
    %v53 = vld [vmem:[%s1 + $0x44] sm:$0xf]
    %v54 = vld [vmem:[%s1 + $0x48] sm:$0xf]
    %v55 = vld [vmem:[%s1 + $0x4c] sm:$0xf]
    %v56 = vld [vmem:[%s1 + $0x50] sm:$0xf]
    %v57 = vld [vmem:[%s1 + $0x54] sm:$0xf]
    %v58 = vld [vmem:[%s1 + $0x58] sm:$0xf]
    %v59 = vld [vmem:[%s1 + $0x5c] sm:$0xf]
    %v60 = vld [vmem:[%s1 + $0x60] sm:$0xf]
    %v61 = vld [vmem:[%s1 + $0x64] sm:$0xf]
    %v62 = vld [vmem:[%s1 + $0x68] sm:$0xf]
    %v63 = vld [vmem:[%s1 + $0x6c] sm:$0xf]
    %v64 = vld [vmem:[%s1 + $0x70] sm:$0xf]
    %v65 = vld [vmem:[%s1 + $0x74] sm:$0xf]
    %v66 = vld [vmem:[%s1 + $0x78] sm:$0xf]
    %v67 = vld [vmem:[%s1 + $0x7c] sm:$0xf]
    %v68 = vld [vmem:[%s1 + $0x80] sm:$0xf]
    %v69 = vld [vmem:[%s1 + $0x84] sm:$0xf]
    %v70 = vld [vmem:[%s1 + $0x88] sm:$0xf]
    %v71 = vld [vmem:[%s1 + $0x8c] sm:$0xf]
    %v72 = vld [vmem:[%s1 + $0x90] sm:$0xf]
    %v73 = vld [vmem:[%s1 + $0x94] sm:$0xf]
    %v74 = vld [vmem:[%s1 + $0x98] sm:$0xf]
    %v75 = vld [vmem:[%s1 + $0x9c] sm:$0xf]
    %v76 = vld [vmem:[%s1 + $0xa0] sm:$0xf]
    %v77 = vld [vmem:[%s1 + $0xa4] sm:$0xf]
    %v78 = vld [vmem:[%s1 + $0xa8] sm:$0xf]
    %v79 = vld [vmem:[%s1 + $0xac] sm:$0xf]
    %v80 = vld [vmem:[%s1 + $0xb0] sm:$0xf]
    %v81 = vld [vmem:[%s1 + $0xb4] sm:$0xf]
    %v82 = vld [vmem:[%s1 + $0xb8] sm:$0xf]
    %v83 = vld [vmem:[%s1 + $0xbc] sm:$0xf]
    %v84 = vld [vmem:[%s1 + $0xc0] sm:$0xf]
    %v85 = vld [vmem:[%s1 + $0xc4] sm:$0xf]
    %v86 = vld [vmem:[%s1 + $0xc8] sm:$0xf]
    %v87 = vld [vmem:[%s1 + $0xcc] sm:$0xf]
    %v88 = vld [vmem:[%s1 + $0xd0] sm:$0xf]
    %v89 = vld [vmem:[%s1 + $0xd4] sm:$0xf]
    %v90 = vld [vmem:[%s1 + $0xd8] sm:$0xf]
    %v91 = vld [vmem:[%s1 + $0xdc] sm:$0xf]
    %v92 = vld [vmem:[%s1 + $0xe0] sm:$0xf]
    %v93 = vld [vmem:[%s1 + $0xe4] sm:$0xf]
    %v94 = vld [vmem:[%s1 + $0xe8] sm:$0xf]
    %v95 = vld [vmem:[%s1 + $0xec] sm:$0xf]
    %v96 = vld [vmem:[%s1 + $0xf0] sm:$0xf]
    %v97 = vld [vmem:[%s1 + $0xf4] sm:$0xf]
    %v98 = vld [vmem:[%s1 + $0xf8] sm:$0xf]
    %v99 = vld [vmem:[%s1 + $0xfc] sm:$0xf]
    %v100 = vld [vmem:[%s1 + $0x100] sm:$0xf]
    %v101 = vld [vmem:[%s1 + $0x104] sm:$0xf]
    %v102 = vld [vmem:[%s1 + $0x108] sm:$0xf]
    %v103 = vld [vmem:[%s1 + $0x10c] sm:$0xf]
    %v104 = vld [vmem:[%s1 + $0x110] sm:$0xf]
    %v105 = vld [vmem:[%s1 + $0x114] sm:$0xf]
    %v106 = vld [vmem:[%s1 + $0x118] sm:$0xf]
    %v107 = vld [vmem:[%s1 + $0x11c] sm:$0xf]
    %v108 = vld [vmem:[%s1 + $0x120] sm:$0xf]
    %v109 = vld [vmem:[%s1 + $0x124] sm:$0xf]
    %v110 = vld [vmem:[%s1 + $0x128] sm:$0xf]
    %v111 = vld [vmem:[%s1 + $0x12c] sm:$0xf]
    %v112 = vld [vmem:[%s1 + $0x130] sm:$0xf]
    %v113 = vld [vmem:[%s1 + $0x134] sm:$0xf]
    %v114 = vld [vmem:[%s1 + $0x138] sm:$0xf]
    %v115 = vld [vmem:[%s1 + $0x13c] sm:$0xf]
    %v116 = vld [vmem:[%s1 + $0x140] sm:$0xf]
    %v117 = vld [vmem:[%s1 + $0x144] sm:$0xf]
    %v118 = vld [vmem:[%s1 + $0x148] sm:$0xf]
    %v119 = vld [vmem:[%s1 + $0x14c] sm:$0xf]
    %v120 = vld [vmem:[%s1 + $0x150] sm:$0xf]
    %v121 = vld [vmem:[%s1 + $0x154] sm:$0xf]
    %v122 = vld [vmem:[%s1 + $0x158] sm:$0xf]
    %v123 = vld [vmem:[%s1 + $0x15c] sm:$0xf]
    %v124 = vld [vmem:[%s1 + $0x160] sm:$0xf]
    %v125 = vld [vmem:[%s1 + $0x164] sm:$0xf]
    %v126 = vld [vmem:[%s1 + $0x168] sm:$0xf]
    %v127 = vld [vmem:[%s1 + $0x16c] sm:$0xf]
    %v128 = vld [vmem:[%s1 + $0x170] sm:$0xf]
    %v129 = vld [vmem:[%s1 + $0x174] sm:$0xf]
    %v130 = vld [vmem:[%s1 + $0x178] sm:$0xf]
    %v131 = vld [vmem:[%s1 + $0x17c] sm:$0xf]
    %v132 = vld [vmem:[%s1 + $0x180] sm:$0xf]
    %v133 = vld [vmem:[%s1 + $0x184] sm:$0xf]
    %v134 = vld [vmem:[%s1 + $0x188] sm:$0xf]
    %v135 = vld [vmem:[%s1 + $0x18c] sm:$0xf]
    %v136 = vld [vmem:[%s1 + $0x190] sm:$0xf]
    %v137 = vld [vmem:[%s1 + $0x194] sm:$0xf]
    %v138 = vld [vmem:[%s1 + $0x198] sm:$0xf]
    %v139 = vld [vmem:[%s1 + $0x19c] sm:$0xf]
    %v140 = vld [vmem:[%s1 + $0x1a0] sm:$0xf]
    %v141 = vld [vmem:[%s1 + $0x1a4] sm:$0xf]
    %v142 = vld [vmem:[%s1 + $0x1a8] sm:$0xf]
    %v143 = vld [vmem:[%s1 + $0x1ac] sm:$0xf]
    %v144 = vld [vmem:[%s1 + $0x1b0] sm:$0xf]
    %v145 = vld [vmem:[%s1 + $0x1b4] sm:$0xf]
    %v146 = vld [vmem:[%s1 + $0x1b8] sm:$0xf]
    %v147 = vld [vmem:[%s1 + $0x1bc] sm:$0xf]
    %v148 = vld [vmem:[%s1 + $0x1c0] sm:$0xf]
    %v149 = vld [vmem:[%s1 + $0x1c4] sm:$0xf]
    %v150 = vld [vmem:[%s1 + $0x1c8] sm:$0xf]
    %v151 = vld [vmem:[%s1 + $0x1cc] sm:$0xf]
    %v152 = vld [vmem:[%s1 + $0x1d0] sm:$0xf]
    %v153 = vld [vmem:[%s1 + $0x1d4] sm:$0xf]
    %v154 = vld [vmem:[%s1 + $0x1d8] sm:$0xf]
    %v155 = vld [vmem:[%s1 + $0x1dc] sm:$0xf]
    %v156 = vld [vmem:[%s1 + $0x1e0] sm:$0xf]
    %v157 = vld [vmem:[%s1 + $0x1e4] sm:$0xf]
    %v158 = vld [vmem:[%s1 + $0x1e8] sm:$0xf]
    %v159 = vld [vmem:[%s1 + $0x1ec] sm:$0xf]
    %v160 = vld [vmem:[%s1 + $0x1f0] sm:$0xf]
    %v161 = vld [vmem:[%s1 + $0x1f4] sm:$0xf]
    %v162 = vld [vmem:[%s1 + $0x1f8] sm:$0xf]
    %v163 = vld [vmem:[%s1 + $0x1fc] sm:$0xf]
    %v164 = vld [vmem:[%s1 + $0x200] sm:$0xf]
    %v165 = vld [vmem:[%s1 + $0x204] sm:$0xf]
    %v166 = vld [vmem:[%s1 + $0x208] sm:$0xf]
    %v167 = vld [vmem:[%s1 + $0x20c] sm:$0xf]
    %v168 = vld [vmem:[%s1 + $0x210] sm:$0xf]
    %v169 = vld [vmem:[%s1 + $0x214] sm:$0xf]
    %v170 = vld [vmem:[%s1 + $0x218] sm:$0xf]
    %v171 = vld [vmem:[%s1 + $0x21c] sm:$0xf]
    %v172 = vld [vmem:[%s1 + $0x220] sm:$0xf]
    %v173 = vld [vmem:[%s1 + $0x224] sm:$0xf]
    %v174 = vld [vmem:[%s1 + $0x228] sm:$0xf]
    %v175 = vld [vmem:[%s1 + $0x22c] sm:$0xf]
    %v176 = vld [vmem:[%s1 + $0x230] sm:$0xf]
    %v177 = vld [vmem:[%s1 + $0x234] sm:$0xf]
    %v178 = vld [vmem:[%s1 + $0x238] sm:$0xf]
    %v179 = vld [vmem:[%s1 + $0x23c] sm:$0xf]
    %v180 = vld [vmem:[%s1 + $0x240] sm:$0xf]
    %v181 = vld [vmem:[%s1 + $0x244] sm:$0xf]
    %v182 = vld [vmem:[%s1 + $0x248] sm:$0xf]
    %v183 = vld [vmem:[%s1 + $0x24c] sm:$0xf]
    %v184 = vld [vmem:[%s1 + $0x250] sm:$0xf]
    %v185 = vld [vmem:[%s1 + $0x254] sm:$0xf]
    %v186 = vld [vmem:[%s1 + $0x258] sm:$0xf]
    %v187 = vld [vmem:[%s1 + $0x25c] sm:$0xf]
    %v188 = vld [vmem:[%s1 + $0x260] sm:$0xf]
    %v189 = vld [vmem:[%s1 + $0x264] sm:$0xf]
    %v190 = vld [vmem:[%s1 + $0x268] sm:$0xf]
    %v191 = vld [vmem:[%s1 + $0x26c] sm:$0xf]
    %v192 = vld [vmem:[%s1 + $0x270] sm:$0xf]
    %v193 = vld [vmem:[%s1 + $0x274] sm:$0xf]
    %v194 = vld [vmem:[%s1 + $0x278] sm:$0xf]
    %v195 = vld [vmem:[%s1 + $0x27c] sm:$0xf]
    %v196 = vld [vmem:[%s1 + $0x280] sm:$0xf]
    %v197 = vld [vmem:[%s1 + $0x284] sm:$0xf]
    %v198 = vld [vmem:[%s1 + $0x288] sm:$0xf]
    %v199 = vld [vmem:[%s1 + $0x28c] sm:$0xf]
    %v200 = vld [vmem:[%s1 + $0x290] sm:$0xf]
    %v201 = vld [vmem:[%s1 + $0x294] sm:$0xf]
    %v202 = vld [vmem:[%s1 + $0x298] sm:$0xf]
    %v203 = vld [vmem:[%s1 + $0x29c] sm:$0xf]
    %v204 = vld [vmem:[%s1 + $0x2a0] sm:$0xf]
    %v205 = vld [vmem:[%s1 + $0x2a4] sm:$0xf]
    %v206 = vld [vmem:[%s1 + $0x2a8] sm:$0xf]
    %v207 = vld [vmem:[%s1 + $0x2ac] sm:$0xf]
    %v208 = vld [vmem:[%s1 + $0x2b0] sm:$0xf]
    %v209 = vld [vmem:[%s1 + $0x2b4] sm:$0xf]
    %v210 = vld [vmem:[%s1 + $0x2b8] sm:$0xf]
    %v211 = vld [vmem:[%s1 + $0x2bc] sm:$0xf]
    %v212 = vld [vmem:[%s1 + $0x2c0] sm:$0xf]
    %v213 = vld [vmem:[%s1 + $0x2c4] sm:$0xf]
    %v214 = vld [vmem:[%s1 + $0x2c8] sm:$0xf]
    %v215 = vld [vmem:[%s1 + $0x2cc] sm:$0xf]
    %v216 = vld [vmem:[%s1 + $0x2d0] sm:$0xf]
    %v217 = vld [vmem:[%s1 + $0x2d4] sm:$0xf]
    %v218 = vld [vmem:[%s1 + $0x2d8] sm:$0xf]
    %v219 = vld [vmem:[%s1 + $0x2dc] sm:$0xf]
    %v220 = vld [vmem:[%s1 + $0x2e0] sm:$0xf]
    %v221 = vld [vmem:[%s1 + $0x2e4] sm:$0xf]
    %v222 = vld [vmem:[%s1 + $0x2e8] sm:$0xf]
    %v223 = vld [vmem:[%s1 + $0x2ec] sm:$0xf]
    %v224 = vld [vmem:[%s1 + $0x2f0] sm:$0xf]
    %v225 = vld [vmem:[%s1 + $0x2f4] sm:$0xf]
    %v226 = vld [vmem:[%s1 + $0x2f8] sm:$0xf]
    %v227 = vld [vmem:[%s1 + $0x2fc] sm:$0xf]
    %v228 = vld [vmem:[%s1 + $0x300] sm:$0xf]
    %v229 = vld [vmem:[%s1 + $0x304] sm:$0xf]
    %v230 = vld [vmem:[%s1 + $0x308] sm:$0xf]
    %v231 = vld [vmem:[%s1 + $0x30c] sm:$0xf]
    %v232 = vld [vmem:[%s1 + $0x310] sm:$0xf]
    %v233 = vld [vmem:[%s1 + $0x314] sm:$0xf]
    %v234 = vld [vmem:[%s1 + $0x318] sm:$0xf]
    %v235 = vld [vmem:[%s1 + $0x31c] sm:$0xf]
    %v236 = vld [vmem:[%s1 + $0x320] sm:$0xf]
    %v237 = vld [vmem:[%s1 + $0x324] sm:$0xf]
    %v238 = vld [vmem:[%s1 + $0x328] sm:$0xf]
    %v239 = vld [vmem:[%s1 + $0x32c] sm:$0xf]
    %v240 = vld [vmem:[%s1 + $0x330] sm:$0xf]
    %v241 = vld [vmem:[%s1 + $0x334] sm:$0xf]
    %v242 = vld [vmem:[%s1 + $0x338] sm:$0xf]
    %v243 = vld [vmem:[%s1 + $0x33c] sm:$0xf]
    %v244 = vld [vmem:[%s1 + $0x340] sm:$0xf]
    %v245 = vld [vmem:[%s1 + $0x344] sm:$0xf]
    %v246 = vld [vmem:[%s1 + $0x348] sm:$0xf]
    %v247 = vld [vmem:[%s1 + $0x34c] sm:$0xf]
    %v248 = vld [vmem:[%s1 + $0x350] sm:$0xf]
    %v249 = vld [vmem:[%s1 + $0x354] sm:$0xf]
    %v250 = vld [vmem:[%s1 + $0x358] sm:$0xf]
    %v251 = vld [vmem:[%s1 + $0x35c] sm:$0xf]
    %v252 = vld [vmem:[%s1 + $0x360] sm:$0xf]
    %v253 = vld [vmem:[%s1 + $0x364] sm:$0xf]
    %v254 = vld [vmem:[%s1 + $0x368] sm:$0xf]
    %v255 = vld [vmem:[%s1 + $0x36c] sm:$0xf]
    %v256 = vld [vmem:[%s1 + $0x370] sm:$0xf]
    %v257 = vld [vmem:[%s1 + $0x374] sm:$0xf]
    %v258 = vld [vmem:[%s1 + $0x378] sm:$0xf]
    %v259 = vld [vmem:[%s1 + $0x37c] sm:$0xf]
    %v260 = vld [vmem:[%s1 + $0x380] sm:$0xf]
    %v261 = vld [vmem:[%s1 + $0x384] sm:$0xf]
    %v262 = vld [vmem:[%s1 + $0x388] sm:$0xf]
    %v263 = vld [vmem:[%s1 + $0x38c] sm:$0xf]
    %v264 = vld [vmem:[%s1 + $0x390] sm:$0xf]
    %v265 = vld [vmem:[%s1 + $0x394] sm:$0xf]
    %v266 = vld [vmem:[%s1 + $0x398] sm:$0xf]
    %v267 = vld [vmem:[%s1 + $0x39c] sm:$0xf]
    %v268 = vld [vmem:[%s1 + $0x3a0] sm:$0xf]
    %v269 = vld [vmem:[%s1 + $0x3a4] sm:$0xf]
    %v270 = vld [vmem:[%s1 + $0x3a8] sm:$0xf]
    %v271 = vld [vmem:[%s1 + $0x3ac] sm:$0xf]
    %v272 = vld [vmem:[%s1 + $0x3b0] sm:$0xf]
    %v273 = vld [vmem:[%s1 + $0x3b4] sm:$0xf]
    %v274 = vld [vmem:[%s1 + $0x3b8] sm:$0xf]
    %v275 = vld [vmem:[%s1 + $0x3bc] sm:$0xf]
    %v276 = vld [vmem:[%s1 + $0x3c0] sm:$0xf]
    %v277 = vld [vmem:[%s1 + $0x3c4] sm:$0xf]
    %v278 = vld [vmem:[%s1 + $0x3c8] sm:$0xf]
    %v279 = vld [vmem:[%s1 + $0x3cc] sm:$0xf]
    %v280 = vld [vmem:[%s1 + $0x3d0] sm:$0xf]
    %v281 = vld [vmem:[%s1 + $0x3d4] sm:$0xf]
    %v282 = vld [vmem:[%s1 + $0x3d8] sm:$0xf]
    %v283 = vld [vmem:[%s1 + $0x3dc] sm:$0xf]
    %v284 = vld [vmem:[%s1 + $0x3e0] sm:$0xf]
    %v285 = vld [vmem:[%s1 + $0x3e4] sm:$0xf]
    %v286 = vld [vmem:[%s1 + $0x3e8] sm:$0xf]
    %v287 = vld [vmem:[%s1 + $0x3ec] sm:$0xf]
    %v288 = vld [vmem:[%s1 + $0x3f0] sm:$0xf]
    %v289 = vld [vmem:[%s1 + $0x3f4] sm:$0xf]
    %v290 = vld [vmem:[%s1 + $0x3f8] sm:$0xf]
    %v291 = vld [vmem:[%s1 + $0x3fc] sm:$0xf]
    %v292 = vld [vmem:[%s1 + $0x400] sm:$0xf]
    %v293 = vld [vmem:[%s1 + $0x404] sm:$0xf]
    %v294 = vld [vmem:[%s1 + $0x408] sm:$0xf]
    %v295 = vld [vmem:[%s1 + $0x40c] sm:$0xf]
    %v296 = vld [vmem:[%s1 + $0x410] sm:$0xf]
    %v297 = vld [vmem:[%s1 + $0x414] sm:$0xf]
    %v298 = vld [vmem:[%s1 + $0x418] sm:$0xf]
    %v299 = vld [vmem:[%s1 + $0x41c] sm:$0xf]
    %v300 = vld [vmem:[%s1 + $0x420] sm:$0xf]
    %v301 = vld [vmem:[%s1 + $0x424] sm:$0xf]
    %v302 = vld [vmem:[%s1 + $0x428] sm:$0xf]
    %v303 = vld [vmem:[%s1 + $0x42c] sm:$0xf]
    %v304 = vld [vmem:[%s1 + $0x430] sm:$0xf]
    %v305 = vld [vmem:[%s1 + $0x434] sm:$0xf]
    %v306 = vld [vmem:[%s1 + $0x438] sm:$0xf]
    %v307 = vld [vmem:[%s1 + $0x43c] sm:$0xf]
    %v308 = vld [vmem:[%s1 + $0x440] sm:$0xf]
    %v309 = vld [vmem:[%s1 + $0x444] sm:$0xf]
    %v310 = vld [vmem:[%s1 + $0x448] sm:$0xf]
    %v311 = vld [vmem:[%s1 + $0x44c] sm:$0xf]
    %v312 = vld [vmem:[%s1 + $0x450] sm:$0xf]
    %v313 = vld [vmem:[%s1 + $0x454] sm:$0xf]
    %v314 = vld [vmem:[%s1 + $0x458] sm:$0xf]
    %v315 = vld [vmem:[%s1 + $0x45c] sm:$0xf]
    %v316 = vld [vmem:[%s1 + $0x460] sm:$0xf]
    %v317 = vld [vmem:[%s1 + $0x464] sm:$0xf]
    %v318 = vld [vmem:[%s1 + $0x468] sm:$0xf]
    %v319 = vld [vmem:[%s1 + $0x46c] sm:$0xf]
    %v320 = vld [vmem:[%s1 + $0x470] sm:$0xf]
    %v321 = vld [vmem:[%s1 + $0x474] sm:$0xf]
    %v322 = vld [vmem:[%s1 + $0x478] sm:$0xf]
    %v323 = vld [vmem:[%s1 + $0x47c] sm:$0xf]
    %v324 = vld [vmem:[%s1 + $0x480] sm:$0xf]
    %v325 = vld [vmem:[%s1 + $0x484] sm:$0xf]
    %v326 = vld [vmem:[%s1 + $0x488] sm:$0xf]
    %v327 = vld [vmem:[%s1 + $0x48c] sm:$0xf]
    %v328 = vld [vmem:[%s1 + $0x490] sm:$0xf]
    %v329 = vld [vmem:[%s1 + $0x494] sm:$0xf]
    %v330 = vld [vmem:[%s1 + $0x498] sm:$0xf]
    %v331 = vld [vmem:[%s1 + $0x49c] sm:$0xf]
    %v332 = vld [vmem:[%s1 + $0x4a0] sm:$0xf]
    %v333 = vld [vmem:[%s1 + $0x4a4] sm:$0xf]
    %v334 = vld [vmem:[%s1 + $0x4a8] sm:$0xf]
    %v335 = vld [vmem:[%s1 + $0x4ac] sm:$0xf]
    %v336 = vld [vmem:[%s1 + $0x4b0] sm:$0xf]
    %v337 = vld [vmem:[%s1 + $0x4b4] sm:$0xf]
    %v338 = vld [vmem:[%s1 + $0x4b8] sm:$0xf]
    %v339 = vld [vmem:[%s1 + $0x4bc] sm:$0xf]
    %v340 = vld [vmem:[%s1 + $0x4c0] sm:$0xf]
    %v341 = vld [vmem:[%s1 + $0x4c4] sm:$0xf]
    %v342 = vld [vmem:[%s1 + $0x4c8] sm:$0xf]
    %v343 = vld [vmem:[%s1 + $0x4cc] sm:$0xf]
    %v344 = vld [vmem:[%s1 + $0x4d0] sm:$0xf]
    %v345 = vld [vmem:[%s1 + $0x4d4] sm:$0xf]
    %v346 = vld [vmem:[%s1 + $0x4d8] sm:$0xf]
    %v347 = vld [vmem:[%s1 + $0x4dc] sm:$0xf]
    %v348 = vld [vmem:[%s1 + $0x4e0] sm:$0xf]
    %v349 = vld [vmem:[%s1 + $0x4e4] sm:$0xf]
    %v350 = vld [vmem:[%s1 + $0x4e8] sm:$0xf]
    %v351 = vld [vmem:[%s1 + $0x4ec] sm:$0xf]
    %v352 = vld [vmem:[%s1 + $0x4f0] sm:$0xf]
    %v353 = vld [vmem:[%s1 + $0x4f4] sm:$0xf]
    %v354 = vld [vmem:[%s1 + $0x4f8] sm:$0xf]
    %v355 = vld [vmem:[%s1 + $0x4fc] sm:$0xf]
    %v356 = vld [vmem:[%s1 + $0x500] sm:$0xf]
    %v357 = vld [vmem:[%s1 + $0x504] sm:$0xf]
    %v358 = vld [vmem:[%s1 + $0x508] sm:$0xf]
    %v359 = vld [vmem:[%s1 + $0x50c] sm:$0xf]
    %v360 = vld [vmem:[%s1 + $0x510] sm:$0xf]
    %v361 = vld [vmem:[%s1 + $0x514] sm:$0xf]
    %v362 = vld [vmem:[%s1 + $0x518] sm:$0xf]
    %v363 = vld [vmem:[%s1 + $0x51c] sm:$0xf]
    %v364 = vld [vmem:[%s1 + $0x520] sm:$0xf]
    %v365 = vld [vmem:[%s1 + $0x524] sm:$0xf]
    %v366 = vld [vmem:[%s1 + $0x528] sm:$0xf]
    %v367 = vld [vmem:[%s1 + $0x52c] sm:$0xf]
    %v368 = vld [vmem:[%s1 + $0x530] sm:$0xf]
    %v369 = vld [vmem:[%s1 + $0x534] sm:$0xf]
    %v370 = vld [vmem:[%s1 + $0x538] sm:$0xf]
    %v371 = vld [vmem:[%s1 + $0x53c] sm:$0xf]
    %v372 = vld [vmem:[%s1 + $0x540] sm:$0xf]
    %v373 = vld [vmem:[%s1 + $0x544] sm:$0xf]
    %v374 = vld [vmem:[%s1 + $0x548] sm:$0xf]
    %v375 = vld [vmem:[%s1 + $0x54c] sm:$0xf]
    %v376 = vld [vmem:[%s1 + $0x550] sm:$0xf]
    %v377 = vld [vmem:[%s1 + $0x554] sm:$0xf]
    %v378 = vld [vmem:[%s1 + $0x558] sm:$0xf]
    %v379 = vld [vmem:[%s1 + $0x55c] sm:$0xf]
    %v380 = vld [vmem:[%s1 + $0x560] sm:$0xf]
    %v381 = vld [vmem:[%s1 + $0x564] sm:$0xf]
    %v382 = vld [vmem:[%s1 + $0x568] sm:$0xf]
    %v383 = vld [vmem:[%s1 + $0x56c] sm:$0xf]
    %v384 = vld [vmem:[%s1 + $0x570] sm:$0xf]
    %v385 = vld [vmem:[%s1 + $0x574] sm:$0xf]
    %v386 = vld [vmem:[%s1 + $0x578] sm:$0xf]
    %v387 = vld [vmem:[%s1 + $0x57c] sm:$0xf]
    %v388 = vld [vmem:[%s1 + $0x580] sm:$0xf]
    %v389 = vld [vmem:[%s1 + $0x584] sm:$0xf]
    %v390 = vld [vmem:[%s1 + $0x588] sm:$0xf]
    %v391 = vld [vmem:[%s1 + $0x58c] sm:$0xf]
    %v392 = vld [vmem:[%s1 + $0x590] sm:$0xf]
    %v393 = vld [vmem:[%s1 + $0x594] sm:$0xf]
    %v394 = vld [vmem:[%s1 + $0x598] sm:$0xf]
    %v395 = vld [vmem:[%s1 + $0x59c] sm:$0xf]
    %v396 = vld [vmem:[%s1 + $0x5a0] sm:$0xf]
    %v397 = vld [vmem:[%s1 + $0x5a4] sm:$0xf]
    %v398 = vld [vmem:[%s1 + $0x5a8] sm:$0xf]
    %v399 = vld [vmem:[%s1 + $0x5ac] sm:$0xf]
    %v400 = vld [vmem:[%s1 + $0x5b0] sm:$0xf]
    %v401 = vld [vmem:[%s1 + $0x5b4] sm:$0xf]
    %v402 = vld [vmem:[%s1 + $0x5b8] sm:$0xf]
    %v403 = vld [vmem:[%s1 + $0x5bc] sm:$0xf]
    %v404 = vld [vmem:[%s1 + $0x5c0] sm:$0xf]
    %v405 = vld [vmem:[%s1 + $0x5c4] sm:$0xf]
    %v406 = vld [vmem:[%s1 + $0x5c8] sm:$0xf]
    %v407 = vld [vmem:[%s1 + $0x5cc] sm:$0xf]
    %v408 = vld [vmem:[%s1 + $0x5d0] sm:$0xf]
    %v409 = vld [vmem:[%s1 + $0x5d4] sm:$0xf]
    %v410 = vld [vmem:[%s1 + $0x5d8] sm:$0xf]
    %v411 = vld [vmem:[%s1 + $0x5dc] sm:$0xf]
    %v412 = vld [vmem:[%s1 + $0x5e0] sm:$0xf]
    %v413 = vld [vmem:[%s1 + $0x5e4] sm:$0xf]
    %v414 = vld [vmem:[%s1 + $0x5e8] sm:$0xf]
    %v415 = vld [vmem:[%s1 + $0x5ec] sm:$0xf]
    %v416 = vld [vmem:[%s1 + $0x5f0] sm:$0xf]
    %v417 = vld [vmem:[%s1 + $0x5f4] sm:$0xf]
    %v418 = vld [vmem:[%s1 + $0x5f8] sm:$0xf]
    %v419 = vld [vmem:[%s1 + $0x5fc] sm:$0xf]
    %v420 = vld [vmem:[%s1 + $0x600] sm:$0xf]
    %v421 = vld [vmem:[%s1 + $0x604] sm:$0xf]
    %v422 = vld [vmem:[%s1 + $0x608] sm:$0xf]
    %v423 = vld [vmem:[%s1 + $0x60c] sm:$0xf]
    %v424 = vld [vmem:[%s1 + $0x610] sm:$0xf]
    %v425 = vld [vmem:[%s1 + $0x614] sm:$0xf]
    %v426 = vld [vmem:[%s1 + $0x618] sm:$0xf]
    %v427 = vld [vmem:[%s1 + $0x61c] sm:$0xf]
    %v428 = vld [vmem:[%s1 + $0x620] sm:$0xf]
    %v429 = vld [vmem:[%s1 + $0x624] sm:$0xf]
    %v430 = vld [vmem:[%s1 + $0x628] sm:$0xf]
    %v431 = vld [vmem:[%s1 + $0x62c] sm:$0xf]
    %v432 = vld [vmem:[%s1 + $0x630] sm:$0xf]
    %v433 = vld [vmem:[%s1 + $0x634] sm:$0xf]
    %v434 = vld [vmem:[%s1 + $0x638] sm:$0xf]
    %v435 = vld [vmem:[%s1 + $0x63c] sm:$0xf]
    %v436 = vld [vmem:[%s1 + $0x640] sm:$0xf]
    %v437 = vld [vmem:[%s1 + $0x644] sm:$0xf]
    %v438 = vld [vmem:[%s1 + $0x648] sm:$0xf]
    %v439 = vld [vmem:[%s1 + $0x64c] sm:$0xf]
    %v440 = vld [vmem:[%s1 + $0x650] sm:$0xf]
    %v441 = vld [vmem:[%s1 + $0x654] sm:$0xf]
    %v442 = vld [vmem:[%s1 + $0x658] sm:$0xf]
    %v443 = vld [vmem:[%s1 + $0x65c] sm:$0xf]
    %v444 = vld [vmem:[%s1 + $0x660] sm:$0xf]
    %v445 = vld [vmem:[%s1 + $0x664] sm:$0xf]
    %v446 = vld [vmem:[%s1 + $0x668] sm:$0xf]
    %v447 = vld [vmem:[%s1 + $0x66c] sm:$0xf]
    %v448 = vld [vmem:[%s1 + $0x670] sm:$0xf]
    %v449 = vld [vmem:[%s1 + $0x674] sm:$0xf]
    %v450 = vld [vmem:[%s1 + $0x678] sm:$0xf]
    %v451 = vld [vmem:[%s1 + $0x67c] sm:$0xf]
    %v452 = vld [vmem:[%s1 + $0x680] sm:$0xf]
    %v453 = vld [vmem:[%s1 + $0x684] sm:$0xf]
    %v454 = vld [vmem:[%s1 + $0x688] sm:$0xf]
    %v455 = vld [vmem:[%s1 + $0x68c] sm:$0xf]
    %v456 = vld [vmem:[%s1 + $0x690] sm:$0xf]
    %v457 = vld [vmem:[%s1 + $0x694] sm:$0xf]
    %v458 = vld [vmem:[%s1 + $0x698] sm:$0xf]
    %v459 = vld [vmem:[%s1 + $0x69c] sm:$0xf]
    %v460 = vld [vmem:[%s1 + $0x6a0] sm:$0xf]
    %v461 = vld [vmem:[%s1 + $0x6a4] sm:$0xf]
    %v462 = vld [vmem:[%s1 + $0x6a8] sm:$0xf]
    %v463 = vld [vmem:[%s1 + $0x6ac] sm:$0xf]
    %v464 = vld [vmem:[%s1 + $0x6b0] sm:$0xf]
    %v465 = vld [vmem:[%s1 + $0x6b4] sm:$0xf]
    %v466 = vld [vmem:[%s1 + $0x6b8] sm:$0xf]
    %v467 = vld [vmem:[%s1 + $0x6bc] sm:$0xf]
    %v468 = vld [vmem:[%s1 + $0x6c0] sm:$0xf]
    %v469 = vld [vmem:[%s1 + $0x6c4] sm:$0xf]
    %v470 = vld [vmem:[%s1 + $0x6c8] sm:$0xf]
    %v471 = vld [vmem:[%s1 + $0x6cc] sm:$0xf]
    %v472 = vld [vmem:[%s1 + $0x6d0] sm:$0xf]
    %v473 = vld [vmem:[%s1 + $0x6d4] sm:$0xf]
    %v474 = vld [vmem:[%s1 + $0x6d8] sm:$0xf]
    %v475 = vld [vmem:[%s1 + $0x6dc] sm:$0xf]
    %v476 = vld [vmem:[%s1 + $0x6e0] sm:$0xf]
    %v477 = vld [vmem:[%s1 + $0x6e4] sm:$0xf]
    %v478 = vld [vmem:[%s1 + $0x6e8] sm:$0xf]
    %v479 = vld [vmem:[%s1 + $0x6ec] sm:$0xf]
    %v480 = vld [vmem:[%s1 + $0x6f0] sm:$0xf]
    %v481 = vld [vmem:[%s1 + $0x6f4] sm:$0xf]
    %v482 = vld [vmem:[%s1 + $0x6f8] sm:$0xf]
    %v483 = vld [vmem:[%s1 + $0x6fc] sm:$0xf]
    %v484 = vld [vmem:[%s1 + $0x700] sm:$0xf]
    %v485 = vld [vmem:[%s1 + $0x704] sm:$0xf]
    %v486 = vld [vmem:[%s1 + $0x708] sm:$0xf]
    %v487 = vld [vmem:[%s1 + $0x70c] sm:$0xf]
    %v488 = vld [vmem:[%s1 + $0x710] sm:$0xf]
    %v489 = vld [vmem:[%s1 + $0x714] sm:$0xf]
    %v490 = vld [vmem:[%s1 + $0x718] sm:$0xf]
    %v491 = vld [vmem:[%s1 + $0x71c] sm:$0xf]
    %v492 = vld [vmem:[%s1 + $0x720] sm:$0xf]
    %v493 = vld [vmem:[%s1 + $0x724] sm:$0xf]
    %v494 = vld [vmem:[%s1 + $0x728] sm:$0xf]
    %v495 = vld [vmem:[%s1 + $0x72c] sm:$0xf]
    %v496 = vld [vmem:[%s1 + $0x730] sm:$0xf]
    %v497 = vld [vmem:[%s1 + $0x734] sm:$0xf]
    %v498 = vld [vmem:[%s1 + $0x738] sm:$0xf]
    %v499 = vld [vmem:[%s1 + $0x73c] sm:$0xf]
    %v500 = vld [vmem:[%s1 + $0x740] sm:$0xf]
    %v501 = vld [vmem:[%s1 + $0x744] sm:$0xf]
    %v502 = vld [vmem:[%s1 + $0x748] sm:$0xf]
    %v503 = vld [vmem:[%s1 + $0x74c] sm:$0xf]
    %v504 = vld [vmem:[%s1 + $0x750] sm:$0xf]
    %v505 = vld [vmem:[%s1 + $0x754] sm:$0xf]
    %v506 = vld [vmem:[%s1 + $0x758] sm:$0xf]
    %v507 = vld [vmem:[%s1 + $0x75c] sm:$0xf]
    %v508 = vld [vmem:[%s1 + $0x760] sm:$0xf]
    %v509 = vld [vmem:[%s1 + $0x764] sm:$0xf]
    %v510 = vld [vmem:[%s1 + $0x768] sm:$0xf]
    %v511 = vld [vmem:[%s1 + $0x76c] sm:$0xf]
    %v512 = vld [vmem:[%s1 + $0x770] sm:$0xf]
    %v513 = vld [vmem:[%s1 + $0x774] sm:$0xf]
    %v514 = vld [vmem:[%s1 + $0x778] sm:$0xf]
    %v515 = vld [vmem:[%s1 + $0x77c] sm:$0xf]
    %v516 = vld [vmem:[%s1 + $0x780] sm:$0xf]
    %v517 = vld [vmem:[%s1 + $0x784] sm:$0xf]
    %v518 = vld [vmem:[%s1 + $0x788] sm:$0xf]
    %v519 = vld [vmem:[%s1 + $0x78c] sm:$0xf]
    %v520 = vld [vmem:[%s1 + $0x790] sm:$0xf]
    %v521 = vld [vmem:[%s1 + $0x794] sm:$0xf]
    %v522 = vld [vmem:[%s1 + $0x798] sm:$0xf]
    %v523 = vld [vmem:[%s1 + $0x79c] sm:$0xf]
    %v524 = vld [vmem:[%s1 + $0x7a0] sm:$0xf]
    %v525 = vld [vmem:[%s1 + $0x7a4] sm:$0xf]
    %v526 = vld [vmem:[%s1 + $0x7a8] sm:$0xf]
    %v527 = vld [vmem:[%s1 + $0x7ac] sm:$0xf]
    %v528 = vld [vmem:[%s1 + $0x7b0] sm:$0xf]
    %v529 = vld [vmem:[%s1 + $0x7b4] sm:$0xf]
    %v530 = vld [vmem:[%s1 + $0x7b8] sm:$0xf]
    %v531 = vld [vmem:[%s1 + $0x7bc] sm:$0xf]
    %v532 = vld [vmem:[%s1 + $0x7c0] sm:$0xf]
    %v533 = vld [vmem:[%s1 + $0x7c4] sm:$0xf]
    %v534 = vld [vmem:[%s1 + $0x7c8] sm:$0xf]
    %v535 = vld [vmem:[%s1 + $0x7cc] sm:$0xf]
    %v536 = vld [vmem:[%s1 + $0x7d0] sm:$0xf]
    %v537 = vld [vmem:[%s1 + $0x7d4] sm:$0xf]
    %v538 = vld [vmem:[%s1 + $0x7d8] sm:$0xf]
    %v539 = vld [vmem:[%s1 + $0x7dc] sm:$0xf]
    %v540 = vld [vmem:[%s1 + $0x7e0] sm:$0xf]
    %v541 = vld [vmem:[%s1 + $0x7e4] sm:$0xf]
    %v542 = vld [vmem:[%s1 + $0x7e8] sm:$0xf]
    %v543 = vld [vmem:[%s1 + $0x7ec] sm:$0xf]
    %v544 = vld [vmem:[%s1 + $0x7f0] sm:$0xf]
    %v545 = vld [vmem:[%s1 + $0x7f4] sm:$0xf]
    %v546 = vld [vmem:[%s1 + $0x7f8] sm:$0xf]
    %v547 = vld [vmem:[%s1 + $0x7fc] sm:$0xf]
    %v548 = vld [vmem:[%s1 + $0x800] sm:$0xf]
    %v549 = vld [vmem:[%s1 + $0x804] sm:$0xf]
    %v550 = vld [vmem:[%s1 + $0x808] sm:$0xf]
    %v551 = vld [vmem:[%s1 + $0x80c] sm:$0xf]
    %v552 = vld [vmem:[%s1 + $0x810] sm:$0xf]
    %v553 = vld [vmem:[%s1 + $0x814] sm:$0xf]
    %v554 = vld [vmem:[%s1 + $0x818] sm:$0xf]
    %v555 = vld [vmem:[%s1 + $0x81c] sm:$0xf]
    %v556 = vld [vmem:[%s1 + $0x820] sm:$0xf]
    %v557 = vld [vmem:[%s1 + $0x824] sm:$0xf]
    %v558 = vld [vmem:[%s1 + $0x828] sm:$0xf]
    %v559 = vld [vmem:[%s1 + $0x82c] sm:$0xf]
    %v560 = vld [vmem:[%s1 + $0x830] sm:$0xf]
    %v561 = vld [vmem:[%s1 + $0x834] sm:$0xf]
    %v562 = vld [vmem:[%s1 + $0x838] sm:$0xf]
    %v563 = vld [vmem:[%s1 + $0x83c] sm:$0xf]
    %v564 = vld [vmem:[%s1 + $0x840] sm:$0xf]
    %v565 = vld [vmem:[%s1 + $0x844] sm:$0xf]
    %v566 = vld [vmem:[%s1 + $0x848] sm:$0xf]
    %v567 = vld [vmem:[%s1 + $0x84c] sm:$0xf]
    %v568 = vld [vmem:[%s1 + $0x850] sm:$0xf]
    %v569 = vld [vmem:[%s1 + $0x854] sm:$0xf]
    %v570 = vld [vmem:[%s1 + $0x858] sm:$0xf]
    %v571 = vld [vmem:[%s1 + $0x85c] sm:$0xf]
    %v572 = vld [vmem:[%s1 + $0x860] sm:$0xf]
    %v573 = vld [vmem:[%s1 + $0x864] sm:$0xf]
    %v574 = vld [vmem:[%s1 + $0x868] sm:$0xf]
    %v575 = vld [vmem:[%s1 + $0x86c] sm:$0xf]
    %v576 = vld [vmem:[%s1 + $0x870] sm:$0xf]
    %v577 = vld [vmem:[%s1 + $0x874] sm:$0xf]
    %v578 = vld [vmem:[%s1 + $0x878] sm:$0xf]
    %v579 = vld [vmem:[%s1 + $0x87c] sm:$0xf]
    %v580 = vld [vmem:[%s1 + $0x880] sm:$0xf]
    %v581 = vld [vmem:[%s1 + $0x884] sm:$0xf]
    %v582 = vld [vmem:[%s1 + $0x888] sm:$0xf]
    %v583 = vld [vmem:[%s1 + $0x88c] sm:$0xf]
    %v584 = vld [vmem:[%s1 + $0x890] sm:$0xf]
    %v585 = vld [vmem:[%s1 + $0x894] sm:$0xf]
    %v586 = vld [vmem:[%s1 + $0x898] sm:$0xf]
    %v587 = vld [vmem:[%s1 + $0x89c] sm:$0xf]
    %v588 = vld [vmem:[%s1 + $0x8a0] sm:$0xf]
    %v589 = vld [vmem:[%s1 + $0x8a4] sm:$0xf]
    %v590 = vld [vmem:[%s1 + $0x8a8] sm:$0xf]
    %v591 = vld [vmem:[%s1 + $0x8ac] sm:$0xf]
    %v592 = vld [vmem:[%s1 + $0x8b0] sm:$0xf]
    %v593 = vld [vmem:[%s1 + $0x8b4] sm:$0xf]
    %v594 = vld [vmem:[%s1 + $0x8b8] sm:$0xf]
    %v595 = vld [vmem:[%s1 + $0x8bc] sm:$0xf]
    %v596 = vld [vmem:[%s1 + $0x8c0] sm:$0xf]
    %v597 = vld [vmem:[%s1 + $0x8c4] sm:$0xf]
    %v598 = vld [vmem:[%s1 + $0x8c8] sm:$0xf]
    %v599 = vld [vmem:[%s1 + $0x8cc] sm:$0xf]
    %v600 = vld [vmem:[%s1 + $0x8d0] sm:$0xf]
    %v601 = vld [vmem:[%s1 + $0x8d4] sm:$0xf]
    %v602 = vld [vmem:[%s1 + $0x8d8] sm:$0xf]
    %v603 = vld [vmem:[%s1 + $0x8dc] sm:$0xf]
    %v604 = vld [vmem:[%s1 + $0x8e0] sm:$0xf]
    %v605 = vld [vmem:[%s1 + $0x8e4] sm:$0xf]
    %v606 = vld [vmem:[%s1 + $0x8e8] sm:$0xf]
    %v607 = vld [vmem:[%s1 + $0x8ec] sm:$0xf]
    %v608 = vld [vmem:[%s1 + $0x8f0] sm:$0xf]
    %v609 = vld [vmem:[%s1 + $0x8f4] sm:$0xf]
    %v610 = vld [vmem:[%s1 + $0x8f8] sm:$0xf]
    %v611 = vld [vmem:[%s1 + $0x8fc] sm:$0xf]
    %v612 = vld [vmem:[%s1 + $0x900] sm:$0xf]
    %v613 = vld [vmem:[%s1 + $0x904] sm:$0xf]
    %v614 = vld [vmem:[%s1 + $0x908] sm:$0xf]
    %v615 = vld [vmem:[%s1 + $0x90c] sm:$0xf]
    %v616 = vld [vmem:[%s1 + $0x910] sm:$0xf]
    %v617 = vld [vmem:[%s1 + $0x914] sm:$0xf]
    %v618 = vld [vmem:[%s1 + $0x918] sm:$0xf]
    %v619 = vld [vmem:[%s1 + $0x91c] sm:$0xf]
    %v620 = vld [vmem:[%s1 + $0x920] sm:$0xf]
    %v621 = vld [vmem:[%s1 + $0x924] sm:$0xf]
    %v622 = vld [vmem:[%s1 + $0x928] sm:$0xf]
    %v623 = vld [vmem:[%s1 + $0x92c] sm:$0xf]
    %v624 = vld [vmem:[%s1 + $0x930] sm:$0xf]
    %v625 = vld [vmem:[%s1 + $0x934] sm:$0xf]
    %v626 = vld [vmem:[%s1 + $0x938] sm:$0xf]
    %v627 = vld [vmem:[%s1 + $0x93c] sm:$0xf]
    %v628 = vld [vmem:[%s1 + $0x940] sm:$0xf]
    %v629 = vld [vmem:[%s1 + $0x944] sm:$0xf]
    %v630 = vld [vmem:[%s1 + $0x948] sm:$0xf]
    %v631 = vld [vmem:[%s1 + $0x94c] sm:$0xf]
    %v632 = vld [vmem:[%s1 + $0x950] sm:$0xf]
    %v633 = vld [vmem:[%s1 + $0x954] sm:$0xf]
    %v634 = vld [vmem:[%s1 + $0x958] sm:$0xf]
    %v635 = vld [vmem:[%s1 + $0x95c] sm:$0xf]
    %v636 = vld [vmem:[%s1 + $0x960] sm:$0xf]
    %v637 = vld [vmem:[%s1 + $0x964] sm:$0xf]
    %v638 = vld [vmem:[%s1 + $0x968] sm:$0xf]
    %v639 = vld [vmem:[%s1 + $0x96c] sm:$0xf]
    %v640 = vld [vmem:[%s1 + $0x970] sm:$0xf]
    %v641 = vld [vmem:[%s1 + $0x974] sm:$0xf]
    %v642 = vld [vmem:[%s1 + $0x978] sm:$0xf]
    %v643 = vld [vmem:[%s1 + $0x97c] sm:$0xf]
    %v644 = vld [vmem:[%s1 + $0x980] sm:$0xf]
    %v645 = vld [vmem:[%s1 + $0x984] sm:$0xf]
    %v646 = vld [vmem:[%s1 + $0x988] sm:$0xf]
    %v647 = vld [vmem:[%s1 + $0x98c] sm:$0xf]
    %v648 = vld [vmem:[%s1 + $0x990] sm:$0xf]
    %v649 = vld [vmem:[%s1 + $0x994] sm:$0xf]
    %v650 = vld [vmem:[%s1 + $0x998] sm:$0xf]
    %v651 = vld [vmem:[%s1 + $0x99c] sm:$0xf]
    %v652 = vld [vmem:[%s1 + $0x9a0] sm:$0xf]
    %v653 = vld [vmem:[%s1 + $0x9a4] sm:$0xf]
    %v654 = vld [vmem:[%s1 + $0x9a8] sm:$0xf]
    %v655 = vld [vmem:[%s1 + $0x9ac] sm:$0xf]
    %v656 = vld [vmem:[%s1 + $0x9b0] sm:$0xf]
    %v657 = vld [vmem:[%s1 + $0x9b4] sm:$0xf]
    %v658 = vld [vmem:[%s1 + $0x9b8] sm:$0xf]
    %v659 = vld [vmem:[%s1 + $0x9bc] sm:$0xf]
    %v660 = vld [vmem:[%s1 + $0x9c0] sm:$0xf]
    %v661 = vld [vmem:[%s1 + $0x9c4] sm:$0xf]
    %v662 = vld [vmem:[%s1 + $0x9c8] sm:$0xf]
    %v663 = vld [vmem:[%s1 + $0x9cc] sm:$0xf]
    %v664 = vld [vmem:[%s1 + $0x9d0] sm:$0xf]
    %v665 = vld [vmem:[%s1 + $0x9d4] sm:$0xf]
    %v666 = vld [vmem:[%s1 + $0x9d8] sm:$0xf]
    %v667 = vld [vmem:[%s1 + $0x9dc] sm:$0xf]
    %v668 = vld [vmem:[%s1 + $0x9e0] sm:$0xf]
    %v669 = vld [vmem:[%s1 + $0x9e4] sm:$0xf]
    %v670 = vld [vmem:[%s1 + $0x9e8] sm:$0xf]
    %v671 = vld [vmem:[%s1 + $0x9ec] sm:$0xf]
    %v672 = vld [vmem:[%s1 + $0x9f0] sm:$0xf]
    %v673 = vld [vmem:[%s1 + $0x9f4] sm:$0xf]
    %v674 = vld [vmem:[%s1 + $0x9f8] sm:$0xf]
    %v675 = vld [vmem:[%s1 + $0x9fc] sm:$0xf]
    %v676 = vld [vmem:[%s1 + $0xa00] sm:$0xf]
    %v677 = vld [vmem:[%s1 + $0xa04] sm:$0xf]
    %v678 = vld [vmem:[%s1 + $0xa08] sm:$0xf]
    %v679 = vld [vmem:[%s1 + $0xa0c] sm:$0xf]
    %v680 = vld [vmem:[%s1 + $0xa10] sm:$0xf]
    %v681 = vld [vmem:[%s1 + $0xa14] sm:$0xf]
    %v682 = vld [vmem:[%s1 + $0xa18] sm:$0xf]
    %v683 = vld [vmem:[%s1 + $0xa1c] sm:$0xf]
    %v684 = vld [vmem:[%s1 + $0xa20] sm:$0xf]
    %v685 = vld [vmem:[%s1 + $0xa24] sm:$0xf]
    %v686 = vld [vmem:[%s1 + $0xa28] sm:$0xf]
    %v687 = vld [vmem:[%s1 + $0xa2c] sm:$0xf]
    %v688 = vld [vmem:[%s1 + $0xa30] sm:$0xf]
    %v689 = vld [vmem:[%s1 + $0xa34] sm:$0xf]
    %v690 = vld [vmem:[%s1 + $0xa38] sm:$0xf]
    %v691 = vld [vmem:[%s1 + $0xa3c] sm:$0xf]
    %v692 = vld [vmem:[%s1 + $0xa40] sm:$0xf]
    %v693 = vld [vmem:[%s1 + $0xa44] sm:$0xf]
    %v694 = vld [vmem:[%s1 + $0xa48] sm:$0xf]
    %v695 = vld [vmem:[%s1 + $0xa4c] sm:$0xf]
    %v696 = vld [vmem:[%s1 + $0xa50] sm:$0xf]
    %v697 = vld [vmem:[%s1 + $0xa54] sm:$0xf]
    %v698 = vld [vmem:[%s1 + $0xa58] sm:$0xf]
    %v699 = vld [vmem:[%s1 + $0xa5c] sm:$0xf]
    %v700 = vld [vmem:[%s1 + $0xa60] sm:$0xf]
    %v701 = vld [vmem:[%s1 + $0xa64] sm:$0xf]
    %v702 = vld [vmem:[%s1 + $0xa68] sm:$0xf]
    %v703 = vld [vmem:[%s1 + $0xa6c] sm:$0xf]
    %v704 = vld [vmem:[%s1 + $0xa70] sm:$0xf]
    %v705 = vld [vmem:[%s1 + $0xa74] sm:$0xf]
    %v706 = vld [vmem:[%s1 + $0xa78] sm:$0xf]
    %v707 = vld [vmem:[%s1 + $0xa7c] sm:$0xf]
    %v708 = vld [vmem:[%s1 + $0xa80] sm:$0xf]
    %v709 = vld [vmem:[%s1 + $0xa84] sm:$0xf]
    %v710 = vld [vmem:[%s1 + $0xa88] sm:$0xf]
    %v711 = vld [vmem:[%s1 + $0xa8c] sm:$0xf]
    %v712 = vld [vmem:[%s1 + $0xa90] sm:$0xf]
    %v713 = vld [vmem:[%s1 + $0xa94] sm:$0xf]
    %v714 = vld [vmem:[%s1 + $0xa98] sm:$0xf]
    %v715 = vld [vmem:[%s1 + $0xa9c] sm:$0xf]
    %v716 = vld [vmem:[%s1 + $0xaa0] sm:$0xf]
    %v717 = vld [vmem:[%s1 + $0xaa4] sm:$0xf]
    %v718 = vld [vmem:[%s1 + $0xaa8] sm:$0xf]
    %v719 = vld [vmem:[%s1 + $0xaac] sm:$0xf]
    %v720 = vld [vmem:[%s1 + $0xab0] sm:$0xf]
    %v721 = vld [vmem:[%s1 + $0xab4] sm:$0xf]
    %v722 = vld [vmem:[%s1 + $0xab8] sm:$0xf]
    %v723 = vld [vmem:[%s1 + $0xabc] sm:$0xf]
    %v724 = vld [vmem:[%s1 + $0xac0] sm:$0xf]
    %v725 = vld [vmem:[%s1 + $0xac4] sm:$0xf]
    %v726 = vld [vmem:[%s1 + $0xac8] sm:$0xf]
    %v727 = vld [vmem:[%s1 + $0xacc] sm:$0xf]
    %v728 = vld [vmem:[%s1 + $0xad0] sm:$0xf]
    %v729 = vld [vmem:[%s1 + $0xad4] sm:$0xf]
    %v730 = vld [vmem:[%s1 + $0xad8] sm:$0xf]
    %v731 = vld [vmem:[%s1 + $0xadc] sm:$0xf]
    %v732 = vld [vmem:[%s1 + $0xae0] sm:$0xf]
    %v733 = vld [vmem:[%s1 + $0xae4] sm:$0xf]
    %v734 = vld [vmem:[%s1 + $0xae8] sm:$0xf]
    %v735 = vld [vmem:[%s1 + $0xaec] sm:$0xf]
    %v736 = vld [vmem:[%s1 + $0xaf0] sm:$0xf]
    %v737 = vld [vmem:[%s1 + $0xaf4] sm:$0xf]
    %v738 = vld [vmem:[%s1 + $0xaf8] sm:$0xf]
    %v739 = vld [vmem:[%s1 + $0xafc] sm:$0xf]
    %v740 = vld [vmem:[%s1 + $0xb00] sm:$0xf]
    %v741 = vld [vmem:[%s1 + $0xb04] sm:$0xf]
    %v742 = vld [vmem:[%s1 + $0xb08] sm:$0xf]
    %v743 = vld [vmem:[%s1 + $0xb0c] sm:$0xf]
    %v744 = vld [vmem:[%s1 + $0xb10] sm:$0xf]
    %v745 = vld [vmem:[%s1 + $0xb14] sm:$0xf]
    %v746 = vld [vmem:[%s1 + $0xb18] sm:$0xf]
    %v747 = vld [vmem:[%s1 + $0xb1c] sm:$0xf]
    %v748 = vld [vmem:[%s1 + $0xb20] sm:$0xf]
    %v749 = vld [vmem:[%s1 + $0xb24] sm:$0xf]
    %v750 = vld [vmem:[%s1 + $0xb28] sm:$0xf]
    %v751 = vld [vmem:[%s1 + $0xb2c] sm:$0xf]
    %v752 = vld [vmem:[%s1 + $0xb30] sm:$0xf]
    %v753 = vld [vmem:[%s1 + $0xb34] sm:$0xf]
    %v754 = vld [vmem:[%s1 + $0xb38] sm:$0xf]
    %v755 = vld [vmem:[%s1 + $0xb3c] sm:$0xf]
    %v756 = vld [vmem:[%s1 + $0xb40] sm:$0xf]
    %v757 = vld [vmem:[%s1 + $0xb44] sm:$0xf]
    %v758 = vld [vmem:[%s1 + $0xb48] sm:$0xf]
    %v759 = vld [vmem:[%s1 + $0xb4c] sm:$0xf]
    %v760 = vld [vmem:[%s1 + $0xb50] sm:$0xf]
    %v761 = vld [vmem:[%s1 + $0xb54] sm:$0xf]
    %v762 = vld [vmem:[%s1 + $0xb58] sm:$0xf]
    %v763 = vld [vmem:[%s1 + $0xb5c] sm:$0xf]
    %v764 = vld [vmem:[%s1 + $0xb60] sm:$0xf]
    %v765 = vld [vmem:[%s1 + $0xb64] sm:$0xf]
    %v766 = vld [vmem:[%s1 + $0xb68] sm:$0xf]
    %v767 = vld [vmem:[%s1 + $0xb6c] sm:$0xf]
    %v768 = vld [vmem:[%s1 + $0xb70] sm:$0xf]
    %v769 = vld [vmem:[%s1 + $0xb74] sm:$0xf]
    %v770 = vld [vmem:[%s1 + $0xb78] sm:$0xf]
    %v771 = vld [vmem:[%s1 + $0xb7c] sm:$0xf]
    %v772 = vld [vmem:[%s1 + $0xb80] sm:$0xf]
    %v773 = vld [vmem:[%s1 + $0xb84] sm:$0xf]
    %v774 = vld [vmem:[%s1 + $0xb88] sm:$0xf]
    %v775 = vld [vmem:[%s1 + $0xb8c] sm:$0xf]
    %v776 = vld [vmem:[%s1 + $0xb90] sm:$0xf]
    %v777 = vld [vmem:[%s1 + $0xb94] sm:$0xf]
    %v778 = vld [vmem:[%s1 + $0xb98] sm:$0xf]
    %v779 = vld [vmem:[%s1 + $0xb9c] sm:$0xf]
    %v780 = vld [vmem:[%s1 + $0xba0] sm:$0xf]
    %v781 = vld [vmem:[%s1 + $0xba4] sm:$0xf]
    %v782 = vld [vmem:[%s1 + $0xba8] sm:$0xf]
    %v783 = vld [vmem:[%s1 + $0xbac] sm:$0xf]
    %v784 = vld [vmem:[%s1 + $0xbb0] sm:$0xf]
    %v785 = vld [vmem:[%s1 + $0xbb4] sm:$0xf]
    %v786 = vld [vmem:[%s1 + $0xbb8] sm:$0xf]
    %v787 = vld [vmem:[%s1 + $0xbbc] sm:$0xf]
    %v788 = vld [vmem:[%s1 + $0xbc0] sm:$0xf]
    %v789 = vld [vmem:[%s1 + $0xbc4] sm:$0xf]
    %v790 = vld [vmem:[%s1 + $0xbc8] sm:$0xf]
    %v791 = vld [vmem:[%s1 + $0xbcc] sm:$0xf]
    %v792 = vld [vmem:[%s1 + $0xbd0] sm:$0xf]
    %v793 = vld [vmem:[%s1 + $0xbd4] sm:$0xf]
    %v794 = vld [vmem:[%s1 + $0xbd8] sm:$0xf]
    %v795 = vld [vmem:[%s1 + $0xbdc] sm:$0xf]
    %v796 = vld [vmem:[%s1 + $0xbe0] sm:$0xf]
    %v797 = vld [vmem:[%s1 + $0xbe4] sm:$0xf]
    %v798 = vld [vmem:[%s1 + $0xbe8] sm:$0xf]
    %v799 = vld [vmem:[%s1 + $0xbec] sm:$0xf]
    %v800 = vld [vmem:[%s1 + $0xbf0] sm:$0xf]
    %v801 = vld [vmem:[%s1 + $0xbf4] sm:$0xf]
    %v802 = vld [vmem:[%s1 + $0xbf8] sm:$0xf]
    %v803 = vld [vmem:[%s1 + $0xbfc] sm:$0xf]
    %v804 = vld [vmem:[%s1 + $0xc00] sm:$0xf]
    %v805 = vld [vmem:[%s1 + $0xc04] sm:$0xf]
    %v806 = vld [vmem:[%s1 + $0xc08] sm:$0xf]
    %v807 = vld [vmem:[%s1 + $0xc0c] sm:$0xf]
    %v808 = vld [vmem:[%s1 + $0xc10] sm:$0xf]
    %v809 = vld [vmem:[%s1 + $0xc14] sm:$0xf]
    %v810 = vld [vmem:[%s1 + $0xc18] sm:$0xf]
    %v811 = vld [vmem:[%s1 + $0xc1c] sm:$0xf]
    %v812 = vld [vmem:[%s1 + $0xc20] sm:$0xf]
    %v813 = vld [vmem:[%s1 + $0xc24] sm:$0xf]
    %v814 = vld [vmem:[%s1 + $0xc28] sm:$0xf]
    %v815 = vld [vmem:[%s1 + $0xc2c] sm:$0xf]
    %v816 = vld [vmem:[%s1 + $0xc30] sm:$0xf]
    %v817 = vld [vmem:[%s1 + $0xc34] sm:$0xf]
    %v818 = vld [vmem:[%s1 + $0xc38] sm:$0xf]
    %v819 = vld [vmem:[%s1 + $0xc3c] sm:$0xf]
    %v820 = vld [vmem:[%s1 + $0xc40] sm:$0xf]
    %v821 = vld [vmem:[%s1 + $0xc44] sm:$0xf]
    %v822 = vld [vmem:[%s1 + $0xc48] sm:$0xf]
    %v823 = vld [vmem:[%s1 + $0xc4c] sm:$0xf]
    %v824 = vld [vmem:[%s1 + $0xc50] sm:$0xf]
    %v825 = vld [vmem:[%s1 + $0xc54] sm:$0xf]
    %v826 = vld [vmem:[%s1 + $0xc58] sm:$0xf]
    %v827 = vld [vmem:[%s1 + $0xc5c] sm:$0xf]
    %v828 = vld [vmem:[%s1 + $0xc60] sm:$0xf]
    %v829 = vld [vmem:[%s1 + $0xc64] sm:$0xf]
    %v830 = vld [vmem:[%s1 + $0xc68] sm:$0xf]
    %v831 = vld [vmem:[%s1 + $0xc6c] sm:$0xf]
    %v832 = vld [vmem:[%s1 + $0xc70] sm:$0xf]
    %v833 = vld [vmem:[%s1 + $0xc74] sm:$0xf]
    %v834 = vld [vmem:[%s1 + $0xc78] sm:$0xf]
    %v835 = vld [vmem:[%s1 + $0xc7c] sm:$0xf]
    %v836 = vld [vmem:[%s1 + $0xc80] sm:$0xf]
    %v837 = vld [vmem:[%s1 + $0xc84] sm:$0xf]
    %v838 = vld [vmem:[%s1 + $0xc88] sm:$0xf]
    %v839 = vld [vmem:[%s1 + $0xc8c] sm:$0xf]
    %v840 = vld [vmem:[%s1 + $0xc90] sm:$0xf]
    %v841 = vld [vmem:[%s1 + $0xc94] sm:$0xf]
    %v842 = vld [vmem:[%s1 + $0xc98] sm:$0xf]
    %v843 = vld [vmem:[%s1 + $0xc9c] sm:$0xf]
    %v844 = vld [vmem:[%s1 + $0xca0] sm:$0xf]
    %v845 = vld [vmem:[%s1 + $0xca4] sm:$0xf]
    %v846 = vld [vmem:[%s1 + $0xca8] sm:$0xf]
    %v847 = vld [vmem:[%s1 + $0xcac] sm:$0xf]
    %v848 = vld [vmem:[%s1 + $0xcb0] sm:$0xf]
    %v849 = vld [vmem:[%s1 + $0xcb4] sm:$0xf]
    %v850 = vld [vmem:[%s1 + $0xcb8] sm:$0xf]
    %v851 = vld [vmem:[%s1 + $0xcbc] sm:$0xf]
    %v852 = vld [vmem:[%s1 + $0xcc0] sm:$0xf]
    %v853 = vld [vmem:[%s1 + $0xcc4] sm:$0xf]
    %v854 = vld [vmem:[%s1 + $0xcc8] sm:$0xf]
    %v855 = vld [vmem:[%s1 + $0xccc] sm:$0xf]
    %v856 = vld [vmem:[%s1 + $0xcd0] sm:$0xf]
    %v857 = vld [vmem:[%s1 + $0xcd4] sm:$0xf]
    %v858 = vld [vmem:[%s1 + $0xcd8] sm:$0xf]
    %v859 = vld [vmem:[%s1 + $0xcdc] sm:$0xf]
    %v860 = vld [vmem:[%s1 + $0xce0] sm:$0xf]
    %v861 = vld [vmem:[%s1 + $0xce4] sm:$0xf]
    %v862 = vld [vmem:[%s1 + $0xce8] sm:$0xf]
    %v863 = vld [vmem:[%s1 + $0xcec] sm:$0xf]
    %v864 = vld [vmem:[%s1 + $0xcf0] sm:$0xf]
    %v865 = vld [vmem:[%s1 + $0xcf4] sm:$0xf]
    %v866 = vld [vmem:[%s1 + $0xcf8] sm:$0xf]
    %v867 = vld [vmem:[%s1 + $0xcfc] sm:$0xf]
    %v868 = vld [vmem:[%s1 + $0xd00] sm:$0xf]
    %v869 = vld [vmem:[%s1 + $0xd04] sm:$0xf]
    %v870 = vld [vmem:[%s1 + $0xd08] sm:$0xf]
    %v871 = vld [vmem:[%s1 + $0xd0c] sm:$0xf]
    %v872 = vld [vmem:[%s1 + $0xd10] sm:$0xf]
    %v873 = vld [vmem:[%s1 + $0xd14] sm:$0xf]
    %v874 = vld [vmem:[%s1 + $0xd18] sm:$0xf]
    %v875 = vld [vmem:[%s1 + $0xd1c] sm:$0xf]
    %v876 = vld [vmem:[%s1 + $0xd20] sm:$0xf]
    %v877 = vld [vmem:[%s1 + $0xd24] sm:$0xf]
    %v878 = vld [vmem:[%s1 + $0xd28] sm:$0xf]
    %v879 = vld [vmem:[%s1 + $0xd2c] sm:$0xf]
    %v880 = vld [vmem:[%s1 + $0xd30] sm:$0xf]
    %v881 = vld [vmem:[%s1 + $0xd34] sm:$0xf]
    %v882 = vld [vmem:[%s1 + $0xd38] sm:$0xf]
    %v883 = vld [vmem:[%s1 + $0xd3c] sm:$0xf]
    %v884 = vld [vmem:[%s1 + $0xd40] sm:$0xf]
    %v885 = vld [vmem:[%s1 + $0xd44] sm:$0xf]
    %v886 = vld [vmem:[%s1 + $0xd48] sm:$0xf]
    %v887 = vld [vmem:[%s1 + $0xd4c] sm:$0xf]
    %v888 = vld [vmem:[%s1 + $0xd50] sm:$0xf]
    %v889 = vld [vmem:[%s1 + $0xd54] sm:$0xf]
    %v890 = vld [vmem:[%s1 + $0xd58] sm:$0xf]
    %v891 = vld [vmem:[%s1 + $0xd5c] sm:$0xf]
    %v892 = vld [vmem:[%s1 + $0xd60] sm:$0xf]
    %v893 = vld [vmem:[%s1 + $0xd64] sm:$0xf]
    %v894 = vld [vmem:[%s1 + $0xd68] sm:$0xf]
    %v895 = vld [vmem:[%s1 + $0xd6c] sm:$0xf]
    %v896 = vld [vmem:[%s1 + $0xd70] sm:$0xf]
    %v897 = vld [vmem:[%s1 + $0xd74] sm:$0xf]
    %v898 = vld [vmem:[%s1 + $0xd78] sm:$0xf]
    %v899 = vld [vmem:[%s1 + $0xd7c] sm:$0xf]
    %v900 = vld [vmem:[%s1 + $0xd80] sm:$0xf]
    %v901 = vld [vmem:[%s1 + $0xd84] sm:$0xf]
    %v902 = vld [vmem:[%s1 + $0xd88] sm:$0xf]
    %v903 = vld [vmem:[%s1 + $0xd8c] sm:$0xf]
    %v904 = vld [vmem:[%s1 + $0xd90] sm:$0xf]
    %v905 = vld [vmem:[%s1 + $0xd94] sm:$0xf]
    %v906 = vld [vmem:[%s1 + $0xd98] sm:$0xf]
    %v907 = vld [vmem:[%s1 + $0xd9c] sm:$0xf]
    %v908 = vld [vmem:[%s1 + $0xda0] sm:$0xf]
    %v909 = vld [vmem:[%s1 + $0xda4] sm:$0xf]
    %v910 = vld [vmem:[%s1 + $0xda8] sm:$0xf]
    %v911 = vld [vmem:[%s1 + $0xdac] sm:$0xf]
    %v912 = vld [vmem:[%s1 + $0xdb0] sm:$0xf]
    %v913 = vld [vmem:[%s1 + $0xdb4] sm:$0xf]
    %v914 = vld [vmem:[%s1 + $0xdb8] sm:$0xf]
    %v915 = vld [vmem:[%s1 + $0xdbc] sm:$0xf]
    %v916 = vld [vmem:[%s1 + $0xdc0] sm:$0xf]
    %v917 = vld [vmem:[%s1 + $0xdc4] sm:$0xf]
    %v918 = vld [vmem:[%s1 + $0xdc8] sm:$0xf]
    %v919 = vld [vmem:[%s1 + $0xdcc] sm:$0xf]
    %v920 = vld [vmem:[%s1 + $0xdd0] sm:$0xf]
    %v921 = vld [vmem:[%s1 + $0xdd4] sm:$0xf]
    %v922 = vld [vmem:[%s1 + $0xdd8] sm:$0xf]
    %v923 = vld [vmem:[%s1 + $0xddc] sm:$0xf]
    %v924 = vld [vmem:[%s1 + $0xde0] sm:$0xf]
    %v925 = vld [vmem:[%s1 + $0xde4] sm:$0xf]
    %v926 = vld [vmem:[%s1 + $0xde8] sm:$0xf]
    %v927 = vld [vmem:[%s1 + $0xdec] sm:$0xf]
    %v928 = vld [vmem:[%s1 + $0xdf0] sm:$0xf]
    %v929 = vld [vmem:[%s1 + $0xdf4] sm:$0xf]
    %v930 = vld [vmem:[%s1 + $0xdf8] sm:$0xf]
    %v931 = vld [vmem:[%s1 + $0xdfc] sm:$0xf]
    %v932 = vld [vmem:[%s1 + $0xe00] sm:$0xf]
    %v933 = vld [vmem:[%s1 + $0xe04] sm:$0xf]
    %v934 = vld [vmem:[%s1 + $0xe08] sm:$0xf]
    %v935 = vld [vmem:[%s1 + $0xe0c] sm:$0xf]
    %v936 = vld [vmem:[%s1 + $0xe10] sm:$0xf]
    %v937 = vld [vmem:[%s1 + $0xe14] sm:$0xf]
    %v938 = vld [vmem:[%s1 + $0xe18] sm:$0xf]
    %v939 = vld [vmem:[%s1 + $0xe1c] sm:$0xf]
    %v940 = vld [vmem:[%s1 + $0xe20] sm:$0xf]
    %v941 = vld [vmem:[%s1 + $0xe24] sm:$0xf]
    %v942 = vld [vmem:[%s1 + $0xe28] sm:$0xf]
    %v943 = vld [vmem:[%s1 + $0xe2c] sm:$0xf]
    %v944 = vld [vmem:[%s1 + $0xe30] sm:$0xf]
    %v945 = vld [vmem:[%s1 + $0xe34] sm:$0xf]
    %v946 = vld [vmem:[%s1 + $0xe38] sm:$0xf]
    %v947 = vld [vmem:[%s1 + $0xe3c] sm:$0xf]
    %v948 = vld [vmem:[%s1 + $0xe40] sm:$0xf]
    %v949 = vld [vmem:[%s1 + $0xe44] sm:$0xf]
    %v950 = vld [vmem:[%s1 + $0xe48] sm:$0xf]
    %v951 = vld [vmem:[%s1 + $0xe4c] sm:$0xf]
    %v952 = vld [vmem:[%s1 + $0xe50] sm:$0xf]
    %v953 = vld [vmem:[%s1 + $0xe54] sm:$0xf]
    %v954 = vld [vmem:[%s1 + $0xe58] sm:$0xf]
    %v955 = vld [vmem:[%s1 + $0xe5c] sm:$0xf]
    %v956 = vld [vmem:[%s1 + $0xe60] sm:$0xf]
    %v957 = vld [vmem:[%s1 + $0xe64] sm:$0xf]
    %v958 = vld [vmem:[%s1 + $0xe68] sm:$0xf]
    %v959 = vld [vmem:[%s1 + $0xe6c] sm:$0xf]
    %v960 = vld [vmem:[%s1 + $0xe70] sm:$0xf]
    %v961 = vld [vmem:[%s1 + $0xe74] sm:$0xf]
    %v962 = vld [vmem:[%s1 + $0xe78] sm:$0xf]
    %v963 = vld [vmem:[%s1 + $0xe7c] sm:$0xf]
    %v964 = vld [vmem:[%s1 + $0xe80] sm:$0xf]
    %v965 = vld [vmem:[%s1 + $0xe84] sm:$0xf]
    %v966 = vld [vmem:[%s1 + $0xe88] sm:$0xf]
    %v967 = vld [vmem:[%s1 + $0xe8c] sm:$0xf]
    %v968 = vld [vmem:[%s1 + $0xe90] sm:$0xf]
    %v969 = vld [vmem:[%s1 + $0xe94] sm:$0xf]
    %v970 = vld [vmem:[%s1 + $0xe98] sm:$0xf]
    %v971 = vld [vmem:[%s1 + $0xe9c] sm:$0xf]
    %v972 = vld [vmem:[%s1 + $0xea0] sm:$0xf]
    %v973 = vld [vmem:[%s1 + $0xea4] sm:$0xf]
    %v974 = vld [vmem:[%s1 + $0xea8] sm:$0xf]
    %v975 = vld [vmem:[%s1 + $0xeac] sm:$0xf]
    %v976 = vld [vmem:[%s1 + $0xeb0] sm:$0xf]
    %v977 = vld [vmem:[%s1 + $0xeb4] sm:$0xf]
    %v978 = vld [vmem:[%s1 + $0xeb8] sm:$0xf]
    %v979 = vld [vmem:[%s1 + $0xebc] sm:$0xf]
    %v980 = vld [vmem:[%s1 + $0xec0] sm:$0xf]
    %v981 = vld [vmem:[%s1 + $0xec4] sm:$0xf]
    %v982 = vld [vmem:[%s1 + $0xec8] sm:$0xf]
    %v983 = vld [vmem:[%s1 + $0xecc] sm:$0xf]
    %v984 = vld [vmem:[%s1 + $0xed0] sm:$0xf]
    %v985 = vld [vmem:[%s1 + $0xed4] sm:$0xf]
    %v986 = vld [vmem:[%s1 + $0xed8] sm:$0xf]
    %v987 = vld [vmem:[%s1 + $0xedc] sm:$0xf]
    %v988 = vld [vmem:[%s1 + $0xee0] sm:$0xf]
    %v989 = vld [vmem:[%s1 + $0xee4] sm:$0xf]
    %v990 = vld [vmem:[%s1 + $0xee8] sm:$0xf]
    %v991 = vld [vmem:[%s1 + $0xeec] sm:$0xf]
    %v992 = vld [vmem:[%s1 + $0xef0] sm:$0xf]
    %v993 = vld [vmem:[%s1 + $0xef4] sm:$0xf]
    %v994 = vld [vmem:[%s1 + $0xef8] sm:$0xf]
    %v995 = vld [vmem:[%s1 + $0xefc] sm:$0xf]
    %v996 = vld [vmem:[%s1 + $0xf00] sm:$0xf]
    %v997 = vld [vmem:[%s1 + $0xf04] sm:$0xf]
    %v998 = vld [vmem:[%s1 + $0xf08] sm:$0xf]
    %v999 = vld [vmem:[%s1 + $0xf0c] sm:$0xf]
    %v1000 = vld [vmem:[%s1 + $0xf10] sm:$0xf]
    %v1001 = vld [vmem:[%s1 + $0xf14] sm:$0xf]
    %v1002 = vld [vmem:[%s1 + $0xf18] sm:$0xf]
    %v1003 = vld [vmem:[%s1 + $0xf1c] sm:$0xf]
    %v1004 = vld [vmem:[%s1 + $0xf20] sm:$0xf]
    %v1005 = vld [vmem:[%s1 + $0xf24] sm:$0xf]
    %v1006 = vld [vmem:[%s1 + $0xf28] sm:$0xf]
    %v1007 = vld [vmem:[%s1 + $0xf2c] sm:$0xf]
    %v1008 = vld [vmem:[%s1 + $0xf30] sm:$0xf]
    %v1009 = vld [vmem:[%s1 + $0xf34] sm:$0xf]
    %v1010 = vld [vmem:[%s1 + $0xf38] sm:$0xf]
    %v1011 = vld [vmem:[%s1 + $0xf3c] sm:$0xf]
    %v1012 = vld [vmem:[%s1 + $0xf40] sm:$0xf]
    %v1013 = vld [vmem:[%s1 + $0xf44] sm:$0xf]
    %v1014 = vld [vmem:[%s1 + $0xf48] sm:$0xf]
    %v1015 = vld [vmem:[%s1 + $0xf4c] sm:$0xf]
    %v1016 = vld [vmem:[%s1 + $0xf50] sm:$0xf]
    %v1017 = vld [vmem:[%s1 + $0xf54] sm:$0xf]
    %v1018 = vld [vmem:[%s1 + $0xf58] sm:$0xf]
    %v1019 = vld [vmem:[%s1 + $0xf5c] sm:$0xf]
    %v1020 = vld [vmem:[%s1 + $0xf60] sm:$0xf]
    %v1021 = vld [vmem:[%s1 + $0xf64] sm:$0xf]
    %v1022 = vld [vmem:[%s1 + $0xf68] sm:$0xf]
    %v1023 = vld [vmem:[%s1 + $0xf6c] sm:$0xf]
    %v1024 = vld [vmem:[%s1 + $0xf70] sm:$0xf]
    %v1025 = vld [vmem:[%s1 + $0xf74] sm:$0xf]
    %v1026 = vld [vmem:[%s1 + $0xf78] sm:$0xf]
    %v1027 = vld [vmem:[%s1 + $0xf7c] sm:$0xf]
    %v1028 = vld [vmem:[%s1 + $0xf80] sm:$0xf]
    %v1029 = vld [vmem:[%s1 + $0xf84] sm:$0xf]
    %v1030 = vld [vmem:[%s1 + $0xf88] sm:$0xf]
    %v1031 = vld [vmem:[%s1 + $0xf8c] sm:$0xf]
    %v1032 = vld [vmem:[%s1 + $0xf90] sm:$0xf]
    %v1033 = vld [vmem:[%s1 + $0xf94] sm:$0xf]
    %v1034 = vld [vmem:[%s1 + $0xf98] sm:$0xf]
    %v1035 = vld [vmem:[%s1 + $0xf9c] sm:$0xf]
    %v1036 = vld [vmem:[%s1 + $0xfa0] sm:$0xf]
    %v1037 = vld [vmem:[%s1 + $0xfa4] sm:$0xf]
    %v1038 = vld [vmem:[%s1 + $0xfa8] sm:$0xf]
    %v1039 = vld [vmem:[%s1 + $0xfac] sm:$0xf]
    %v1040 = vld [vmem:[%s1 + $0xfb0] sm:$0xf]
    %v1041 = vld [vmem:[%s1 + $0xfb4] sm:$0xf]
    %v1042 = vld [vmem:[%s1 + $0xfb8] sm:$0xf]
    %v1043 = vld [vmem:[%s1 + $0xfbc] sm:$0xf]
    %v1044 = vld [vmem:[%s1 + $0xfc0] sm:$0xf]
    %v1045 = vld [vmem:[%s1 + $0xfc4] sm:$0xf]
    %v1046 = vld [vmem:[%s1 + $0xfc8] sm:$0xf]
    %v1047 = vld [vmem:[%s1 + $0xfcc] sm:$0xf]
    %v1048 = vld [vmem:[%s1 + $0xfd0] sm:$0xf]
    %v1049 = vld [vmem:[%s1 + $0xfd4] sm:$0xf]
    %v1050 = vld [vmem:[%s1 + $0xfd8] sm:$0xf]
    %v1051 = vld [vmem:[%s1 + $0xfdc] sm:$0xf]
    %v1052 = vld [vmem:[%s1 + $0xfe0] sm:$0xf]
    %v1053 = vld [vmem:[%s1 + $0xfe4] sm:$0xf]
    %v1054 = vld [vmem:[%s1 + $0xfe8] sm:$0xf]
    %v1055 = vld [vmem:[%s1 + $0xfec] sm:$0xf]
    %v1056 = vld [vmem:[%s1 + $0xff0] sm:$0xf]
    %v1057 = vld [vmem:[%s1 + $0xff4] sm:$0xf]
    %v1058 = vld [vmem:[%s1 + $0xff8] sm:$0xf]
    %v1059 = vld [vmem:[%s1 + $0xffc] sm:$0xf]
    %v1060 = vld [vmem:[%s2] sm:$0x1]
    %v1062 = vperm.slane %v1060, 0
    %1065 = vst [vmem:[#allocation1] ss:$9 sm:$0xff] %v28
    %v1066 = vld [vmem:[#allocation1] sm:$0xff]
    %v1067 = vld [vmem:[#allocation1 + $0x9] sm:$0xff]
    %v1068 = vld [vmem:[#allocation1 + $0x12] sm:$0xff]
    %v1069 = vld [vmem:[#allocation1 + $0x1b] sm:$0xff]
    %v1070 = vld [vmem:[#allocation1 + $0x24] sm:$0xff]
    %v1071 = vld [vmem:[#allocation1 + $0x2d] sm:$0xff]
    %v1072 = vld [vmem:[#allocation1 + $0x36] sm:$0xff]
    %v1073 = vld [vmem:[#allocation1 + $0x3f] sm:$0xff]
    %1075 = vst [vmem:[#allocation1] ss:$9 sm:$0xff] %v29
    %v1076 = vld [vmem:[#allocation1] sm:$0xff]
    %v1077 = vld [vmem:[#allocation1 + $0x9] sm:$0xff]
    %v1078 = vld [vmem:[#allocation1 + $0x12] sm:$0xff]
    %v1079 = vld [vmem:[#allocation1 + $0x1b] sm:$0xff]
    %v1080 = vld [vmem:[#allocation1 + $0x24] sm:$0xff]
    %v1081 = vld [vmem:[#allocation1 + $0x2d] sm:$0xff]
    %v1082 = vld [vmem:[#allocation1 + $0x36] sm:$0xff]
    %v1083 = vld [vmem:[#allocation1 + $0x3f] sm:$0xff]
    %1085 = vst [vmem:[#allocation1] ss:$9 sm:$0xff] %v30
    %v1086 = vld [vmem:[#allocation1] sm:$0xff]
    %v1087 = vld [vmem:[#allocation1 + $0x9] sm:$0xff]
    %v1088 = vld [vmem:[#allocation1 + $0x12] sm:$0xff]
    %v1089 = vld [vmem:[#allocation1 + $0x1b] sm:$0xff]
    %v1090 = vld [vmem:[#allocation1 + $0x24] sm:$0xff]
    %v1091 = vld [vmem:[#allocation1 + $0x2d] sm:$0xff]
    %v1092 = vld [vmem:[#allocation1 + $0x36] sm:$0xff]
    %v1093 = vld [vmem:[#allocation1 + $0x3f] sm:$0xff]
    %1095 = vst [vmem:[#allocation1] ss:$9 sm:$0xff] %v31
    %v1096 = vld [vmem:[#allocation1] sm:$0xff]
    %v1097 = vld [vmem:[#allocation1 + $0x9] sm:$0xff]
    %v1098 = vld [vmem:[#allocation1 + $0x12] sm:$0xff]
    %v1099 = vld [vmem:[#allocation1 + $0x1b] sm:$0xff]
    %v1100 = vld [vmem:[#allocation1 + $0x24] sm:$0xff]
    %v1101 = vld [vmem:[#allocation1 + $0x2d] sm:$0xff]
    %v1102 = vld [vmem:[#allocation1 + $0x36] sm:$0xff]
    %v1103 = vld [vmem:[#allocation1 + $0x3f] sm:$0xff]
    %1105 = vst [vmem:[#allocation1] ss:$9 sm:$0xff] %v32
    %v1106 = vld [vmem:[#allocation1] sm:$0xff]
    %v1107 = vld [vmem:[#allocation1 + $0x9] sm:$0xff]
    %v1108 = vld [vmem:[#allocation1 + $0x12] sm:$0xff]
    %v1109 = vld [vmem:[#allocation1 + $0x1b] sm:$0xff]
    %v1110 = vld [vmem:[#allocation1 + $0x24] sm:$0xff]
    %v1111 = vld [vmem:[#allocation1 + $0x2d] sm:$0xff]
    %v1112 = vld [vmem:[#allocation1 + $0x36] sm:$0xff]
    %v1113 = vld [vmem:[#allocation1 + $0x3f] sm:$0xff]
    %1115 = vst [vmem:[#allocation1] ss:$9 sm:$0xff] %v33
    %v1116 = vld [vmem:[#allocation1] sm:$0xff]
    %v1117 = vld [vmem:[#allocation1 + $0x9] sm:$0xff]
    %v1118 = vld [vmem:[#allocation1 + $0x12] sm:$0xff]
    %v1119 = vld [vmem:[#allocation1 + $0x1b] sm:$0xff]
    %v1120 = vld [vmem:[#allocation1 + $0x24] sm:$0xff]
    %v1121 = vld [vmem:[#allocation1 + $0x2d] sm:$0xff]
    %v1122 = vld [vmem:[#allocation1 + $0x36] sm:$0xff]
    %v1123 = vld [vmem:[#allocation1 + $0x3f] sm:$0xff]
    %1125 = vst [vmem:[#allocation1] ss:$9 sm:$0xff] %v34
    %v1126 = vld [vmem:[#allocation1] sm:$0xff]
    %v1127 = vld [vmem:[#allocation1 + $0x9] sm:$0xff]
    %v1128 = vld [vmem:[#allocation1 + $0x12] sm:$0xff]
    %v1129 = vld [vmem:[#allocation1 + $0x1b] sm:$0xff]
    %v1130 = vld [vmem:[#allocation1 + $0x24] sm:$0xff]
    %v1131 = vld [vmem:[#allocation1 + $0x2d] sm:$0xff]
    %v1132 = vld [vmem:[#allocation1 + $0x36] sm:$0xff]
    %v1133 = vld [vmem:[#allocation1 + $0x3f] sm:$0xff]
    %1135 = vst [vmem:[#allocation1] ss:$9 sm:$0xff] %v35
    %v1136 = vld [vmem:[#allocation1] sm:$0xff]
    %v1137 = vld [vmem:[#allocation1 + $0x9] sm:$0xff]
    %v1138 = vld [vmem:[#allocation1 + $0x12] sm:$0xff]
    %v1139 = vld [vmem:[#allocation1 + $0x1b] sm:$0xff]
    %v1140 = vld [vmem:[#allocation1 + $0x24] sm:$0xff]
    %v1141 = vld [vmem:[#allocation1 + $0x2d] sm:$0xff]
    %v1142 = vld [vmem:[#allocation1 + $0x36] sm:$0xff]
    %v1143 = vld [vmem:[#allocation1 + $0x3f] sm:$0xff]
    %v2232 = vunpack.c.l.b16 %v36
    %v2233 = vunpack.c.l.b16 %v37
    %v2234 = vunpack.c.l.b16 %v38
    %v2235 = vunpack.c.l.b16 %v39
    %v2236 = vunpack.c.l.b16 %v40
    %v2237 = vunpack.c.l.b16 %v41
    %v2238 = vunpack.c.l.b16 %v42
    %v2239 = vunpack.c.l.b16 %v43
    %v2240 = vunpack.c.l.b16 %v44
    %v2241 = vunpack.c.l.b16 %v45
    %v2242 = vunpack.c.l.b16 %v46
    %v2243 = vunpack.c.l.b16 %v47
    %v2244 = vunpack.c.l.b16 %v48
    %v2245 = vunpack.c.l.b16 %v49
    %v2246 = vunpack.c.l.b16 %v50
    %v2247 = vunpack.c.l.b16 %v51
    %v2248 = vunpack.c.l.b16 %v52
    %v2249 = vunpack.c.l.b16 %v53
    %v2250 = vunpack.c.l.b16 %v54
    %v2251 = vunpack.c.l.b16 %v55
    %v2252 = vunpack.c.l.b16 %v56
    %v2253 = vunpack.c.l.b16 %v57
    %v2254 = vunpack.c.l.b16 %v58
    %v2255 = vunpack.c.l.b16 %v59
    %v2256 = vunpack.c.l.b16 %v60
    %v2257 = vunpack.c.l.b16 %v61
    %v2258 = vunpack.c.l.b16 %v62
    %v2259 = vunpack.c.l.b16 %v63
    %v2260 = vunpack.c.l.b16 %v64
    %v2261 = vunpack.c.l.b16 %v65
    %v2262 = vunpack.c.l.b16 %v66
    %v2263 = vunpack.c.l.b16 %v67
    %v2264 = vunpack.c.l.b16 %v68
    %v2265 = vunpack.c.l.b16 %v69
    %v2266 = vunpack.c.l.b16 %v70
    %v2267 = vunpack.c.l.b16 %v71
    %v2268 = vunpack.c.l.b16 %v72
    %v2269 = vunpack.c.l.b16 %v73
    %v2270 = vunpack.c.l.b16 %v74
    %v2271 = vunpack.c.l.b16 %v75
    %v2272 = vunpack.c.l.b16 %v76
    %v2273 = vunpack.c.l.b16 %v77
    %v2274 = vunpack.c.l.b16 %v78
    %v2275 = vunpack.c.l.b16 %v79
    %v2276 = vunpack.c.l.b16 %v80
    %v2277 = vunpack.c.l.b16 %v81
    %v2278 = vunpack.c.l.b16 %v82
    %v2279 = vunpack.c.l.b16 %v83
    %v2280 = vunpack.c.l.b16 %v84
    %v2281 = vunpack.c.l.b16 %v85
    %v2282 = vunpack.c.l.b16 %v86
    %v2283 = vunpack.c.l.b16 %v87
    %v2284 = vunpack.c.l.b16 %v88
    %v2285 = vunpack.c.l.b16 %v89
    %v2286 = vunpack.c.l.b16 %v90
    %v2287 = vunpack.c.l.b16 %v91
    %v2288 = vunpack.c.l.b16 %v92
    %v2289 = vunpack.c.l.b16 %v93
    %v2290 = vunpack.c.l.b16 %v94
    %v2291 = vunpack.c.l.b16 %v95
    %v2292 = vunpack.c.l.b16 %v96
    %v2293 = vunpack.c.l.b16 %v97
    %v2294 = vunpack.c.l.b16 %v98
    %v2295 = vunpack.c.l.b16 %v99
    %v2296 = vunpack.c.l.b16 %v100
    %v2297 = vunpack.c.l.b16 %v101
    %v2298 = vunpack.c.l.b16 %v102
    %v2299 = vunpack.c.l.b16 %v103
    %v2300 = vunpack.c.l.b16 %v104
    %v2301 = vunpack.c.l.b16 %v105
    %v2302 = vunpack.c.l.b16 %v106
    %v2303 = vunpack.c.l.b16 %v107
    %v2304 = vunpack.c.l.b16 %v108
    %v2305 = vunpack.c.l.b16 %v109
    %v2306 = vunpack.c.l.b16 %v110
    %v2307 = vunpack.c.l.b16 %v111
    %v2308 = vunpack.c.l.b16 %v112
    %v2309 = vunpack.c.l.b16 %v113
    %v2310 = vunpack.c.l.b16 %v114
    %v2311 = vunpack.c.l.b16 %v115
    %v2312 = vunpack.c.l.b16 %v116
    %v2313 = vunpack.c.l.b16 %v117
    %v2314 = vunpack.c.l.b16 %v118
    %v2315 = vunpack.c.l.b16 %v119
    %v2316 = vunpack.c.l.b16 %v120
    %v2317 = vunpack.c.l.b16 %v121
    %v2318 = vunpack.c.l.b16 %v122
    %v2319 = vunpack.c.l.b16 %v123
    %v2320 = vunpack.c.l.b16 %v124
    %v2321 = vunpack.c.l.b16 %v125
    %v2322 = vunpack.c.l.b16 %v126
    %v2323 = vunpack.c.l.b16 %v127
    %v2324 = vunpack.c.l.b16 %v128
    %v2325 = vunpack.c.l.b16 %v129
    %v2326 = vunpack.c.l.b16 %v130
    %v2327 = vunpack.c.l.b16 %v131
    %v2328 = vunpack.c.l.b16 %v132
    %v2329 = vunpack.c.l.b16 %v133
    %v2330 = vunpack.c.l.b16 %v134
    %v2331 = vunpack.c.l.b16 %v135
    %v2332 = vunpack.c.l.b16 %v136
    %v2333 = vunpack.c.l.b16 %v137
    %v2334 = vunpack.c.l.b16 %v138
    %v2335 = vunpack.c.l.b16 %v139
    %v2336 = vunpack.c.l.b16 %v140
    %v2337 = vunpack.c.l.b16 %v141
    %v2338 = vunpack.c.l.b16 %v142
    %v2339 = vunpack.c.l.b16 %v143
    %v2340 = vunpack.c.l.b16 %v144
    %v2341 = vunpack.c.l.b16 %v145
    %v2342 = vunpack.c.l.b16 %v146
    %v2343 = vunpack.c.l.b16 %v147
    %v2344 = vunpack.c.l.b16 %v148
    %v2345 = vunpack.c.l.b16 %v149
    %v2346 = vunpack.c.l.b16 %v150
    %v2347 = vunpack.c.l.b16 %v151
    %v2348 = vunpack.c.l.b16 %v152
    %v2349 = vunpack.c.l.b16 %v153
    %v2350 = vunpack.c.l.b16 %v154
    %v2351 = vunpack.c.l.b16 %v155
    %v2352 = vunpack.c.l.b16 %v156
    %v2353 = vunpack.c.l.b16 %v157
    %v2354 = vunpack.c.l.b16 %v158
    %v2355 = vunpack.c.l.b16 %v159
    %v2356 = vunpack.c.l.b16 %v160
    %v2357 = vunpack.c.l.b16 %v161
    %v2358 = vunpack.c.l.b16 %v162
    %v2359 = vunpack.c.l.b16 %v163
    %v2360 = vunpack.c.l.b16 %v164
    %v2361 = vunpack.c.l.b16 %v165
    %v2362 = vunpack.c.l.b16 %v166
    %v2363 = vunpack.c.l.b16 %v167
    %v2364 = vunpack.c.l.b16 %v168
    %v2365 = vunpack.c.l.b16 %v169
    %v2366 = vunpack.c.l.b16 %v170
    %v2367 = vunpack.c.l.b16 %v171
    %v2368 = vunpack.c.l.b16 %v172
    %v2369 = vunpack.c.l.b16 %v173
    %v2370 = vunpack.c.l.b16 %v174
    %v2371 = vunpack.c.l.b16 %v175
    %v2372 = vunpack.c.l.b16 %v176
    %v2373 = vunpack.c.l.b16 %v177
    %v2374 = vunpack.c.l.b16 %v178
    %v2375 = vunpack.c.l.b16 %v179
    %v2376 = vunpack.c.l.b16 %v180
    %v2377 = vunpack.c.l.b16 %v181
    %v2378 = vunpack.c.l.b16 %v182
    %v2379 = vunpack.c.l.b16 %v183
    %v2380 = vunpack.c.l.b16 %v184
    %v2381 = vunpack.c.l.b16 %v185
    %v2382 = vunpack.c.l.b16 %v186
    %v2383 = vunpack.c.l.b16 %v187
    %v2384 = vunpack.c.l.b16 %v188
    %v2385 = vunpack.c.l.b16 %v189
    %v2386 = vunpack.c.l.b16 %v190
    %v2387 = vunpack.c.l.b16 %v191
    %v2388 = vunpack.c.l.b16 %v192
    %v2389 = vunpack.c.l.b16 %v193
    %v2390 = vunpack.c.l.b16 %v194
    %v2391 = vunpack.c.l.b16 %v195
    %v2392 = vunpack.c.l.b16 %v196
    %v2393 = vunpack.c.l.b16 %v197
    %v2394 = vunpack.c.l.b16 %v198
    %v2395 = vunpack.c.l.b16 %v199
    %v2396 = vunpack.c.l.b16 %v200
    %v2397 = vunpack.c.l.b16 %v201
    %v2398 = vunpack.c.l.b16 %v202
    %v2399 = vunpack.c.l.b16 %v203
    %v2400 = vunpack.c.l.b16 %v204
    %v2401 = vunpack.c.l.b16 %v205
    %v2402 = vunpack.c.l.b16 %v206
    %v2403 = vunpack.c.l.b16 %v207
    %v2404 = vunpack.c.l.b16 %v208
    %v2405 = vunpack.c.l.b16 %v209
    %v2406 = vunpack.c.l.b16 %v210
    %v2407 = vunpack.c.l.b16 %v211
    %v2408 = vunpack.c.l.b16 %v212
    %v2409 = vunpack.c.l.b16 %v213
    %v2410 = vunpack.c.l.b16 %v214
    %v2411 = vunpack.c.l.b16 %v215
    %v2412 = vunpack.c.l.b16 %v216
    %v2413 = vunpack.c.l.b16 %v217
    %v2414 = vunpack.c.l.b16 %v218
    %v2415 = vunpack.c.l.b16 %v219
    %v2416 = vunpack.c.l.b16 %v220
    %v2417 = vunpack.c.l.b16 %v221
    %v2418 = vunpack.c.l.b16 %v222
    %v2419 = vunpack.c.l.b16 %v223
    %v2420 = vunpack.c.l.b16 %v224
    %v2421 = vunpack.c.l.b16 %v225
    %v2422 = vunpack.c.l.b16 %v226
    %v2423 = vunpack.c.l.b16 %v227
    %v2424 = vunpack.c.l.b16 %v228
    %v2425 = vunpack.c.l.b16 %v229
    %v2426 = vunpack.c.l.b16 %v230
    %v2427 = vunpack.c.l.b16 %v231
    %v2428 = vunpack.c.l.b16 %v232
    %v2429 = vunpack.c.l.b16 %v233
    %v2430 = vunpack.c.l.b16 %v234
    %v2431 = vunpack.c.l.b16 %v235
    %v2432 = vunpack.c.l.b16 %v236
    %v2433 = vunpack.c.l.b16 %v237
    %v2434 = vunpack.c.l.b16 %v238
    %v2435 = vunpack.c.l.b16 %v239
    %v2436 = vunpack.c.l.b16 %v240
    %v2437 = vunpack.c.l.b16 %v241
    %v2438 = vunpack.c.l.b16 %v242
    %v2439 = vunpack.c.l.b16 %v243
    %v2440 = vunpack.c.l.b16 %v244
    %v2441 = vunpack.c.l.b16 %v245
    %v2442 = vunpack.c.l.b16 %v246
    %v2443 = vunpack.c.l.b16 %v247
    %v2444 = vunpack.c.l.b16 %v248
    %v2445 = vunpack.c.l.b16 %v249
    %v2446 = vunpack.c.l.b16 %v250
    %v2447 = vunpack.c.l.b16 %v251
    %v2448 = vunpack.c.l.b16 %v252
    %v2449 = vunpack.c.l.b16 %v253
    %v2450 = vunpack.c.l.b16 %v254
    %v2451 = vunpack.c.l.b16 %v255
    %v2452 = vunpack.c.l.b16 %v256
    %v2453 = vunpack.c.l.b16 %v257
    %v2454 = vunpack.c.l.b16 %v258
    %v2455 = vunpack.c.l.b16 %v259
    %v2456 = vunpack.c.l.b16 %v260
    %v2457 = vunpack.c.l.b16 %v261
    %v2458 = vunpack.c.l.b16 %v262
    %v2459 = vunpack.c.l.b16 %v263
    %v2460 = vunpack.c.l.b16 %v264
    %v2461 = vunpack.c.l.b16 %v265
    %v2462 = vunpack.c.l.b16 %v266
    %v2463 = vunpack.c.l.b16 %v267
    %v2464 = vunpack.c.l.b16 %v268
    %v2465 = vunpack.c.l.b16 %v269
    %v2466 = vunpack.c.l.b16 %v270
    %v2467 = vunpack.c.l.b16 %v271
    %v2468 = vunpack.c.l.b16 %v272
    %v2469 = vunpack.c.l.b16 %v273
    %v2470 = vunpack.c.l.b16 %v274
    %v2471 = vunpack.c.l.b16 %v275
    %v2472 = vunpack.c.l.b16 %v276
    %v2473 = vunpack.c.l.b16 %v277
    %v2474 = vunpack.c.l.b16 %v278
    %v2475 = vunpack.c.l.b16 %v279
    %v2476 = vunpack.c.l.b16 %v280
    %v2477 = vunpack.c.l.b16 %v281
    %v2478 = vunpack.c.l.b16 %v282
    %v2479 = vunpack.c.l.b16 %v283
    %v2480 = vunpack.c.l.b16 %v284
    %v2481 = vunpack.c.l.b16 %v285
    %v2482 = vunpack.c.l.b16 %v286
    %v2483 = vunpack.c.l.b16 %v287
    %v2484 = vunpack.c.l.b16 %v288
    %v2485 = vunpack.c.l.b16 %v289
    %v2486 = vunpack.c.l.b16 %v290
    %v2487 = vunpack.c.l.b16 %v291
    %v2488 = vunpack.c.l.b16 %v292
    %v2489 = vunpack.c.l.b16 %v293
    %v2490 = vunpack.c.l.b16 %v294
    %v2491 = vunpack.c.l.b16 %v295
    %v2492 = vunpack.c.l.b16 %v296
    %v2493 = vunpack.c.l.b16 %v297
    %v2494 = vunpack.c.l.b16 %v298
    %v2495 = vunpack.c.l.b16 %v299
    %v2496 = vunpack.c.l.b16 %v300
    %v2497 = vunpack.c.l.b16 %v301
    %v2498 = vunpack.c.l.b16 %v302
    %v2499 = vunpack.c.l.b16 %v303
    %v2500 = vunpack.c.l.b16 %v304
    %v2501 = vunpack.c.l.b16 %v305
    %v2502 = vunpack.c.l.b16 %v306
    %v2503 = vunpack.c.l.b16 %v307
    %v2504 = vunpack.c.l.b16 %v308
    %v2505 = vunpack.c.l.b16 %v309
    %v2506 = vunpack.c.l.b16 %v310
    %v2507 = vunpack.c.l.b16 %v311
    %v2508 = vunpack.c.l.b16 %v312
    %v2509 = vunpack.c.l.b16 %v313
    %v2510 = vunpack.c.l.b16 %v314
    %v2511 = vunpack.c.l.b16 %v315
    %v2512 = vunpack.c.l.b16 %v316
    %v2513 = vunpack.c.l.b16 %v317
    %v2514 = vunpack.c.l.b16 %v318
    %v2515 = vunpack.c.l.b16 %v319
    %v2516 = vunpack.c.l.b16 %v320
    %v2517 = vunpack.c.l.b16 %v321
    %v2518 = vunpack.c.l.b16 %v322
    %v2519 = vunpack.c.l.b16 %v323
    %v2520 = vunpack.c.l.b16 %v324
    %v2521 = vunpack.c.l.b16 %v325
    %v2522 = vunpack.c.l.b16 %v326
    %v2523 = vunpack.c.l.b16 %v327
    %v2524 = vunpack.c.l.b16 %v328
    %v2525 = vunpack.c.l.b16 %v329
    %v2526 = vunpack.c.l.b16 %v330
    %v2527 = vunpack.c.l.b16 %v331
    %v2528 = vunpack.c.l.b16 %v332
    %v2529 = vunpack.c.l.b16 %v333
    %v2530 = vunpack.c.l.b16 %v334
    %v2531 = vunpack.c.l.b16 %v335
    %v2532 = vunpack.c.l.b16 %v336
    %v2533 = vunpack.c.l.b16 %v337
    %v2534 = vunpack.c.l.b16 %v338
    %v2535 = vunpack.c.l.b16 %v339
    %v2536 = vunpack.c.l.b16 %v340
    %v2537 = vunpack.c.l.b16 %v341
    %v2538 = vunpack.c.l.b16 %v342
    %v2539 = vunpack.c.l.b16 %v343
    %v2540 = vunpack.c.l.b16 %v344
    %v2541 = vunpack.c.l.b16 %v345
    %v2542 = vunpack.c.l.b16 %v346
    %v2543 = vunpack.c.l.b16 %v347
    %v2544 = vunpack.c.l.b16 %v348
    %v2545 = vunpack.c.l.b16 %v349
    %v2546 = vunpack.c.l.b16 %v350
    %v2547 = vunpack.c.l.b16 %v351
    %v2548 = vunpack.c.l.b16 %v352
    %v2549 = vunpack.c.l.b16 %v353
    %v2550 = vunpack.c.l.b16 %v354
    %v2551 = vunpack.c.l.b16 %v355
    %v2552 = vunpack.c.l.b16 %v356
    %v2553 = vunpack.c.l.b16 %v357
    %v2554 = vunpack.c.l.b16 %v358
    %v2555 = vunpack.c.l.b16 %v359
    %v2556 = vunpack.c.l.b16 %v360
    %v2557 = vunpack.c.l.b16 %v361
    %v2558 = vunpack.c.l.b16 %v362
    %v2559 = vunpack.c.l.b16 %v363
    %v2560 = vunpack.c.l.b16 %v364
    %v2561 = vunpack.c.l.b16 %v365
    %v2562 = vunpack.c.l.b16 %v366
    %v2563 = vunpack.c.l.b16 %v367
    %v2564 = vunpack.c.l.b16 %v368
    %v2565 = vunpack.c.l.b16 %v369
    %v2566 = vunpack.c.l.b16 %v370
    %v2567 = vunpack.c.l.b16 %v371
    %v2568 = vunpack.c.l.b16 %v372
    %v2569 = vunpack.c.l.b16 %v373
    %v2570 = vunpack.c.l.b16 %v374
    %v2571 = vunpack.c.l.b16 %v375
    %v2572 = vunpack.c.l.b16 %v376
    %v2573 = vunpack.c.l.b16 %v377
    %v2574 = vunpack.c.l.b16 %v378
    %v2575 = vunpack.c.l.b16 %v379
    %v2576 = vunpack.c.l.b16 %v380
    %v2577 = vunpack.c.l.b16 %v381
    %v2578 = vunpack.c.l.b16 %v382
    %v2579 = vunpack.c.l.b16 %v383
    %v2580 = vunpack.c.l.b16 %v384
    %v2581 = vunpack.c.l.b16 %v385
    %v2582 = vunpack.c.l.b16 %v386
    %v2583 = vunpack.c.l.b16 %v387
    %v2584 = vunpack.c.l.b16 %v388
    %v2585 = vunpack.c.l.b16 %v389
    %v2586 = vunpack.c.l.b16 %v390
    %v2587 = vunpack.c.l.b16 %v391
    %v2588 = vunpack.c.l.b16 %v392
    %v2589 = vunpack.c.l.b16 %v393
    %v2590 = vunpack.c.l.b16 %v394
    %v2591 = vunpack.c.l.b16 %v395
    %v2592 = vunpack.c.l.b16 %v396
    %v2593 = vunpack.c.l.b16 %v397
    %v2594 = vunpack.c.l.b16 %v398
    %v2595 = vunpack.c.l.b16 %v399
    %v2596 = vunpack.c.l.b16 %v400
    %v2597 = vunpack.c.l.b16 %v401
    %v2598 = vunpack.c.l.b16 %v402
    %v2599 = vunpack.c.l.b16 %v403
    %v2600 = vunpack.c.l.b16 %v404
    %v2601 = vunpack.c.l.b16 %v405
    %v2602 = vunpack.c.l.b16 %v406
    %v2603 = vunpack.c.l.b16 %v407
    %v2604 = vunpack.c.l.b16 %v408
    %v2605 = vunpack.c.l.b16 %v409
    %v2606 = vunpack.c.l.b16 %v410
    %v2607 = vunpack.c.l.b16 %v411
    %v2608 = vunpack.c.l.b16 %v412
    %v2609 = vunpack.c.l.b16 %v413
    %v2610 = vunpack.c.l.b16 %v414
    %v2611 = vunpack.c.l.b16 %v415
    %v2612 = vunpack.c.l.b16 %v416
    %v2613 = vunpack.c.l.b16 %v417
    %v2614 = vunpack.c.l.b16 %v418
    %v2615 = vunpack.c.l.b16 %v419
    %v2616 = vunpack.c.l.b16 %v420
    %v2617 = vunpack.c.l.b16 %v421
    %v2618 = vunpack.c.l.b16 %v422
    %v2619 = vunpack.c.l.b16 %v423
    %v2620 = vunpack.c.l.b16 %v424
    %v2621 = vunpack.c.l.b16 %v425
    %v2622 = vunpack.c.l.b16 %v426
    %v2623 = vunpack.c.l.b16 %v427
    %v2624 = vunpack.c.l.b16 %v428
    %v2625 = vunpack.c.l.b16 %v429
    %v2626 = vunpack.c.l.b16 %v430
    %v2627 = vunpack.c.l.b16 %v431
    %v2628 = vunpack.c.l.b16 %v432
    %v2629 = vunpack.c.l.b16 %v433
    %v2630 = vunpack.c.l.b16 %v434
    %v2631 = vunpack.c.l.b16 %v435
    %v2632 = vunpack.c.l.b16 %v436
    %v2633 = vunpack.c.l.b16 %v437
    %v2634 = vunpack.c.l.b16 %v438
    %v2635 = vunpack.c.l.b16 %v439
    %v2636 = vunpack.c.l.b16 %v440
    %v2637 = vunpack.c.l.b16 %v441
    %v2638 = vunpack.c.l.b16 %v442
    %v2639 = vunpack.c.l.b16 %v443
    %v2640 = vunpack.c.l.b16 %v444
    %v2641 = vunpack.c.l.b16 %v445
    %v2642 = vunpack.c.l.b16 %v446
    %v2643 = vunpack.c.l.b16 %v447
    %v2644 = vunpack.c.l.b16 %v448
    %v2645 = vunpack.c.l.b16 %v449
    %v2646 = vunpack.c.l.b16 %v450
    %v2647 = vunpack.c.l.b16 %v451
    %v2648 = vunpack.c.l.b16 %v452
    %v2649 = vunpack.c.l.b16 %v453
    %v2650 = vunpack.c.l.b16 %v454
    %v2651 = vunpack.c.l.b16 %v455
    %v2652 = vunpack.c.l.b16 %v456
    %v2653 = vunpack.c.l.b16 %v457
    %v2654 = vunpack.c.l.b16 %v458
    %v2655 = vunpack.c.l.b16 %v459
    %v2656 = vunpack.c.l.b16 %v460
    %v2657 = vunpack.c.l.b16 %v461
    %v2658 = vunpack.c.l.b16 %v462
    %v2659 = vunpack.c.l.b16 %v463
    %v2660 = vunpack.c.l.b16 %v464
    %v2661 = vunpack.c.l.b16 %v465
    %v2662 = vunpack.c.l.b16 %v466
    %v2663 = vunpack.c.l.b16 %v467
    %v2664 = vunpack.c.l.b16 %v468
    %v2665 = vunpack.c.l.b16 %v469
    %v2666 = vunpack.c.l.b16 %v470
    %v2667 = vunpack.c.l.b16 %v471
    %v2668 = vunpack.c.l.b16 %v472
    %v2669 = vunpack.c.l.b16 %v473
    %v2670 = vunpack.c.l.b16 %v474
    %v2671 = vunpack.c.l.b16 %v475
    %v2672 = vunpack.c.l.b16 %v476
    %v2673 = vunpack.c.l.b16 %v477
    %v2674 = vunpack.c.l.b16 %v478
    %v2675 = vunpack.c.l.b16 %v479
    %v2676 = vunpack.c.l.b16 %v480
    %v2677 = vunpack.c.l.b16 %v481
    %v2678 = vunpack.c.l.b16 %v482
    %v2679 = vunpack.c.l.b16 %v483
    %v2680 = vunpack.c.l.b16 %v484
    %v2681 = vunpack.c.l.b16 %v485
    %v2682 = vunpack.c.l.b16 %v486
    %v2683 = vunpack.c.l.b16 %v487
    %v2684 = vunpack.c.l.b16 %v488
    %v2685 = vunpack.c.l.b16 %v489
    %v2686 = vunpack.c.l.b16 %v490
    %v2687 = vunpack.c.l.b16 %v491
    %v2688 = vunpack.c.l.b16 %v492
    %v2689 = vunpack.c.l.b16 %v493
    %v2690 = vunpack.c.l.b16 %v494
    %v2691 = vunpack.c.l.b16 %v495
    %v2692 = vunpack.c.l.b16 %v496
    %v2693 = vunpack.c.l.b16 %v497
    %v2694 = vunpack.c.l.b16 %v498
    %v2695 = vunpack.c.l.b16 %v499
    %v2696 = vunpack.c.l.b16 %v500
    %v2697 = vunpack.c.l.b16 %v501
    %v2698 = vunpack.c.l.b16 %v502
    %v2699 = vunpack.c.l.b16 %v503
    %v2700 = vunpack.c.l.b16 %v504
    %v2701 = vunpack.c.l.b16 %v505
    %v2702 = vunpack.c.l.b16 %v506
    %v2703 = vunpack.c.l.b16 %v507
    %v2704 = vunpack.c.l.b16 %v508
    %v2705 = vunpack.c.l.b16 %v509
    %v2706 = vunpack.c.l.b16 %v510
    %v2707 = vunpack.c.l.b16 %v511
    %v2708 = vunpack.c.l.b16 %v512
    %v2709 = vunpack.c.l.b16 %v513
    %v2710 = vunpack.c.l.b16 %v514
    %v2711 = vunpack.c.l.b16 %v515
    %v2712 = vunpack.c.l.b16 %v516
    %v2713 = vunpack.c.l.b16 %v517
    %v2714 = vunpack.c.l.b16 %v518
    %v2715 = vunpack.c.l.b16 %v519
    %v2716 = vunpack.c.l.b16 %v520
    %v2717 = vunpack.c.l.b16 %v521
    %v2718 = vunpack.c.l.b16 %v522
    %v2719 = vunpack.c.l.b16 %v523
    %v2720 = vunpack.c.l.b16 %v524
    %v2721 = vunpack.c.l.b16 %v525
    %v2722 = vunpack.c.l.b16 %v526
    %v2723 = vunpack.c.l.b16 %v527
    %v2724 = vunpack.c.l.b16 %v528
    %v2725 = vunpack.c.l.b16 %v529
    %v2726 = vunpack.c.l.b16 %v530
    %v2727 = vunpack.c.l.b16 %v531
    %v2728 = vunpack.c.l.b16 %v532
    %v2729 = vunpack.c.l.b16 %v533
    %v2730 = vunpack.c.l.b16 %v534
    %v2731 = vunpack.c.l.b16 %v535
    %v2732 = vunpack.c.l.b16 %v536
    %v2733 = vunpack.c.l.b16 %v537
    %v2734 = vunpack.c.l.b16 %v538
    %v2735 = vunpack.c.l.b16 %v539
    %v2736 = vunpack.c.l.b16 %v540
    %v2737 = vunpack.c.l.b16 %v541
    %v2738 = vunpack.c.l.b16 %v542
    %v2739 = vunpack.c.l.b16 %v543
    %v2740 = vunpack.c.l.b16 %v544
    %v2741 = vunpack.c.l.b16 %v545
    %v2742 = vunpack.c.l.b16 %v546
    %v2743 = vunpack.c.l.b16 %v547
    %v2744 = vunpack.c.l.b16 %v548
    %v2745 = vunpack.c.l.b16 %v549
    %v2746 = vunpack.c.l.b16 %v550
    %v2747 = vunpack.c.l.b16 %v551
    %v2748 = vunpack.c.l.b16 %v552
    %v2749 = vunpack.c.l.b16 %v553
    %v2750 = vunpack.c.l.b16 %v554
    %v2751 = vunpack.c.l.b16 %v555
    %v2752 = vunpack.c.l.b16 %v556
    %v2753 = vunpack.c.l.b16 %v557
    %v2754 = vunpack.c.l.b16 %v558
    %v2755 = vunpack.c.l.b16 %v559
    %v2756 = vunpack.c.l.b16 %v560
    %v2757 = vunpack.c.l.b16 %v561
    %v2758 = vunpack.c.l.b16 %v562
    %v2759 = vunpack.c.l.b16 %v563
    %v2760 = vunpack.c.l.b16 %v564
    %v2761 = vunpack.c.l.b16 %v565
    %v2762 = vunpack.c.l.b16 %v566
    %v2763 = vunpack.c.l.b16 %v567
    %v2764 = vunpack.c.l.b16 %v568
    %v2765 = vunpack.c.l.b16 %v569
    %v2766 = vunpack.c.l.b16 %v570
    %v2767 = vunpack.c.l.b16 %v571
    %v2768 = vunpack.c.l.b16 %v572
    %v2769 = vunpack.c.l.b16 %v573
    %v2770 = vunpack.c.l.b16 %v574
    %v2771 = vunpack.c.l.b16 %v575
    %v2772 = vunpack.c.l.b16 %v576
    %v2773 = vunpack.c.l.b16 %v577
    %v2774 = vunpack.c.l.b16 %v578
    %v2775 = vunpack.c.l.b16 %v579
    %v2776 = vunpack.c.l.b16 %v580
    %v2777 = vunpack.c.l.b16 %v581
    %v2778 = vunpack.c.l.b16 %v582
    %v2779 = vunpack.c.l.b16 %v583
    %v2780 = vunpack.c.l.b16 %v584
    %v2781 = vunpack.c.l.b16 %v585
    %v2782 = vunpack.c.l.b16 %v586
    %v2783 = vunpack.c.l.b16 %v587
    %v2784 = vunpack.c.l.b16 %v588
    %v2785 = vunpack.c.l.b16 %v589
    %v2786 = vunpack.c.l.b16 %v590
    %v2787 = vunpack.c.l.b16 %v591
    %v2788 = vunpack.c.l.b16 %v592
    %v2789 = vunpack.c.l.b16 %v593
    %v2790 = vunpack.c.l.b16 %v594
    %v2791 = vunpack.c.l.b16 %v595
    %v2792 = vunpack.c.l.b16 %v596
    %v2793 = vunpack.c.l.b16 %v597
    %v2794 = vunpack.c.l.b16 %v598
    %v2795 = vunpack.c.l.b16 %v599
    %v2796 = vunpack.c.l.b16 %v600
    %v2797 = vunpack.c.l.b16 %v601
    %v2798 = vunpack.c.l.b16 %v602
    %v2799 = vunpack.c.l.b16 %v603
    %v2800 = vunpack.c.l.b16 %v604
    %v2801 = vunpack.c.l.b16 %v605
    %v2802 = vunpack.c.l.b16 %v606
    %v2803 = vunpack.c.l.b16 %v607
    %v2804 = vunpack.c.l.b16 %v608
    %v2805 = vunpack.c.l.b16 %v609
    %v2806 = vunpack.c.l.b16 %v610
    %v2807 = vunpack.c.l.b16 %v611
    %v2808 = vunpack.c.l.b16 %v612
    %v2809 = vunpack.c.l.b16 %v613
    %v2810 = vunpack.c.l.b16 %v614
    %v2811 = vunpack.c.l.b16 %v615
    %v2812 = vunpack.c.l.b16 %v616
    %v2813 = vunpack.c.l.b16 %v617
    %v2814 = vunpack.c.l.b16 %v618
    %v2815 = vunpack.c.l.b16 %v619
    %v2816 = vunpack.c.l.b16 %v620
    %v2817 = vunpack.c.l.b16 %v621
    %v2818 = vunpack.c.l.b16 %v622
    %v2819 = vunpack.c.l.b16 %v623
    %v2820 = vunpack.c.l.b16 %v624
    %v2821 = vunpack.c.l.b16 %v625
    %v2822 = vunpack.c.l.b16 %v626
    %v2823 = vunpack.c.l.b16 %v627
    %v2824 = vunpack.c.l.b16 %v628
    %v2825 = vunpack.c.l.b16 %v629
    %v2826 = vunpack.c.l.b16 %v630
    %v2827 = vunpack.c.l.b16 %v631
    %v2828 = vunpack.c.l.b16 %v632
    %v2829 = vunpack.c.l.b16 %v633
    %v2830 = vunpack.c.l.b16 %v634
    %v2831 = vunpack.c.l.b16 %v635
    %v2832 = vunpack.c.l.b16 %v636
    %v2833 = vunpack.c.l.b16 %v637
    %v2834 = vunpack.c.l.b16 %v638
    %v2835 = vunpack.c.l.b16 %v639
    %v2836 = vunpack.c.l.b16 %v640
    %v2837 = vunpack.c.l.b16 %v641
    %v2838 = vunpack.c.l.b16 %v642
    %v2839 = vunpack.c.l.b16 %v643
    %v2840 = vunpack.c.l.b16 %v644
    %v2841 = vunpack.c.l.b16 %v645
    %v2842 = vunpack.c.l.b16 %v646
    %v2843 = vunpack.c.l.b16 %v647
    %v2844 = vunpack.c.l.b16 %v648
    %v2845 = vunpack.c.l.b16 %v649
    %v2846 = vunpack.c.l.b16 %v650
    %v2847 = vunpack.c.l.b16 %v651
    %v2848 = vunpack.c.l.b16 %v652
    %v2849 = vunpack.c.l.b16 %v653
    %v2850 = vunpack.c.l.b16 %v654
    %v2851 = vunpack.c.l.b16 %v655
    %v2852 = vunpack.c.l.b16 %v656
    %v2853 = vunpack.c.l.b16 %v657
    %v2854 = vunpack.c.l.b16 %v658
    %v2855 = vunpack.c.l.b16 %v659
    %v2856 = vunpack.c.l.b16 %v660
    %v2857 = vunpack.c.l.b16 %v661
    %v2858 = vunpack.c.l.b16 %v662
    %v2859 = vunpack.c.l.b16 %v663
    %v2860 = vunpack.c.l.b16 %v664
    %v2861 = vunpack.c.l.b16 %v665
    %v2862 = vunpack.c.l.b16 %v666
    %v2863 = vunpack.c.l.b16 %v667
    %v2864 = vunpack.c.l.b16 %v668
    %v2865 = vunpack.c.l.b16 %v669
    %v2866 = vunpack.c.l.b16 %v670
    %v2867 = vunpack.c.l.b16 %v671
    %v2868 = vunpack.c.l.b16 %v672
    %v2869 = vunpack.c.l.b16 %v673
    %v2870 = vunpack.c.l.b16 %v674
    %v2871 = vunpack.c.l.b16 %v675
    %v2872 = vunpack.c.l.b16 %v676
    %v2873 = vunpack.c.l.b16 %v677
    %v2874 = vunpack.c.l.b16 %v678
    %v2875 = vunpack.c.l.b16 %v679
    %v2876 = vunpack.c.l.b16 %v680
    %v2877 = vunpack.c.l.b16 %v681
    %v2878 = vunpack.c.l.b16 %v682
    %v2879 = vunpack.c.l.b16 %v683
    %v2880 = vunpack.c.l.b16 %v684
    %v2881 = vunpack.c.l.b16 %v685
    %v2882 = vunpack.c.l.b16 %v686
    %v2883 = vunpack.c.l.b16 %v687
    %v2884 = vunpack.c.l.b16 %v688
    %v2885 = vunpack.c.l.b16 %v689
    %v2886 = vunpack.c.l.b16 %v690
    %v2887 = vunpack.c.l.b16 %v691
    %v2888 = vunpack.c.l.b16 %v692
    %v2889 = vunpack.c.l.b16 %v693
    %v2890 = vunpack.c.l.b16 %v694
    %v2891 = vunpack.c.l.b16 %v695
    %v2892 = vunpack.c.l.b16 %v696
    %v2893 = vunpack.c.l.b16 %v697
    %v2894 = vunpack.c.l.b16 %v698
    %v2895 = vunpack.c.l.b16 %v699
    %v2896 = vunpack.c.l.b16 %v700
    %v2897 = vunpack.c.l.b16 %v701
    %v2898 = vunpack.c.l.b16 %v702
    %v2899 = vunpack.c.l.b16 %v703
    %v2900 = vunpack.c.l.b16 %v704
    %v2901 = vunpack.c.l.b16 %v705
    %v2902 = vunpack.c.l.b16 %v706
    %v2903 = vunpack.c.l.b16 %v707
    %v2904 = vunpack.c.l.b16 %v708
    %v2905 = vunpack.c.l.b16 %v709
    %v2906 = vunpack.c.l.b16 %v710
    %v2907 = vunpack.c.l.b16 %v711
    %v2908 = vunpack.c.l.b16 %v712
    %v2909 = vunpack.c.l.b16 %v713
    %v2910 = vunpack.c.l.b16 %v714
    %v2911 = vunpack.c.l.b16 %v715
    %v2912 = vunpack.c.l.b16 %v716
    %v2913 = vunpack.c.l.b16 %v717
    %v2914 = vunpack.c.l.b16 %v718
    %v2915 = vunpack.c.l.b16 %v719
    %v2916 = vunpack.c.l.b16 %v720
    %v2917 = vunpack.c.l.b16 %v721
    %v2918 = vunpack.c.l.b16 %v722
    %v2919 = vunpack.c.l.b16 %v723
    %v2920 = vunpack.c.l.b16 %v724
    %v2921 = vunpack.c.l.b16 %v725
    %v2922 = vunpack.c.l.b16 %v726
    %v2923 = vunpack.c.l.b16 %v727
    %v2924 = vunpack.c.l.b16 %v728
    %v2925 = vunpack.c.l.b16 %v729
    %v2926 = vunpack.c.l.b16 %v730
    %v2927 = vunpack.c.l.b16 %v731
    %v2928 = vunpack.c.l.b16 %v732
    %v2929 = vunpack.c.l.b16 %v733
    %v2930 = vunpack.c.l.b16 %v734
    %v2931 = vunpack.c.l.b16 %v735
    %v2932 = vunpack.c.l.b16 %v736
    %v2933 = vunpack.c.l.b16 %v737
    %v2934 = vunpack.c.l.b16 %v738
    %v2935 = vunpack.c.l.b16 %v739
    %v2936 = vunpack.c.l.b16 %v740
    %v2937 = vunpack.c.l.b16 %v741
    %v2938 = vunpack.c.l.b16 %v742
    %v2939 = vunpack.c.l.b16 %v743
    %v2940 = vunpack.c.l.b16 %v744
    %v2941 = vunpack.c.l.b16 %v745
    %v2942 = vunpack.c.l.b16 %v746
    %v2943 = vunpack.c.l.b16 %v747
    %v2944 = vunpack.c.l.b16 %v748
    %v2945 = vunpack.c.l.b16 %v749
    %v2946 = vunpack.c.l.b16 %v750
    %v2947 = vunpack.c.l.b16 %v751
    %v2948 = vunpack.c.l.b16 %v752
    %v2949 = vunpack.c.l.b16 %v753
    %v2950 = vunpack.c.l.b16 %v754
    %v2951 = vunpack.c.l.b16 %v755
    %v2952 = vunpack.c.l.b16 %v756
    %v2953 = vunpack.c.l.b16 %v757
    %v2954 = vunpack.c.l.b16 %v758
    %v2955 = vunpack.c.l.b16 %v759
    %v2956 = vunpack.c.l.b16 %v760
    %v2957 = vunpack.c.l.b16 %v761
    %v2958 = vunpack.c.l.b16 %v762
    %v2959 = vunpack.c.l.b16 %v763
    %v2960 = vunpack.c.l.b16 %v764
    %v2961 = vunpack.c.l.b16 %v765
    %v2962 = vunpack.c.l.b16 %v766
    %v2963 = vunpack.c.l.b16 %v767
    %v2964 = vunpack.c.l.b16 %v768
    %v2965 = vunpack.c.l.b16 %v769
    %v2966 = vunpack.c.l.b16 %v770
    %v2967 = vunpack.c.l.b16 %v771
    %v2968 = vunpack.c.l.b16 %v772
    %v2969 = vunpack.c.l.b16 %v773
    %v2970 = vunpack.c.l.b16 %v774
    %v2971 = vunpack.c.l.b16 %v775
    %v2972 = vunpack.c.l.b16 %v776
    %v2973 = vunpack.c.l.b16 %v777
    %v2974 = vunpack.c.l.b16 %v778
    %v2975 = vunpack.c.l.b16 %v779
    %v2976 = vunpack.c.l.b16 %v780
    %v2977 = vunpack.c.l.b16 %v781
    %v2978 = vunpack.c.l.b16 %v782
    %v2979 = vunpack.c.l.b16 %v783
    %v2980 = vunpack.c.l.b16 %v784
    %v2981 = vunpack.c.l.b16 %v785
    %v2982 = vunpack.c.l.b16 %v786
    %v2983 = vunpack.c.l.b16 %v787
    %v2984 = vunpack.c.l.b16 %v788
    %v2985 = vunpack.c.l.b16 %v789
    %v2986 = vunpack.c.l.b16 %v790
    %v2987 = vunpack.c.l.b16 %v791
    %v2988 = vunpack.c.l.b16 %v792
    %v2989 = vunpack.c.l.b16 %v793
    %v2990 = vunpack.c.l.b16 %v794
    %v2991 = vunpack.c.l.b16 %v795
    %v2992 = vunpack.c.l.b16 %v796
    %v2993 = vunpack.c.l.b16 %v797
    %v2994 = vunpack.c.l.b16 %v798
    %v2995 = vunpack.c.l.b16 %v799
    %v2996 = vunpack.c.l.b16 %v800
    %v2997 = vunpack.c.l.b16 %v801
    %v2998 = vunpack.c.l.b16 %v802
    %v2999 = vunpack.c.l.b16 %v803
    %v3000 = vunpack.c.l.b16 %v804
    %v3001 = vunpack.c.l.b16 %v805
    %v3002 = vunpack.c.l.b16 %v806
    %v3003 = vunpack.c.l.b16 %v807
    %v3004 = vunpack.c.l.b16 %v808
    %v3005 = vunpack.c.l.b16 %v809
    %v3006 = vunpack.c.l.b16 %v810
    %v3007 = vunpack.c.l.b16 %v811
    %v3008 = vunpack.c.l.b16 %v812
    %v3009 = vunpack.c.l.b16 %v813
    %v3010 = vunpack.c.l.b16 %v814
    %v3011 = vunpack.c.l.b16 %v815
    %v3012 = vunpack.c.l.b16 %v816
    %v3013 = vunpack.c.l.b16 %v817
    %v3014 = vunpack.c.l.b16 %v818
    %v3015 = vunpack.c.l.b16 %v819
    %v3016 = vunpack.c.l.b16 %v820
    %v3017 = vunpack.c.l.b16 %v821
    %v3018 = vunpack.c.l.b16 %v822
    %v3019 = vunpack.c.l.b16 %v823
    %v3020 = vunpack.c.l.b16 %v824
    %v3021 = vunpack.c.l.b16 %v825
    %v3022 = vunpack.c.l.b16 %v826
    %v3023 = vunpack.c.l.b16 %v827
    %v3024 = vunpack.c.l.b16 %v828
    %v3025 = vunpack.c.l.b16 %v829
    %v3026 = vunpack.c.l.b16 %v830
    %v3027 = vunpack.c.l.b16 %v831
    %v3028 = vunpack.c.l.b16 %v832
    %v3029 = vunpack.c.l.b16 %v833
    %v3030 = vunpack.c.l.b16 %v834
    %v3031 = vunpack.c.l.b16 %v835
    %v3032 = vunpack.c.l.b16 %v836
    %v3033 = vunpack.c.l.b16 %v837
    %v3034 = vunpack.c.l.b16 %v838
    %v3035 = vunpack.c.l.b16 %v839
    %v3036 = vunpack.c.l.b16 %v840
    %v3037 = vunpack.c.l.b16 %v841
    %v3038 = vunpack.c.l.b16 %v842
    %v3039 = vunpack.c.l.b16 %v843
    %v3040 = vunpack.c.l.b16 %v844
    %v3041 = vunpack.c.l.b16 %v845
    %v3042 = vunpack.c.l.b16 %v846
    %v3043 = vunpack.c.l.b16 %v847
    %v3044 = vunpack.c.l.b16 %v848
    %v3045 = vunpack.c.l.b16 %v849
    %v3046 = vunpack.c.l.b16 %v850
    %v3047 = vunpack.c.l.b16 %v851
    %v3048 = vunpack.c.l.b16 %v852
    %v3049 = vunpack.c.l.b16 %v853
    %v3050 = vunpack.c.l.b16 %v854
    %v3051 = vunpack.c.l.b16 %v855
    %v3052 = vunpack.c.l.b16 %v856
    %v3053 = vunpack.c.l.b16 %v857
    %v3054 = vunpack.c.l.b16 %v858
    %v3055 = vunpack.c.l.b16 %v859
    %v3056 = vunpack.c.l.b16 %v860
    %v3057 = vunpack.c.l.b16 %v861
    %v3058 = vunpack.c.l.b16 %v862
    %v3059 = vunpack.c.l.b16 %v863
    %v3060 = vunpack.c.l.b16 %v864
    %v3061 = vunpack.c.l.b16 %v865
    %v3062 = vunpack.c.l.b16 %v866
    %v3063 = vunpack.c.l.b16 %v867
    %v3064 = vunpack.c.l.b16 %v868
    %v3065 = vunpack.c.l.b16 %v869
    %v3066 = vunpack.c.l.b16 %v870
    %v3067 = vunpack.c.l.b16 %v871
    %v3068 = vunpack.c.l.b16 %v872
    %v3069 = vunpack.c.l.b16 %v873
    %v3070 = vunpack.c.l.b16 %v874
    %v3071 = vunpack.c.l.b16 %v875
    %v3072 = vunpack.c.l.b16 %v876
    %v3073 = vunpack.c.l.b16 %v877
    %v3074 = vunpack.c.l.b16 %v878
    %v3075 = vunpack.c.l.b16 %v879
    %v3076 = vunpack.c.l.b16 %v880
    %v3077 = vunpack.c.l.b16 %v881
    %v3078 = vunpack.c.l.b16 %v882
    %v3079 = vunpack.c.l.b16 %v883
    %v3080 = vunpack.c.l.b16 %v884
    %v3081 = vunpack.c.l.b16 %v885
    %v3082 = vunpack.c.l.b16 %v886
    %v3083 = vunpack.c.l.b16 %v887
    %v3084 = vunpack.c.l.b16 %v888
    %v3085 = vunpack.c.l.b16 %v889
    %v3086 = vunpack.c.l.b16 %v890
    %v3087 = vunpack.c.l.b16 %v891
    %v3088 = vunpack.c.l.b16 %v892
    %v3089 = vunpack.c.l.b16 %v893
    %v3090 = vunpack.c.l.b16 %v894
    %v3091 = vunpack.c.l.b16 %v895
    %v3092 = vunpack.c.l.b16 %v896
    %v3093 = vunpack.c.l.b16 %v897
    %v3094 = vunpack.c.l.b16 %v898
    %v3095 = vunpack.c.l.b16 %v899
    %v3096 = vunpack.c.l.b16 %v900
    %v3097 = vunpack.c.l.b16 %v901
    %v3098 = vunpack.c.l.b16 %v902
    %v3099 = vunpack.c.l.b16 %v903
    %v3100 = vunpack.c.l.b16 %v904
    %v3101 = vunpack.c.l.b16 %v905
    %v3102 = vunpack.c.l.b16 %v906
    %v3103 = vunpack.c.l.b16 %v907
    %v3104 = vunpack.c.l.b16 %v908
    %v3105 = vunpack.c.l.b16 %v909
    %v3106 = vunpack.c.l.b16 %v910
    %v3107 = vunpack.c.l.b16 %v911
    %v3108 = vunpack.c.l.b16 %v912
    %v3109 = vunpack.c.l.b16 %v913
    %v3110 = vunpack.c.l.b16 %v914
    %v3111 = vunpack.c.l.b16 %v915
    %v3112 = vunpack.c.l.b16 %v916
    %v3113 = vunpack.c.l.b16 %v917
    %v3114 = vunpack.c.l.b16 %v918
    %v3115 = vunpack.c.l.b16 %v919
    %v3116 = vunpack.c.l.b16 %v920
    %v3117 = vunpack.c.l.b16 %v921
    %v3118 = vunpack.c.l.b16 %v922
    %v3119 = vunpack.c.l.b16 %v923
    %v3120 = vunpack.c.l.b16 %v924
    %v3121 = vunpack.c.l.b16 %v925
    %v3122 = vunpack.c.l.b16 %v926
    %v3123 = vunpack.c.l.b16 %v927
    %v3124 = vunpack.c.l.b16 %v928
    %v3125 = vunpack.c.l.b16 %v929
    %v3126 = vunpack.c.l.b16 %v930
    %v3127 = vunpack.c.l.b16 %v931
    %v3128 = vunpack.c.l.b16 %v932
    %v3129 = vunpack.c.l.b16 %v933
    %v3130 = vunpack.c.l.b16 %v934
    %v3131 = vunpack.c.l.b16 %v935
    %v3132 = vunpack.c.l.b16 %v936
    %v3133 = vunpack.c.l.b16 %v937
    %v3134 = vunpack.c.l.b16 %v938
    %v3135 = vunpack.c.l.b16 %v939
    %v3136 = vunpack.c.l.b16 %v940
    %v3137 = vunpack.c.l.b16 %v941
    %v3138 = vunpack.c.l.b16 %v942
    %v3139 = vunpack.c.l.b16 %v943
    %v3140 = vunpack.c.l.b16 %v944
    %v3141 = vunpack.c.l.b16 %v945
    %v3142 = vunpack.c.l.b16 %v946
    %v3143 = vunpack.c.l.b16 %v947
    %v3144 = vunpack.c.l.b16 %v948
    %v3145 = vunpack.c.l.b16 %v949
    %v3146 = vunpack.c.l.b16 %v950
    %v3147 = vunpack.c.l.b16 %v951
    %v3148 = vunpack.c.l.b16 %v952
    %v3149 = vunpack.c.l.b16 %v953
    %v3150 = vunpack.c.l.b16 %v954
    %v3151 = vunpack.c.l.b16 %v955
    %v3152 = vunpack.c.l.b16 %v956
    %v3153 = vunpack.c.l.b16 %v957
    %v3154 = vunpack.c.l.b16 %v958
    %v3155 = vunpack.c.l.b16 %v959
    %v3156 = vunpack.c.l.b16 %v960
    %v3157 = vunpack.c.l.b16 %v961
    %v3158 = vunpack.c.l.b16 %v962
    %v3159 = vunpack.c.l.b16 %v963
    %v3160 = vunpack.c.l.b16 %v964
    %v3161 = vunpack.c.l.b16 %v965
    %v3162 = vunpack.c.l.b16 %v966
    %v3163 = vunpack.c.l.b16 %v967
    %v3164 = vunpack.c.l.b16 %v968
    %v3165 = vunpack.c.l.b16 %v969
    %v3166 = vunpack.c.l.b16 %v970
    %v3167 = vunpack.c.l.b16 %v971
    %v3168 = vunpack.c.l.b16 %v972
    %v3169 = vunpack.c.l.b16 %v973
    %v3170 = vunpack.c.l.b16 %v974
    %v3171 = vunpack.c.l.b16 %v975
    %v3172 = vunpack.c.l.b16 %v976
    %v3173 = vunpack.c.l.b16 %v977
    %v3174 = vunpack.c.l.b16 %v978
    %v3175 = vunpack.c.l.b16 %v979
    %v3176 = vunpack.c.l.b16 %v980
    %v3177 = vunpack.c.l.b16 %v981
    %v3178 = vunpack.c.l.b16 %v982
    %v3179 = vunpack.c.l.b16 %v983
    %v3180 = vunpack.c.l.b16 %v984
    %v3181 = vunpack.c.l.b16 %v985
    %v3182 = vunpack.c.l.b16 %v986
    %v3183 = vunpack.c.l.b16 %v987
    %v3184 = vunpack.c.l.b16 %v988
    %v3185 = vunpack.c.l.b16 %v989
    %v3186 = vunpack.c.l.b16 %v990
    %v3187 = vunpack.c.l.b16 %v991
    %v3188 = vunpack.c.l.b16 %v992
    %v3189 = vunpack.c.l.b16 %v993
    %v3190 = vunpack.c.l.b16 %v994
    %v3191 = vunpack.c.l.b16 %v995
    %v3192 = vunpack.c.l.b16 %v996
    %v3193 = vunpack.c.l.b16 %v997
    %v3194 = vunpack.c.l.b16 %v998
    %v3195 = vunpack.c.l.b16 %v999
    %v3196 = vunpack.c.l.b16 %v1000
    %v3197 = vunpack.c.l.b16 %v1001
    %v3198 = vunpack.c.l.b16 %v1002
    %v3199 = vunpack.c.l.b16 %v1003
    %v3200 = vunpack.c.l.b16 %v1004
    %v3201 = vunpack.c.l.b16 %v1005
    %v3202 = vunpack.c.l.b16 %v1006
    %v3203 = vunpack.c.l.b16 %v1007
    %v3204 = vunpack.c.l.b16 %v1008
    %v3205 = vunpack.c.l.b16 %v1009
    %v3206 = vunpack.c.l.b16 %v1010
    %v3207 = vunpack.c.l.b16 %v1011
    %v3208 = vunpack.c.l.b16 %v1012
    %v3209 = vunpack.c.l.b16 %v1013
    %v3210 = vunpack.c.l.b16 %v1014
    %v3211 = vunpack.c.l.b16 %v1015
    %v3212 = vunpack.c.l.b16 %v1016
    %v3213 = vunpack.c.l.b16 %v1017
    %v3214 = vunpack.c.l.b16 %v1018
    %v3215 = vunpack.c.l.b16 %v1019
    %v3216 = vunpack.c.l.b16 %v1020
    %v3217 = vunpack.c.l.b16 %v1021
    %v3218 = vunpack.c.l.b16 %v1022
    %v3219 = vunpack.c.l.b16 %v1023
    %v3220 = vunpack.c.l.b16 %v1024
    %v3221 = vunpack.c.l.b16 %v1025
    %v3222 = vunpack.c.l.b16 %v1026
    %v3223 = vunpack.c.l.b16 %v1027
    %v3224 = vunpack.c.l.b16 %v1028
    %v3225 = vunpack.c.l.b16 %v1029
    %v3226 = vunpack.c.l.b16 %v1030
    %v3227 = vunpack.c.l.b16 %v1031
    %v3228 = vunpack.c.l.b16 %v1032
    %v3229 = vunpack.c.l.b16 %v1033
    %v3230 = vunpack.c.l.b16 %v1034
    %v3231 = vunpack.c.l.b16 %v1035
    %v3232 = vunpack.c.l.b16 %v1036
    %v3233 = vunpack.c.l.b16 %v1037
    %v3234 = vunpack.c.l.b16 %v1038
    %v3235 = vunpack.c.l.b16 %v1039
    %v3236 = vunpack.c.l.b16 %v1040
    %v3237 = vunpack.c.l.b16 %v1041
    %v3238 = vunpack.c.l.b16 %v1042
    %v3239 = vunpack.c.l.b16 %v1043
    %v3240 = vunpack.c.l.b16 %v1044
    %v3241 = vunpack.c.l.b16 %v1045
    %v3242 = vunpack.c.l.b16 %v1046
    %v3243 = vunpack.c.l.b16 %v1047
    %v3244 = vunpack.c.l.b16 %v1048
    %v3245 = vunpack.c.l.b16 %v1049
    %v3246 = vunpack.c.l.b16 %v1050
    %v3247 = vunpack.c.l.b16 %v1051
    %v3248 = vunpack.c.l.b16 %v1052
    %v3249 = vunpack.c.l.b16 %v1053
    %v3250 = vunpack.c.l.b16 %v1054
    %v3251 = vunpack.c.l.b16 %v1055
    %v3252 = vunpack.c.l.b16 %v1056
    %v3253 = vunpack.c.l.b16 %v1057
    %v3254 = vunpack.c.l.b16 %v1058
    %v3255 = vunpack.c.l.b16 %v1059
    %v3256 = vpack.c.b16 %v2233, %v2232
    %v3257 = vpack.c.b16 %v2235, %v2234
    %v3258 = vpack.c.b16 %v2237, %v2236
    %v3259 = vpack.c.b16 %v2239, %v2238
    %v3260 = vpack.c.b16 %v2241, %v2240
    %v3261 = vpack.c.b16 %v2243, %v2242
    %v3262 = vpack.c.b16 %v2245, %v2244
    %v3263 = vpack.c.b16 %v2247, %v2246
    %v3264 = vpack.c.b16 %v2249, %v2248
    %v3265 = vpack.c.b16 %v2251, %v2250
    %v3266 = vpack.c.b16 %v2253, %v2252
    %v3267 = vpack.c.b16 %v2255, %v2254
    %v3268 = vpack.c.b16 %v2257, %v2256
    %v3269 = vpack.c.b16 %v2259, %v2258
    %v3270 = vpack.c.b16 %v2261, %v2260
    %v3271 = vpack.c.b16 %v2263, %v2262
    %v3272 = vpack.c.b16 %v2265, %v2264
    %v3273 = vpack.c.b16 %v2267, %v2266
    %v3274 = vpack.c.b16 %v2269, %v2268
    %v3275 = vpack.c.b16 %v2271, %v2270
    %v3276 = vpack.c.b16 %v2273, %v2272
    %v3277 = vpack.c.b16 %v2275, %v2274
    %v3278 = vpack.c.b16 %v2277, %v2276
    %v3279 = vpack.c.b16 %v2279, %v2278
    %v3280 = vpack.c.b16 %v2281, %v2280
    %v3281 = vpack.c.b16 %v2283, %v2282
    %v3282 = vpack.c.b16 %v2285, %v2284
    %v3283 = vpack.c.b16 %v2287, %v2286
    %v3284 = vpack.c.b16 %v2289, %v2288
    %v3285 = vpack.c.b16 %v2291, %v2290
    %v3286 = vpack.c.b16 %v2293, %v2292
    %v3287 = vpack.c.b16 %v2295, %v2294
    %v3288 = vpack.c.b16 %v2297, %v2296
    %v3289 = vpack.c.b16 %v2299, %v2298
    %v3290 = vpack.c.b16 %v2301, %v2300
    %v3291 = vpack.c.b16 %v2303, %v2302
    %v3292 = vpack.c.b16 %v2305, %v2304
    %v3293 = vpack.c.b16 %v2307, %v2306
    %v3294 = vpack.c.b16 %v2309, %v2308
    %v3295 = vpack.c.b16 %v2311, %v2310
    %v3296 = vpack.c.b16 %v2313, %v2312
    %v3297 = vpack.c.b16 %v2315, %v2314
    %v3298 = vpack.c.b16 %v2317, %v2316
    %v3299 = vpack.c.b16 %v2319, %v2318
    %v3300 = vpack.c.b16 %v2321, %v2320
    %v3301 = vpack.c.b16 %v2323, %v2322
    %v3302 = vpack.c.b16 %v2325, %v2324
    %v3303 = vpack.c.b16 %v2327, %v2326
    %v3304 = vpack.c.b16 %v2329, %v2328
    %v3305 = vpack.c.b16 %v2331, %v2330
    %v3306 = vpack.c.b16 %v2333, %v2332
    %v3307 = vpack.c.b16 %v2335, %v2334
    %v3308 = vpack.c.b16 %v2337, %v2336
    %v3309 = vpack.c.b16 %v2339, %v2338
    %v3310 = vpack.c.b16 %v2341, %v2340
    %v3311 = vpack.c.b16 %v2343, %v2342
    %v3312 = vpack.c.b16 %v2345, %v2344
    %v3313 = vpack.c.b16 %v2347, %v2346
    %v3314 = vpack.c.b16 %v2349, %v2348
    %v3315 = vpack.c.b16 %v2351, %v2350
    %v3316 = vpack.c.b16 %v2353, %v2352
    %v3317 = vpack.c.b16 %v2355, %v2354
    %v3318 = vpack.c.b16 %v2357, %v2356
    %v3319 = vpack.c.b16 %v2359, %v2358
    %v3320 = vpack.c.b16 %v2361, %v2360
    %v3321 = vpack.c.b16 %v2363, %v2362
    %v3322 = vpack.c.b16 %v2365, %v2364
    %v3323 = vpack.c.b16 %v2367, %v2366
    %v3324 = vpack.c.b16 %v2369, %v2368
    %v3325 = vpack.c.b16 %v2371, %v2370
    %v3326 = vpack.c.b16 %v2373, %v2372
    %v3327 = vpack.c.b16 %v2375, %v2374
    %v3328 = vpack.c.b16 %v2377, %v2376
    %v3329 = vpack.c.b16 %v2379, %v2378
    %v3330 = vpack.c.b16 %v2381, %v2380
    %v3331 = vpack.c.b16 %v2383, %v2382
    %v3332 = vpack.c.b16 %v2385, %v2384
    %v3333 = vpack.c.b16 %v2387, %v2386
    %v3334 = vpack.c.b16 %v2389, %v2388
    %v3335 = vpack.c.b16 %v2391, %v2390
    %v3336 = vpack.c.b16 %v2393, %v2392
    %v3337 = vpack.c.b16 %v2395, %v2394
    %v3338 = vpack.c.b16 %v2397, %v2396
    %v3339 = vpack.c.b16 %v2399, %v2398
    %v3340 = vpack.c.b16 %v2401, %v2400
    %v3341 = vpack.c.b16 %v2403, %v2402
    %v3342 = vpack.c.b16 %v2405, %v2404
    %v3343 = vpack.c.b16 %v2407, %v2406
    %v3344 = vpack.c.b16 %v2409, %v2408
    %v3345 = vpack.c.b16 %v2411, %v2410
    %v3346 = vpack.c.b16 %v2413, %v2412
    %v3347 = vpack.c.b16 %v2415, %v2414
    %v3348 = vpack.c.b16 %v2417, %v2416
    %v3349 = vpack.c.b16 %v2419, %v2418
    %v3350 = vpack.c.b16 %v2421, %v2420
    %v3351 = vpack.c.b16 %v2423, %v2422
    %v3352 = vpack.c.b16 %v2425, %v2424
    %v3353 = vpack.c.b16 %v2427, %v2426
    %v3354 = vpack.c.b16 %v2429, %v2428
    %v3355 = vpack.c.b16 %v2431, %v2430
    %v3356 = vpack.c.b16 %v2433, %v2432
    %v3357 = vpack.c.b16 %v2435, %v2434
    %v3358 = vpack.c.b16 %v2437, %v2436
    %v3359 = vpack.c.b16 %v2439, %v2438
    %v3360 = vpack.c.b16 %v2441, %v2440
    %v3361 = vpack.c.b16 %v2443, %v2442
    %v3362 = vpack.c.b16 %v2445, %v2444
    %v3363 = vpack.c.b16 %v2447, %v2446
    %v3364 = vpack.c.b16 %v2449, %v2448
    %v3365 = vpack.c.b16 %v2451, %v2450
    %v3366 = vpack.c.b16 %v2453, %v2452
    %v3367 = vpack.c.b16 %v2455, %v2454
    %v3368 = vpack.c.b16 %v2457, %v2456
    %v3369 = vpack.c.b16 %v2459, %v2458
    %v3370 = vpack.c.b16 %v2461, %v2460
    %v3371 = vpack.c.b16 %v2463, %v2462
    %v3372 = vpack.c.b16 %v2465, %v2464
    %v3373 = vpack.c.b16 %v2467, %v2466
    %v3374 = vpack.c.b16 %v2469, %v2468
    %v3375 = vpack.c.b16 %v2471, %v2470
    %v3376 = vpack.c.b16 %v2473, %v2472
    %v3377 = vpack.c.b16 %v2475, %v2474
    %v3378 = vpack.c.b16 %v2477, %v2476
    %v3379 = vpack.c.b16 %v2479, %v2478
    %v3380 = vpack.c.b16 %v2481, %v2480
    %v3381 = vpack.c.b16 %v2483, %v2482
    %v3382 = vpack.c.b16 %v2485, %v2484
    %v3383 = vpack.c.b16 %v2487, %v2486
    %v3384 = vpack.c.b16 %v2489, %v2488
    %v3385 = vpack.c.b16 %v2491, %v2490
    %v3386 = vpack.c.b16 %v2493, %v2492
    %v3387 = vpack.c.b16 %v2495, %v2494
    %v3388 = vpack.c.b16 %v2497, %v2496
    %v3389 = vpack.c.b16 %v2499, %v2498
    %v3390 = vpack.c.b16 %v2501, %v2500
    %v3391 = vpack.c.b16 %v2503, %v2502
    %v3392 = vpack.c.b16 %v2505, %v2504
    %v3393 = vpack.c.b16 %v2507, %v2506
    %v3394 = vpack.c.b16 %v2509, %v2508
    %v3395 = vpack.c.b16 %v2511, %v2510
    %v3396 = vpack.c.b16 %v2513, %v2512
    %v3397 = vpack.c.b16 %v2515, %v2514
    %v3398 = vpack.c.b16 %v2517, %v2516
    %v3399 = vpack.c.b16 %v2519, %v2518
    %v3400 = vpack.c.b16 %v2521, %v2520
    %v3401 = vpack.c.b16 %v2523, %v2522
    %v3402 = vpack.c.b16 %v2525, %v2524
    %v3403 = vpack.c.b16 %v2527, %v2526
    %v3404 = vpack.c.b16 %v2529, %v2528
    %v3405 = vpack.c.b16 %v2531, %v2530
    %v3406 = vpack.c.b16 %v2533, %v2532
    %v3407 = vpack.c.b16 %v2535, %v2534
    %v3408 = vpack.c.b16 %v2537, %v2536
    %v3409 = vpack.c.b16 %v2539, %v2538
    %v3410 = vpack.c.b16 %v2541, %v2540
    %v3411 = vpack.c.b16 %v2543, %v2542
    %v3412 = vpack.c.b16 %v2545, %v2544
    %v3413 = vpack.c.b16 %v2547, %v2546
    %v3414 = vpack.c.b16 %v2549, %v2548
    %v3415 = vpack.c.b16 %v2551, %v2550
    %v3416 = vpack.c.b16 %v2553, %v2552
    %v3417 = vpack.c.b16 %v2555, %v2554
    %v3418 = vpack.c.b16 %v2557, %v2556
    %v3419 = vpack.c.b16 %v2559, %v2558
    %v3420 = vpack.c.b16 %v2561, %v2560
    %v3421 = vpack.c.b16 %v2563, %v2562
    %v3422 = vpack.c.b16 %v2565, %v2564
    %v3423 = vpack.c.b16 %v2567, %v2566
    %v3424 = vpack.c.b16 %v2569, %v2568
    %v3425 = vpack.c.b16 %v2571, %v2570
    %v3426 = vpack.c.b16 %v2573, %v2572
    %v3427 = vpack.c.b16 %v2575, %v2574
    %v3428 = vpack.c.b16 %v2577, %v2576
    %v3429 = vpack.c.b16 %v2579, %v2578
    %v3430 = vpack.c.b16 %v2581, %v2580
    %v3431 = vpack.c.b16 %v2583, %v2582
    %v3432 = vpack.c.b16 %v2585, %v2584
    %v3433 = vpack.c.b16 %v2587, %v2586
    %v3434 = vpack.c.b16 %v2589, %v2588
    %v3435 = vpack.c.b16 %v2591, %v2590
    %v3436 = vpack.c.b16 %v2593, %v2592
    %v3437 = vpack.c.b16 %v2595, %v2594
    %v3438 = vpack.c.b16 %v2597, %v2596
    %v3439 = vpack.c.b16 %v2599, %v2598
    %v3440 = vpack.c.b16 %v2601, %v2600
    %v3441 = vpack.c.b16 %v2603, %v2602
    %v3442 = vpack.c.b16 %v2605, %v2604
    %v3443 = vpack.c.b16 %v2607, %v2606
    %v3444 = vpack.c.b16 %v2609, %v2608
    %v3445 = vpack.c.b16 %v2611, %v2610
    %v3446 = vpack.c.b16 %v2613, %v2612
    %v3447 = vpack.c.b16 %v2615, %v2614
    %v3448 = vpack.c.b16 %v2617, %v2616
    %v3449 = vpack.c.b16 %v2619, %v2618
    %v3450 = vpack.c.b16 %v2621, %v2620
    %v3451 = vpack.c.b16 %v2623, %v2622
    %v3452 = vpack.c.b16 %v2625, %v2624
    %v3453 = vpack.c.b16 %v2627, %v2626
    %v3454 = vpack.c.b16 %v2629, %v2628
    %v3455 = vpack.c.b16 %v2631, %v2630
    %v3456 = vpack.c.b16 %v2633, %v2632
    %v3457 = vpack.c.b16 %v2635, %v2634
    %v3458 = vpack.c.b16 %v2637, %v2636
    %v3459 = vpack.c.b16 %v2639, %v2638
    %v3460 = vpack.c.b16 %v2641, %v2640
    %v3461 = vpack.c.b16 %v2643, %v2642
    %v3462 = vpack.c.b16 %v2645, %v2644
    %v3463 = vpack.c.b16 %v2647, %v2646
    %v3464 = vpack.c.b16 %v2649, %v2648
    %v3465 = vpack.c.b16 %v2651, %v2650
    %v3466 = vpack.c.b16 %v2653, %v2652
    %v3467 = vpack.c.b16 %v2655, %v2654
    %v3468 = vpack.c.b16 %v2657, %v2656
    %v3469 = vpack.c.b16 %v2659, %v2658
    %v3470 = vpack.c.b16 %v2661, %v2660
    %v3471 = vpack.c.b16 %v2663, %v2662
    %v3472 = vpack.c.b16 %v2665, %v2664
    %v3473 = vpack.c.b16 %v2667, %v2666
    %v3474 = vpack.c.b16 %v2669, %v2668
    %v3475 = vpack.c.b16 %v2671, %v2670
    %v3476 = vpack.c.b16 %v2673, %v2672
    %v3477 = vpack.c.b16 %v2675, %v2674
    %v3478 = vpack.c.b16 %v2677, %v2676
    %v3479 = vpack.c.b16 %v2679, %v2678
    %v3480 = vpack.c.b16 %v2681, %v2680
    %v3481 = vpack.c.b16 %v2683, %v2682
    %v3482 = vpack.c.b16 %v2685, %v2684
    %v3483 = vpack.c.b16 %v2687, %v2686
    %v3484 = vpack.c.b16 %v2689, %v2688
    %v3485 = vpack.c.b16 %v2691, %v2690
    %v3486 = vpack.c.b16 %v2693, %v2692
    %v3487 = vpack.c.b16 %v2695, %v2694
    %v3488 = vpack.c.b16 %v2697, %v2696
    %v3489 = vpack.c.b16 %v2699, %v2698
    %v3490 = vpack.c.b16 %v2701, %v2700
    %v3491 = vpack.c.b16 %v2703, %v2702
    %v3492 = vpack.c.b16 %v2705, %v2704
    %v3493 = vpack.c.b16 %v2707, %v2706
    %v3494 = vpack.c.b16 %v2709, %v2708
    %v3495 = vpack.c.b16 %v2711, %v2710
    %v3496 = vpack.c.b16 %v2713, %v2712
    %v3497 = vpack.c.b16 %v2715, %v2714
    %v3498 = vpack.c.b16 %v2717, %v2716
    %v3499 = vpack.c.b16 %v2719, %v2718
    %v3500 = vpack.c.b16 %v2721, %v2720
    %v3501 = vpack.c.b16 %v2723, %v2722
    %v3502 = vpack.c.b16 %v2725, %v2724
    %v3503 = vpack.c.b16 %v2727, %v2726
    %v3504 = vpack.c.b16 %v2729, %v2728
    %v3505 = vpack.c.b16 %v2731, %v2730
    %v3506 = vpack.c.b16 %v2733, %v2732
    %v3507 = vpack.c.b16 %v2735, %v2734
    %v3508 = vpack.c.b16 %v2737, %v2736
    %v3509 = vpack.c.b16 %v2739, %v2738
    %v3510 = vpack.c.b16 %v2741, %v2740
    %v3511 = vpack.c.b16 %v2743, %v2742
    %v3512 = vpack.c.b16 %v2745, %v2744
    %v3513 = vpack.c.b16 %v2747, %v2746
    %v3514 = vpack.c.b16 %v2749, %v2748
    %v3515 = vpack.c.b16 %v2751, %v2750
    %v3516 = vpack.c.b16 %v2753, %v2752
    %v3517 = vpack.c.b16 %v2755, %v2754
    %v3518 = vpack.c.b16 %v2757, %v2756
    %v3519 = vpack.c.b16 %v2759, %v2758
    %v3520 = vpack.c.b16 %v2761, %v2760
    %v3521 = vpack.c.b16 %v2763, %v2762
    %v3522 = vpack.c.b16 %v2765, %v2764
    %v3523 = vpack.c.b16 %v2767, %v2766
    %v3524 = vpack.c.b16 %v2769, %v2768
    %v3525 = vpack.c.b16 %v2771, %v2770
    %v3526 = vpack.c.b16 %v2773, %v2772
    %v3527 = vpack.c.b16 %v2775, %v2774
    %v3528 = vpack.c.b16 %v2777, %v2776
    %v3529 = vpack.c.b16 %v2779, %v2778
    %v3530 = vpack.c.b16 %v2781, %v2780
    %v3531 = vpack.c.b16 %v2783, %v2782
    %v3532 = vpack.c.b16 %v2785, %v2784
    %v3533 = vpack.c.b16 %v2787, %v2786
    %v3534 = vpack.c.b16 %v2789, %v2788
    %v3535 = vpack.c.b16 %v2791, %v2790
    %v3536 = vpack.c.b16 %v2793, %v2792
    %v3537 = vpack.c.b16 %v2795, %v2794
    %v3538 = vpack.c.b16 %v2797, %v2796
    %v3539 = vpack.c.b16 %v2799, %v2798
    %v3540 = vpack.c.b16 %v2801, %v2800
    %v3541 = vpack.c.b16 %v2803, %v2802
    %v3542 = vpack.c.b16 %v2805, %v2804
    %v3543 = vpack.c.b16 %v2807, %v2806
    %v3544 = vpack.c.b16 %v2809, %v2808
    %v3545 = vpack.c.b16 %v2811, %v2810
    %v3546 = vpack.c.b16 %v2813, %v2812
    %v3547 = vpack.c.b16 %v2815, %v2814
    %v3548 = vpack.c.b16 %v2817, %v2816
    %v3549 = vpack.c.b16 %v2819, %v2818
    %v3550 = vpack.c.b16 %v2821, %v2820
    %v3551 = vpack.c.b16 %v2823, %v2822
    %v3552 = vpack.c.b16 %v2825, %v2824
    %v3553 = vpack.c.b16 %v2827, %v2826
    %v3554 = vpack.c.b16 %v2829, %v2828
    %v3555 = vpack.c.b16 %v2831, %v2830
    %v3556 = vpack.c.b16 %v2833, %v2832
    %v3557 = vpack.c.b16 %v2835, %v2834
    %v3558 = vpack.c.b16 %v2837, %v2836
    %v3559 = vpack.c.b16 %v2839, %v2838
    %v3560 = vpack.c.b16 %v2841, %v2840
    %v3561 = vpack.c.b16 %v2843, %v2842
    %v3562 = vpack.c.b16 %v2845, %v2844
    %v3563 = vpack.c.b16 %v2847, %v2846
    %v3564 = vpack.c.b16 %v2849, %v2848
    %v3565 = vpack.c.b16 %v2851, %v2850
    %v3566 = vpack.c.b16 %v2853, %v2852
    %v3567 = vpack.c.b16 %v2855, %v2854
    %v3568 = vpack.c.b16 %v2857, %v2856
    %v3569 = vpack.c.b16 %v2859, %v2858
    %v3570 = vpack.c.b16 %v2861, %v2860
    %v3571 = vpack.c.b16 %v2863, %v2862
    %v3572 = vpack.c.b16 %v2865, %v2864
    %v3573 = vpack.c.b16 %v2867, %v2866
    %v3574 = vpack.c.b16 %v2869, %v2868
    %v3575 = vpack.c.b16 %v2871, %v2870
    %v3576 = vpack.c.b16 %v2873, %v2872
    %v3577 = vpack.c.b16 %v2875, %v2874
    %v3578 = vpack.c.b16 %v2877, %v2876
    %v3579 = vpack.c.b16 %v2879, %v2878
    %v3580 = vpack.c.b16 %v2881, %v2880
    %v3581 = vpack.c.b16 %v2883, %v2882
    %v3582 = vpack.c.b16 %v2885, %v2884
    %v3583 = vpack.c.b16 %v2887, %v2886
    %v3584 = vpack.c.b16 %v2889, %v2888
    %v3585 = vpack.c.b16 %v2891, %v2890
    %v3586 = vpack.c.b16 %v2893, %v2892
    %v3587 = vpack.c.b16 %v2895, %v2894
    %v3588 = vpack.c.b16 %v2897, %v2896
    %v3589 = vpack.c.b16 %v2899, %v2898
    %v3590 = vpack.c.b16 %v2901, %v2900
    %v3591 = vpack.c.b16 %v2903, %v2902
    %v3592 = vpack.c.b16 %v2905, %v2904
    %v3593 = vpack.c.b16 %v2907, %v2906
    %v3594 = vpack.c.b16 %v2909, %v2908
    %v3595 = vpack.c.b16 %v2911, %v2910
    %v3596 = vpack.c.b16 %v2913, %v2912
    %v3597 = vpack.c.b16 %v2915, %v2914
    %v3598 = vpack.c.b16 %v2917, %v2916
    %v3599 = vpack.c.b16 %v2919, %v2918
    %v3600 = vpack.c.b16 %v2921, %v2920
    %v3601 = vpack.c.b16 %v2923, %v2922
    %v3602 = vpack.c.b16 %v2925, %v2924
    %v3603 = vpack.c.b16 %v2927, %v2926
    %v3604 = vpack.c.b16 %v2929, %v2928
    %v3605 = vpack.c.b16 %v2931, %v2930
    %v3606 = vpack.c.b16 %v2933, %v2932
    %v3607 = vpack.c.b16 %v2935, %v2934
    %v3608 = vpack.c.b16 %v2937, %v2936
    %v3609 = vpack.c.b16 %v2939, %v2938
    %v3610 = vpack.c.b16 %v2941, %v2940
    %v3611 = vpack.c.b16 %v2943, %v2942
    %v3612 = vpack.c.b16 %v2945, %v2944
    %v3613 = vpack.c.b16 %v2947, %v2946
    %v3614 = vpack.c.b16 %v2949, %v2948
    %v3615 = vpack.c.b16 %v2951, %v2950
    %v3616 = vpack.c.b16 %v2953, %v2952
    %v3617 = vpack.c.b16 %v2955, %v2954
    %v3618 = vpack.c.b16 %v2957, %v2956
    %v3619 = vpack.c.b16 %v2959, %v2958
    %v3620 = vpack.c.b16 %v2961, %v2960
    %v3621 = vpack.c.b16 %v2963, %v2962
    %v3622 = vpack.c.b16 %v2965, %v2964
    %v3623 = vpack.c.b16 %v2967, %v2966
    %v3624 = vpack.c.b16 %v2969, %v2968
    %v3625 = vpack.c.b16 %v2971, %v2970
    %v3626 = vpack.c.b16 %v2973, %v2972
    %v3627 = vpack.c.b16 %v2975, %v2974
    %v3628 = vpack.c.b16 %v2977, %v2976
    %v3629 = vpack.c.b16 %v2979, %v2978
    %v3630 = vpack.c.b16 %v2981, %v2980
    %v3631 = vpack.c.b16 %v2983, %v2982
    %v3632 = vpack.c.b16 %v2985, %v2984
    %v3633 = vpack.c.b16 %v2987, %v2986
    %v3634 = vpack.c.b16 %v2989, %v2988
    %v3635 = vpack.c.b16 %v2991, %v2990
    %v3636 = vpack.c.b16 %v2993, %v2992
    %v3637 = vpack.c.b16 %v2995, %v2994
    %v3638 = vpack.c.b16 %v2997, %v2996
    %v3639 = vpack.c.b16 %v2999, %v2998
    %v3640 = vpack.c.b16 %v3001, %v3000
    %v3641 = vpack.c.b16 %v3003, %v3002
    %v3642 = vpack.c.b16 %v3005, %v3004
    %v3643 = vpack.c.b16 %v3007, %v3006
    %v3644 = vpack.c.b16 %v3009, %v3008
    %v3645 = vpack.c.b16 %v3011, %v3010
    %v3646 = vpack.c.b16 %v3013, %v3012
    %v3647 = vpack.c.b16 %v3015, %v3014
    %v3648 = vpack.c.b16 %v3017, %v3016
    %v3649 = vpack.c.b16 %v3019, %v3018
    %v3650 = vpack.c.b16 %v3021, %v3020
    %v3651 = vpack.c.b16 %v3023, %v3022
    %v3652 = vpack.c.b16 %v3025, %v3024
    %v3653 = vpack.c.b16 %v3027, %v3026
    %v3654 = vpack.c.b16 %v3029, %v3028
    %v3655 = vpack.c.b16 %v3031, %v3030
    %v3656 = vpack.c.b16 %v3033, %v3032
    %v3657 = vpack.c.b16 %v3035, %v3034
    %v3658 = vpack.c.b16 %v3037, %v3036
    %v3659 = vpack.c.b16 %v3039, %v3038
    %v3660 = vpack.c.b16 %v3041, %v3040
    %v3661 = vpack.c.b16 %v3043, %v3042
    %v3662 = vpack.c.b16 %v3045, %v3044
    %v3663 = vpack.c.b16 %v3047, %v3046
    %v3664 = vpack.c.b16 %v3049, %v3048
    %v3665 = vpack.c.b16 %v3051, %v3050
    %v3666 = vpack.c.b16 %v3053, %v3052
    %v3667 = vpack.c.b16 %v3055, %v3054
    %v3668 = vpack.c.b16 %v3057, %v3056
    %v3669 = vpack.c.b16 %v3059, %v3058
    %v3670 = vpack.c.b16 %v3061, %v3060
    %v3671 = vpack.c.b16 %v3063, %v3062
    %v3672 = vpack.c.b16 %v3065, %v3064
    %v3673 = vpack.c.b16 %v3067, %v3066
    %v3674 = vpack.c.b16 %v3069, %v3068
    %v3675 = vpack.c.b16 %v3071, %v3070
    %v3676 = vpack.c.b16 %v3073, %v3072
    %v3677 = vpack.c.b16 %v3075, %v3074
    %v3678 = vpack.c.b16 %v3077, %v3076
    %v3679 = vpack.c.b16 %v3079, %v3078
    %v3680 = vpack.c.b16 %v3081, %v3080
    %v3681 = vpack.c.b16 %v3083, %v3082
    %v3682 = vpack.c.b16 %v3085, %v3084
    %v3683 = vpack.c.b16 %v3087, %v3086
    %v3684 = vpack.c.b16 %v3089, %v3088
    %v3685 = vpack.c.b16 %v3091, %v3090
    %v3686 = vpack.c.b16 %v3093, %v3092
    %v3687 = vpack.c.b16 %v3095, %v3094
    %v3688 = vpack.c.b16 %v3097, %v3096
    %v3689 = vpack.c.b16 %v3099, %v3098
    %v3690 = vpack.c.b16 %v3101, %v3100
    %v3691 = vpack.c.b16 %v3103, %v3102
    %v3692 = vpack.c.b16 %v3105, %v3104
    %v3693 = vpack.c.b16 %v3107, %v3106
    %v3694 = vpack.c.b16 %v3109, %v3108
    %v3695 = vpack.c.b16 %v3111, %v3110
    %v3696 = vpack.c.b16 %v3113, %v3112
    %v3697 = vpack.c.b16 %v3115, %v3114
    %v3698 = vpack.c.b16 %v3117, %v3116
    %v3699 = vpack.c.b16 %v3119, %v3118
    %v3700 = vpack.c.b16 %v3121, %v3120
    %v3701 = vpack.c.b16 %v3123, %v3122
    %v3702 = vpack.c.b16 %v3125, %v3124
    %v3703 = vpack.c.b16 %v3127, %v3126
    %v3704 = vpack.c.b16 %v3129, %v3128
    %v3705 = vpack.c.b16 %v3131, %v3130
    %v3706 = vpack.c.b16 %v3133, %v3132
    %v3707 = vpack.c.b16 %v3135, %v3134
    %v3708 = vpack.c.b16 %v3137, %v3136
    %v3709 = vpack.c.b16 %v3139, %v3138
    %v3710 = vpack.c.b16 %v3141, %v3140
    %v3711 = vpack.c.b16 %v3143, %v3142
    %v3712 = vpack.c.b16 %v3145, %v3144
    %v3713 = vpack.c.b16 %v3147, %v3146
    %v3714 = vpack.c.b16 %v3149, %v3148
    %v3715 = vpack.c.b16 %v3151, %v3150
    %v3716 = vpack.c.b16 %v3153, %v3152
    %v3717 = vpack.c.b16 %v3155, %v3154
    %v3718 = vpack.c.b16 %v3157, %v3156
    %v3719 = vpack.c.b16 %v3159, %v3158
    %v3720 = vpack.c.b16 %v3161, %v3160
    %v3721 = vpack.c.b16 %v3163, %v3162
    %v3722 = vpack.c.b16 %v3165, %v3164
    %v3723 = vpack.c.b16 %v3167, %v3166
    %v3724 = vpack.c.b16 %v3169, %v3168
    %v3725 = vpack.c.b16 %v3171, %v3170
    %v3726 = vpack.c.b16 %v3173, %v3172
    %v3727 = vpack.c.b16 %v3175, %v3174
    %v3728 = vpack.c.b16 %v3177, %v3176
    %v3729 = vpack.c.b16 %v3179, %v3178
    %v3730 = vpack.c.b16 %v3181, %v3180
    %v3731 = vpack.c.b16 %v3183, %v3182
    %v3732 = vpack.c.b16 %v3185, %v3184
    %v3733 = vpack.c.b16 %v3187, %v3186
    %v3734 = vpack.c.b16 %v3189, %v3188
    %v3735 = vpack.c.b16 %v3191, %v3190
    %v3736 = vpack.c.b16 %v3193, %v3192
    %v3737 = vpack.c.b16 %v3195, %v3194
    %v3738 = vpack.c.b16 %v3197, %v3196
    %v3739 = vpack.c.b16 %v3199, %v3198
    %v3740 = vpack.c.b16 %v3201, %v3200
    %v3741 = vpack.c.b16 %v3203, %v3202
    %v3742 = vpack.c.b16 %v3205, %v3204
    %v3743 = vpack.c.b16 %v3207, %v3206
    %v3744 = vpack.c.b16 %v3209, %v3208
    %v3745 = vpack.c.b16 %v3211, %v3210
    %v3746 = vpack.c.b16 %v3213, %v3212
    %v3747 = vpack.c.b16 %v3215, %v3214
    %v3748 = vpack.c.b16 %v3217, %v3216
    %v3749 = vpack.c.b16 %v3219, %v3218
    %v3750 = vpack.c.b16 %v3221, %v3220
    %v3751 = vpack.c.b16 %v3223, %v3222
    %v3752 = vpack.c.b16 %v3225, %v3224
    %v3753 = vpack.c.b16 %v3227, %v3226
    %v3754 = vpack.c.b16 %v3229, %v3228
    %v3755 = vpack.c.b16 %v3231, %v3230
    %v3756 = vpack.c.b16 %v3233, %v3232
    %v3757 = vpack.c.b16 %v3235, %v3234
    %v3758 = vpack.c.b16 %v3237, %v3236
    %v3759 = vpack.c.b16 %v3239, %v3238
    %v3760 = vpack.c.b16 %v3241, %v3240
    %v3761 = vpack.c.b16 %v3243, %v3242
    %v3762 = vpack.c.b16 %v3245, %v3244
    %v3763 = vpack.c.b16 %v3247, %v3246
    %v3764 = vpack.c.b16 %v3249, %v3248
    %v3765 = vpack.c.b16 %v3251, %v3250
    %v3766 = vpack.c.b16 %v3253, %v3252
    %v3767 = vpack.c.b16 %v3255, %v3254
    %4280 = vmatpush.bf16.msra.mxu0 %v3263
    %4281 = vmatpush.bf16.msra.mxu0 %v3262
    %4282 = vmatpush.bf16.msra.mxu0 %v3261
    %4283 = vmatpush.bf16.msra.mxu0 %v3260
    %4284 = vmatpush.bf16.msra.mxu0 %v3259
    %4285 = vmatpush.bf16.msra.mxu0 %v3258
    %4286 = vmatpush.bf16.msra.mxu0 %v3257
    %4287 = vmatpush.bf16.msra.mxu0 %v3256
    %4288 = vmatmul.bf16.gmra.mxu0 %v1066
    %v4289 = vpop.f32.mrf.mxu0
    %v4290 = vadd.f32 %v1062, %v4289
    %v4291 = vpop.f32.mrf.mxu0
    %4292 = vdwg.mxu0
    %4293 = vmatpush.bf16.msra.mxu0 %v3271
    %4294 = vmatpush.bf16.msra.mxu0 %v3270
    %4295 = vmatpush.bf16.msra.mxu0 %v3269
    %4296 = vmatpush.bf16.msra.mxu0 %v3268
    %4297 = vmatpush.bf16.msra.mxu0 %v3267
    %4298 = vmatpush.bf16.msra.mxu0 %v3266
    %4299 = vmatpush.bf16.msra.mxu0 %v3265
    %4300 = vmatpush.bf16.msra.mxu0 %v3264
    %4301 = vmatmul.bf16.gmra.mxu0 %v1067
    %v4302 = vpop.f32.mrf.mxu0
    %v4303 = vadd.f32 %v4290, %v4302
    %v4304 = vpop.f32.mrf.mxu0
    %4305 = vdwg.mxu0
    %4306 = vmatpush.bf16.msra.mxu0 %v3279
    %4307 = vmatpush.bf16.msra.mxu0 %v3278
    %4308 = vmatpush.bf16.msra.mxu0 %v3277
    %4309 = vmatpush.bf16.msra.mxu0 %v3276
    %4310 = vmatpush.bf16.msra.mxu0 %v3275
    %4311 = vmatpush.bf16.msra.mxu0 %v3274
    %4312 = vmatpush.bf16.msra.mxu0 %v3273
    %4313 = vmatpush.bf16.msra.mxu0 %v3272
    %4314 = vmatmul.bf16.gmra.mxu0 %v1068
    %v4315 = vpop.f32.mrf.mxu0
    %v4316 = vadd.f32 %v4303, %v4315
    %v4317 = vpop.f32.mrf.mxu0
    %4318 = vdwg.mxu0
    %4319 = vmatpush.bf16.msra.mxu0 %v3287
    %4320 = vmatpush.bf16.msra.mxu0 %v3286
    %4321 = vmatpush.bf16.msra.mxu0 %v3285
    %4322 = vmatpush.bf16.msra.mxu0 %v3284
    %4323 = vmatpush.bf16.msra.mxu0 %v3283
    %4324 = vmatpush.bf16.msra.mxu0 %v3282
    %4325 = vmatpush.bf16.msra.mxu0 %v3281
    %4326 = vmatpush.bf16.msra.mxu0 %v3280
    %4327 = vmatmul.bf16.gmra.mxu0 %v1069
    %v4328 = vpop.f32.mrf.mxu0
    %v4329 = vadd.f32 %v4316, %v4328
    %v4330 = vpop.f32.mrf.mxu0
    %4331 = vdwg.mxu0
    %4332 = vmatpush.bf16.msra.mxu0 %v3295
    %4333 = vmatpush.bf16.msra.mxu0 %v3294
    %4334 = vmatpush.bf16.msra.mxu0 %v3293
    %4335 = vmatpush.bf16.msra.mxu0 %v3292
    %4336 = vmatpush.bf16.msra.mxu0 %v3291
    %4337 = vmatpush.bf16.msra.mxu0 %v3290
    %4338 = vmatpush.bf16.msra.mxu0 %v3289
    %4339 = vmatpush.bf16.msra.mxu0 %v3288
    %4340 = vmatmul.bf16.gmra.mxu0 %v1070
    %v4341 = vpop.f32.mrf.mxu0
    %v4342 = vadd.f32 %v4329, %v4341
    %v4343 = vpop.f32.mrf.mxu0
    %4344 = vdwg.mxu0
    %4345 = vmatpush.bf16.msra.mxu0 %v3303
    %4346 = vmatpush.bf16.msra.mxu0 %v3302
    %4347 = vmatpush.bf16.msra.mxu0 %v3301
    %4348 = vmatpush.bf16.msra.mxu0 %v3300
    %4349 = vmatpush.bf16.msra.mxu0 %v3299
    %4350 = vmatpush.bf16.msra.mxu0 %v3298
    %4351 = vmatpush.bf16.msra.mxu0 %v3297
    %4352 = vmatpush.bf16.msra.mxu0 %v3296
    %4353 = vmatmul.bf16.gmra.mxu0 %v1071
    %v4354 = vpop.f32.mrf.mxu0
    %v4355 = vadd.f32 %v4342, %v4354
    %v4356 = vpop.f32.mrf.mxu0
    %4357 = vdwg.mxu0
    %4358 = vmatpush.bf16.msra.mxu0 %v3311
    %4359 = vmatpush.bf16.msra.mxu0 %v3310
    %4360 = vmatpush.bf16.msra.mxu0 %v3309
    %4361 = vmatpush.bf16.msra.mxu0 %v3308
    %4362 = vmatpush.bf16.msra.mxu0 %v3307
    %4363 = vmatpush.bf16.msra.mxu0 %v3306
    %4364 = vmatpush.bf16.msra.mxu0 %v3305
    %4365 = vmatpush.bf16.msra.mxu0 %v3304
    %4366 = vmatmul.bf16.gmra.mxu0 %v1072
    %v4367 = vpop.f32.mrf.mxu0
    %v4368 = vadd.f32 %v4355, %v4367
    %v4369 = vpop.f32.mrf.mxu0
    %4370 = vdwg.mxu0
    %4371 = vmatpush.bf16.msra.mxu0 %v3319
    %4372 = vmatpush.bf16.msra.mxu0 %v3318
    %4373 = vmatpush.bf16.msra.mxu0 %v3317
    %4374 = vmatpush.bf16.msra.mxu0 %v3316
    %4375 = vmatpush.bf16.msra.mxu0 %v3315
    %4376 = vmatpush.bf16.msra.mxu0 %v3314
    %4377 = vmatpush.bf16.msra.mxu0 %v3313
    %4378 = vmatpush.bf16.msra.mxu0 %v3312
    %4379 = vmatmul.bf16.gmra.mxu0 %v1073
    %v4380 = vpop.f32.mrf.mxu0
    %v4381 = vadd.f32 %v4368, %v4380
    %v4382 = vpop.f32.mrf.mxu0
    %4383 = vdwg.mxu0
    %4384 = vmatpush.bf16.msra.mxu0 %v3327
    %4385 = vmatpush.bf16.msra.mxu0 %v3326
    %4386 = vmatpush.bf16.msra.mxu0 %v3325
    %4387 = vmatpush.bf16.msra.mxu0 %v3324
    %4388 = vmatpush.bf16.msra.mxu0 %v3323
    %4389 = vmatpush.bf16.msra.mxu0 %v3322
    %4390 = vmatpush.bf16.msra.mxu0 %v3321
    %4391 = vmatpush.bf16.msra.mxu0 %v3320
    %4392 = vmatmul.bf16.gmra.mxu0 %v1076
    %v4393 = vpop.f32.mrf.mxu0
    %v4394 = vadd.f32 %v4381, %v4393
    %v4395 = vpop.f32.mrf.mxu0
    %4396 = vdwg.mxu0
    %4397 = vmatpush.bf16.msra.mxu0 %v3335
    %4398 = vmatpush.bf16.msra.mxu0 %v3334
    %4399 = vmatpush.bf16.msra.mxu0 %v3333
    %4400 = vmatpush.bf16.msra.mxu0 %v3332
    %4401 = vmatpush.bf16.msra.mxu0 %v3331
    %4402 = vmatpush.bf16.msra.mxu0 %v3330
    %4403 = vmatpush.bf16.msra.mxu0 %v3329
    %4404 = vmatpush.bf16.msra.mxu0 %v3328
    %4405 = vmatmul.bf16.gmra.mxu0 %v1077
    %v4406 = vpop.f32.mrf.mxu0
    %v4407 = vadd.f32 %v4394, %v4406
    %v4408 = vpop.f32.mrf.mxu0
    %4409 = vdwg.mxu0
    %4410 = vmatpush.bf16.msra.mxu0 %v3343
    %4411 = vmatpush.bf16.msra.mxu0 %v3342
    %4412 = vmatpush.bf16.msra.mxu0 %v3341
    %4413 = vmatpush.bf16.msra.mxu0 %v3340
    %4414 = vmatpush.bf16.msra.mxu0 %v3339
    %4415 = vmatpush.bf16.msra.mxu0 %v3338
    %4416 = vmatpush.bf16.msra.mxu0 %v3337
    %4417 = vmatpush.bf16.msra.mxu0 %v3336
    %4418 = vmatmul.bf16.gmra.mxu0 %v1078
    %v4419 = vpop.f32.mrf.mxu0
    %v4420 = vadd.f32 %v4407, %v4419
    %v4421 = vpop.f32.mrf.mxu0
    %4422 = vdwg.mxu0
    %4423 = vmatpush.bf16.msra.mxu0 %v3351
    %4424 = vmatpush.bf16.msra.mxu0 %v3350
    %4425 = vmatpush.bf16.msra.mxu0 %v3349
    %4426 = vmatpush.bf16.msra.mxu0 %v3348
    %4427 = vmatpush.bf16.msra.mxu0 %v3347
    %4428 = vmatpush.bf16.msra.mxu0 %v3346
    %4429 = vmatpush.bf16.msra.mxu0 %v3345
    %4430 = vmatpush.bf16.msra.mxu0 %v3344
    %4431 = vmatmul.bf16.gmra.mxu0 %v1079
    %v4432 = vpop.f32.mrf.mxu0
    %v4433 = vadd.f32 %v4420, %v4432
    %v4434 = vpop.f32.mrf.mxu0
    %4435 = vdwg.mxu0
    %4436 = vmatpush.bf16.msra.mxu0 %v3359
    %4437 = vmatpush.bf16.msra.mxu0 %v3358
    %4438 = vmatpush.bf16.msra.mxu0 %v3357
    %4439 = vmatpush.bf16.msra.mxu0 %v3356
    %4440 = vmatpush.bf16.msra.mxu0 %v3355
    %4441 = vmatpush.bf16.msra.mxu0 %v3354
    %4442 = vmatpush.bf16.msra.mxu0 %v3353
    %4443 = vmatpush.bf16.msra.mxu0 %v3352
    %4444 = vmatmul.bf16.gmra.mxu0 %v1080
    %v4445 = vpop.f32.mrf.mxu0
    %v4446 = vadd.f32 %v4433, %v4445
    %v4447 = vpop.f32.mrf.mxu0
    %4448 = vdwg.mxu0
    %4449 = vmatpush.bf16.msra.mxu0 %v3367
    %4450 = vmatpush.bf16.msra.mxu0 %v3366
    %4451 = vmatpush.bf16.msra.mxu0 %v3365
    %4452 = vmatpush.bf16.msra.mxu0 %v3364
    %4453 = vmatpush.bf16.msra.mxu0 %v3363
    %4454 = vmatpush.bf16.msra.mxu0 %v3362
    %4455 = vmatpush.bf16.msra.mxu0 %v3361
    %4456 = vmatpush.bf16.msra.mxu0 %v3360
    %4457 = vmatmul.bf16.gmra.mxu0 %v1081
    %v4458 = vpop.f32.mrf.mxu0
    %v4459 = vadd.f32 %v4446, %v4458
    %v4460 = vpop.f32.mrf.mxu0
    %4461 = vdwg.mxu0
    %4462 = vmatpush.bf16.msra.mxu0 %v3375
    %4463 = vmatpush.bf16.msra.mxu0 %v3374
    %4464 = vmatpush.bf16.msra.mxu0 %v3373
    %4465 = vmatpush.bf16.msra.mxu0 %v3372
    %4466 = vmatpush.bf16.msra.mxu0 %v3371
    %4467 = vmatpush.bf16.msra.mxu0 %v3370
    %4468 = vmatpush.bf16.msra.mxu0 %v3369
    %4469 = vmatpush.bf16.msra.mxu0 %v3368
    %4470 = vmatmul.bf16.gmra.mxu0 %v1082
    %v4471 = vpop.f32.mrf.mxu0
    %v4472 = vadd.f32 %v4459, %v4471
    %v4473 = vpop.f32.mrf.mxu0
    %4474 = vdwg.mxu0
    %4475 = vmatpush.bf16.msra.mxu0 %v3383
    %4476 = vmatpush.bf16.msra.mxu0 %v3382
    %4477 = vmatpush.bf16.msra.mxu0 %v3381
    %4478 = vmatpush.bf16.msra.mxu0 %v3380
    %4479 = vmatpush.bf16.msra.mxu0 %v3379
    %4480 = vmatpush.bf16.msra.mxu0 %v3378
    %4481 = vmatpush.bf16.msra.mxu0 %v3377
    %4482 = vmatpush.bf16.msra.mxu0 %v3376
    %4483 = vmatmul.bf16.gmra.mxu0 %v1083
    %v4484 = vpop.f32.mrf.mxu0
    %v4485 = vadd.f32 %v4472, %v4484
    %v4486 = vpop.f32.mrf.mxu0
    %4487 = vdwg.mxu0
    %4488 = vmatpush.bf16.msra.mxu0 %v3391
    %4489 = vmatpush.bf16.msra.mxu0 %v3390
    %4490 = vmatpush.bf16.msra.mxu0 %v3389
    %4491 = vmatpush.bf16.msra.mxu0 %v3388
    %4492 = vmatpush.bf16.msra.mxu0 %v3387
    %4493 = vmatpush.bf16.msra.mxu0 %v3386
    %4494 = vmatpush.bf16.msra.mxu0 %v3385
    %4495 = vmatpush.bf16.msra.mxu0 %v3384
    %4496 = vmatmul.bf16.gmra.mxu0 %v1086
    %v4497 = vpop.f32.mrf.mxu0
    %v4498 = vadd.f32 %v4485, %v4497
    %v4499 = vpop.f32.mrf.mxu0
    %4500 = vdwg.mxu0
    %4501 = vmatpush.bf16.msra.mxu0 %v3399
    %4502 = vmatpush.bf16.msra.mxu0 %v3398
    %4503 = vmatpush.bf16.msra.mxu0 %v3397
    %4504 = vmatpush.bf16.msra.mxu0 %v3396
    %4505 = vmatpush.bf16.msra.mxu0 %v3395
    %4506 = vmatpush.bf16.msra.mxu0 %v3394
    %4507 = vmatpush.bf16.msra.mxu0 %v3393
    %4508 = vmatpush.bf16.msra.mxu0 %v3392
    %4509 = vmatmul.bf16.gmra.mxu0 %v1087
    %v4510 = vpop.f32.mrf.mxu0
    %v4511 = vadd.f32 %v4498, %v4510
    %v4512 = vpop.f32.mrf.mxu0
    %4513 = vdwg.mxu0
    %4514 = vmatpush.bf16.msra.mxu0 %v3407
    %4515 = vmatpush.bf16.msra.mxu0 %v3406
    %4516 = vmatpush.bf16.msra.mxu0 %v3405
    %4517 = vmatpush.bf16.msra.mxu0 %v3404
    %4518 = vmatpush.bf16.msra.mxu0 %v3403
    %4519 = vmatpush.bf16.msra.mxu0 %v3402
    %4520 = vmatpush.bf16.msra.mxu0 %v3401
    %4521 = vmatpush.bf16.msra.mxu0 %v3400
    %4522 = vmatmul.bf16.gmra.mxu0 %v1088
    %v4523 = vpop.f32.mrf.mxu0
    %v4524 = vadd.f32 %v4511, %v4523
    %v4525 = vpop.f32.mrf.mxu0
    %4526 = vdwg.mxu0
    %4527 = vmatpush.bf16.msra.mxu0 %v3415
    %4528 = vmatpush.bf16.msra.mxu0 %v3414
    %4529 = vmatpush.bf16.msra.mxu0 %v3413
    %4530 = vmatpush.bf16.msra.mxu0 %v3412
    %4531 = vmatpush.bf16.msra.mxu0 %v3411
    %4532 = vmatpush.bf16.msra.mxu0 %v3410
    %4533 = vmatpush.bf16.msra.mxu0 %v3409
    %4534 = vmatpush.bf16.msra.mxu0 %v3408
    %4535 = vmatmul.bf16.gmra.mxu0 %v1089
    %v4536 = vpop.f32.mrf.mxu0
    %v4537 = vadd.f32 %v4524, %v4536
    %v4538 = vpop.f32.mrf.mxu0
    %4539 = vdwg.mxu0
    %4540 = vmatpush.bf16.msra.mxu0 %v3423
    %4541 = vmatpush.bf16.msra.mxu0 %v3422
    %4542 = vmatpush.bf16.msra.mxu0 %v3421
    %4543 = vmatpush.bf16.msra.mxu0 %v3420
    %4544 = vmatpush.bf16.msra.mxu0 %v3419
    %4545 = vmatpush.bf16.msra.mxu0 %v3418
    %4546 = vmatpush.bf16.msra.mxu0 %v3417
    %4547 = vmatpush.bf16.msra.mxu0 %v3416
    %4548 = vmatmul.bf16.gmra.mxu0 %v1090
    %v4549 = vpop.f32.mrf.mxu0
    %v4550 = vadd.f32 %v4537, %v4549
    %v4551 = vpop.f32.mrf.mxu0
    %4552 = vdwg.mxu0
    %4553 = vmatpush.bf16.msra.mxu0 %v3431
    %4554 = vmatpush.bf16.msra.mxu0 %v3430
    %4555 = vmatpush.bf16.msra.mxu0 %v3429
    %4556 = vmatpush.bf16.msra.mxu0 %v3428
    %4557 = vmatpush.bf16.msra.mxu0 %v3427
    %4558 = vmatpush.bf16.msra.mxu0 %v3426
    %4559 = vmatpush.bf16.msra.mxu0 %v3425
    %4560 = vmatpush.bf16.msra.mxu0 %v3424
    %4561 = vmatmul.bf16.gmra.mxu0 %v1091
    %v4562 = vpop.f32.mrf.mxu0
    %v4563 = vadd.f32 %v4550, %v4562
    %v4564 = vpop.f32.mrf.mxu0
    %4565 = vdwg.mxu0
    %4566 = vmatpush.bf16.msra.mxu0 %v3439
    %4567 = vmatpush.bf16.msra.mxu0 %v3438
    %4568 = vmatpush.bf16.msra.mxu0 %v3437
    %4569 = vmatpush.bf16.msra.mxu0 %v3436
    %4570 = vmatpush.bf16.msra.mxu0 %v3435
    %4571 = vmatpush.bf16.msra.mxu0 %v3434
    %4572 = vmatpush.bf16.msra.mxu0 %v3433
    %4573 = vmatpush.bf16.msra.mxu0 %v3432
    %4574 = vmatmul.bf16.gmra.mxu0 %v1092
    %v4575 = vpop.f32.mrf.mxu0
    %v4576 = vadd.f32 %v4563, %v4575
    %v4577 = vpop.f32.mrf.mxu0
    %4578 = vdwg.mxu0
    %4579 = vmatpush.bf16.msra.mxu0 %v3447
    %4580 = vmatpush.bf16.msra.mxu0 %v3446
    %4581 = vmatpush.bf16.msra.mxu0 %v3445
    %4582 = vmatpush.bf16.msra.mxu0 %v3444
    %4583 = vmatpush.bf16.msra.mxu0 %v3443
    %4584 = vmatpush.bf16.msra.mxu0 %v3442
    %4585 = vmatpush.bf16.msra.mxu0 %v3441
    %4586 = vmatpush.bf16.msra.mxu0 %v3440
    %4587 = vmatmul.bf16.gmra.mxu0 %v1093
    %v4588 = vpop.f32.mrf.mxu0
    %v4589 = vadd.f32 %v4576, %v4588
    %v4590 = vpop.f32.mrf.mxu0
    %4591 = vdwg.mxu0
    %4592 = vmatpush.bf16.msra.mxu0 %v3455
    %4593 = vmatpush.bf16.msra.mxu0 %v3454
    %4594 = vmatpush.bf16.msra.mxu0 %v3453
    %4595 = vmatpush.bf16.msra.mxu0 %v3452
    %4596 = vmatpush.bf16.msra.mxu0 %v3451
    %4597 = vmatpush.bf16.msra.mxu0 %v3450
    %4598 = vmatpush.bf16.msra.mxu0 %v3449
    %4599 = vmatpush.bf16.msra.mxu0 %v3448
    %4600 = vmatmul.bf16.gmra.mxu0 %v1096
    %v4601 = vpop.f32.mrf.mxu0
    %v4602 = vadd.f32 %v4589, %v4601
    %v4603 = vpop.f32.mrf.mxu0
    %4604 = vdwg.mxu0
    %4605 = vmatpush.bf16.msra.mxu0 %v3463
    %4606 = vmatpush.bf16.msra.mxu0 %v3462
    %4607 = vmatpush.bf16.msra.mxu0 %v3461
    %4608 = vmatpush.bf16.msra.mxu0 %v3460
    %4609 = vmatpush.bf16.msra.mxu0 %v3459
    %4610 = vmatpush.bf16.msra.mxu0 %v3458
    %4611 = vmatpush.bf16.msra.mxu0 %v3457
    %4612 = vmatpush.bf16.msra.mxu0 %v3456
    %4613 = vmatmul.bf16.gmra.mxu0 %v1097
    %v4614 = vpop.f32.mrf.mxu0
    %v4615 = vadd.f32 %v4602, %v4614
    %v4616 = vpop.f32.mrf.mxu0
    %4617 = vdwg.mxu0
    %4618 = vmatpush.bf16.msra.mxu0 %v3471
    %4619 = vmatpush.bf16.msra.mxu0 %v3470
    %4620 = vmatpush.bf16.msra.mxu0 %v3469
    %4621 = vmatpush.bf16.msra.mxu0 %v3468
    %4622 = vmatpush.bf16.msra.mxu0 %v3467
    %4623 = vmatpush.bf16.msra.mxu0 %v3466
    %4624 = vmatpush.bf16.msra.mxu0 %v3465
    %4625 = vmatpush.bf16.msra.mxu0 %v3464
    %4626 = vmatmul.bf16.gmra.mxu0 %v1098
    %v4627 = vpop.f32.mrf.mxu0
    %v4628 = vadd.f32 %v4615, %v4627
    %v4629 = vpop.f32.mrf.mxu0
    %4630 = vdwg.mxu0
    %4631 = vmatpush.bf16.msra.mxu0 %v3479
    %4632 = vmatpush.bf16.msra.mxu0 %v3478
    %4633 = vmatpush.bf16.msra.mxu0 %v3477
    %4634 = vmatpush.bf16.msra.mxu0 %v3476
    %4635 = vmatpush.bf16.msra.mxu0 %v3475
    %4636 = vmatpush.bf16.msra.mxu0 %v3474
    %4637 = vmatpush.bf16.msra.mxu0 %v3473
    %4638 = vmatpush.bf16.msra.mxu0 %v3472
    %4639 = vmatmul.bf16.gmra.mxu0 %v1099
    %v4640 = vpop.f32.mrf.mxu0
    %v4641 = vadd.f32 %v4628, %v4640
    %v4642 = vpop.f32.mrf.mxu0
    %4643 = vdwg.mxu0
    %4644 = vmatpush.bf16.msra.mxu0 %v3487
    %4645 = vmatpush.bf16.msra.mxu0 %v3486
    %4646 = vmatpush.bf16.msra.mxu0 %v3485
    %4647 = vmatpush.bf16.msra.mxu0 %v3484
    %4648 = vmatpush.bf16.msra.mxu0 %v3483
    %4649 = vmatpush.bf16.msra.mxu0 %v3482
    %4650 = vmatpush.bf16.msra.mxu0 %v3481
    %4651 = vmatpush.bf16.msra.mxu0 %v3480
    %4652 = vmatmul.bf16.gmra.mxu0 %v1100
    %v4653 = vpop.f32.mrf.mxu0
    %v4654 = vadd.f32 %v4641, %v4653
    %v4655 = vpop.f32.mrf.mxu0
    %4656 = vdwg.mxu0
    %4657 = vmatpush.bf16.msra.mxu0 %v3495
    %4658 = vmatpush.bf16.msra.mxu0 %v3494
    %4659 = vmatpush.bf16.msra.mxu0 %v3493
    %4660 = vmatpush.bf16.msra.mxu0 %v3492
    %4661 = vmatpush.bf16.msra.mxu0 %v3491
    %4662 = vmatpush.bf16.msra.mxu0 %v3490
    %4663 = vmatpush.bf16.msra.mxu0 %v3489
    %4664 = vmatpush.bf16.msra.mxu0 %v3488
    %4665 = vmatmul.bf16.gmra.mxu0 %v1101
    %v4666 = vpop.f32.mrf.mxu0
    %v4667 = vadd.f32 %v4654, %v4666
    %v4668 = vpop.f32.mrf.mxu0
    %4669 = vdwg.mxu0
    %4670 = vmatpush.bf16.msra.mxu0 %v3503
    %4671 = vmatpush.bf16.msra.mxu0 %v3502
    %4672 = vmatpush.bf16.msra.mxu0 %v3501
    %4673 = vmatpush.bf16.msra.mxu0 %v3500
    %4674 = vmatpush.bf16.msra.mxu0 %v3499
    %4675 = vmatpush.bf16.msra.mxu0 %v3498
    %4676 = vmatpush.bf16.msra.mxu0 %v3497
    %4677 = vmatpush.bf16.msra.mxu0 %v3496
    %4678 = vmatmul.bf16.gmra.mxu0 %v1102
    %v4679 = vpop.f32.mrf.mxu0
    %v4680 = vadd.f32 %v4667, %v4679
    %v4681 = vpop.f32.mrf.mxu0
    %4682 = vdwg.mxu0
    %4683 = vmatpush.bf16.msra.mxu0 %v3511
    %4684 = vmatpush.bf16.msra.mxu0 %v3510
    %4685 = vmatpush.bf16.msra.mxu0 %v3509
    %4686 = vmatpush.bf16.msra.mxu0 %v3508
    %4687 = vmatpush.bf16.msra.mxu0 %v3507
    %4688 = vmatpush.bf16.msra.mxu0 %v3506
    %4689 = vmatpush.bf16.msra.mxu0 %v3505
    %4690 = vmatpush.bf16.msra.mxu0 %v3504
    %4691 = vmatmul.bf16.gmra.mxu0 %v1103
    %v4692 = vpop.f32.mrf.mxu0
    %v4693 = vadd.f32 %v4680, %v4692
    %v4694 = vpop.f32.mrf.mxu0
    %4695 = vdwg.mxu0
    %4696 = vmatpush.bf16.msra.mxu0 %v3519
    %4697 = vmatpush.bf16.msra.mxu0 %v3518
    %4698 = vmatpush.bf16.msra.mxu0 %v3517
    %4699 = vmatpush.bf16.msra.mxu0 %v3516
    %4700 = vmatpush.bf16.msra.mxu0 %v3515
    %4701 = vmatpush.bf16.msra.mxu0 %v3514
    %4702 = vmatpush.bf16.msra.mxu0 %v3513
    %4703 = vmatpush.bf16.msra.mxu0 %v3512
    %4704 = vmatmul.bf16.gmra.mxu0 %v1106
    %v4705 = vpop.f32.mrf.mxu0
    %v4706 = vadd.f32 %v4693, %v4705
    %v4707 = vpop.f32.mrf.mxu0
    %4708 = vdwg.mxu0
    %4709 = vmatpush.bf16.msra.mxu0 %v3527
    %4710 = vmatpush.bf16.msra.mxu0 %v3526
    %4711 = vmatpush.bf16.msra.mxu0 %v3525
    %4712 = vmatpush.bf16.msra.mxu0 %v3524
    %4713 = vmatpush.bf16.msra.mxu0 %v3523
    %4714 = vmatpush.bf16.msra.mxu0 %v3522
    %4715 = vmatpush.bf16.msra.mxu0 %v3521
    %4716 = vmatpush.bf16.msra.mxu0 %v3520
    %4717 = vmatmul.bf16.gmra.mxu0 %v1107
    %v4718 = vpop.f32.mrf.mxu0
    %v4719 = vadd.f32 %v4706, %v4718
    %v4720 = vpop.f32.mrf.mxu0
    %4721 = vdwg.mxu0
    %4722 = vmatpush.bf16.msra.mxu0 %v3535
    %4723 = vmatpush.bf16.msra.mxu0 %v3534
    %4724 = vmatpush.bf16.msra.mxu0 %v3533
    %4725 = vmatpush.bf16.msra.mxu0 %v3532
    %4726 = vmatpush.bf16.msra.mxu0 %v3531
    %4727 = vmatpush.bf16.msra.mxu0 %v3530
    %4728 = vmatpush.bf16.msra.mxu0 %v3529
    %4729 = vmatpush.bf16.msra.mxu0 %v3528
    %4730 = vmatmul.bf16.gmra.mxu0 %v1108
    %v4731 = vpop.f32.mrf.mxu0
    %v4732 = vadd.f32 %v4719, %v4731
    %v4733 = vpop.f32.mrf.mxu0
    %4734 = vdwg.mxu0
    %4735 = vmatpush.bf16.msra.mxu0 %v3543
    %4736 = vmatpush.bf16.msra.mxu0 %v3542
    %4737 = vmatpush.bf16.msra.mxu0 %v3541
    %4738 = vmatpush.bf16.msra.mxu0 %v3540
    %4739 = vmatpush.bf16.msra.mxu0 %v3539
    %4740 = vmatpush.bf16.msra.mxu0 %v3538
    %4741 = vmatpush.bf16.msra.mxu0 %v3537
    %4742 = vmatpush.bf16.msra.mxu0 %v3536
    %4743 = vmatmul.bf16.gmra.mxu0 %v1109
    %v4744 = vpop.f32.mrf.mxu0
    %v4745 = vadd.f32 %v4732, %v4744
    %v4746 = vpop.f32.mrf.mxu0
    %4747 = vdwg.mxu0
    %4748 = vmatpush.bf16.msra.mxu0 %v3551
    %4749 = vmatpush.bf16.msra.mxu0 %v3550
    %4750 = vmatpush.bf16.msra.mxu0 %v3549
    %4751 = vmatpush.bf16.msra.mxu0 %v3548
    %4752 = vmatpush.bf16.msra.mxu0 %v3547
    %4753 = vmatpush.bf16.msra.mxu0 %v3546
    %4754 = vmatpush.bf16.msra.mxu0 %v3545
    %4755 = vmatpush.bf16.msra.mxu0 %v3544
    %4756 = vmatmul.bf16.gmra.mxu0 %v1110
    %v4757 = vpop.f32.mrf.mxu0
    %v4758 = vadd.f32 %v4745, %v4757
    %v4759 = vpop.f32.mrf.mxu0
    %4760 = vdwg.mxu0
    %4761 = vmatpush.bf16.msra.mxu0 %v3559
    %4762 = vmatpush.bf16.msra.mxu0 %v3558
    %4763 = vmatpush.bf16.msra.mxu0 %v3557
    %4764 = vmatpush.bf16.msra.mxu0 %v3556
    %4765 = vmatpush.bf16.msra.mxu0 %v3555
    %4766 = vmatpush.bf16.msra.mxu0 %v3554
    %4767 = vmatpush.bf16.msra.mxu0 %v3553
    %4768 = vmatpush.bf16.msra.mxu0 %v3552
    %4769 = vmatmul.bf16.gmra.mxu0 %v1111
    %v4770 = vpop.f32.mrf.mxu0
    %v4771 = vadd.f32 %v4758, %v4770
    %v4772 = vpop.f32.mrf.mxu0
    %4773 = vdwg.mxu0
    %4774 = vmatpush.bf16.msra.mxu0 %v3567
    %4775 = vmatpush.bf16.msra.mxu0 %v3566
    %4776 = vmatpush.bf16.msra.mxu0 %v3565
    %4777 = vmatpush.bf16.msra.mxu0 %v3564
    %4778 = vmatpush.bf16.msra.mxu0 %v3563
    %4779 = vmatpush.bf16.msra.mxu0 %v3562
    %4780 = vmatpush.bf16.msra.mxu0 %v3561
    %4781 = vmatpush.bf16.msra.mxu0 %v3560
    %4782 = vmatmul.bf16.gmra.mxu0 %v1112
    %v4783 = vpop.f32.mrf.mxu0
    %v4784 = vadd.f32 %v4771, %v4783
    %v4785 = vpop.f32.mrf.mxu0
    %4786 = vdwg.mxu0
    %4787 = vmatpush.bf16.msra.mxu0 %v3575
    %4788 = vmatpush.bf16.msra.mxu0 %v3574
    %4789 = vmatpush.bf16.msra.mxu0 %v3573
    %4790 = vmatpush.bf16.msra.mxu0 %v3572
    %4791 = vmatpush.bf16.msra.mxu0 %v3571
    %4792 = vmatpush.bf16.msra.mxu0 %v3570
    %4793 = vmatpush.bf16.msra.mxu0 %v3569
    %4794 = vmatpush.bf16.msra.mxu0 %v3568
    %4795 = vmatmul.bf16.gmra.mxu0 %v1113
    %v4796 = vpop.f32.mrf.mxu0
    %v4797 = vadd.f32 %v4784, %v4796
    %v4798 = vpop.f32.mrf.mxu0
    %4799 = vdwg.mxu0
    %4800 = vmatpush.bf16.msra.mxu0 %v3583
    %4801 = vmatpush.bf16.msra.mxu0 %v3582
    %4802 = vmatpush.bf16.msra.mxu0 %v3581
    %4803 = vmatpush.bf16.msra.mxu0 %v3580
    %4804 = vmatpush.bf16.msra.mxu0 %v3579
    %4805 = vmatpush.bf16.msra.mxu0 %v3578
    %4806 = vmatpush.bf16.msra.mxu0 %v3577
    %4807 = vmatpush.bf16.msra.mxu0 %v3576
    %4808 = vmatmul.bf16.gmra.mxu0 %v1116
    %v4809 = vpop.f32.mrf.mxu0
    %v4810 = vadd.f32 %v4797, %v4809
    %v4811 = vpop.f32.mrf.mxu0
    %4812 = vdwg.mxu0
    %4813 = vmatpush.bf16.msra.mxu0 %v3591
    %4814 = vmatpush.bf16.msra.mxu0 %v3590
    %4815 = vmatpush.bf16.msra.mxu0 %v3589
    %4816 = vmatpush.bf16.msra.mxu0 %v3588
    %4817 = vmatpush.bf16.msra.mxu0 %v3587
    %4818 = vmatpush.bf16.msra.mxu0 %v3586
    %4819 = vmatpush.bf16.msra.mxu0 %v3585
    %4820 = vmatpush.bf16.msra.mxu0 %v3584
    %4821 = vmatmul.bf16.gmra.mxu0 %v1117
    %v4822 = vpop.f32.mrf.mxu0
    %v4823 = vadd.f32 %v4810, %v4822
    %v4824 = vpop.f32.mrf.mxu0
    %4825 = vdwg.mxu0
    %4826 = vmatpush.bf16.msra.mxu0 %v3599
    %4827 = vmatpush.bf16.msra.mxu0 %v3598
    %4828 = vmatpush.bf16.msra.mxu0 %v3597
    %4829 = vmatpush.bf16.msra.mxu0 %v3596
    %4830 = vmatpush.bf16.msra.mxu0 %v3595
    %4831 = vmatpush.bf16.msra.mxu0 %v3594
    %4832 = vmatpush.bf16.msra.mxu0 %v3593
    %4833 = vmatpush.bf16.msra.mxu0 %v3592
    %4834 = vmatmul.bf16.gmra.mxu0 %v1118
    %v4835 = vpop.f32.mrf.mxu0
    %v4836 = vadd.f32 %v4823, %v4835
    %v4837 = vpop.f32.mrf.mxu0
    %4838 = vdwg.mxu0
    %4839 = vmatpush.bf16.msra.mxu0 %v3607
    %4840 = vmatpush.bf16.msra.mxu0 %v3606
    %4841 = vmatpush.bf16.msra.mxu0 %v3605
    %4842 = vmatpush.bf16.msra.mxu0 %v3604
    %4843 = vmatpush.bf16.msra.mxu0 %v3603
    %4844 = vmatpush.bf16.msra.mxu0 %v3602
    %4845 = vmatpush.bf16.msra.mxu0 %v3601
    %4846 = vmatpush.bf16.msra.mxu0 %v3600
    %4847 = vmatmul.bf16.gmra.mxu0 %v1119
    %v4848 = vpop.f32.mrf.mxu0
    %v4849 = vadd.f32 %v4836, %v4848
    %v4850 = vpop.f32.mrf.mxu0
    %4851 = vdwg.mxu0
    %4852 = vmatpush.bf16.msra.mxu0 %v3615
    %4853 = vmatpush.bf16.msra.mxu0 %v3614
    %4854 = vmatpush.bf16.msra.mxu0 %v3613
    %4855 = vmatpush.bf16.msra.mxu0 %v3612
    %4856 = vmatpush.bf16.msra.mxu0 %v3611
    %4857 = vmatpush.bf16.msra.mxu0 %v3610
    %4858 = vmatpush.bf16.msra.mxu0 %v3609
    %4859 = vmatpush.bf16.msra.mxu0 %v3608
    %4860 = vmatmul.bf16.gmra.mxu0 %v1120
    %v4861 = vpop.f32.mrf.mxu0
    %v4862 = vadd.f32 %v4849, %v4861
    %v4863 = vpop.f32.mrf.mxu0
    %4864 = vdwg.mxu0
    %4865 = vmatpush.bf16.msra.mxu0 %v3623
    %4866 = vmatpush.bf16.msra.mxu0 %v3622
    %4867 = vmatpush.bf16.msra.mxu0 %v3621
    %4868 = vmatpush.bf16.msra.mxu0 %v3620
    %4869 = vmatpush.bf16.msra.mxu0 %v3619
    %4870 = vmatpush.bf16.msra.mxu0 %v3618
    %4871 = vmatpush.bf16.msra.mxu0 %v3617
    %4872 = vmatpush.bf16.msra.mxu0 %v3616
    %4873 = vmatmul.bf16.gmra.mxu0 %v1121
    %v4874 = vpop.f32.mrf.mxu0
    %v4875 = vadd.f32 %v4862, %v4874
    %v4876 = vpop.f32.mrf.mxu0
    %4877 = vdwg.mxu0
    %4878 = vmatpush.bf16.msra.mxu0 %v3631
    %4879 = vmatpush.bf16.msra.mxu0 %v3630
    %4880 = vmatpush.bf16.msra.mxu0 %v3629
    %4881 = vmatpush.bf16.msra.mxu0 %v3628
    %4882 = vmatpush.bf16.msra.mxu0 %v3627
    %4883 = vmatpush.bf16.msra.mxu0 %v3626
    %4884 = vmatpush.bf16.msra.mxu0 %v3625
    %4885 = vmatpush.bf16.msra.mxu0 %v3624
    %4886 = vmatmul.bf16.gmra.mxu0 %v1122
    %v4887 = vpop.f32.mrf.mxu0
    %v4888 = vadd.f32 %v4875, %v4887
    %v4889 = vpop.f32.mrf.mxu0
    %4890 = vdwg.mxu0
    %4891 = vmatpush.bf16.msra.mxu0 %v3639
    %4892 = vmatpush.bf16.msra.mxu0 %v3638
    %4893 = vmatpush.bf16.msra.mxu0 %v3637
    %4894 = vmatpush.bf16.msra.mxu0 %v3636
    %4895 = vmatpush.bf16.msra.mxu0 %v3635
    %4896 = vmatpush.bf16.msra.mxu0 %v3634
    %4897 = vmatpush.bf16.msra.mxu0 %v3633
    %4898 = vmatpush.bf16.msra.mxu0 %v3632
    %4899 = vmatmul.bf16.gmra.mxu0 %v1123
    %v4900 = vpop.f32.mrf.mxu0
    %v4901 = vadd.f32 %v4888, %v4900
    %v4902 = vpop.f32.mrf.mxu0
    %4903 = vdwg.mxu0
    %4904 = vmatpush.bf16.msra.mxu0 %v3647
    %4905 = vmatpush.bf16.msra.mxu0 %v3646
    %4906 = vmatpush.bf16.msra.mxu0 %v3645
    %4907 = vmatpush.bf16.msra.mxu0 %v3644
    %4908 = vmatpush.bf16.msra.mxu0 %v3643
    %4909 = vmatpush.bf16.msra.mxu0 %v3642
    %4910 = vmatpush.bf16.msra.mxu0 %v3641
    %4911 = vmatpush.bf16.msra.mxu0 %v3640
    %4912 = vmatmul.bf16.gmra.mxu0 %v1126
    %v4913 = vpop.f32.mrf.mxu0
    %v4914 = vadd.f32 %v4901, %v4913
    %v4915 = vpop.f32.mrf.mxu0
    %4916 = vdwg.mxu0
    %4917 = vmatpush.bf16.msra.mxu0 %v3655
    %4918 = vmatpush.bf16.msra.mxu0 %v3654
    %4919 = vmatpush.bf16.msra.mxu0 %v3653
    %4920 = vmatpush.bf16.msra.mxu0 %v3652
    %4921 = vmatpush.bf16.msra.mxu0 %v3651
    %4922 = vmatpush.bf16.msra.mxu0 %v3650
    %4923 = vmatpush.bf16.msra.mxu0 %v3649
    %4924 = vmatpush.bf16.msra.mxu0 %v3648
    %4925 = vmatmul.bf16.gmra.mxu0 %v1127
    %v4926 = vpop.f32.mrf.mxu0
    %v4927 = vadd.f32 %v4914, %v4926
    %v4928 = vpop.f32.mrf.mxu0
    %4929 = vdwg.mxu0
    %4930 = vmatpush.bf16.msra.mxu0 %v3663
    %4931 = vmatpush.bf16.msra.mxu0 %v3662
    %4932 = vmatpush.bf16.msra.mxu0 %v3661
    %4933 = vmatpush.bf16.msra.mxu0 %v3660
    %4934 = vmatpush.bf16.msra.mxu0 %v3659
    %4935 = vmatpush.bf16.msra.mxu0 %v3658
    %4936 = vmatpush.bf16.msra.mxu0 %v3657
    %4937 = vmatpush.bf16.msra.mxu0 %v3656
    %4938 = vmatmul.bf16.gmra.mxu0 %v1128
    %v4939 = vpop.f32.mrf.mxu0
    %v4940 = vadd.f32 %v4927, %v4939
    %v4941 = vpop.f32.mrf.mxu0
    %4942 = vdwg.mxu0
    %4943 = vmatpush.bf16.msra.mxu0 %v3671
    %4944 = vmatpush.bf16.msra.mxu0 %v3670
    %4945 = vmatpush.bf16.msra.mxu0 %v3669
    %4946 = vmatpush.bf16.msra.mxu0 %v3668
    %4947 = vmatpush.bf16.msra.mxu0 %v3667
    %4948 = vmatpush.bf16.msra.mxu0 %v3666
    %4949 = vmatpush.bf16.msra.mxu0 %v3665
    %4950 = vmatpush.bf16.msra.mxu0 %v3664
    %4951 = vmatmul.bf16.gmra.mxu0 %v1129
    %v4952 = vpop.f32.mrf.mxu0
    %v4953 = vadd.f32 %v4940, %v4952
    %v4954 = vpop.f32.mrf.mxu0
    %4955 = vdwg.mxu0
    %4956 = vmatpush.bf16.msra.mxu0 %v3679
    %4957 = vmatpush.bf16.msra.mxu0 %v3678
    %4958 = vmatpush.bf16.msra.mxu0 %v3677
    %4959 = vmatpush.bf16.msra.mxu0 %v3676
    %4960 = vmatpush.bf16.msra.mxu0 %v3675
    %4961 = vmatpush.bf16.msra.mxu0 %v3674
    %4962 = vmatpush.bf16.msra.mxu0 %v3673
    %4963 = vmatpush.bf16.msra.mxu0 %v3672
    %4964 = vmatmul.bf16.gmra.mxu0 %v1130
    %v4965 = vpop.f32.mrf.mxu0
    %v4966 = vadd.f32 %v4953, %v4965
    %v4967 = vpop.f32.mrf.mxu0
    %4968 = vdwg.mxu0
    %4969 = vmatpush.bf16.msra.mxu0 %v3687
    %4970 = vmatpush.bf16.msra.mxu0 %v3686
    %4971 = vmatpush.bf16.msra.mxu0 %v3685
    %4972 = vmatpush.bf16.msra.mxu0 %v3684
    %4973 = vmatpush.bf16.msra.mxu0 %v3683
    %4974 = vmatpush.bf16.msra.mxu0 %v3682
    %4975 = vmatpush.bf16.msra.mxu0 %v3681
    %4976 = vmatpush.bf16.msra.mxu0 %v3680
    %4977 = vmatmul.bf16.gmra.mxu0 %v1131
    %v4978 = vpop.f32.mrf.mxu0
    %v4979 = vadd.f32 %v4966, %v4978
    %v4980 = vpop.f32.mrf.mxu0
    %4981 = vdwg.mxu0
    %4982 = vmatpush.bf16.msra.mxu0 %v3695
    %4983 = vmatpush.bf16.msra.mxu0 %v3694
    %4984 = vmatpush.bf16.msra.mxu0 %v3693
    %4985 = vmatpush.bf16.msra.mxu0 %v3692
    %4986 = vmatpush.bf16.msra.mxu0 %v3691
    %4987 = vmatpush.bf16.msra.mxu0 %v3690
    %4988 = vmatpush.bf16.msra.mxu0 %v3689
    %4989 = vmatpush.bf16.msra.mxu0 %v3688
    %4990 = vmatmul.bf16.gmra.mxu0 %v1132
    %v4991 = vpop.f32.mrf.mxu0
    %v4992 = vadd.f32 %v4979, %v4991
    %v4993 = vpop.f32.mrf.mxu0
    %4994 = vdwg.mxu0
    %4995 = vmatpush.bf16.msra.mxu0 %v3703
    %4996 = vmatpush.bf16.msra.mxu0 %v3702
    %4997 = vmatpush.bf16.msra.mxu0 %v3701
    %4998 = vmatpush.bf16.msra.mxu0 %v3700
    %4999 = vmatpush.bf16.msra.mxu0 %v3699
    %5000 = vmatpush.bf16.msra.mxu0 %v3698
    %5001 = vmatpush.bf16.msra.mxu0 %v3697
    %5002 = vmatpush.bf16.msra.mxu0 %v3696
    %5003 = vmatmul.bf16.gmra.mxu0 %v1133
    %v5004 = vpop.f32.mrf.mxu0
    %v5005 = vadd.f32 %v4992, %v5004
    %v5006 = vpop.f32.mrf.mxu0
    %5007 = vdwg.mxu0
    %5008 = vmatpush.bf16.msra.mxu0 %v3711
    %5009 = vmatpush.bf16.msra.mxu0 %v3710
    %5010 = vmatpush.bf16.msra.mxu0 %v3709
    %5011 = vmatpush.bf16.msra.mxu0 %v3708
    %5012 = vmatpush.bf16.msra.mxu0 %v3707
    %5013 = vmatpush.bf16.msra.mxu0 %v3706
    %5014 = vmatpush.bf16.msra.mxu0 %v3705
    %5015 = vmatpush.bf16.msra.mxu0 %v3704
    %5016 = vmatmul.bf16.gmra.mxu0 %v1136
    %v5017 = vpop.f32.mrf.mxu0
    %v5018 = vadd.f32 %v5005, %v5017
    %v5019 = vpop.f32.mrf.mxu0
    %5020 = vdwg.mxu0
    %5021 = vmatpush.bf16.msra.mxu0 %v3719
    %5022 = vmatpush.bf16.msra.mxu0 %v3718
    %5023 = vmatpush.bf16.msra.mxu0 %v3717
    %5024 = vmatpush.bf16.msra.mxu0 %v3716
    %5025 = vmatpush.bf16.msra.mxu0 %v3715
    %5026 = vmatpush.bf16.msra.mxu0 %v3714
    %5027 = vmatpush.bf16.msra.mxu0 %v3713
    %5028 = vmatpush.bf16.msra.mxu0 %v3712
    %5029 = vmatmul.bf16.gmra.mxu0 %v1137
    %v5030 = vpop.f32.mrf.mxu0
    %v5031 = vadd.f32 %v5018, %v5030
    %v5032 = vpop.f32.mrf.mxu0
    %5033 = vdwg.mxu0
    %5034 = vmatpush.bf16.msra.mxu0 %v3727
    %5035 = vmatpush.bf16.msra.mxu0 %v3726
    %5036 = vmatpush.bf16.msra.mxu0 %v3725
    %5037 = vmatpush.bf16.msra.mxu0 %v3724
    %5038 = vmatpush.bf16.msra.mxu0 %v3723
    %5039 = vmatpush.bf16.msra.mxu0 %v3722
    %5040 = vmatpush.bf16.msra.mxu0 %v3721
    %5041 = vmatpush.bf16.msra.mxu0 %v3720
    %5042 = vmatmul.bf16.gmra.mxu0 %v1138
    %v5043 = vpop.f32.mrf.mxu0
    %v5044 = vadd.f32 %v5031, %v5043
    %v5045 = vpop.f32.mrf.mxu0
    %5046 = vdwg.mxu0
    %5047 = vmatpush.bf16.msra.mxu0 %v3735
    %5048 = vmatpush.bf16.msra.mxu0 %v3734
    %5049 = vmatpush.bf16.msra.mxu0 %v3733
    %5050 = vmatpush.bf16.msra.mxu0 %v3732
    %5051 = vmatpush.bf16.msra.mxu0 %v3731
    %5052 = vmatpush.bf16.msra.mxu0 %v3730
    %5053 = vmatpush.bf16.msra.mxu0 %v3729
    %5054 = vmatpush.bf16.msra.mxu0 %v3728
    %5055 = vmatmul.bf16.gmra.mxu0 %v1139
    %v5056 = vpop.f32.mrf.mxu0
    %v5057 = vadd.f32 %v5044, %v5056
    %v5058 = vpop.f32.mrf.mxu0
    %5059 = vdwg.mxu0
    %5060 = vmatpush.bf16.msra.mxu0 %v3743
    %5061 = vmatpush.bf16.msra.mxu0 %v3742
    %5062 = vmatpush.bf16.msra.mxu0 %v3741
    %5063 = vmatpush.bf16.msra.mxu0 %v3740
    %5064 = vmatpush.bf16.msra.mxu0 %v3739
    %5065 = vmatpush.bf16.msra.mxu0 %v3738
    %5066 = vmatpush.bf16.msra.mxu0 %v3737
    %5067 = vmatpush.bf16.msra.mxu0 %v3736
    %5068 = vmatmul.bf16.gmra.mxu0 %v1140
    %v5069 = vpop.f32.mrf.mxu0
    %v5070 = vadd.f32 %v5057, %v5069
    %v5071 = vpop.f32.mrf.mxu0
    %5072 = vdwg.mxu0
    %5073 = vmatpush.bf16.msra.mxu0 %v3751
    %5074 = vmatpush.bf16.msra.mxu0 %v3750
    %5075 = vmatpush.bf16.msra.mxu0 %v3749
    %5076 = vmatpush.bf16.msra.mxu0 %v3748
    %5077 = vmatpush.bf16.msra.mxu0 %v3747
    %5078 = vmatpush.bf16.msra.mxu0 %v3746
    %5079 = vmatpush.bf16.msra.mxu0 %v3745
    %5080 = vmatpush.bf16.msra.mxu0 %v3744
    %5081 = vmatmul.bf16.gmra.mxu0 %v1141
    %v5082 = vpop.f32.mrf.mxu0
    %v5083 = vadd.f32 %v5070, %v5082
    %v5084 = vpop.f32.mrf.mxu0
    %5085 = vdwg.mxu0
    %5086 = vmatpush.bf16.msra.mxu0 %v3759
    %5087 = vmatpush.bf16.msra.mxu0 %v3758
    %5088 = vmatpush.bf16.msra.mxu0 %v3757
    %5089 = vmatpush.bf16.msra.mxu0 %v3756
    %5090 = vmatpush.bf16.msra.mxu0 %v3755
    %5091 = vmatpush.bf16.msra.mxu0 %v3754
    %5092 = vmatpush.bf16.msra.mxu0 %v3753
    %5093 = vmatpush.bf16.msra.mxu0 %v3752
    %5094 = vmatmul.bf16.gmra.mxu0 %v1142
    %v5095 = vpop.f32.mrf.mxu0
    %v5096 = vadd.f32 %v5083, %v5095
    %v5097 = vpop.f32.mrf.mxu0
    %5098 = vdwg.mxu0
    %5099 = vmatpush.bf16.msra.mxu0 %v3767
    %5100 = vmatpush.bf16.msra.mxu0 %v3766
    %5101 = vmatpush.bf16.msra.mxu0 %v3765
    %5102 = vmatpush.bf16.msra.mxu0 %v3764
    %5103 = vmatpush.bf16.msra.mxu0 %v3763
    %5104 = vmatpush.bf16.msra.mxu0 %v3762
    %5105 = vmatpush.bf16.msra.mxu0 %v3761
    %5106 = vmatpush.bf16.msra.mxu0 %v3760
    %5107 = vmatmul.bf16.gmra.mxu0 %v1143
    %v5108 = vpop.f32.mrf.mxu0
    %v5109 = vadd.f32 %v5096, %v5108
    %v5110 = vpop.f32.mrf.mxu0
    %5111 = vdwg.mxu0
    %v5112 = vmax.f32 %v5109, 0.0
    %v5113 = vpack.c.bf16 %v5112, %v5112
    %v5114 = vld [vmem:[%s3] sm:$0xf]
    %v5115 = vld [vmem:[%s3 + $0x4] sm:$0xf]
    %v5116 = vld [vmem:[%s3 + $0x8] sm:$0xf]
    %v5117 = vld [vmem:[%s3 + $0xc] sm:$0xf]
    %v5118 = vld [vmem:[%s4] sm:$0x1]
    %v5120 = vperm.slane %v5118, 0
    %v5126 = vunpack.c.l.b16 %v5114
    %v5127 = vunpack.c.l.b16 %v5115
    %v5128 = vunpack.c.l.b16 %v5116
    %v5129 = vunpack.c.l.b16 %v5117
    %v5130 = vpack.c.b16 %v5127, %v5126
    %v5131 = vpack.c.b16 %v5129, %v5128
    %vm5134 = vcmask 261120
    %v5136 = vsel %vm5134, %v5113, 0
    %5138 = vmatpush.bf16.msra.mxu0 0
    %5139 = vmatpush.bf16.msra.mxu0 0
    %5140 = vmatpush.bf16.msra.mxu0 0
    %5141 = vmatpush.bf16.msra.mxu0 0
    %5142 = vmatpush.bf16.msra.mxu0 0
    %5143 = vmatpush.bf16.msra.mxu0 0
    %5144 = vmatpush.bf16.msra.mxu0 %v5131
    %5145 = vmatpush.bf16.msra.mxu0 %v5130
    %5146 = vmatmul.bf16.gmra.mxu0 %v5136
    %v5147 = vpop.f32.mrf.mxu0
    %v5148 = vadd.f32 %v5120, %v5147
    %v5149 = vpop.f32.mrf.mxu0
    %5150 = vdwg.mxu0
    %v5151 = vmax.f32 %v5148, 0.0
    %v5152 = vpack.c.bf16 %v5151, %v5151
    %v5153 = vld [vmem:[%s5] sm:$0xf]
    %v5154 = vld [vmem:[%s5 + $0x4] sm:$0xf]
    %v5155 = vld [vmem:[%s6] sm:$0x1]
    %v5157 = vperm.slane %v5155, 0
    %v5161 = vunpack.c.l.b16 %v5153
    %v5162 = vunpack.c.l.b16 %v5154
    %v5163 = vpack.c.b16 %v5162, %v5161
    %vm5165 = vcmask 130048
    %v5167 = vsel %vm5165, %v5152, 0
    %5169 = vmatpush.bf16.msra.mxu0 0
    %5170 = vmatpush.bf16.msra.mxu0 0
    %5171 = vmatpush.bf16.msra.mxu0 0
    %5172 = vmatpush.bf16.msra.mxu0 0
    %5173 = vmatpush.bf16.msra.mxu0 0
    %5174 = vmatpush.bf16.msra.mxu0 0
    %5175 = vmatpush.bf16.msra.mxu0 0
    %5176 = vmatpush.bf16.msra.mxu0 %v5163
    %5177 = vmatmul.bf16.gmra.mxu0 %v5167
    %v5178 = vpop.f32.mrf.mxu0
    %v5179 = vadd.f32 %v5157, %v5178
    %v5180 = vpop.f32.mrf.mxu0
    %5181 = vdwg.mxu0
    %5182 = vst [vmem:[#allocation2] sm:$0x3] %v5179
    // Predicated region
    $region30: #{currency_model_forward.3} parent=1 // pred_check
      _
    $region31: #{currency_model_forward.3} parent=1 // pred_check_branch
      %5184 = sbr.rel (0) target = $region33
    $region32: #{currency_model_forward.3} parent=1 // pred_region
      %5186 = vsyncadd [#allocation3], 0
      %s5188 = sshll.u32 [#allocation2], 4
      %s5189 = int_to_ptr.vmem [resolvable:$true] %s5188
      %s5190 = sshll.u32 %s7, 4
      %s5191 = int_to_ptr.hbm [resolvable:$true] %s5190
      %5193 = dma.vmem_to_hbm [thread:$0]  %s5189, 32, %s5191, [#allocation3]
    $region33: #{currency_model_forward.3} parent=1 // pred_fallthru
      _
    // Predicated region
    $region34: #{currency_model_forward.3} parent=1 // pred_check
      _
    $region35: #{currency_model_forward.3} parent=1 // pred_check_branch
      %5195 = sbr.rel (0) target = $region37
    $region36: #{currency_model_forward.3} parent=1 // pred_region
      %5197 = dma.done [#allocation3], 32
    $region37: #{currency_model_forward.3} parent=1 // pred_fallthru
      _
    %5198 = vsyncpa [#allocation3], 1

// kernel: currency_model_forward.2
$region0: #{currency_model_forward.2}
  #allocation0 [shape = 'u32[]', space=smem, size = 0x4, offset = 0x4, fixed_abs, tag = 'smem constant byte address 0x4 - core index']
  #allocation1 [shape = 'u32[72,128]{1,0:T(1,128)}', space=vmem, size = 0x9000, scoped, tag = 'internal scratch']
  #allocation2 [shape = 'f32[2,17,17,32]{3,2,1,0:T(8,128)}', space=vmem, size = 0x66000, scoped, tag = 'scratch operand']
  %s0 = inlined_call_operand.vmem [shape: f32[512,3], index: 0, kind: input, shape index: {}]
  %s1 = inlined_call_operand.hbm [shape: bf16[3,128], index: 1, kind: input, shape index: {}]
  %s2 = inlined_call_operand.hbm [shape: f32[1,32], index: 2, kind: input, shape index: {}]
  %s3 = inlined_call_operand.hbm [shape: bf16[32,128], index: 3, kind: input, shape index: {}]
  %s4 = inlined_call_operand.hbm [shape: f32[1,32], index: 4, kind: input, shape index: {}]
  %s5 = inlined_call_operand.vmem [shape: bf16[2,16,16,32], index: 5, kind: output, shape index: {}]
  %s6 = sld [smem:[#allocation0]]
  $region46: #{currency_model_forward.2} parent=0
    _
  %s8 = ssub.s32 1, %s6
  %s9 = scalar_select 0, %s8, %s6
  $region1: #{currency_model_forward.2} parent=0
    #allocation3 [shape = 'u8[1024]{0}', space=vmem, size = 0x400, scoped, tag = 'input window, operand 1, single buffered']
    #allocation4 [shape = 's32[1]{0}', space=sflag, size = 0x4, scoped, tag = 'scoped memory for currency_model_forward.2']
    #allocation5 [shape = 'u8[512]{0}', space=vmem, size = 0x400, scoped, tag = 'input window, operand 2, single buffered']
    #allocation6 [shape = 's32[1]{0}', space=sflag, size = 0x4, scoped, tag = 'scoped memory for currency_model_forward.2']
    #allocation7 [shape = 'u8[8192]{0}', space=vmem, size = 0x2000, scoped, tag = 'input window, operand 3, single buffered']
    #allocation8 [shape = 'u8[512]{0}', space=vmem, size = 0x400, scoped, tag = 'input window, operand 4, single buffered']
    #allocation9 [shape = 's32[1]{0}', space=sflag, size = 0x4, scoped, tag = 'scoped memory for currency_model_forward.2']
    %10 = vsyncpa [#allocation4], 0
    %11 = vsyncpa [#allocation6], 0
    %12 = vsyncpa [#allocation9], 0
    // Predicated region
    $region2: #{currency_model_forward.2} parent=1 // pred_check
      _
    $region3: #{currency_model_forward.2} parent=1 // pred_check_branch
      %14 = sbr.rel (0) target = $region5
    $region4: #{currency_model_forward.2} parent=1 // pred_region
      _
    $region5: #{currency_model_forward.2} parent=1 // pred_fallthru
      _
    // Predicated region
    $region6: #{currency_model_forward.2} parent=1 // pred_check
      _
    $region7: #{currency_model_forward.2} parent=1 // pred_check_branch
      %16 = sbr.rel (0) target = $region9
    $region8: #{currency_model_forward.2} parent=1 // pred_region
      %18 = vsyncadd [#allocation4], 0
      %s20 = sshll.u32 %s1, 4
      %s21 = int_to_ptr.hbm [resolvable:$true] %s20
      %s22 = sshll.u32 [#allocation3], 4
      %s23 = int_to_ptr.vmem [resolvable:$true] %s22
      %25 = dma.hbm_to_vmem [thread:$0]  %s21, 32, %s23, [#allocation4]
    $region9: #{currency_model_forward.2} parent=1 // pred_fallthru
      _
    // Predicated region
    $region10: #{currency_model_forward.2} parent=1 // pred_check
      _
    $region11: #{currency_model_forward.2} parent=1 // pred_check_branch
      %27 = sbr.rel (0) target = $region13
    $region12: #{currency_model_forward.2} parent=1 // pred_region
      %29 = vsyncadd [#allocation6], 0
      %s31 = sshll.u32 %s2, 4
      %s32 = int_to_ptr.hbm [resolvable:$true] %s31
      %s33 = sshll.u32 [#allocation5], 4
      %s34 = int_to_ptr.vmem [resolvable:$true] %s33
      %36 = dma.hbm_to_vmem [thread:$0]  %s32, 16, %s34, [#allocation6]
    $region13: #{currency_model_forward.2} parent=1 // pred_fallthru
      _
    // Predicated region
    $region14: #{currency_model_forward.2} parent=1 // pred_check
      _
    $region15: #{currency_model_forward.2} parent=1 // pred_check_branch
      %38 = sbr.rel (0) target = $region17
    $region16: #{currency_model_forward.2} parent=1 // pred_region
      %40 = vsyncadd [#allocation6], 0
      %s41 = sshll.u32 %s3, 4
      %s42 = int_to_ptr.hbm [resolvable:$true] %s41
      %s43 = sshll.u32 [#allocation7], 4
      %s44 = int_to_ptr.vmem [resolvable:$true] %s43
      %49 = dma.hbm_to_vmem [thread:$0]  %s42, 256, %s44, [#allocation6], 64, 64, 4
    $region17: #{currency_model_forward.2} parent=1 // pred_fallthru
      _
    // Predicated region
    $region18: #{currency_model_forward.2} parent=1 // pred_check
      _
    $region19: #{currency_model_forward.2} parent=1 // pred_check_branch
      %51 = sbr.rel (0) target = $region21
    $region20: #{currency_model_forward.2} parent=1 // pred_region
      %53 = vsyncadd [#allocation9], 0
      %s55 = sshll.u32 %s4, 4
      %s56 = int_to_ptr.hbm [resolvable:$true] %s55
      %s57 = sshll.u32 [#allocation8], 4
      %s58 = int_to_ptr.vmem [resolvable:$true] %s57
      %60 = dma.hbm_to_vmem [thread:$0]  %s56, 16, %s58, [#allocation9]
    $region21: #{currency_model_forward.2} parent=1 // pred_fallthru
      _
    // Predicated region
    $region22: #{currency_model_forward.2} parent=1 // pred_check
      _
    $region23: #{currency_model_forward.2} parent=1 // pred_check_branch
      %62 = sbr.rel (0) target = $region25
    $region24: #{currency_model_forward.2} parent=1 // pred_region
      %64 = dma.done [#allocation4], 32
    $region25: #{currency_model_forward.2} parent=1 // pred_fallthru
      _
    // Predicated region
    $region26: #{currency_model_forward.2} parent=1 // pred_check
      _
    $region27: #{currency_model_forward.2} parent=1 // pred_check_branch
      %66 = sbr.rel (0) target = $region29
    $region28: #{currency_model_forward.2} parent=1 // pred_region
      %68 = dma.done [#allocation6], 16
    $region29: #{currency_model_forward.2} parent=1 // pred_fallthru
      _
    // Predicated region
    $region30: #{currency_model_forward.2} parent=1 // pred_check
      _
    $region31: #{currency_model_forward.2} parent=1 // pred_check_branch
      %70 = sbr.rel (0) target = $region33
    $region32: #{currency_model_forward.2} parent=1 // pred_region
      %72 = dma.done [#allocation6], 256
    $region33: #{currency_model_forward.2} parent=1 // pred_fallthru
      _
    // Predicated region
    $region34: #{currency_model_forward.2} parent=1 // pred_check
      _
    $region35: #{currency_model_forward.2} parent=1 // pred_check_branch
      %74 = sbr.rel (0) target = $region37
    $region36: #{currency_model_forward.2} parent=1 // pred_region
      %76 = dma.done [#allocation9], 16
    $region37: #{currency_model_forward.2} parent=1 // pred_fallthru
      _
    %v78 = vld [vmem:[%s0] sm:$0xff]
    %v79 = vld [vmem:[%s0 + $0x8] sm:$0xff]
    %v80 = vld [vmem:[%s0 + $0x10] sm:$0xff]
    %v81 = vld [vmem:[%s0 + $0x18] sm:$0xff]
    %v82 = vld [vmem:[%s0 + $0x20] sm:$0xff]
    %v83 = vld [vmem:[%s0 + $0x28] sm:$0xff]
    %v84 = vld [vmem:[%s0 + $0x30] sm:$0xff]
    %v85 = vld [vmem:[%s0 + $0x38] sm:$0xff]
    %v86 = vld [vmem:[%s0 + $0x40] sm:$0xff]
    %v87 = vld [vmem:[%s0 + $0x48] sm:$0xff]
    %v88 = vld [vmem:[%s0 + $0x50] sm:$0xff]
    %v89 = vld [vmem:[%s0 + $0x58] sm:$0xff]
    %v90 = vld [vmem:[%s0 + $0x60] sm:$0xff]
    %v91 = vld [vmem:[%s0 + $0x68] sm:$0xff]
    %v92 = vld [vmem:[%s0 + $0x70] sm:$0xff]
    %v93 = vld [vmem:[%s0 + $0x78] sm:$0xff]
    %v94 = vld [vmem:[%s0 + $0x80] sm:$0xff]
    %v95 = vld [vmem:[%s0 + $0x88] sm:$0xff]
    %v96 = vld [vmem:[%s0 + $0x90] sm:$0xff]
    %v97 = vld [vmem:[%s0 + $0x98] sm:$0xff]
    %v98 = vld [vmem:[%s0 + $0xa0] sm:$0xff]
    %v99 = vld [vmem:[%s0 + $0xa8] sm:$0xff]
    %v100 = vld [vmem:[%s0 + $0xb0] sm:$0xff]
    %v101 = vld [vmem:[%s0 + $0xb8] sm:$0xff]
    %v102 = vld [vmem:[%s0 + $0xc0] sm:$0xff]
    %v103 = vld [vmem:[%s0 + $0xc8] sm:$0xff]
    %v104 = vld [vmem:[%s0 + $0xd0] sm:$0xff]
    %v105 = vld [vmem:[%s0 + $0xd8] sm:$0xff]
    %v106 = vld [vmem:[%s0 + $0xe0] sm:$0xff]
    %v107 = vld [vmem:[%s0 + $0xe8] sm:$0xff]
    %v108 = vld [vmem:[%s0 + $0xf0] sm:$0xff]
    %v109 = vld [vmem:[%s0 + $0xf8] sm:$0xff]
    %v110 = vld [vmem:[%s0 + $0x100] sm:$0xff]
    %v111 = vld [vmem:[%s0 + $0x108] sm:$0xff]
    %v112 = vld [vmem:[%s0 + $0x110] sm:$0xff]
    %v113 = vld [vmem:[%s0 + $0x118] sm:$0xff]
    %v114 = vld [vmem:[%s0 + $0x120] sm:$0xff]
    %v115 = vld [vmem:[%s0 + $0x128] sm:$0xff]
    %v116 = vld [vmem:[%s0 + $0x130] sm:$0xff]
    %v117 = vld [vmem:[%s0 + $0x138] sm:$0xff]
    %v118 = vld [vmem:[%s0 + $0x140] sm:$0xff]
    %v119 = vld [vmem:[%s0 + $0x148] sm:$0xff]
    %v120 = vld [vmem:[%s0 + $0x150] sm:$0xff]
    %v121 = vld [vmem:[%s0 + $0x158] sm:$0xff]
    %v122 = vld [vmem:[%s0 + $0x160] sm:$0xff]
    %v123 = vld [vmem:[%s0 + $0x168] sm:$0xff]
    %v124 = vld [vmem:[%s0 + $0x170] sm:$0xff]
    %v125 = vld [vmem:[%s0 + $0x178] sm:$0xff]
    %v126 = vld [vmem:[%s0 + $0x180] sm:$0xff]
    %v127 = vld [vmem:[%s0 + $0x188] sm:$0xff]
    %v128 = vld [vmem:[%s0 + $0x190] sm:$0xff]
    %v129 = vld [vmem:[%s0 + $0x198] sm:$0xff]
    %v130 = vld [vmem:[%s0 + $0x1a0] sm:$0xff]
    %v131 = vld [vmem:[%s0 + $0x1a8] sm:$0xff]
    %v132 = vld [vmem:[%s0 + $0x1b0] sm:$0xff]
    %v133 = vld [vmem:[%s0 + $0x1b8] sm:$0xff]
    %v134 = vld [vmem:[%s0 + $0x1c0] sm:$0xff]
    %v135 = vld [vmem:[%s0 + $0x1c8] sm:$0xff]
    %v136 = vld [vmem:[%s0 + $0x1d0] sm:$0xff]
    %v137 = vld [vmem:[%s0 + $0x1d8] sm:$0xff]
    %v138 = vld [vmem:[%s0 + $0x1e0] sm:$0xff]
    %v139 = vld [vmem:[%s0 + $0x1e8] sm:$0xff]
    %v140 = vld [vmem:[%s0 + $0x1f0] sm:$0xff]
    %v141 = vld [vmem:[%s0 + $0x1f8] sm:$0xff]
    %v142 = vpack.c.bf16 %v79, %v78
    %v143 = vpack.c.bf16 %v81, %v80
    %v144 = vpack.c.bf16 %v83, %v82
    %v145 = vpack.c.bf16 %v85, %v84
    %v146 = vpack.c.bf16 %v87, %v86
    %v147 = vpack.c.bf16 %v89, %v88
    %v148 = vpack.c.bf16 %v91, %v90
    %v149 = vpack.c.bf16 %v93, %v92
    %v150 = vpack.c.bf16 %v95, %v94
    %v151 = vpack.c.bf16 %v97, %v96
    %v152 = vpack.c.bf16 %v99, %v98
    %v153 = vpack.c.bf16 %v101, %v100
    %v154 = vpack.c.bf16 %v103, %v102
    %v155 = vpack.c.bf16 %v105, %v104
    %v156 = vpack.c.bf16 %v107, %v106
    %v157 = vpack.c.bf16 %v109, %v108
    %v158 = vpack.c.bf16 %v111, %v110
    %v159 = vpack.c.bf16 %v113, %v112
    %v160 = vpack.c.bf16 %v115, %v114
    %v161 = vpack.c.bf16 %v117, %v116
    %v162 = vpack.c.bf16 %v119, %v118
    %v163 = vpack.c.bf16 %v121, %v120
    %v164 = vpack.c.bf16 %v123, %v122
    %v165 = vpack.c.bf16 %v125, %v124
    %v166 = vpack.c.bf16 %v127, %v126
    %v167 = vpack.c.bf16 %v129, %v128
    %v168 = vpack.c.bf16 %v131, %v130
    %v169 = vpack.c.bf16 %v133, %v132
    %v170 = vpack.c.bf16 %v135, %v134
    %v171 = vpack.c.bf16 %v137, %v136
    %v172 = vpack.c.bf16 %v139, %v138
    %v173 = vpack.c.bf16 %v141, %v140
    %v174 = vld [vmem:[#allocation3] sm:$0x3]
    %vm175 = vcmask 23552
    %v177 = vsel %vm175, %v142, 0
    %v180 = vsel %vm175, %v143, 0
    %v183 = vsel %vm175, %v144, 0
    %v186 = vsel %vm175, %v145, 0
    %v189 = vsel %vm175, %v146, 0
    %v192 = vsel %vm175, %v147, 0
    %v195 = vsel %vm175, %v148, 0
    %v198 = vsel %vm175, %v149, 0
    %v201 = vsel %vm175, %v150, 0
    %v204 = vsel %vm175, %v151, 0
    %v207 = vsel %vm175, %v152, 0
    %v210 = vsel %vm175, %v153, 0
    %v213 = vsel %vm175, %v154, 0
    %v216 = vsel %vm175, %v155, 0
    %v219 = vsel %vm175, %v156, 0
    %v222 = vsel %vm175, %v157, 0
    %v225 = vsel %vm175, %v158, 0
    %v228 = vsel %vm175, %v159, 0
    %v231 = vsel %vm175, %v160, 0
    %v234 = vsel %vm175, %v161, 0
    %v237 = vsel %vm175, %v162, 0
    %v240 = vsel %vm175, %v163, 0
    %v243 = vsel %vm175, %v164, 0
    %v246 = vsel %vm175, %v165, 0
    %v249 = vsel %vm175, %v166, 0
    %v252 = vsel %vm175, %v167, 0
    %v255 = vsel %vm175, %v168, 0
    %v258 = vsel %vm175, %v169, 0
    %v261 = vsel %vm175, %v170, 0
    %v264 = vsel %vm175, %v171, 0
    %v267 = vsel %vm175, %v172, 0
    %v270 = vsel %vm175, %v173, 0
    %vm272 = vcmask 1040384
    %vm273 = vcmask 1041408
    %v274 = vsel %vm272, 4294967295, 65535
    %v275 = vsel %vm273, %v274, 0
    %v277 = vand.u32 %v174, %v275
    %279 = vmatpush.bf16.msra.mxu0 0
    %280 = vmatpush.bf16.msra.mxu0 0
    %281 = vmatpush.bf16.msra.mxu0 0
    %282 = vmatpush.bf16.msra.mxu0 0
    %283 = vmatpush.bf16.msra.mxu0 0
    %284 = vmatpush.bf16.msra.mxu0 0
    %285 = vmatpush.bf16.msra.mxu0 0
    %286 = vmatpush.bf16.msra.mxu0 %v277
    %287 = vmatmul.bf16.gmra.mxu0 %v177
    %v288 = vpop.f32.mrf.mxu0
    %v289 = vadd.f32 0.0, %v288
    %v290 = vpop.f32.mrf.mxu0
    %v291 = vadd.f32 0.0, %v290
    %292 = vmatmul.bf16.gmra.mxu0 %v180
    %v293 = vpop.f32.mrf.mxu0
    %v294 = vadd.f32 0.0, %v293
    %v295 = vpop.f32.mrf.mxu0
    %v296 = vadd.f32 0.0, %v295
    %297 = vmatmul.bf16.gmra.mxu0 %v183
    %v298 = vpop.f32.mrf.mxu0
    %v299 = vadd.f32 0.0, %v298
    %v300 = vpop.f32.mrf.mxu0
    %v301 = vadd.f32 0.0, %v300
    %302 = vmatmul.bf16.gmra.mxu0 %v186
    %v303 = vpop.f32.mrf.mxu0
    %v304 = vadd.f32 0.0, %v303
    %v305 = vpop.f32.mrf.mxu0
    %v306 = vadd.f32 0.0, %v305
    %307 = vmatmul.bf16.gmra.mxu0 %v189
    %v308 = vpop.f32.mrf.mxu0
    %v309 = vadd.f32 0.0, %v308
    %v310 = vpop.f32.mrf.mxu0
    %v311 = vadd.f32 0.0, %v310
    %312 = vmatmul.bf16.gmra.mxu0 %v192
    %v313 = vpop.f32.mrf.mxu0
    %v314 = vadd.f32 0.0, %v313
    %v315 = vpop.f32.mrf.mxu0
    %v316 = vadd.f32 0.0, %v315
    %317 = vmatmul.bf16.gmra.mxu0 %v195
    %v318 = vpop.f32.mrf.mxu0
    %v319 = vadd.f32 0.0, %v318
    %v320 = vpop.f32.mrf.mxu0
    %v321 = vadd.f32 0.0, %v320
    %322 = vmatmul.bf16.gmra.mxu0 %v198
    %v323 = vpop.f32.mrf.mxu0
    %v324 = vadd.f32 0.0, %v323
    %v325 = vpop.f32.mrf.mxu0
    %v326 = vadd.f32 0.0, %v325
    %327 = vmatmul.bf16.gmra.mxu0 %v201
    %v328 = vpop.f32.mrf.mxu0
    %v329 = vadd.f32 0.0, %v328
    %v330 = vpop.f32.mrf.mxu0
    %v331 = vadd.f32 0.0, %v330
    %332 = vmatmul.bf16.gmra.mxu0 %v204
    %v333 = vpop.f32.mrf.mxu0
    %v334 = vadd.f32 0.0, %v333
    %v335 = vpop.f32.mrf.mxu0
    %v336 = vadd.f32 0.0, %v335
    %337 = vmatmul.bf16.gmra.mxu0 %v207
    %v338 = vpop.f32.mrf.mxu0
    %v339 = vadd.f32 0.0, %v338
    %v340 = vpop.f32.mrf.mxu0
    %v341 = vadd.f32 0.0, %v340
    %342 = vmatmul.bf16.gmra.mxu0 %v210
    %v343 = vpop.f32.mrf.mxu0
    %v344 = vadd.f32 0.0, %v343
    %v345 = vpop.f32.mrf.mxu0
    %v346 = vadd.f32 0.0, %v345
    %347 = vmatmul.bf16.gmra.mxu0 %v213
    %v348 = vpop.f32.mrf.mxu0
    %v349 = vadd.f32 0.0, %v348
    %v350 = vpop.f32.mrf.mxu0
    %v351 = vadd.f32 0.0, %v350
    %352 = vmatmul.bf16.gmra.mxu0 %v216
    %v353 = vpop.f32.mrf.mxu0
    %v354 = vadd.f32 0.0, %v353
    %v355 = vpop.f32.mrf.mxu0
    %v356 = vadd.f32 0.0, %v355
    %357 = vmatmul.bf16.gmra.mxu0 %v219
    %v358 = vpop.f32.mrf.mxu0
    %v359 = vadd.f32 0.0, %v358
    %v360 = vpop.f32.mrf.mxu0
    %v361 = vadd.f32 0.0, %v360
    %362 = vmatmul.bf16.gmra.mxu0 %v222
    %v363 = vpop.f32.mrf.mxu0
    %v364 = vadd.f32 0.0, %v363
    %v365 = vpop.f32.mrf.mxu0
    %v366 = vadd.f32 0.0, %v365
    %367 = vmatmul.bf16.gmra.mxu0 %v225
    %v368 = vpop.f32.mrf.mxu0
    %v369 = vadd.f32 0.0, %v368
    %v370 = vpop.f32.mrf.mxu0
    %v371 = vadd.f32 0.0, %v370
    %372 = vmatmul.bf16.gmra.mxu0 %v228
    %v373 = vpop.f32.mrf.mxu0
    %v374 = vadd.f32 0.0, %v373
    %v375 = vpop.f32.mrf.mxu0
    %v376 = vadd.f32 0.0, %v375
    %377 = vmatmul.bf16.gmra.mxu0 %v231
    %v378 = vpop.f32.mrf.mxu0
    %v379 = vadd.f32 0.0, %v378
    %v380 = vpop.f32.mrf.mxu0
    %v381 = vadd.f32 0.0, %v380
    %382 = vmatmul.bf16.gmra.mxu0 %v234
    %v383 = vpop.f32.mrf.mxu0
    %v384 = vadd.f32 0.0, %v383
    %v385 = vpop.f32.mrf.mxu0
    %v386 = vadd.f32 0.0, %v385
    %387 = vmatmul.bf16.gmra.mxu0 %v237
    %v388 = vpop.f32.mrf.mxu0
    %v389 = vadd.f32 0.0, %v388
    %v390 = vpop.f32.mrf.mxu0
    %v391 = vadd.f32 0.0, %v390
    %392 = vmatmul.bf16.gmra.mxu0 %v240
    %v393 = vpop.f32.mrf.mxu0
    %v394 = vadd.f32 0.0, %v393
    %v395 = vpop.f32.mrf.mxu0
    %v396 = vadd.f32 0.0, %v395
    %397 = vmatmul.bf16.gmra.mxu0 %v243
    %v398 = vpop.f32.mrf.mxu0
    %v399 = vadd.f32 0.0, %v398
    %v400 = vpop.f32.mrf.mxu0
    %v401 = vadd.f32 0.0, %v400
    %402 = vmatmul.bf16.gmra.mxu0 %v246
    %v403 = vpop.f32.mrf.mxu0
    %v404 = vadd.f32 0.0, %v403
    %v405 = vpop.f32.mrf.mxu0
    %v406 = vadd.f32 0.0, %v405
    %407 = vmatmul.bf16.gmra.mxu0 %v249
    %v408 = vpop.f32.mrf.mxu0
    %v409 = vadd.f32 0.0, %v408
    %v410 = vpop.f32.mrf.mxu0
    %v411 = vadd.f32 0.0, %v410
    %412 = vmatmul.bf16.gmra.mxu0 %v252
    %v413 = vpop.f32.mrf.mxu0
    %v414 = vadd.f32 0.0, %v413
    %v415 = vpop.f32.mrf.mxu0
    %v416 = vadd.f32 0.0, %v415
    %417 = vmatmul.bf16.gmra.mxu0 %v255
    %v418 = vpop.f32.mrf.mxu0
    %v419 = vadd.f32 0.0, %v418
    %v420 = vpop.f32.mrf.mxu0
    %v421 = vadd.f32 0.0, %v420
    %422 = vmatmul.bf16.gmra.mxu0 %v258
    %v423 = vpop.f32.mrf.mxu0
    %v424 = vadd.f32 0.0, %v423
    %v425 = vpop.f32.mrf.mxu0
    %v426 = vadd.f32 0.0, %v425
    %427 = vmatmul.bf16.gmra.mxu0 %v261
    %v428 = vpop.f32.mrf.mxu0
    %v429 = vadd.f32 0.0, %v428
    %v430 = vpop.f32.mrf.mxu0
    %v431 = vadd.f32 0.0, %v430
    %432 = vmatmul.bf16.gmra.mxu0 %v264
    %v433 = vpop.f32.mrf.mxu0
    %v434 = vadd.f32 0.0, %v433
    %v435 = vpop.f32.mrf.mxu0
    %v436 = vadd.f32 0.0, %v435
    %437 = vmatmul.bf16.gmra.mxu0 %v267
    %v438 = vpop.f32.mrf.mxu0
    %v439 = vadd.f32 0.0, %v438
    %v440 = vpop.f32.mrf.mxu0
    %v441 = vadd.f32 0.0, %v440
    %442 = vmatmul.bf16.gmra.mxu0 %v270
    %v443 = vpop.f32.mrf.mxu0
    %v444 = vadd.f32 0.0, %v443
    %v445 = vpop.f32.mrf.mxu0
    %v446 = vadd.f32 0.0, %v445
    %447 = vdwg.mxu0
    %v448 = vld [vmem:[#allocation5] sm:$0x1]
    %v450 = vperm.slane %v448, 0
    %vm452 = vcmask 261120
    %453 = vst.msk [vmem:[#allocation2] sm:$0xff] %vm452, %v450
    %454 = vst.msk [vmem:[#allocation2 + $0x8] sm:$0xff] %vm452, %v450
    %vm455 = vcmask 253952
    %456 = vst.msk [vmem:[#allocation2 + $0x10] sm:$0x1] %vm455, %v450
    %457 = vst.msk [vmem:[#allocation2 + $0x18] sm:$0xff] %vm452, %v450
    %458 = vst.msk [vmem:[#allocation2 + $0x20] sm:$0xff] %vm452, %v450
    %459 = vst.msk [vmem:[#allocation2 + $0x28] sm:$0x1] %vm455, %v450
    %460 = vst.msk [vmem:[#allocation2 + $0x30] sm:$0xff] %vm452, %v450
    %461 = vst.msk [vmem:[#allocation2 + $0x38] sm:$0xff] %vm452, %v450
    %462 = vst.msk [vmem:[#allocation2 + $0x40] sm:$0x1] %vm455, %v450
    %463 = vst.msk [vmem:[#allocation2 + $0x48] sm:$0xff] %vm452, %v450
    %464 = vst.msk [vmem:[#allocation2 + $0x50] sm:$0xff] %vm452, %v450
    %465 = vst.msk [vmem:[#allocation2 + $0x58] sm:$0x1] %vm455, %v450
    %466 = vst.msk [vmem:[#allocation2 + $0x60] sm:$0xff] %vm452, %v450
    %467 = vst.msk [vmem:[#allocation2 + $0x68] sm:$0xff] %vm452, %v450
    %468 = vst.msk [vmem:[#allocation2 + $0x70] sm:$0x1] %vm455, %v450
    %469 = vst.msk [vmem:[#allocation2 + $0x78] sm:$0xff] %vm452, %v450
    %470 = vst.msk [vmem:[#allocation2 + $0x80] sm:$0xff] %vm452, %v450
    %471 = vst.msk [vmem:[#allocation2 + $0x88] sm:$0x1] %vm455, %v450
    %472 = vst.msk [vmem:[#allocation2 + $0x90] sm:$0xff] %vm452, %v450
    %473 = vst.msk [vmem:[#allocation2 + $0x98] sm:$0xff] %vm452, %v450
    %474 = vst.msk [vmem:[#allocation2 + $0xa0] sm:$0x1] %vm455, %v450
    %475 = vst.msk [vmem:[#allocation2 + $0xa8] sm:$0xff] %vm452, %v450
    %476 = vst.msk [vmem:[#allocation2 + $0xb0] sm:$0xff] %vm452, %v450
    %477 = vst.msk [vmem:[#allocation2 + $0xb8] sm:$0x1] %vm455, %v450
    %478 = vst.msk [vmem:[#allocation2 + $0xc0] sm:$0xff] %vm452, %v450
    %479 = vst.msk [vmem:[#allocation2 + $0xc8] sm:$0xff] %vm452, %v450
    %480 = vst.msk [vmem:[#allocation2 + $0xd0] sm:$0x1] %vm455, %v450
    %481 = vst.msk [vmem:[#allocation2 + $0xd8] sm:$0xff] %vm452, %v450
    %482 = vst.msk [vmem:[#allocation2 + $0xe0] sm:$0xff] %vm452, %v450
    %483 = vst.msk [vmem:[#allocation2 + $0xe8] sm:$0x1] %vm455, %v450
    %484 = vst.msk [vmem:[#allocation2 + $0xf0] sm:$0xff] %vm452, %v450
    %485 = vst.msk [vmem:[#allocation2 + $0xf8] sm:$0xff] %vm452, %v450
    %486 = vst.msk [vmem:[#allocation2 + $0x100] sm:$0x1] %vm455, %v450
    %487 = vst.msk [vmem:[#allocation2 + $0x108] sm:$0xff] %vm452, %v450
    %488 = vst.msk [vmem:[#allocation2 + $0x110] sm:$0xff] %vm452, %v450
    %489 = vst.msk [vmem:[#allocation2 + $0x118] sm:$0x1] %vm455, %v450
    %490 = vst.msk [vmem:[#allocation2 + $0x120] sm:$0xff] %vm452, %v450
    %491 = vst.msk [vmem:[#allocation2 + $0x128] sm:$0xff] %vm452, %v450
    %492 = vst.msk [vmem:[#allocation2 + $0x130] sm:$0x1] %vm455, %v450
    %493 = vst.msk [vmem:[#allocation2 + $0x138] sm:$0xff] %vm452, %v450
    %494 = vst.msk [vmem:[#allocation2 + $0x140] sm:$0xff] %vm452, %v450
    %495 = vst.msk [vmem:[#allocation2 + $0x148] sm:$0x1] %vm455, %v450
    %496 = vst.msk [vmem:[#allocation2 + $0x150] sm:$0xff] %vm452, %v450
    %497 = vst.msk [vmem:[#allocation2 + $0x158] sm:$0xff] %vm452, %v450
    %498 = vst.msk [vmem:[#allocation2 + $0x160] sm:$0x1] %vm455, %v450
    %499 = vst.msk [vmem:[#allocation2 + $0x168] sm:$0xff] %vm452, %v450
    %500 = vst.msk [vmem:[#allocation2 + $0x170] sm:$0xff] %vm452, %v450
    %501 = vst.msk [vmem:[#allocation2 + $0x178] sm:$0x1] %vm455, %v450
    %502 = vst.msk [vmem:[#allocation2 + $0x180] sm:$0xff] %vm452, %v450
    %503 = vst.msk [vmem:[#allocation2 + $0x188] sm:$0xff] %vm452, %v450
    %504 = vst.msk [vmem:[#allocation2 + $0x190] sm:$0x1] %vm455, %v450
    %505 = vst.msk [vmem:[#allocation2 + $0x198] sm:$0xff] %vm452, %v450
    %506 = vst.msk [vmem:[#allocation2 + $0x1a0] sm:$0xff] %vm452, %v450
    %507 = vst.msk [vmem:[#allocation2 + $0x1a8] sm:$0x1] %vm455, %v450
    %508 = vst.msk [vmem:[#allocation2 + $0x1b0] sm:$0xff] %vm452, %v450
    %509 = vst.msk [vmem:[#allocation2 + $0x1b8] sm:$0xff] %vm452, %v450
    %510 = vst.msk [vmem:[#allocation2 + $0x1c0] sm:$0x1] %vm455, %v450
    %511 = vst.msk [vmem:[#allocation2 + $0x1c8] sm:$0xff] %vm452, %v450
    %512 = vst.msk [vmem:[#allocation2 + $0x1d0] sm:$0xff] %vm452, %v450
    %513 = vst.msk [vmem:[#allocation2 + $0x1d8] sm:$0x1] %vm455, %v450
    %514 = vst.msk [vmem:[#allocation2 + $0x1e0] sm:$0xff] %vm452, %v450
    %515 = vst.msk [vmem:[#allocation2 + $0x1e8] sm:$0xff] %vm452, %v450
    %516 = vst.msk [vmem:[#allocation2 + $0x1f0] sm:$0x1] %vm455, %v450
    %517 = vst.msk [vmem:[#allocation2 + $0x1f8] sm:$0xff] %vm452, %v450
    %518 = vst.msk [vmem:[#allocation2 + $0x200] sm:$0xff] %vm452, %v450
    %519 = vst.msk [vmem:[#allocation2 + $0x208] sm:$0x1] %vm455, %v450
    %520 = vst.msk [vmem:[#allocation2 + $0x210] sm:$0xff] %vm452, %v450
    %521 = vst.msk [vmem:[#allocation2 + $0x218] sm:$0xff] %vm452, %v450
    %522 = vst.msk [vmem:[#allocation2 + $0x220] sm:$0x1] %vm455, %v450
    %523 = vst.msk [vmem:[#allocation2 + $0x228] sm:$0xff] %vm452, %v450
    %524 = vst.msk [vmem:[#allocation2 + $0x230] sm:$0xff] %vm452, %v450
    %525 = vst.msk [vmem:[#allocation2 + $0x238] sm:$0x1] %vm455, %v450
    %526 = vst.msk [vmem:[#allocation2 + $0x240] sm:$0xff] %vm452, %v450
    %527 = vst.msk [vmem:[#allocation2 + $0x248] sm:$0xff] %vm452, %v450
    %528 = vst.msk [vmem:[#allocation2 + $0x250] sm:$0x1] %vm455, %v450
    %529 = vst.msk [vmem:[#allocation2 + $0x258] sm:$0xff] %vm452, %v450
    %530 = vst.msk [vmem:[#allocation2 + $0x260] sm:$0xff] %vm452, %v450
    %531 = vst.msk [vmem:[#allocation2 + $0x268] sm:$0x1] %vm455, %v450
    %532 = vst.msk [vmem:[#allocation2 + $0x270] sm:$0xff] %vm452, %v450
    %533 = vst.msk [vmem:[#allocation2 + $0x278] sm:$0xff] %vm452, %v450
    %534 = vst.msk [vmem:[#allocation2 + $0x280] sm:$0x1] %vm455, %v450
    %535 = vst.msk [vmem:[#allocation2 + $0x288] sm:$0xff] %vm452, %v450
    %536 = vst.msk [vmem:[#allocation2 + $0x290] sm:$0xff] %vm452, %v450
    %537 = vst.msk [vmem:[#allocation2 + $0x298] sm:$0x1] %vm455, %v450
    %538 = vst.msk [vmem:[#allocation2 + $0x2a0] sm:$0xff] %vm452, %v450
    %539 = vst.msk [vmem:[#allocation2 + $0x2a8] sm:$0xff] %vm452, %v450
    %540 = vst.msk [vmem:[#allocation2 + $0x2b0] sm:$0x1] %vm455, %v450
    %541 = vst.msk [vmem:[#allocation2 + $0x2b8] sm:$0xff] %vm452, %v450
    %542 = vst.msk [vmem:[#allocation2 + $0x2c0] sm:$0xff] %vm452, %v450
    %543 = vst.msk [vmem:[#allocation2 + $0x2c8] sm:$0x1] %vm455, %v450
    %544 = vst.msk [vmem:[#allocation2 + $0x2d0] sm:$0xff] %vm452, %v450
    %545 = vst.msk [vmem:[#allocation2 + $0x2d8] sm:$0xff] %vm452, %v450
    %546 = vst.msk [vmem:[#allocation2 + $0x2e0] sm:$0x1] %vm455, %v450
    %547 = vst.msk [vmem:[#allocation2 + $0x2e8] sm:$0xff] %vm452, %v450
    %548 = vst.msk [vmem:[#allocation2 + $0x2f0] sm:$0xff] %vm452, %v450
    %549 = vst.msk [vmem:[#allocation2 + $0x2f8] sm:$0x1] %vm455, %v450
    %550 = vst.msk [vmem:[#allocation2 + $0x300] sm:$0xff] %vm452, %v450
    %551 = vst.msk [vmem:[#allocation2 + $0x308] sm:$0xff] %vm452, %v450
    %552 = vst.msk [vmem:[#allocation2 + $0x310] sm:$0x1] %vm455, %v450
    %553 = vst.msk [vmem:[#allocation2 + $0x318] sm:$0xff] %vm452, %v450
    %554 = vst.msk [vmem:[#allocation2 + $0x320] sm:$0xff] %vm452, %v450
    %555 = vst.msk [vmem:[#allocation2 + $0x328] sm:$0x1] %vm455, %v450
    %s556 = scalar_lea.vmem [#allocation2], 24
    %v557 = vld [vmem:[%s556 + $0x1] sm:$0xff]
    %v558 = vld [vmem:[%s556 + $0x9] sm:$0xff]
    %v559 = vld [vmem:[%s556 + $0x19] sm:$0xff]
    %v560 = vld [vmem:[%s556 + $0x21] sm:$0xff]
    %v561 = vld [vmem:[%s556 + $0x31] sm:$0xff]
    %v562 = vld [vmem:[%s556 + $0x39] sm:$0xff]
    %v563 = vld [vmem:[%s556 + $0x49] sm:$0xff]
    %v564 = vld [vmem:[%s556 + $0x51] sm:$0xff]
    %v565 = vld [vmem:[%s556 + $0x61] sm:$0xff]
    %v566 = vld [vmem:[%s556 + $0x69] sm:$0xff]
    %v567 = vld [vmem:[%s556 + $0x79] sm:$0xff]
    %v568 = vld [vmem:[%s556 + $0x81] sm:$0xff]
    %v569 = vld [vmem:[%s556 + $0x91] sm:$0xff]
    %v570 = vld [vmem:[%s556 + $0x99] sm:$0xff]
    %v571 = vld [vmem:[%s556 + $0xa9] sm:$0xff]
    %v572 = vld [vmem:[%s556 + $0xb1] sm:$0xff]
    %v573 = vld [vmem:[%s556 + $0xc1] sm:$0xff]
    %v574 = vld [vmem:[%s556 + $0xc9] sm:$0xff]
    %v575 = vld [vmem:[%s556 + $0xd9] sm:$0xff]
    %v576 = vld [vmem:[%s556 + $0xe1] sm:$0xff]
    %v577 = vld [vmem:[%s556 + $0xf1] sm:$0xff]
    %v578 = vld [vmem:[%s556 + $0xf9] sm:$0xff]
    %v579 = vld [vmem:[%s556 + $0x109] sm:$0xff]
    %v580 = vld [vmem:[%s556 + $0x111] sm:$0xff]
    %v581 = vld [vmem:[%s556 + $0x121] sm:$0xff]
    %v582 = vld [vmem:[%s556 + $0x129] sm:$0xff]
    %v583 = vld [vmem:[%s556 + $0x139] sm:$0xff]
    %v584 = vld [vmem:[%s556 + $0x141] sm:$0xff]
    %v585 = vld [vmem:[%s556 + $0x151] sm:$0xff]
    %v586 = vld [vmem:[%s556 + $0x159] sm:$0xff]
    %v587 = vld [vmem:[%s556 + $0x169] sm:$0xff]
    %v588 = vld [vmem:[%s556 + $0x171] sm:$0xff]
    %v589 = vld [vmem:[%s556 + $0x199] sm:$0xff]
    %v590 = vld [vmem:[%s556 + $0x1a1] sm:$0xff]
    %v591 = vld [vmem:[%s556 + $0x1b1] sm:$0xff]
    %v592 = vld [vmem:[%s556 + $0x1b9] sm:$0xff]
    %v593 = vld [vmem:[%s556 + $0x1c9] sm:$0xff]
    %v594 = vld [vmem:[%s556 + $0x1d1] sm:$0xff]
    %v595 = vld [vmem:[%s556 + $0x1e1] sm:$0xff]
    %v596 = vld [vmem:[%s556 + $0x1e9] sm:$0xff]
    %v597 = vld [vmem:[%s556 + $0x1f9] sm:$0xff]
    %v598 = vld [vmem:[%s556 + $0x201] sm:$0xff]
    %v599 = vld [vmem:[%s556 + $0x211] sm:$0xff]
    %v600 = vld [vmem:[%s556 + $0x219] sm:$0xff]
    %v601 = vld [vmem:[%s556 + $0x229] sm:$0xff]
    %v602 = vld [vmem:[%s556 + $0x231] sm:$0xff]
    %v603 = vld [vmem:[%s556 + $0x241] sm:$0xff]
    %v604 = vld [vmem:[%s556 + $0x249] sm:$0xff]
    %v605 = vld [vmem:[%s556 + $0x259] sm:$0xff]
    %v606 = vld [vmem:[%s556 + $0x261] sm:$0xff]
    %v607 = vld [vmem:[%s556 + $0x271] sm:$0xff]
    %v608 = vld [vmem:[%s556 + $0x279] sm:$0xff]
    %v609 = vld [vmem:[%s556 + $0x289] sm:$0xff]
    %v610 = vld [vmem:[%s556 + $0x291] sm:$0xff]
    %v611 = vld [vmem:[%s556 + $0x2a1] sm:$0xff]
    %v612 = vld [vmem:[%s556 + $0x2a9] sm:$0xff]
    %v613 = vld [vmem:[%s556 + $0x2b9] sm:$0xff]
    %v614 = vld [vmem:[%s556 + $0x2c1] sm:$0xff]
    %v615 = vld [vmem:[%s556 + $0x2d1] sm:$0xff]
    %v616 = vld [vmem:[%s556 + $0x2d9] sm:$0xff]
    %v617 = vld [vmem:[%s556 + $0x2e9] sm:$0xff]
    %v618 = vld [vmem:[%s556 + $0x2f1] sm:$0xff]
    %v619 = vld [vmem:[%s556 + $0x301] sm:$0xff]
    %v620 = vld [vmem:[%s556 + $0x309] sm:$0xff]
    %v621 = vadd.f32 %v557, %v289
    %v622 = vadd.f32 %v558, %v291
    %v623 = vadd.f32 %v559, %v294
    %v624 = vadd.f32 %v560, %v296
    %v625 = vadd.f32 %v561, %v299
    %v626 = vadd.f32 %v562, %v301
    %v627 = vadd.f32 %v563, %v304
    %v628 = vadd.f32 %v564, %v306
    %v629 = vadd.f32 %v565, %v309
    %v630 = vadd.f32 %v566, %v311
    %v631 = vadd.f32 %v567, %v314
    %v632 = vadd.f32 %v568, %v316
    %v633 = vadd.f32 %v569, %v319
    %v634 = vadd.f32 %v570, %v321
    %v635 = vadd.f32 %v571, %v324
    %v636 = vadd.f32 %v572, %v326
    %v637 = vadd.f32 %v573, %v329
    %v638 = vadd.f32 %v574, %v331
    %v639 = vadd.f32 %v575, %v334
    %v640 = vadd.f32 %v576, %v336
    %v641 = vadd.f32 %v577, %v339
    %v642 = vadd.f32 %v578, %v341
    %v643 = vadd.f32 %v579, %v344
    %v644 = vadd.f32 %v580, %v346
    %v645 = vadd.f32 %v581, %v349
    %v646 = vadd.f32 %v582, %v351
    %v647 = vadd.f32 %v583, %v354
    %v648 = vadd.f32 %v584, %v356
    %v649 = vadd.f32 %v585, %v359
    %v650 = vadd.f32 %v586, %v361
    %v651 = vadd.f32 %v587, %v364
    %v652 = vadd.f32 %v588, %v366
    %v653 = vadd.f32 %v589, %v369
    %v654 = vadd.f32 %v590, %v371
    %v655 = vadd.f32 %v591, %v374
    %v656 = vadd.f32 %v592, %v376
    %v657 = vadd.f32 %v593, %v379
    %v658 = vadd.f32 %v594, %v381
    %v659 = vadd.f32 %v595, %v384
    %v660 = vadd.f32 %v596, %v386
    %v661 = vadd.f32 %v597, %v389
    %v662 = vadd.f32 %v598, %v391
    %v663 = vadd.f32 %v599, %v394
    %v664 = vadd.f32 %v600, %v396
    %v665 = vadd.f32 %v601, %v399
    %v666 = vadd.f32 %v602, %v401
    %v667 = vadd.f32 %v603, %v404
    %v668 = vadd.f32 %v604, %v406
    %v669 = vadd.f32 %v605, %v409
    %v670 = vadd.f32 %v606, %v411
    %v671 = vadd.f32 %v607, %v414
    %v672 = vadd.f32 %v608, %v416
    %v673 = vadd.f32 %v609, %v419
    %v674 = vadd.f32 %v610, %v421
    %v675 = vadd.f32 %v611, %v424
    %v676 = vadd.f32 %v612, %v426
    %v677 = vadd.f32 %v613, %v429
    %v678 = vadd.f32 %v614, %v431
    %v679 = vadd.f32 %v615, %v434
    %v680 = vadd.f32 %v616, %v436
    %v681 = vadd.f32 %v617, %v439
    %v682 = vadd.f32 %v618, %v441
    %v683 = vadd.f32 %v619, %v444
    %v684 = vadd.f32 %v620, %v446
    %685 = vst.msk [vmem:[%s556 + $0x1] sm:$0xff] %vm452, %v621
    %686 = vst.msk [vmem:[%s556 + $0x9] sm:$0xff] %vm452, %v622
    %687 = vst.msk [vmem:[%s556 + $0x19] sm:$0xff] %vm452, %v623
    %688 = vst.msk [vmem:[%s556 + $0x21] sm:$0xff] %vm452, %v624
    %689 = vst.msk [vmem:[%s556 + $0x31] sm:$0xff] %vm452, %v625
    %690 = vst.msk [vmem:[%s556 + $0x39] sm:$0xff] %vm452, %v626
    %691 = vst.msk [vmem:[%s556 + $0x49] sm:$0xff] %vm452, %v627
    %692 = vst.msk [vmem:[%s556 + $0x51] sm:$0xff] %vm452, %v628
    %693 = vst.msk [vmem:[%s556 + $0x61] sm:$0xff] %vm452, %v629
    %694 = vst.msk [vmem:[%s556 + $0x69] sm:$0xff] %vm452, %v630
    %695 = vst.msk [vmem:[%s556 + $0x79] sm:$0xff] %vm452, %v631
    %696 = vst.msk [vmem:[%s556 + $0x81] sm:$0xff] %vm452, %v632
    %697 = vst.msk [vmem:[%s556 + $0x91] sm:$0xff] %vm452, %v633
    %698 = vst.msk [vmem:[%s556 + $0x99] sm:$0xff] %vm452, %v634
    %699 = vst.msk [vmem:[%s556 + $0xa9] sm:$0xff] %vm452, %v635
    %700 = vst.msk [vmem:[%s556 + $0xb1] sm:$0xff] %vm452, %v636
    %701 = vst.msk [vmem:[%s556 + $0xc1] sm:$0xff] %vm452, %v637
    %702 = vst.msk [vmem:[%s556 + $0xc9] sm:$0xff] %vm452, %v638
    %703 = vst.msk [vmem:[%s556 + $0xd9] sm:$0xff] %vm452, %v639
    %704 = vst.msk [vmem:[%s556 + $0xe1] sm:$0xff] %vm452, %v640
    %705 = vst.msk [vmem:[%s556 + $0xf1] sm:$0xff] %vm452, %v641
    %706 = vst.msk [vmem:[%s556 + $0xf9] sm:$0xff] %vm452, %v642
    %707 = vst.msk [vmem:[%s556 + $0x109] sm:$0xff] %vm452, %v643
    %708 = vst.msk [vmem:[%s556 + $0x111] sm:$0xff] %vm452, %v644
    %709 = vst.msk [vmem:[%s556 + $0x121] sm:$0xff] %vm452, %v645
    %710 = vst.msk [vmem:[%s556 + $0x129] sm:$0xff] %vm452, %v646
    %711 = vst.msk [vmem:[%s556 + $0x139] sm:$0xff] %vm452, %v647
    %712 = vst.msk [vmem:[%s556 + $0x141] sm:$0xff] %vm452, %v648
    %713 = vst.msk [vmem:[%s556 + $0x151] sm:$0xff] %vm452, %v649
    %714 = vst.msk [vmem:[%s556 + $0x159] sm:$0xff] %vm452, %v650
    %715 = vst.msk [vmem:[%s556 + $0x169] sm:$0xff] %vm452, %v651
    %716 = vst.msk [vmem:[%s556 + $0x171] sm:$0xff] %vm452, %v652
    %717 = vst.msk [vmem:[%s556 + $0x199] sm:$0xff] %vm452, %v653
    %718 = vst.msk [vmem:[%s556 + $0x1a1] sm:$0xff] %vm452, %v654
    %719 = vst.msk [vmem:[%s556 + $0x1b1] sm:$0xff] %vm452, %v655
    %720 = vst.msk [vmem:[%s556 + $0x1b9] sm:$0xff] %vm452, %v656
    %721 = vst.msk [vmem:[%s556 + $0x1c9] sm:$0xff] %vm452, %v657
    %722 = vst.msk [vmem:[%s556 + $0x1d1] sm:$0xff] %vm452, %v658
    %723 = vst.msk [vmem:[%s556 + $0x1e1] sm:$0xff] %vm452, %v659
    %724 = vst.msk [vmem:[%s556 + $0x1e9] sm:$0xff] %vm452, %v660
    %725 = vst.msk [vmem:[%s556 + $0x1f9] sm:$0xff] %vm452, %v661
    %726 = vst.msk [vmem:[%s556 + $0x201] sm:$0xff] %vm452, %v662
    %727 = vst.msk [vmem:[%s556 + $0x211] sm:$0xff] %vm452, %v663
    %728 = vst.msk [vmem:[%s556 + $0x219] sm:$0xff] %vm452, %v664
    %729 = vst.msk [vmem:[%s556 + $0x229] sm:$0xff] %vm452, %v665
    %730 = vst.msk [vmem:[%s556 + $0x231] sm:$0xff] %vm452, %v666
    %731 = vst.msk [vmem:[%s556 + $0x241] sm:$0xff] %vm452, %v667
    %732 = vst.msk [vmem:[%s556 + $0x249] sm:$0xff] %vm452, %v668
    %733 = vst.msk [vmem:[%s556 + $0x259] sm:$0xff] %vm452, %v669
    %734 = vst.msk [vmem:[%s556 + $0x261] sm:$0xff] %vm452, %v670
    %735 = vst.msk [vmem:[%s556 + $0x271] sm:$0xff] %vm452, %v671
    %736 = vst.msk [vmem:[%s556 + $0x279] sm:$0xff] %vm452, %v672
    %737 = vst.msk [vmem:[%s556 + $0x289] sm:$0xff] %vm452, %v673
    %738 = vst.msk [vmem:[%s556 + $0x291] sm:$0xff] %vm452, %v674
    %739 = vst.msk [vmem:[%s556 + $0x2a1] sm:$0xff] %vm452, %v675
    %740 = vst.msk [vmem:[%s556 + $0x2a9] sm:$0xff] %vm452, %v676
    %741 = vst.msk [vmem:[%s556 + $0x2b9] sm:$0xff] %vm452, %v677
    %742 = vst.msk [vmem:[%s556 + $0x2c1] sm:$0xff] %vm452, %v678
    %743 = vst.msk [vmem:[%s556 + $0x2d1] sm:$0xff] %vm452, %v679
    %744 = vst.msk [vmem:[%s556 + $0x2d9] sm:$0xff] %vm452, %v680
    %745 = vst.msk [vmem:[%s556 + $0x2e9] sm:$0xff] %vm452, %v681
    %746 = vst.msk [vmem:[%s556 + $0x2f1] sm:$0xff] %vm452, %v682
    %747 = vst.msk [vmem:[%s556 + $0x301] sm:$0xff] %vm452, %v683
    %748 = vst.msk [vmem:[%s556 + $0x309] sm:$0xff] %vm452, %v684
    %v749 = vld [vmem:[%s556] sm:$0xff]
    %v750 = vld [vmem:[%s556 + $0x8] sm:$0xff]
    %v751 = vld [vmem:[%s556 + $0x18] sm:$0xff]
    %v752 = vld [vmem:[%s556 + $0x20] sm:$0xff]
    %v753 = vld [vmem:[%s556 + $0x30] sm:$0xff]
    %v754 = vld [vmem:[%s556 + $0x38] sm:$0xff]
    %v755 = vld [vmem:[%s556 + $0x48] sm:$0xff]
    %v756 = vld [vmem:[%s556 + $0x50] sm:$0xff]
    %v757 = vld [vmem:[%s556 + $0x60] sm:$0xff]
    %v758 = vld [vmem:[%s556 + $0x68] sm:$0xff]
    %v759 = vld [vmem:[%s556 + $0x78] sm:$0xff]
    %v760 = vld [vmem:[%s556 + $0x80] sm:$0xff]
    %v761 = vld [vmem:[%s556 + $0x90] sm:$0xff]
    %v762 = vld [vmem:[%s556 + $0x98] sm:$0xff]
    %v763 = vld [vmem:[%s556 + $0xa8] sm:$0xff]
    %v764 = vld [vmem:[%s556 + $0xb0] sm:$0xff]
    %v765 = vld [vmem:[%s556 + $0xc0] sm:$0xff]
    %v766 = vld [vmem:[%s556 + $0xc8] sm:$0xff]
    %v767 = vld [vmem:[%s556 + $0xd8] sm:$0xff]
    %v768 = vld [vmem:[%s556 + $0xe0] sm:$0xff]
    %v769 = vld [vmem:[%s556 + $0xf0] sm:$0xff]
    %v770 = vld [vmem:[%s556 + $0xf8] sm:$0xff]
    %v771 = vld [vmem:[%s556 + $0x108] sm:$0xff]
    %v772 = vld [vmem:[%s556 + $0x110] sm:$0xff]
    %v773 = vld [vmem:[%s556 + $0x120] sm:$0xff]
    %v774 = vld [vmem:[%s556 + $0x128] sm:$0xff]
    %v775 = vld [vmem:[%s556 + $0x138] sm:$0xff]
    %v776 = vld [vmem:[%s556 + $0x140] sm:$0xff]
    %v777 = vld [vmem:[%s556 + $0x150] sm:$0xff]
    %v778 = vld [vmem:[%s556 + $0x158] sm:$0xff]
    %v779 = vld [vmem:[%s556 + $0x168] sm:$0xff]
    %v780 = vld [vmem:[%s556 + $0x170] sm:$0xff]
    %v781 = vld [vmem:[%s556 + $0x198] sm:$0xff]
    %v782 = vld [vmem:[%s556 + $0x1a0] sm:$0xff]
    %v783 = vld [vmem:[%s556 + $0x1b0] sm:$0xff]
    %v784 = vld [vmem:[%s556 + $0x1b8] sm:$0xff]
    %v785 = vld [vmem:[%s556 + $0x1c8] sm:$0xff]
    %v786 = vld [vmem:[%s556 + $0x1d0] sm:$0xff]
    %v787 = vld [vmem:[%s556 + $0x1e0] sm:$0xff]
    %v788 = vld [vmem:[%s556 + $0x1e8] sm:$0xff]
    %v789 = vld [vmem:[%s556 + $0x1f8] sm:$0xff]
    %v790 = vld [vmem:[%s556 + $0x200] sm:$0xff]
    %v791 = vld [vmem:[%s556 + $0x210] sm:$0xff]
    %v792 = vld [vmem:[%s556 + $0x218] sm:$0xff]
    %v793 = vld [vmem:[%s556 + $0x228] sm:$0xff]
    %v794 = vld [vmem:[%s556 + $0x230] sm:$0xff]
    %v795 = vld [vmem:[%s556 + $0x240] sm:$0xff]
    %v796 = vld [vmem:[%s556 + $0x248] sm:$0xff]
    %v797 = vld [vmem:[%s556 + $0x258] sm:$0xff]
    %v798 = vld [vmem:[%s556 + $0x260] sm:$0xff]
    %v799 = vld [vmem:[%s556 + $0x270] sm:$0xff]
    %v800 = vld [vmem:[%s556 + $0x278] sm:$0xff]
    %v801 = vld [vmem:[%s556 + $0x288] sm:$0xff]
    %v802 = vld [vmem:[%s556 + $0x290] sm:$0xff]
    %v803 = vld [vmem:[%s556 + $0x2a0] sm:$0xff]
    %v804 = vld [vmem:[%s556 + $0x2a8] sm:$0xff]
    %v805 = vld [vmem:[%s556 + $0x2b8] sm:$0xff]
    %v806 = vld [vmem:[%s556 + $0x2c0] sm:$0xff]
    %v807 = vld [vmem:[%s556 + $0x2d0] sm:$0xff]
    %v808 = vld [vmem:[%s556 + $0x2d8] sm:$0xff]
    %v809 = vld [vmem:[%s556 + $0x2e8] sm:$0xff]
    %v810 = vld [vmem:[%s556 + $0x2f0] sm:$0xff]
    %v811 = vld [vmem:[%s556 + $0x300] sm:$0xff]
    %v812 = vld [vmem:[%s556 + $0x308] sm:$0xff]
    %877 = vrot.lane.b32.xlu0 %v289, 96
    %v878 = vpop.permute.xlu0 %877
    %879 = vrot.lane.b32.xlu0 %v291, 96
    %v880 = vpop.permute.xlu0 %879
    %881 = vrot.lane.b32.xlu0 %v294, 96
    %v882 = vpop.permute.xlu0 %881
    %883 = vrot.lane.b32.xlu0 %v296, 96
    %v884 = vpop.permute.xlu0 %883
    %885 = vrot.lane.b32.xlu0 %v299, 96
    %v886 = vpop.permute.xlu0 %885
    %887 = vrot.lane.b32.xlu0 %v301, 96
    %v888 = vpop.permute.xlu0 %887
    %889 = vrot.lane.b32.xlu0 %v304, 96
    %v890 = vpop.permute.xlu0 %889
    %891 = vrot.lane.b32.xlu0 %v306, 96
    %v892 = vpop.permute.xlu0 %891
    %893 = vrot.lane.b32.xlu0 %v309, 96
    %v894 = vpop.permute.xlu0 %893
    %895 = vrot.lane.b32.xlu0 %v311, 96
    %v896 = vpop.permute.xlu0 %895
    %897 = vrot.lane.b32.xlu0 %v314, 96
    %v898 = vpop.permute.xlu0 %897
    %899 = vrot.lane.b32.xlu0 %v316, 96
    %v900 = vpop.permute.xlu0 %899
    %901 = vrot.lane.b32.xlu0 %v319, 96
    %v902 = vpop.permute.xlu0 %901
    %903 = vrot.lane.b32.xlu0 %v321, 96
    %v904 = vpop.permute.xlu0 %903
    %905 = vrot.lane.b32.xlu0 %v324, 96
    %v906 = vpop.permute.xlu0 %905
    %907 = vrot.lane.b32.xlu0 %v326, 96
    %v908 = vpop.permute.xlu0 %907
    %909 = vrot.lane.b32.xlu0 %v329, 96
    %v910 = vpop.permute.xlu0 %909
    %911 = vrot.lane.b32.xlu0 %v331, 96
    %v912 = vpop.permute.xlu0 %911
    %913 = vrot.lane.b32.xlu0 %v334, 96
    %v914 = vpop.permute.xlu0 %913
    %915 = vrot.lane.b32.xlu0 %v336, 96
    %v916 = vpop.permute.xlu0 %915
    %917 = vrot.lane.b32.xlu0 %v339, 96
    %v918 = vpop.permute.xlu0 %917
    %919 = vrot.lane.b32.xlu0 %v341, 96
    %v920 = vpop.permute.xlu0 %919
    %921 = vrot.lane.b32.xlu0 %v344, 96
    %v922 = vpop.permute.xlu0 %921
    %923 = vrot.lane.b32.xlu0 %v346, 96
    %v924 = vpop.permute.xlu0 %923
    %925 = vrot.lane.b32.xlu0 %v349, 96
    %v926 = vpop.permute.xlu0 %925
    %927 = vrot.lane.b32.xlu0 %v351, 96
    %v928 = vpop.permute.xlu0 %927
    %929 = vrot.lane.b32.xlu0 %v354, 96
    %v930 = vpop.permute.xlu0 %929
    %931 = vrot.lane.b32.xlu0 %v356, 96
    %v932 = vpop.permute.xlu0 %931
    %933 = vrot.lane.b32.xlu0 %v359, 96
    %v934 = vpop.permute.xlu0 %933
    %935 = vrot.lane.b32.xlu0 %v361, 96
    %v936 = vpop.permute.xlu0 %935
    %937 = vrot.lane.b32.xlu0 %v364, 96
    %v938 = vpop.permute.xlu0 %937
    %939 = vrot.lane.b32.xlu0 %v366, 96
    %v940 = vpop.permute.xlu0 %939
    %941 = vrot.lane.b32.xlu0 %v369, 96
    %v942 = vpop.permute.xlu0 %941
    %943 = vrot.lane.b32.xlu0 %v371, 96
    %v944 = vpop.permute.xlu0 %943
    %945 = vrot.lane.b32.xlu0 %v374, 96
    %v946 = vpop.permute.xlu0 %945
    %947 = vrot.lane.b32.xlu0 %v376, 96
    %v948 = vpop.permute.xlu0 %947
    %949 = vrot.lane.b32.xlu0 %v379, 96
    %v950 = vpop.permute.xlu0 %949
    %951 = vrot.lane.b32.xlu0 %v381, 96
    %v952 = vpop.permute.xlu0 %951
    %953 = vrot.lane.b32.xlu0 %v384, 96
    %v954 = vpop.permute.xlu0 %953
    %955 = vrot.lane.b32.xlu0 %v386, 96
    %v956 = vpop.permute.xlu0 %955
    %957 = vrot.lane.b32.xlu0 %v389, 96
    %v958 = vpop.permute.xlu0 %957
    %959 = vrot.lane.b32.xlu0 %v391, 96
    %v960 = vpop.permute.xlu0 %959
    %961 = vrot.lane.b32.xlu0 %v394, 96
    %v962 = vpop.permute.xlu0 %961
    %963 = vrot.lane.b32.xlu0 %v396, 96
    %v964 = vpop.permute.xlu0 %963
    %965 = vrot.lane.b32.xlu0 %v399, 96
    %v966 = vpop.permute.xlu0 %965
    %967 = vrot.lane.b32.xlu0 %v401, 96
    %v968 = vpop.permute.xlu0 %967
    %969 = vrot.lane.b32.xlu0 %v404, 96
    %v970 = vpop.permute.xlu0 %969
    %971 = vrot.lane.b32.xlu0 %v406, 96
    %v972 = vpop.permute.xlu0 %971
    %973 = vrot.lane.b32.xlu0 %v409, 96
    %v974 = vpop.permute.xlu0 %973
    %975 = vrot.lane.b32.xlu0 %v411, 96
    %v976 = vpop.permute.xlu0 %975
    %977 = vrot.lane.b32.xlu0 %v414, 96
    %v978 = vpop.permute.xlu0 %977
    %979 = vrot.lane.b32.xlu0 %v416, 96
    %v980 = vpop.permute.xlu0 %979
    %981 = vrot.lane.b32.xlu0 %v419, 96
    %v982 = vpop.permute.xlu0 %981
    %983 = vrot.lane.b32.xlu0 %v421, 96
    %v984 = vpop.permute.xlu0 %983
    %985 = vrot.lane.b32.xlu0 %v424, 96
    %v986 = vpop.permute.xlu0 %985
    %987 = vrot.lane.b32.xlu0 %v426, 96
    %v988 = vpop.permute.xlu0 %987
    %989 = vrot.lane.b32.xlu0 %v429, 96
    %v990 = vpop.permute.xlu0 %989
    %991 = vrot.lane.b32.xlu0 %v431, 96
    %v992 = vpop.permute.xlu0 %991
    %993 = vrot.lane.b32.xlu0 %v434, 96
    %v994 = vpop.permute.xlu0 %993
    %995 = vrot.lane.b32.xlu0 %v436, 96
    %v996 = vpop.permute.xlu0 %995
    %997 = vrot.lane.b32.xlu0 %v439, 96
    %v998 = vpop.permute.xlu0 %997
    %999 = vrot.lane.b32.xlu0 %v441, 96
    %v1000 = vpop.permute.xlu0 %999
    %1001 = vrot.lane.b32.xlu0 %v444, 96
    %v1002 = vpop.permute.xlu0 %1001
    %1003 = vrot.lane.b32.xlu0 %v446, 96
    %v1004 = vpop.permute.xlu0 %1003
    %v1069 = vadd.f32 %v749, %v878
    %v1070 = vadd.f32 %v750, %v880
    %v1071 = vadd.f32 %v751, %v882
    %v1072 = vadd.f32 %v752, %v884
    %v1073 = vadd.f32 %v753, %v886
    %v1074 = vadd.f32 %v754, %v888
    %v1075 = vadd.f32 %v755, %v890
    %v1076 = vadd.f32 %v756, %v892
    %v1077 = vadd.f32 %v757, %v894
    %v1078 = vadd.f32 %v758, %v896
    %v1079 = vadd.f32 %v759, %v898
    %v1080 = vadd.f32 %v760, %v900
    %v1081 = vadd.f32 %v761, %v902
    %v1082 = vadd.f32 %v762, %v904
    %v1083 = vadd.f32 %v763, %v906
    %v1084 = vadd.f32 %v764, %v908
    %v1085 = vadd.f32 %v765, %v910
    %v1086 = vadd.f32 %v766, %v912
    %v1087 = vadd.f32 %v767, %v914
    %v1088 = vadd.f32 %v768, %v916
    %v1089 = vadd.f32 %v769, %v918
    %v1090 = vadd.f32 %v770, %v920
    %v1091 = vadd.f32 %v771, %v922
    %v1092 = vadd.f32 %v772, %v924
    %v1093 = vadd.f32 %v773, %v926
    %v1094 = vadd.f32 %v774, %v928
    %v1095 = vadd.f32 %v775, %v930
    %v1096 = vadd.f32 %v776, %v932
    %v1097 = vadd.f32 %v777, %v934
    %v1098 = vadd.f32 %v778, %v936
    %v1099 = vadd.f32 %v779, %v938
    %v1100 = vadd.f32 %v780, %v940
    %v1101 = vadd.f32 %v781, %v942
    %v1102 = vadd.f32 %v782, %v944
    %v1103 = vadd.f32 %v783, %v946
    %v1104 = vadd.f32 %v784, %v948
    %v1105 = vadd.f32 %v785, %v950
    %v1106 = vadd.f32 %v786, %v952
    %v1107 = vadd.f32 %v787, %v954
    %v1108 = vadd.f32 %v788, %v956
    %v1109 = vadd.f32 %v789, %v958
    %v1110 = vadd.f32 %v790, %v960
    %v1111 = vadd.f32 %v791, %v962
    %v1112 = vadd.f32 %v792, %v964
    %v1113 = vadd.f32 %v793, %v966
    %v1114 = vadd.f32 %v794, %v968
    %v1115 = vadd.f32 %v795, %v970
    %v1116 = vadd.f32 %v796, %v972
    %v1117 = vadd.f32 %v797, %v974
    %v1118 = vadd.f32 %v798, %v976
    %v1119 = vadd.f32 %v799, %v978
    %v1120 = vadd.f32 %v800, %v980
    %v1121 = vadd.f32 %v801, %v982
    %v1122 = vadd.f32 %v802, %v984
    %v1123 = vadd.f32 %v803, %v986
    %v1124 = vadd.f32 %v804, %v988
    %v1125 = vadd.f32 %v805, %v990
    %v1126 = vadd.f32 %v806, %v992
    %v1127 = vadd.f32 %v807, %v994
    %v1128 = vadd.f32 %v808, %v996
    %v1129 = vadd.f32 %v809, %v998
    %v1130 = vadd.f32 %v810, %v1000
    %v1131 = vadd.f32 %v811, %v1002
    %v1132 = vadd.f32 %v812, %v1004
    %1133 = vst.msk [vmem:[%s556] sm:$0xff] %vm452, %v1069
    %1134 = vst.msk [vmem:[%s556 + $0x8] sm:$0xff] %vm452, %v1070
    %1135 = vst.msk [vmem:[%s556 + $0x18] sm:$0xff] %vm452, %v1071
    %1136 = vst.msk [vmem:[%s556 + $0x20] sm:$0xff] %vm452, %v1072
    %1137 = vst.msk [vmem:[%s556 + $0x30] sm:$0xff] %vm452, %v1073
    %1138 = vst.msk [vmem:[%s556 + $0x38] sm:$0xff] %vm452, %v1074
    %1139 = vst.msk [vmem:[%s556 + $0x48] sm:$0xff] %vm452, %v1075
    %1140 = vst.msk [vmem:[%s556 + $0x50] sm:$0xff] %vm452, %v1076
    %1141 = vst.msk [vmem:[%s556 + $0x60] sm:$0xff] %vm452, %v1077
    %1142 = vst.msk [vmem:[%s556 + $0x68] sm:$0xff] %vm452, %v1078
    %1143 = vst.msk [vmem:[%s556 + $0x78] sm:$0xff] %vm452, %v1079
    %1144 = vst.msk [vmem:[%s556 + $0x80] sm:$0xff] %vm452, %v1080
    %1145 = vst.msk [vmem:[%s556 + $0x90] sm:$0xff] %vm452, %v1081
    %1146 = vst.msk [vmem:[%s556 + $0x98] sm:$0xff] %vm452, %v1082
    %1147 = vst.msk [vmem:[%s556 + $0xa8] sm:$0xff] %vm452, %v1083
    %1148 = vst.msk [vmem:[%s556 + $0xb0] sm:$0xff] %vm452, %v1084
    %1149 = vst.msk [vmem:[%s556 + $0xc0] sm:$0xff] %vm452, %v1085
    %1150 = vst.msk [vmem:[%s556 + $0xc8] sm:$0xff] %vm452, %v1086
    %1151 = vst.msk [vmem:[%s556 + $0xd8] sm:$0xff] %vm452, %v1087
    %1152 = vst.msk [vmem:[%s556 + $0xe0] sm:$0xff] %vm452, %v1088
    %1153 = vst.msk [vmem:[%s556 + $0xf0] sm:$0xff] %vm452, %v1089
    %1154 = vst.msk [vmem:[%s556 + $0xf8] sm:$0xff] %vm452, %v1090
    %1155 = vst.msk [vmem:[%s556 + $0x108] sm:$0xff] %vm452, %v1091
    %1156 = vst.msk [vmem:[%s556 + $0x110] sm:$0xff] %vm452, %v1092
    %1157 = vst.msk [vmem:[%s556 + $0x120] sm:$0xff] %vm452, %v1093
    %1158 = vst.msk [vmem:[%s556 + $0x128] sm:$0xff] %vm452, %v1094
    %1159 = vst.msk [vmem:[%s556 + $0x138] sm:$0xff] %vm452, %v1095
    %1160 = vst.msk [vmem:[%s556 + $0x140] sm:$0xff] %vm452, %v1096
    %1161 = vst.msk [vmem:[%s556 + $0x150] sm:$0xff] %vm452, %v1097
    %1162 = vst.msk [vmem:[%s556 + $0x158] sm:$0xff] %vm452, %v1098
    %1163 = vst.msk [vmem:[%s556 + $0x168] sm:$0xff] %vm452, %v1099
    %1164 = vst.msk [vmem:[%s556 + $0x170] sm:$0xff] %vm452, %v1100
    %1165 = vst.msk [vmem:[%s556 + $0x198] sm:$0xff] %vm452, %v1101
    %1166 = vst.msk [vmem:[%s556 + $0x1a0] sm:$0xff] %vm452, %v1102
    %1167 = vst.msk [vmem:[%s556 + $0x1b0] sm:$0xff] %vm452, %v1103
    %1168 = vst.msk [vmem:[%s556 + $0x1b8] sm:$0xff] %vm452, %v1104
    %1169 = vst.msk [vmem:[%s556 + $0x1c8] sm:$0xff] %vm452, %v1105
    %1170 = vst.msk [vmem:[%s556 + $0x1d0] sm:$0xff] %vm452, %v1106
    %1171 = vst.msk [vmem:[%s556 + $0x1e0] sm:$0xff] %vm452, %v1107
    %1172 = vst.msk [vmem:[%s556 + $0x1e8] sm:$0xff] %vm452, %v1108
    %1173 = vst.msk [vmem:[%s556 + $0x1f8] sm:$0xff] %vm452, %v1109
    %1174 = vst.msk [vmem:[%s556 + $0x200] sm:$0xff] %vm452, %v1110
    %1175 = vst.msk [vmem:[%s556 + $0x210] sm:$0xff] %vm452, %v1111
    %1176 = vst.msk [vmem:[%s556 + $0x218] sm:$0xff] %vm452, %v1112
    %1177 = vst.msk [vmem:[%s556 + $0x228] sm:$0xff] %vm452, %v1113
    %1178 = vst.msk [vmem:[%s556 + $0x230] sm:$0xff] %vm452, %v1114
    %1179 = vst.msk [vmem:[%s556 + $0x240] sm:$0xff] %vm452, %v1115
    %1180 = vst.msk [vmem:[%s556 + $0x248] sm:$0xff] %vm452, %v1116
    %1181 = vst.msk [vmem:[%s556 + $0x258] sm:$0xff] %vm452, %v1117
    %1182 = vst.msk [vmem:[%s556 + $0x260] sm:$0xff] %vm452, %v1118
    %1183 = vst.msk [vmem:[%s556 + $0x270] sm:$0xff] %vm452, %v1119
    %1184 = vst.msk [vmem:[%s556 + $0x278] sm:$0xff] %vm452, %v1120
    %1185 = vst.msk [vmem:[%s556 + $0x288] sm:$0xff] %vm452, %v1121
    %1186 = vst.msk [vmem:[%s556 + $0x290] sm:$0xff] %vm452, %v1122
    %1187 = vst.msk [vmem:[%s556 + $0x2a0] sm:$0xff] %vm452, %v1123
    %1188 = vst.msk [vmem:[%s556 + $0x2a8] sm:$0xff] %vm452, %v1124
    %1189 = vst.msk [vmem:[%s556 + $0x2b8] sm:$0xff] %vm452, %v1125
    %1190 = vst.msk [vmem:[%s556 + $0x2c0] sm:$0xff] %vm452, %v1126
    %1191 = vst.msk [vmem:[%s556 + $0x2d0] sm:$0xff] %vm452, %v1127
    %1192 = vst.msk [vmem:[%s556 + $0x2d8] sm:$0xff] %vm452, %v1128
    %1193 = vst.msk [vmem:[%s556 + $0x2e8] sm:$0xff] %vm452, %v1129
    %1194 = vst.msk [vmem:[%s556 + $0x2f0] sm:$0xff] %vm452, %v1130
    %1195 = vst.msk [vmem:[%s556 + $0x300] sm:$0xff] %vm452, %v1131
    %1196 = vst.msk [vmem:[%s556 + $0x308] sm:$0xff] %vm452, %v1132
    %v1197 = vld [vmem:[#allocation2 + $0x1] sm:$0xff]
    %v1198 = vld [vmem:[#allocation2 + $0x9] sm:$0xff]
    %v1199 = vld [vmem:[#allocation2 + $0x19] sm:$0xff]
    %v1200 = vld [vmem:[#allocation2 + $0x21] sm:$0xff]
    %v1201 = vld [vmem:[#allocation2 + $0x31] sm:$0xff]
    %v1202 = vld [vmem:[#allocation2 + $0x39] sm:$0xff]
    %v1203 = vld [vmem:[#allocation2 + $0x49] sm:$0xff]
    %v1204 = vld [vmem:[#allocation2 + $0x51] sm:$0xff]
    %v1205 = vld [vmem:[#allocation2 + $0x61] sm:$0xff]
    %v1206 = vld [vmem:[#allocation2 + $0x69] sm:$0xff]
    %v1207 = vld [vmem:[#allocation2 + $0x79] sm:$0xff]
    %v1208 = vld [vmem:[#allocation2 + $0x81] sm:$0xff]
    %v1209 = vld [vmem:[#allocation2 + $0x91] sm:$0xff]
    %v1210 = vld [vmem:[#allocation2 + $0x99] sm:$0xff]
    %v1211 = vld [vmem:[#allocation2 + $0xa9] sm:$0xff]
    %v1212 = vld [vmem:[#allocation2 + $0xb1] sm:$0xff]
    %v1213 = vld [vmem:[#allocation2 + $0xc1] sm:$0xff]
    %v1214 = vld [vmem:[#allocation2 + $0xc9] sm:$0xff]
    %v1215 = vld [vmem:[#allocation2 + $0xd9] sm:$0xff]
    %v1216 = vld [vmem:[#allocation2 + $0xe1] sm:$0xff]
    %v1217 = vld [vmem:[#allocation2 + $0xf1] sm:$0xff]
    %v1218 = vld [vmem:[#allocation2 + $0xf9] sm:$0xff]
    %v1219 = vld [vmem:[#allocation2 + $0x109] sm:$0xff]
    %v1220 = vld [vmem:[#allocation2 + $0x111] sm:$0xff]
    %v1221 = vld [vmem:[#allocation2 + $0x121] sm:$0xff]
    %v1222 = vld [vmem:[#allocation2 + $0x129] sm:$0xff]
    %v1223 = vld [vmem:[#allocation2 + $0x139] sm:$0xff]
    %v1224 = vld [vmem:[#allocation2 + $0x141] sm:$0xff]
    %v1225 = vld [vmem:[#allocation2 + $0x151] sm:$0xff]
    %v1226 = vld [vmem:[#allocation2 + $0x159] sm:$0xff]
    %v1227 = vld [vmem:[#allocation2 + $0x169] sm:$0xff]
    %v1228 = vld [vmem:[#allocation2 + $0x171] sm:$0xff]
    %v1229 = vld [vmem:[#allocation2 + $0x199] sm:$0xff]
    %v1230 = vld [vmem:[#allocation2 + $0x1a1] sm:$0xff]
    %v1231 = vld [vmem:[#allocation2 + $0x1b1] sm:$0xff]
    %v1232 = vld [vmem:[#allocation2 + $0x1b9] sm:$0xff]
    %v1233 = vld [vmem:[#allocation2 + $0x1c9] sm:$0xff]
    %v1234 = vld [vmem:[#allocation2 + $0x1d1] sm:$0xff]
    %v1235 = vld [vmem:[#allocation2 + $0x1e1] sm:$0xff]
    %v1236 = vld [vmem:[#allocation2 + $0x1e9] sm:$0xff]
    %v1237 = vld [vmem:[#allocation2 + $0x1f9] sm:$0xff]
    %v1238 = vld [vmem:[#allocation2 + $0x201] sm:$0xff]
    %v1239 = vld [vmem:[#allocation2 + $0x211] sm:$0xff]
    %v1240 = vld [vmem:[#allocation2 + $0x219] sm:$0xff]
    %v1241 = vld [vmem:[#allocation2 + $0x229] sm:$0xff]
    %v1242 = vld [vmem:[#allocation2 + $0x231] sm:$0xff]
    %v1243 = vld [vmem:[#allocation2 + $0x241] sm:$0xff]
    %v1244 = vld [vmem:[#allocation2 + $0x249] sm:$0xff]
    %v1245 = vld [vmem:[#allocation2 + $0x259] sm:$0xff]
    %v1246 = vld [vmem:[#allocation2 + $0x261] sm:$0xff]
    %v1247 = vld [vmem:[#allocation2 + $0x271] sm:$0xff]
    %v1248 = vld [vmem:[#allocation2 + $0x279] sm:$0xff]
    %v1249 = vld [vmem:[#allocation2 + $0x289] sm:$0xff]
    %v1250 = vld [vmem:[#allocation2 + $0x291] sm:$0xff]
    %v1251 = vld [vmem:[#allocation2 + $0x2a1] sm:$0xff]
    %v1252 = vld [vmem:[#allocation2 + $0x2a9] sm:$0xff]
    %v1253 = vld [vmem:[#allocation2 + $0x2b9] sm:$0xff]
    %v1254 = vld [vmem:[#allocation2 + $0x2c1] sm:$0xff]
    %v1255 = vld [vmem:[#allocation2 + $0x2d1] sm:$0xff]
    %v1256 = vld [vmem:[#allocation2 + $0x2d9] sm:$0xff]
    %v1257 = vld [vmem:[#allocation2 + $0x2e9] sm:$0xff]
    %v1258 = vld [vmem:[#allocation2 + $0x2f1] sm:$0xff]
    %v1259 = vld [vmem:[#allocation2 + $0x301] sm:$0xff]
    %v1260 = vld [vmem:[#allocation2 + $0x309] sm:$0xff]
    %1261 = vrot.lane.b32.xlu0 %v289, 64
    %v1262 = vpop.permute.xlu0 %1261
    %1263 = vrot.lane.b32.xlu0 %v291, 64
    %v1264 = vpop.permute.xlu0 %1263
    %1265 = vrot.lane.b32.xlu0 %v294, 64
    %v1266 = vpop.permute.xlu0 %1265
    %1267 = vrot.lane.b32.xlu0 %v296, 64
    %v1268 = vpop.permute.xlu0 %1267
    %1269 = vrot.lane.b32.xlu0 %v299, 64
    %v1270 = vpop.permute.xlu0 %1269
    %1271 = vrot.lane.b32.xlu0 %v301, 64
    %v1272 = vpop.permute.xlu0 %1271
    %1273 = vrot.lane.b32.xlu0 %v304, 64
    %v1274 = vpop.permute.xlu0 %1273
    %1275 = vrot.lane.b32.xlu0 %v306, 64
    %v1276 = vpop.permute.xlu0 %1275
    %1277 = vrot.lane.b32.xlu0 %v309, 64
    %v1278 = vpop.permute.xlu0 %1277
    %1279 = vrot.lane.b32.xlu0 %v311, 64
    %v1280 = vpop.permute.xlu0 %1279
    %1281 = vrot.lane.b32.xlu0 %v314, 64
    %v1282 = vpop.permute.xlu0 %1281
    %1283 = vrot.lane.b32.xlu0 %v316, 64
    %v1284 = vpop.permute.xlu0 %1283
    %1285 = vrot.lane.b32.xlu0 %v319, 64
    %v1286 = vpop.permute.xlu0 %1285
    %1287 = vrot.lane.b32.xlu0 %v321, 64
    %v1288 = vpop.permute.xlu0 %1287
    %1289 = vrot.lane.b32.xlu0 %v324, 64
    %v1290 = vpop.permute.xlu0 %1289
    %1291 = vrot.lane.b32.xlu0 %v326, 64
    %v1292 = vpop.permute.xlu0 %1291
    %1293 = vrot.lane.b32.xlu0 %v329, 64
    %v1294 = vpop.permute.xlu0 %1293
    %1295 = vrot.lane.b32.xlu0 %v331, 64
    %v1296 = vpop.permute.xlu0 %1295
    %1297 = vrot.lane.b32.xlu0 %v334, 64
    %v1298 = vpop.permute.xlu0 %1297
    %1299 = vrot.lane.b32.xlu0 %v336, 64
    %v1300 = vpop.permute.xlu0 %1299
    %1301 = vrot.lane.b32.xlu0 %v339, 64
    %v1302 = vpop.permute.xlu0 %1301
    %1303 = vrot.lane.b32.xlu0 %v341, 64
    %v1304 = vpop.permute.xlu0 %1303
    %1305 = vrot.lane.b32.xlu0 %v344, 64
    %v1306 = vpop.permute.xlu0 %1305
    %1307 = vrot.lane.b32.xlu0 %v346, 64
    %v1308 = vpop.permute.xlu0 %1307
    %1309 = vrot.lane.b32.xlu0 %v349, 64
    %v1310 = vpop.permute.xlu0 %1309
    %1311 = vrot.lane.b32.xlu0 %v351, 64
    %v1312 = vpop.permute.xlu0 %1311
    %1313 = vrot.lane.b32.xlu0 %v354, 64
    %v1314 = vpop.permute.xlu0 %1313
    %1315 = vrot.lane.b32.xlu0 %v356, 64
    %v1316 = vpop.permute.xlu0 %1315
    %1317 = vrot.lane.b32.xlu0 %v359, 64
    %v1318 = vpop.permute.xlu0 %1317
    %1319 = vrot.lane.b32.xlu0 %v361, 64
    %v1320 = vpop.permute.xlu0 %1319
    %1321 = vrot.lane.b32.xlu0 %v364, 64
    %v1322 = vpop.permute.xlu0 %1321
    %1323 = vrot.lane.b32.xlu0 %v366, 64
    %v1324 = vpop.permute.xlu0 %1323
    %1325 = vrot.lane.b32.xlu0 %v369, 64
    %v1326 = vpop.permute.xlu0 %1325
    %1327 = vrot.lane.b32.xlu0 %v371, 64
    %v1328 = vpop.permute.xlu0 %1327
    %1329 = vrot.lane.b32.xlu0 %v374, 64
    %v1330 = vpop.permute.xlu0 %1329
    %1331 = vrot.lane.b32.xlu0 %v376, 64
    %v1332 = vpop.permute.xlu0 %1331
    %1333 = vrot.lane.b32.xlu0 %v379, 64
    %v1334 = vpop.permute.xlu0 %1333
    %1335 = vrot.lane.b32.xlu0 %v381, 64
    %v1336 = vpop.permute.xlu0 %1335
    %1337 = vrot.lane.b32.xlu0 %v384, 64
    %v1338 = vpop.permute.xlu0 %1337
    %1339 = vrot.lane.b32.xlu0 %v386, 64
    %v1340 = vpop.permute.xlu0 %1339
    %1341 = vrot.lane.b32.xlu0 %v389, 64
    %v1342 = vpop.permute.xlu0 %1341
    %1343 = vrot.lane.b32.xlu0 %v391, 64
    %v1344 = vpop.permute.xlu0 %1343
    %1345 = vrot.lane.b32.xlu0 %v394, 64
    %v1346 = vpop.permute.xlu0 %1345
    %1347 = vrot.lane.b32.xlu0 %v396, 64
    %v1348 = vpop.permute.xlu0 %1347
    %1349 = vrot.lane.b32.xlu0 %v399, 64
    %v1350 = vpop.permute.xlu0 %1349
    %1351 = vrot.lane.b32.xlu0 %v401, 64
    %v1352 = vpop.permute.xlu0 %1351
    %1353 = vrot.lane.b32.xlu0 %v404, 64
    %v1354 = vpop.permute.xlu0 %1353
    %1355 = vrot.lane.b32.xlu0 %v406, 64
    %v1356 = vpop.permute.xlu0 %1355
    %1357 = vrot.lane.b32.xlu0 %v409, 64
    %v1358 = vpop.permute.xlu0 %1357
    %1359 = vrot.lane.b32.xlu0 %v411, 64
    %v1360 = vpop.permute.xlu0 %1359
    %1361 = vrot.lane.b32.xlu0 %v414, 64
    %v1362 = vpop.permute.xlu0 %1361
    %1363 = vrot.lane.b32.xlu0 %v416, 64
    %v1364 = vpop.permute.xlu0 %1363
    %1365 = vrot.lane.b32.xlu0 %v419, 64
    %v1366 = vpop.permute.xlu0 %1365
    %1367 = vrot.lane.b32.xlu0 %v421, 64
    %v1368 = vpop.permute.xlu0 %1367
    %1369 = vrot.lane.b32.xlu0 %v424, 64
    %v1370 = vpop.permute.xlu0 %1369
    %1371 = vrot.lane.b32.xlu0 %v426, 64
    %v1372 = vpop.permute.xlu0 %1371
    %1373 = vrot.lane.b32.xlu0 %v429, 64
    %v1374 = vpop.permute.xlu0 %1373
    %1375 = vrot.lane.b32.xlu0 %v431, 64
    %v1376 = vpop.permute.xlu0 %1375
    %1377 = vrot.lane.b32.xlu0 %v434, 64
    %v1378 = vpop.permute.xlu0 %1377
    %1379 = vrot.lane.b32.xlu0 %v436, 64
    %v1380 = vpop.permute.xlu0 %1379
    %1381 = vrot.lane.b32.xlu0 %v439, 64
    %v1382 = vpop.permute.xlu0 %1381
    %1383 = vrot.lane.b32.xlu0 %v441, 64
    %v1384 = vpop.permute.xlu0 %1383
    %1385 = vrot.lane.b32.xlu0 %v444, 64
    %v1386 = vpop.permute.xlu0 %1385
    %1387 = vrot.lane.b32.xlu0 %v446, 64
    %v1388 = vpop.permute.xlu0 %1387
    %v1453 = vadd.f32 %v1197, %v1262
    %v1454 = vadd.f32 %v1198, %v1264
    %v1455 = vadd.f32 %v1199, %v1266
    %v1456 = vadd.f32 %v1200, %v1268
    %v1457 = vadd.f32 %v1201, %v1270
    %v1458 = vadd.f32 %v1202, %v1272
    %v1459 = vadd.f32 %v1203, %v1274
    %v1460 = vadd.f32 %v1204, %v1276
    %v1461 = vadd.f32 %v1205, %v1278
    %v1462 = vadd.f32 %v1206, %v1280
    %v1463 = vadd.f32 %v1207, %v1282
    %v1464 = vadd.f32 %v1208, %v1284
    %v1465 = vadd.f32 %v1209, %v1286
    %v1466 = vadd.f32 %v1210, %v1288
    %v1467 = vadd.f32 %v1211, %v1290
    %v1468 = vadd.f32 %v1212, %v1292
    %v1469 = vadd.f32 %v1213, %v1294
    %v1470 = vadd.f32 %v1214, %v1296
    %v1471 = vadd.f32 %v1215, %v1298
    %v1472 = vadd.f32 %v1216, %v1300
    %v1473 = vadd.f32 %v1217, %v1302
    %v1474 = vadd.f32 %v1218, %v1304
    %v1475 = vadd.f32 %v1219, %v1306
    %v1476 = vadd.f32 %v1220, %v1308
    %v1477 = vadd.f32 %v1221, %v1310
    %v1478 = vadd.f32 %v1222, %v1312
    %v1479 = vadd.f32 %v1223, %v1314
    %v1480 = vadd.f32 %v1224, %v1316
    %v1481 = vadd.f32 %v1225, %v1318
    %v1482 = vadd.f32 %v1226, %v1320
    %v1483 = vadd.f32 %v1227, %v1322
    %v1484 = vadd.f32 %v1228, %v1324
    %v1485 = vadd.f32 %v1229, %v1326
    %v1486 = vadd.f32 %v1230, %v1328
    %v1487 = vadd.f32 %v1231, %v1330
    %v1488 = vadd.f32 %v1232, %v1332
    %v1489 = vadd.f32 %v1233, %v1334
    %v1490 = vadd.f32 %v1234, %v1336
    %v1491 = vadd.f32 %v1235, %v1338
    %v1492 = vadd.f32 %v1236, %v1340
    %v1493 = vadd.f32 %v1237, %v1342
    %v1494 = vadd.f32 %v1238, %v1344
    %v1495 = vadd.f32 %v1239, %v1346
    %v1496 = vadd.f32 %v1240, %v1348
    %v1497 = vadd.f32 %v1241, %v1350
    %v1498 = vadd.f32 %v1242, %v1352
    %v1499 = vadd.f32 %v1243, %v1354
    %v1500 = vadd.f32 %v1244, %v1356
    %v1501 = vadd.f32 %v1245, %v1358
    %v1502 = vadd.f32 %v1246, %v1360
    %v1503 = vadd.f32 %v1247, %v1362
    %v1504 = vadd.f32 %v1248, %v1364
    %v1505 = vadd.f32 %v1249, %v1366
    %v1506 = vadd.f32 %v1250, %v1368
    %v1507 = vadd.f32 %v1251, %v1370
    %v1508 = vadd.f32 %v1252, %v1372
    %v1509 = vadd.f32 %v1253, %v1374
    %v1510 = vadd.f32 %v1254, %v1376
    %v1511 = vadd.f32 %v1255, %v1378
    %v1512 = vadd.f32 %v1256, %v1380
    %v1513 = vadd.f32 %v1257, %v1382
    %v1514 = vadd.f32 %v1258, %v1384
    %v1515 = vadd.f32 %v1259, %v1386
    %v1516 = vadd.f32 %v1260, %v1388
    %1517 = vst.msk [vmem:[#allocation2 + $0x1] sm:$0xff] %vm452, %v1453
    %1518 = vst.msk [vmem:[#allocation2 + $0x9] sm:$0xff] %vm452, %v1454
    %1519 = vst.msk [vmem:[#allocation2 + $0x19] sm:$0xff] %vm452, %v1455
    %1520 = vst.msk [vmem:[#allocation2 + $0x21] sm:$0xff] %vm452, %v1456
    %1521 = vst.msk [vmem:[#allocation2 + $0x31] sm:$0xff] %vm452, %v1457
    %1522 = vst.msk [vmem:[#allocation2 + $0x39] sm:$0xff] %vm452, %v1458
    %1523 = vst.msk [vmem:[#allocation2 + $0x49] sm:$0xff] %vm452, %v1459
    %1524 = vst.msk [vmem:[#allocation2 + $0x51] sm:$0xff] %vm452, %v1460
    %1525 = vst.msk [vmem:[#allocation2 + $0x61] sm:$0xff] %vm452, %v1461
    %1526 = vst.msk [vmem:[#allocation2 + $0x69] sm:$0xff] %vm452, %v1462
    %1527 = vst.msk [vmem:[#allocation2 + $0x79] sm:$0xff] %vm452, %v1463
    %1528 = vst.msk [vmem:[#allocation2 + $0x81] sm:$0xff] %vm452, %v1464
    %1529 = vst.msk [vmem:[#allocation2 + $0x91] sm:$0xff] %vm452, %v1465
    %1530 = vst.msk [vmem:[#allocation2 + $0x99] sm:$0xff] %vm452, %v1466
    %1531 = vst.msk [vmem:[#allocation2 + $0xa9] sm:$0xff] %vm452, %v1467
    %1532 = vst.msk [vmem:[#allocation2 + $0xb1] sm:$0xff] %vm452, %v1468
    %1533 = vst.msk [vmem:[#allocation2 + $0xc1] sm:$0xff] %vm452, %v1469
    %1534 = vst.msk [vmem:[#allocation2 + $0xc9] sm:$0xff] %vm452, %v1470
    %1535 = vst.msk [vmem:[#allocation2 + $0xd9] sm:$0xff] %vm452, %v1471
    %1536 = vst.msk [vmem:[#allocation2 + $0xe1] sm:$0xff] %vm452, %v1472
    %1537 = vst.msk [vmem:[#allocation2 + $0xf1] sm:$0xff] %vm452, %v1473
    %1538 = vst.msk [vmem:[#allocation2 + $0xf9] sm:$0xff] %vm452, %v1474
    %1539 = vst.msk [vmem:[#allocation2 + $0x109] sm:$0xff] %vm452, %v1475
    %1540 = vst.msk [vmem:[#allocation2 + $0x111] sm:$0xff] %vm452, %v1476
    %1541 = vst.msk [vmem:[#allocation2 + $0x121] sm:$0xff] %vm452, %v1477
    %1542 = vst.msk [vmem:[#allocation2 + $0x129] sm:$0xff] %vm452, %v1478
    %1543 = vst.msk [vmem:[#allocation2 + $0x139] sm:$0xff] %vm452, %v1479
    %1544 = vst.msk [vmem:[#allocation2 + $0x141] sm:$0xff] %vm452, %v1480
    %1545 = vst.msk [vmem:[#allocation2 + $0x151] sm:$0xff] %vm452, %v1481
    %1546 = vst.msk [vmem:[#allocation2 + $0x159] sm:$0xff] %vm452, %v1482
    %1547 = vst.msk [vmem:[#allocation2 + $0x169] sm:$0xff] %vm452, %v1483
    %1548 = vst.msk [vmem:[#allocation2 + $0x171] sm:$0xff] %vm452, %v1484
    %1549 = vst.msk [vmem:[#allocation2 + $0x199] sm:$0xff] %vm452, %v1485
    %1550 = vst.msk [vmem:[#allocation2 + $0x1a1] sm:$0xff] %vm452, %v1486
    %1551 = vst.msk [vmem:[#allocation2 + $0x1b1] sm:$0xff] %vm452, %v1487
    %1552 = vst.msk [vmem:[#allocation2 + $0x1b9] sm:$0xff] %vm452, %v1488
    %1553 = vst.msk [vmem:[#allocation2 + $0x1c9] sm:$0xff] %vm452, %v1489
    %1554 = vst.msk [vmem:[#allocation2 + $0x1d1] sm:$0xff] %vm452, %v1490
    %1555 = vst.msk [vmem:[#allocation2 + $0x1e1] sm:$0xff] %vm452, %v1491
    %1556 = vst.msk [vmem:[#allocation2 + $0x1e9] sm:$0xff] %vm452, %v1492
    %1557 = vst.msk [vmem:[#allocation2 + $0x1f9] sm:$0xff] %vm452, %v1493
    %1558 = vst.msk [vmem:[#allocation2 + $0x201] sm:$0xff] %vm452, %v1494
    %1559 = vst.msk [vmem:[#allocation2 + $0x211] sm:$0xff] %vm452, %v1495
    %1560 = vst.msk [vmem:[#allocation2 + $0x219] sm:$0xff] %vm452, %v1496
    %1561 = vst.msk [vmem:[#allocation2 + $0x229] sm:$0xff] %vm452, %v1497
    %1562 = vst.msk [vmem:[#allocation2 + $0x231] sm:$0xff] %vm452, %v1498
    %1563 = vst.msk [vmem:[#allocation2 + $0x241] sm:$0xff] %vm452, %v1499
    %1564 = vst.msk [vmem:[#allocation2 + $0x249] sm:$0xff] %vm452, %v1500
    %1565 = vst.msk [vmem:[#allocation2 + $0x259] sm:$0xff] %vm452, %v1501
    %1566 = vst.msk [vmem:[#allocation2 + $0x261] sm:$0xff] %vm452, %v1502
    %1567 = vst.msk [vmem:[#allocation2 + $0x271] sm:$0xff] %vm452, %v1503
    %1568 = vst.msk [vmem:[#allocation2 + $0x279] sm:$0xff] %vm452, %v1504
    %1569 = vst.msk [vmem:[#allocation2 + $0x289] sm:$0xff] %vm452, %v1505
    %1570 = vst.msk [vmem:[#allocation2 + $0x291] sm:$0xff] %vm452, %v1506
    %1571 = vst.msk [vmem:[#allocation2 + $0x2a1] sm:$0xff] %vm452, %v1507
    %1572 = vst.msk [vmem:[#allocation2 + $0x2a9] sm:$0xff] %vm452, %v1508
    %1573 = vst.msk [vmem:[#allocation2 + $0x2b9] sm:$0xff] %vm452, %v1509
    %1574 = vst.msk [vmem:[#allocation2 + $0x2c1] sm:$0xff] %vm452, %v1510
    %1575 = vst.msk [vmem:[#allocation2 + $0x2d1] sm:$0xff] %vm452, %v1511
    %1576 = vst.msk [vmem:[#allocation2 + $0x2d9] sm:$0xff] %vm452, %v1512
    %1577 = vst.msk [vmem:[#allocation2 + $0x2e9] sm:$0xff] %vm452, %v1513
    %1578 = vst.msk [vmem:[#allocation2 + $0x2f1] sm:$0xff] %vm452, %v1514
    %1579 = vst.msk [vmem:[#allocation2 + $0x301] sm:$0xff] %vm452, %v1515
    %1580 = vst.msk [vmem:[#allocation2 + $0x309] sm:$0xff] %vm452, %v1516
    %v1581 = vld [vmem:[#allocation2] sm:$0xff]
    %v1582 = vld [vmem:[#allocation2 + $0x8] sm:$0xff]
    %v1583 = vld [vmem:[#allocation2 + $0x18] sm:$0xff]
    %v1584 = vld [vmem:[#allocation2 + $0x20] sm:$0xff]
    %v1585 = vld [vmem:[#allocation2 + $0x30] sm:$0xff]
    %v1586 = vld [vmem:[#allocation2 + $0x38] sm:$0xff]
    %v1587 = vld [vmem:[#allocation2 + $0x48] sm:$0xff]
    %v1588 = vld [vmem:[#allocation2 + $0x50] sm:$0xff]
    %v1589 = vld [vmem:[#allocation2 + $0x60] sm:$0xff]
    %v1590 = vld [vmem:[#allocation2 + $0x68] sm:$0xff]
    %v1591 = vld [vmem:[#allocation2 + $0x78] sm:$0xff]
    %v1592 = vld [vmem:[#allocation2 + $0x80] sm:$0xff]
    %v1593 = vld [vmem:[#allocation2 + $0x90] sm:$0xff]
    %v1594 = vld [vmem:[#allocation2 + $0x98] sm:$0xff]
    %v1595 = vld [vmem:[#allocation2 + $0xa8] sm:$0xff]
    %v1596 = vld [vmem:[#allocation2 + $0xb0] sm:$0xff]
    %v1597 = vld [vmem:[#allocation2 + $0xc0] sm:$0xff]
    %v1598 = vld [vmem:[#allocation2 + $0xc8] sm:$0xff]
    %v1599 = vld [vmem:[#allocation2 + $0xd8] sm:$0xff]
    %v1600 = vld [vmem:[#allocation2 + $0xe0] sm:$0xff]
    %v1601 = vld [vmem:[#allocation2 + $0xf0] sm:$0xff]
    %v1602 = vld [vmem:[#allocation2 + $0xf8] sm:$0xff]
    %v1603 = vld [vmem:[#allocation2 + $0x108] sm:$0xff]
    %v1604 = vld [vmem:[#allocation2 + $0x110] sm:$0xff]
    %v1605 = vld [vmem:[#allocation2 + $0x120] sm:$0xff]
    %v1606 = vld [vmem:[#allocation2 + $0x128] sm:$0xff]
    %v1607 = vld [vmem:[#allocation2 + $0x138] sm:$0xff]
    %v1608 = vld [vmem:[#allocation2 + $0x140] sm:$0xff]
    %v1609 = vld [vmem:[#allocation2 + $0x150] sm:$0xff]
    %v1610 = vld [vmem:[#allocation2 + $0x158] sm:$0xff]
    %v1611 = vld [vmem:[#allocation2 + $0x168] sm:$0xff]
    %v1612 = vld [vmem:[#allocation2 + $0x170] sm:$0xff]
    %v1613 = vld [vmem:[#allocation2 + $0x198] sm:$0xff]
    %v1614 = vld [vmem:[#allocation2 + $0x1a0] sm:$0xff]
    %v1615 = vld [vmem:[#allocation2 + $0x1b0] sm:$0xff]
    %v1616 = vld [vmem:[#allocation2 + $0x1b8] sm:$0xff]
    %v1617 = vld [vmem:[#allocation2 + $0x1c8] sm:$0xff]
    %v1618 = vld [vmem:[#allocation2 + $0x1d0] sm:$0xff]
    %v1619 = vld [vmem:[#allocation2 + $0x1e0] sm:$0xff]
    %v1620 = vld [vmem:[#allocation2 + $0x1e8] sm:$0xff]
    %v1621 = vld [vmem:[#allocation2 + $0x1f8] sm:$0xff]
    %v1622 = vld [vmem:[#allocation2 + $0x200] sm:$0xff]
    %v1623 = vld [vmem:[#allocation2 + $0x210] sm:$0xff]
    %v1624 = vld [vmem:[#allocation2 + $0x218] sm:$0xff]
    %v1625 = vld [vmem:[#allocation2 + $0x228] sm:$0xff]
    %v1626 = vld [vmem:[#allocation2 + $0x230] sm:$0xff]
    %v1627 = vld [vmem:[#allocation2 + $0x240] sm:$0xff]
    %v1628 = vld [vmem:[#allocation2 + $0x248] sm:$0xff]
    %v1629 = vld [vmem:[#allocation2 + $0x258] sm:$0xff]
    %v1630 = vld [vmem:[#allocation2 + $0x260] sm:$0xff]
    %v1631 = vld [vmem:[#allocation2 + $0x270] sm:$0xff]
    %v1632 = vld [vmem:[#allocation2 + $0x278] sm:$0xff]
    %v1633 = vld [vmem:[#allocation2 + $0x288] sm:$0xff]
    %v1634 = vld [vmem:[#allocation2 + $0x290] sm:$0xff]
    %v1635 = vld [vmem:[#allocation2 + $0x2a0] sm:$0xff]
    %v1636 = vld [vmem:[#allocation2 + $0x2a8] sm:$0xff]
    %v1637 = vld [vmem:[#allocation2 + $0x2b8] sm:$0xff]
    %v1638 = vld [vmem:[#allocation2 + $0x2c0] sm:$0xff]
    %v1639 = vld [vmem:[#allocation2 + $0x2d0] sm:$0xff]
    %v1640 = vld [vmem:[#allocation2 + $0x2d8] sm:$0xff]
    %v1641 = vld [vmem:[#allocation2 + $0x2e8] sm:$0xff]
    %v1642 = vld [vmem:[#allocation2 + $0x2f0] sm:$0xff]
    %v1643 = vld [vmem:[#allocation2 + $0x300] sm:$0xff]
    %v1644 = vld [vmem:[#allocation2 + $0x308] sm:$0xff]
    %1645 = vrot.lane.b32.xlu0 %v289, 32
    %v1646 = vpop.permute.xlu0 %1645
    %1647 = vrot.lane.b32.xlu0 %v291, 32
    %v1648 = vpop.permute.xlu0 %1647
    %1649 = vrot.lane.b32.xlu0 %v294, 32
    %v1650 = vpop.permute.xlu0 %1649
    %1651 = vrot.lane.b32.xlu0 %v296, 32
    %v1652 = vpop.permute.xlu0 %1651
    %1653 = vrot.lane.b32.xlu0 %v299, 32
    %v1654 = vpop.permute.xlu0 %1653
    %1655 = vrot.lane.b32.xlu0 %v301, 32
    %v1656 = vpop.permute.xlu0 %1655
    %1657 = vrot.lane.b32.xlu0 %v304, 32
    %v1658 = vpop.permute.xlu0 %1657
    %1659 = vrot.lane.b32.xlu0 %v306, 32
    %v1660 = vpop.permute.xlu0 %1659
    %1661 = vrot.lane.b32.xlu0 %v309, 32
    %v1662 = vpop.permute.xlu0 %1661
    %1663 = vrot.lane.b32.xlu0 %v311, 32
    %v1664 = vpop.permute.xlu0 %1663
    %1665 = vrot.lane.b32.xlu0 %v314, 32
    %v1666 = vpop.permute.xlu0 %1665
    %1667 = vrot.lane.b32.xlu0 %v316, 32
    %v1668 = vpop.permute.xlu0 %1667
    %1669 = vrot.lane.b32.xlu0 %v319, 32
    %v1670 = vpop.permute.xlu0 %1669
    %1671 = vrot.lane.b32.xlu0 %v321, 32
    %v1672 = vpop.permute.xlu0 %1671
    %1673 = vrot.lane.b32.xlu0 %v324, 32
    %v1674 = vpop.permute.xlu0 %1673
    %1675 = vrot.lane.b32.xlu0 %v326, 32
    %v1676 = vpop.permute.xlu0 %1675
    %1677 = vrot.lane.b32.xlu0 %v329, 32
    %v1678 = vpop.permute.xlu0 %1677
    %1679 = vrot.lane.b32.xlu0 %v331, 32
    %v1680 = vpop.permute.xlu0 %1679
    %1681 = vrot.lane.b32.xlu0 %v334, 32
    %v1682 = vpop.permute.xlu0 %1681
    %1683 = vrot.lane.b32.xlu0 %v336, 32
    %v1684 = vpop.permute.xlu0 %1683
    %1685 = vrot.lane.b32.xlu0 %v339, 32
    %v1686 = vpop.permute.xlu0 %1685
    %1687 = vrot.lane.b32.xlu0 %v341, 32
    %v1688 = vpop.permute.xlu0 %1687
    %1689 = vrot.lane.b32.xlu0 %v344, 32
    %v1690 = vpop.permute.xlu0 %1689
    %1691 = vrot.lane.b32.xlu0 %v346, 32
    %v1692 = vpop.permute.xlu0 %1691
    %1693 = vrot.lane.b32.xlu0 %v349, 32
    %v1694 = vpop.permute.xlu0 %1693
    %1695 = vrot.lane.b32.xlu0 %v351, 32
    %v1696 = vpop.permute.xlu0 %1695
    %1697 = vrot.lane.b32.xlu0 %v354, 32
    %v1698 = vpop.permute.xlu0 %1697
    %1699 = vrot.lane.b32.xlu0 %v356, 32
    %v1700 = vpop.permute.xlu0 %1699
    %1701 = vrot.lane.b32.xlu0 %v359, 32
    %v1702 = vpop.permute.xlu0 %1701
    %1703 = vrot.lane.b32.xlu0 %v361, 32
    %v1704 = vpop.permute.xlu0 %1703
    %1705 = vrot.lane.b32.xlu0 %v364, 32
    %v1706 = vpop.permute.xlu0 %1705
    %1707 = vrot.lane.b32.xlu0 %v366, 32
    %v1708 = vpop.permute.xlu0 %1707
    %1709 = vrot.lane.b32.xlu0 %v369, 32
    %v1710 = vpop.permute.xlu0 %1709
    %1711 = vrot.lane.b32.xlu0 %v371, 32
    %v1712 = vpop.permute.xlu0 %1711
    %1713 = vrot.lane.b32.xlu0 %v374, 32
    %v1714 = vpop.permute.xlu0 %1713
    %1715 = vrot.lane.b32.xlu0 %v376, 32
    %v1716 = vpop.permute.xlu0 %1715
    %1717 = vrot.lane.b32.xlu0 %v379, 32
    %v1718 = vpop.permute.xlu0 %1717
    %1719 = vrot.lane.b32.xlu0 %v381, 32
    %v1720 = vpop.permute.xlu0 %1719
    %1721 = vrot.lane.b32.xlu0 %v384, 32
    %v1722 = vpop.permute.xlu0 %1721
    %1723 = vrot.lane.b32.xlu0 %v386, 32
    %v1724 = vpop.permute.xlu0 %1723
    %1725 = vrot.lane.b32.xlu0 %v389, 32
    %v1726 = vpop.permute.xlu0 %1725
    %1727 = vrot.lane.b32.xlu0 %v391, 32
    %v1728 = vpop.permute.xlu0 %1727
    %1729 = vrot.lane.b32.xlu0 %v394, 32
    %v1730 = vpop.permute.xlu0 %1729
    %1731 = vrot.lane.b32.xlu0 %v396, 32
    %v1732 = vpop.permute.xlu0 %1731
    %1733 = vrot.lane.b32.xlu0 %v399, 32
    %v1734 = vpop.permute.xlu0 %1733
    %1735 = vrot.lane.b32.xlu0 %v401, 32
    %v1736 = vpop.permute.xlu0 %1735
    %1737 = vrot.lane.b32.xlu0 %v404, 32
    %v1738 = vpop.permute.xlu0 %1737
    %1739 = vrot.lane.b32.xlu0 %v406, 32
    %v1740 = vpop.permute.xlu0 %1739
    %1741 = vrot.lane.b32.xlu0 %v409, 32
    %v1742 = vpop.permute.xlu0 %1741
    %1743 = vrot.lane.b32.xlu0 %v411, 32
    %v1744 = vpop.permute.xlu0 %1743
    %1745 = vrot.lane.b32.xlu0 %v414, 32
    %v1746 = vpop.permute.xlu0 %1745
    %1747 = vrot.lane.b32.xlu0 %v416, 32
    %v1748 = vpop.permute.xlu0 %1747
    %1749 = vrot.lane.b32.xlu0 %v419, 32
    %v1750 = vpop.permute.xlu0 %1749
    %1751 = vrot.lane.b32.xlu0 %v421, 32
    %v1752 = vpop.permute.xlu0 %1751
    %1753 = vrot.lane.b32.xlu0 %v424, 32
    %v1754 = vpop.permute.xlu0 %1753
    %1755 = vrot.lane.b32.xlu0 %v426, 32
    %v1756 = vpop.permute.xlu0 %1755
    %1757 = vrot.lane.b32.xlu0 %v429, 32
    %v1758 = vpop.permute.xlu0 %1757
    %1759 = vrot.lane.b32.xlu0 %v431, 32
    %v1760 = vpop.permute.xlu0 %1759
    %1761 = vrot.lane.b32.xlu0 %v434, 32
    %v1762 = vpop.permute.xlu0 %1761
    %1763 = vrot.lane.b32.xlu0 %v436, 32
    %v1764 = vpop.permute.xlu0 %1763
    %1765 = vrot.lane.b32.xlu0 %v439, 32
    %v1766 = vpop.permute.xlu0 %1765
    %1767 = vrot.lane.b32.xlu0 %v441, 32
    %v1768 = vpop.permute.xlu0 %1767
    %1769 = vrot.lane.b32.xlu0 %v444, 32
    %v1770 = vpop.permute.xlu0 %1769
    %1771 = vrot.lane.b32.xlu0 %v446, 32
    %v1772 = vpop.permute.xlu0 %1771
    %v1837 = vadd.f32 %v1581, %v1646
    %v1838 = vadd.f32 %v1582, %v1648
    %v1839 = vadd.f32 %v1583, %v1650
    %v1840 = vadd.f32 %v1584, %v1652
    %v1841 = vadd.f32 %v1585, %v1654
    %v1842 = vadd.f32 %v1586, %v1656
    %v1843 = vadd.f32 %v1587, %v1658
    %v1844 = vadd.f32 %v1588, %v1660
    %v1845 = vadd.f32 %v1589, %v1662
    %v1846 = vadd.f32 %v1590, %v1664
    %v1847 = vadd.f32 %v1591, %v1666
    %v1848 = vadd.f32 %v1592, %v1668
    %v1849 = vadd.f32 %v1593, %v1670
    %v1850 = vadd.f32 %v1594, %v1672
    %v1851 = vadd.f32 %v1595, %v1674
    %v1852 = vadd.f32 %v1596, %v1676
    %v1853 = vadd.f32 %v1597, %v1678
    %v1854 = vadd.f32 %v1598, %v1680
    %v1855 = vadd.f32 %v1599, %v1682
    %v1856 = vadd.f32 %v1600, %v1684
    %v1857 = vadd.f32 %v1601, %v1686
    %v1858 = vadd.f32 %v1602, %v1688
    %v1859 = vadd.f32 %v1603, %v1690
    %v1860 = vadd.f32 %v1604, %v1692
    %v1861 = vadd.f32 %v1605, %v1694
    %v1862 = vadd.f32 %v1606, %v1696
    %v1863 = vadd.f32 %v1607, %v1698
    %v1864 = vadd.f32 %v1608, %v1700
    %v1865 = vadd.f32 %v1609, %v1702
    %v1866 = vadd.f32 %v1610, %v1704
    %v1867 = vadd.f32 %v1611, %v1706
    %v1868 = vadd.f32 %v1612, %v1708
    %v1869 = vadd.f32 %v1613, %v1710
    %v1870 = vadd.f32 %v1614, %v1712
    %v1871 = vadd.f32 %v1615, %v1714
    %v1872 = vadd.f32 %v1616, %v1716
    %v1873 = vadd.f32 %v1617, %v1718
    %v1874 = vadd.f32 %v1618, %v1720
    %v1875 = vadd.f32 %v1619, %v1722
    %v1876 = vadd.f32 %v1620, %v1724
    %v1877 = vadd.f32 %v1621, %v1726
    %v1878 = vadd.f32 %v1622, %v1728
    %v1879 = vadd.f32 %v1623, %v1730
    %v1880 = vadd.f32 %v1624, %v1732
    %v1881 = vadd.f32 %v1625, %v1734
    %v1882 = vadd.f32 %v1626, %v1736
    %v1883 = vadd.f32 %v1627, %v1738
    %v1884 = vadd.f32 %v1628, %v1740
    %v1885 = vadd.f32 %v1629, %v1742
    %v1886 = vadd.f32 %v1630, %v1744
    %v1887 = vadd.f32 %v1631, %v1746
    %v1888 = vadd.f32 %v1632, %v1748
    %v1889 = vadd.f32 %v1633, %v1750
    %v1890 = vadd.f32 %v1634, %v1752
    %v1891 = vadd.f32 %v1635, %v1754
    %v1892 = vadd.f32 %v1636, %v1756
    %v1893 = vadd.f32 %v1637, %v1758
    %v1894 = vadd.f32 %v1638, %v1760
    %v1895 = vadd.f32 %v1639, %v1762
    %v1896 = vadd.f32 %v1640, %v1764
    %v1897 = vadd.f32 %v1641, %v1766
    %v1898 = vadd.f32 %v1642, %v1768
    %v1899 = vadd.f32 %v1643, %v1770
    %v1900 = vadd.f32 %v1644, %v1772
    %1901 = vst.msk [vmem:[#allocation2] sm:$0xff] %vm452, %v1837
    %1902 = vst.msk [vmem:[#allocation2 + $0x8] sm:$0xff] %vm452, %v1838
    %1903 = vst.msk [vmem:[#allocation2 + $0x18] sm:$0xff] %vm452, %v1839
    %1904 = vst.msk [vmem:[#allocation2 + $0x20] sm:$0xff] %vm452, %v1840
    %1905 = vst.msk [vmem:[#allocation2 + $0x30] sm:$0xff] %vm452, %v1841
    %1906 = vst.msk [vmem:[#allocation2 + $0x38] sm:$0xff] %vm452, %v1842
    %1907 = vst.msk [vmem:[#allocation2 + $0x48] sm:$0xff] %vm452, %v1843
    %1908 = vst.msk [vmem:[#allocation2 + $0x50] sm:$0xff] %vm452, %v1844
    %1909 = vst.msk [vmem:[#allocation2 + $0x60] sm:$0xff] %vm452, %v1845
    %1910 = vst.msk [vmem:[#allocation2 + $0x68] sm:$0xff] %vm452, %v1846
    %1911 = vst.msk [vmem:[#allocation2 + $0x78] sm:$0xff] %vm452, %v1847
    %1912 = vst.msk [vmem:[#allocation2 + $0x80] sm:$0xff] %vm452, %v1848
    %1913 = vst.msk [vmem:[#allocation2 + $0x90] sm:$0xff] %vm452, %v1849
    %1914 = vst.msk [vmem:[#allocation2 + $0x98] sm:$0xff] %vm452, %v1850
    %1915 = vst.msk [vmem:[#allocation2 + $0xa8] sm:$0xff] %vm452, %v1851
    %1916 = vst.msk [vmem:[#allocation2 + $0xb0] sm:$0xff] %vm452, %v1852
    %1917 = vst.msk [vmem:[#allocation2 + $0xc0] sm:$0xff] %vm452, %v1853
    %1918 = vst.msk [vmem:[#allocation2 + $0xc8] sm:$0xff] %vm452, %v1854
    %1919 = vst.msk [vmem:[#allocation2 + $0xd8] sm:$0xff] %vm452, %v1855
    %1920 = vst.msk [vmem:[#allocation2 + $0xe0] sm:$0xff] %vm452, %v1856
    %1921 = vst.msk [vmem:[#allocation2 + $0xf0] sm:$0xff] %vm452, %v1857
    %1922 = vst.msk [vmem:[#allocation2 + $0xf8] sm:$0xff] %vm452, %v1858
    %1923 = vst.msk [vmem:[#allocation2 + $0x108] sm:$0xff] %vm452, %v1859
    %1924 = vst.msk [vmem:[#allocation2 + $0x110] sm:$0xff] %vm452, %v1860
    %1925 = vst.msk [vmem:[#allocation2 + $0x120] sm:$0xff] %vm452, %v1861
    %1926 = vst.msk [vmem:[#allocation2 + $0x128] sm:$0xff] %vm452, %v1862
    %1927 = vst.msk [vmem:[#allocation2 + $0x138] sm:$0xff] %vm452, %v1863
    %1928 = vst.msk [vmem:[#allocation2 + $0x140] sm:$0xff] %vm452, %v1864
    %1929 = vst.msk [vmem:[#allocation2 + $0x150] sm:$0xff] %vm452, %v1865
    %1930 = vst.msk [vmem:[#allocation2 + $0x158] sm:$0xff] %vm452, %v1866
    %1931 = vst.msk [vmem:[#allocation2 + $0x168] sm:$0xff] %vm452, %v1867
    %1932 = vst.msk [vmem:[#allocation2 + $0x170] sm:$0xff] %vm452, %v1868
    %1933 = vst.msk [vmem:[#allocation2 + $0x198] sm:$0xff] %vm452, %v1869
    %1934 = vst.msk [vmem:[#allocation2 + $0x1a0] sm:$0xff] %vm452, %v1870
    %1935 = vst.msk [vmem:[#allocation2 + $0x1b0] sm:$0xff] %vm452, %v1871
    %1936 = vst.msk [vmem:[#allocation2 + $0x1b8] sm:$0xff] %vm452, %v1872
    %1937 = vst.msk [vmem:[#allocation2 + $0x1c8] sm:$0xff] %vm452, %v1873
    %1938 = vst.msk [vmem:[#allocation2 + $0x1d0] sm:$0xff] %vm452, %v1874
    %1939 = vst.msk [vmem:[#allocation2 + $0x1e0] sm:$0xff] %vm452, %v1875
    %1940 = vst.msk [vmem:[#allocation2 + $0x1e8] sm:$0xff] %vm452, %v1876
    %1941 = vst.msk [vmem:[#allocation2 + $0x1f8] sm:$0xff] %vm452, %v1877
    %1942 = vst.msk [vmem:[#allocation2 + $0x200] sm:$0xff] %vm452, %v1878
    %1943 = vst.msk [vmem:[#allocation2 + $0x210] sm:$0xff] %vm452, %v1879
    %1944 = vst.msk [vmem:[#allocation2 + $0x218] sm:$0xff] %vm452, %v1880
    %1945 = vst.msk [vmem:[#allocation2 + $0x228] sm:$0xff] %vm452, %v1881
    %1946 = vst.msk [vmem:[#allocation2 + $0x230] sm:$0xff] %vm452, %v1882
    %1947 = vst.msk [vmem:[#allocation2 + $0x240] sm:$0xff] %vm452, %v1883
    %1948 = vst.msk [vmem:[#allocation2 + $0x248] sm:$0xff] %vm452, %v1884
    %1949 = vst.msk [vmem:[#allocation2 + $0x258] sm:$0xff] %vm452, %v1885
    %1950 = vst.msk [vmem:[#allocation2 + $0x260] sm:$0xff] %vm452, %v1886
    %1951 = vst.msk [vmem:[#allocation2 + $0x270] sm:$0xff] %vm452, %v1887
    %1952 = vst.msk [vmem:[#allocation2 + $0x278] sm:$0xff] %vm452, %v1888
    %1953 = vst.msk [vmem:[#allocation2 + $0x288] sm:$0xff] %vm452, %v1889
    %1954 = vst.msk [vmem:[#allocation2 + $0x290] sm:$0xff] %vm452, %v1890
    %1955 = vst.msk [vmem:[#allocation2 + $0x2a0] sm:$0xff] %vm452, %v1891
    %1956 = vst.msk [vmem:[#allocation2 + $0x2a8] sm:$0xff] %vm452, %v1892
    %1957 = vst.msk [vmem:[#allocation2 + $0x2b8] sm:$0xff] %vm452, %v1893
    %1958 = vst.msk [vmem:[#allocation2 + $0x2c0] sm:$0xff] %vm452, %v1894
    %1959 = vst.msk [vmem:[#allocation2 + $0x2d0] sm:$0xff] %vm452, %v1895
    %1960 = vst.msk [vmem:[#allocation2 + $0x2d8] sm:$0xff] %vm452, %v1896
    %1961 = vst.msk [vmem:[#allocation2 + $0x2e8] sm:$0xff] %vm452, %v1897
    %1962 = vst.msk [vmem:[#allocation2 + $0x2f0] sm:$0xff] %vm452, %v1898
    %1963 = vst.msk [vmem:[#allocation2 + $0x300] sm:$0xff] %vm452, %v1899
    %1964 = vst.msk [vmem:[#allocation2 + $0x308] sm:$0xff] %vm452, %v1900
    %v1965 = vld [vmem:[#allocation2] sm:$0xff]
    %v1966 = vld [vmem:[#allocation2 + $0x8] sm:$0xff]
    %v1967 = vld [vmem:[#allocation2 + $0x10] sm:$0x1]
    %v1968 = vld [vmem:[#allocation2 + $0x18] sm:$0xff]
    %v1969 = vld [vmem:[#allocation2 + $0x20] sm:$0xff]
    %v1970 = vld [vmem:[#allocation2 + $0x28] sm:$0x1]
    %v1971 = vld [vmem:[#allocation2 + $0x30] sm:$0xff]
    %v1972 = vld [vmem:[#allocation2 + $0x38] sm:$0xff]
    %v1973 = vld [vmem:[#allocation2 + $0x40] sm:$0x1]
    %v1974 = vld [vmem:[#allocation2 + $0x48] sm:$0xff]
    %v1975 = vld [vmem:[#allocation2 + $0x50] sm:$0xff]
    %v1976 = vld [vmem:[#allocation2 + $0x58] sm:$0x1]
    %v1977 = vld [vmem:[#allocation2 + $0x60] sm:$0xff]
    %v1978 = vld [vmem:[#allocation2 + $0x68] sm:$0xff]
    %v1979 = vld [vmem:[#allocation2 + $0x70] sm:$0x1]
    %v1980 = vld [vmem:[#allocation2 + $0x78] sm:$0xff]
    %v1981 = vld [vmem:[#allocation2 + $0x80] sm:$0xff]
    %v1982 = vld [vmem:[#allocation2 + $0x88] sm:$0x1]
    %v1983 = vld [vmem:[#allocation2 + $0x90] sm:$0xff]
    %v1984 = vld [vmem:[#allocation2 + $0x98] sm:$0xff]
    %v1985 = vld [vmem:[#allocation2 + $0xa0] sm:$0x1]
    %v1986 = vld [vmem:[#allocation2 + $0xa8] sm:$0xff]
    %v1987 = vld [vmem:[#allocation2 + $0xb0] sm:$0xff]
    %v1988 = vld [vmem:[#allocation2 + $0xb8] sm:$0x1]
    %v1989 = vld [vmem:[#allocation2 + $0xc0] sm:$0xff]
    %v1990 = vld [vmem:[#allocation2 + $0xc8] sm:$0xff]
    %v1991 = vld [vmem:[#allocation2 + $0xd0] sm:$0x1]
    %v1992 = vld [vmem:[#allocation2 + $0xd8] sm:$0xff]
    %v1993 = vld [vmem:[#allocation2 + $0xe0] sm:$0xff]
    %v1994 = vld [vmem:[#allocation2 + $0xe8] sm:$0x1]
    %v1995 = vld [vmem:[#allocation2 + $0xf0] sm:$0xff]
    %v1996 = vld [vmem:[#allocation2 + $0xf8] sm:$0xff]
    %v1997 = vld [vmem:[#allocation2 + $0x100] sm:$0x1]
    %v1998 = vld [vmem:[#allocation2 + $0x108] sm:$0xff]
    %v1999 = vld [vmem:[#allocation2 + $0x110] sm:$0xff]
    %v2000 = vld [vmem:[#allocation2 + $0x118] sm:$0x1]
    %v2001 = vld [vmem:[#allocation2 + $0x120] sm:$0xff]
    %v2002 = vld [vmem:[#allocation2 + $0x128] sm:$0xff]
    %v2003 = vld [vmem:[#allocation2 + $0x130] sm:$0x1]
    %v2004 = vld [vmem:[#allocation2 + $0x138] sm:$0xff]
    %v2005 = vld [vmem:[#allocation2 + $0x140] sm:$0xff]
    %v2006 = vld [vmem:[#allocation2 + $0x148] sm:$0x1]
    %v2007 = vld [vmem:[#allocation2 + $0x150] sm:$0xff]
    %v2008 = vld [vmem:[#allocation2 + $0x158] sm:$0xff]
    %v2009 = vld [vmem:[#allocation2 + $0x160] sm:$0x1]
    %v2010 = vld [vmem:[#allocation2 + $0x168] sm:$0xff]
    %v2011 = vld [vmem:[#allocation2 + $0x170] sm:$0xff]
    %v2012 = vld [vmem:[#allocation2 + $0x178] sm:$0x1]
    %v2013 = vld [vmem:[#allocation2 + $0x180] sm:$0xff]
    %v2014 = vld [vmem:[#allocation2 + $0x188] sm:$0xff]
    %v2015 = vld [vmem:[#allocation2 + $0x190] sm:$0x1]
    %v2016 = vld [vmem:[#allocation2 + $0x198] sm:$0xff]
    %v2017 = vld [vmem:[#allocation2 + $0x1a0] sm:$0xff]
    %v2018 = vld [vmem:[#allocation2 + $0x1a8] sm:$0x1]
    %v2019 = vld [vmem:[#allocation2 + $0x1b0] sm:$0xff]
    %v2020 = vld [vmem:[#allocation2 + $0x1b8] sm:$0xff]
    %v2021 = vld [vmem:[#allocation2 + $0x1c0] sm:$0x1]
    %v2022 = vld [vmem:[#allocation2 + $0x1c8] sm:$0xff]
    %v2023 = vld [vmem:[#allocation2 + $0x1d0] sm:$0xff]
    %v2024 = vld [vmem:[#allocation2 + $0x1d8] sm:$0x1]
    %v2025 = vld [vmem:[#allocation2 + $0x1e0] sm:$0xff]
    %v2026 = vld [vmem:[#allocation2 + $0x1e8] sm:$0xff]
    %v2027 = vld [vmem:[#allocation2 + $0x1f0] sm:$0x1]
    %v2028 = vld [vmem:[#allocation2 + $0x1f8] sm:$0xff]
    %v2029 = vld [vmem:[#allocation2 + $0x200] sm:$0xff]
    %v2030 = vld [vmem:[#allocation2 + $0x208] sm:$0x1]
    %v2031 = vld [vmem:[#allocation2 + $0x210] sm:$0xff]
    %v2032 = vld [vmem:[#allocation2 + $0x218] sm:$0xff]
    %v2033 = vld [vmem:[#allocation2 + $0x220] sm:$0x1]
    %v2034 = vld [vmem:[#allocation2 + $0x228] sm:$0xff]
    %v2035 = vld [vmem:[#allocation2 + $0x230] sm:$0xff]
    %v2036 = vld [vmem:[#allocation2 + $0x238] sm:$0x1]
    %v2037 = vld [vmem:[#allocation2 + $0x240] sm:$0xff]
    %v2038 = vld [vmem:[#allocation2 + $0x248] sm:$0xff]
    %v2039 = vld [vmem:[#allocation2 + $0x250] sm:$0x1]
    %v2040 = vld [vmem:[#allocation2 + $0x258] sm:$0xff]
    %v2041 = vld [vmem:[#allocation2 + $0x260] sm:$0xff]
    %v2042 = vld [vmem:[#allocation2 + $0x268] sm:$0x1]
    %v2043 = vld [vmem:[#allocation2 + $0x270] sm:$0xff]
    %v2044 = vld [vmem:[#allocation2 + $0x278] sm:$0xff]
    %v2045 = vld [vmem:[#allocation2 + $0x280] sm:$0x1]
    %v2046 = vld [vmem:[#allocation2 + $0x288] sm:$0xff]
    %v2047 = vld [vmem:[#allocation2 + $0x290] sm:$0xff]
    %v2048 = vld [vmem:[#allocation2 + $0x298] sm:$0x1]
    %v2049 = vld [vmem:[#allocation2 + $0x2a0] sm:$0xff]
    %v2050 = vld [vmem:[#allocation2 + $0x2a8] sm:$0xff]
    %v2051 = vld [vmem:[#allocation2 + $0x2b0] sm:$0x1]
    %v2052 = vld [vmem:[#allocation2 + $0x2b8] sm:$0xff]
    %v2053 = vld [vmem:[#allocation2 + $0x2c0] sm:$0xff]
    %v2054 = vld [vmem:[#allocation2 + $0x2c8] sm:$0x1]
    %v2055 = vld [vmem:[#allocation2 + $0x2d0] sm:$0xff]
    %v2056 = vld [vmem:[#allocation2 + $0x2d8] sm:$0xff]
    %v2057 = vld [vmem:[#allocation2 + $0x2e0] sm:$0x1]
    %v2058 = vld [vmem:[#allocation2 + $0x2e8] sm:$0xff]
    %v2059 = vld [vmem:[#allocation2 + $0x2f0] sm:$0xff]
    %v2060 = vld [vmem:[#allocation2 + $0x2f8] sm:$0x1]
    %v2061 = vld [vmem:[#allocation2 + $0x300] sm:$0xff]
    %v2062 = vld [vmem:[#allocation2 + $0x308] sm:$0xff]
    %v2063 = vld [vmem:[#allocation2 + $0x310] sm:$0x1]
    %v2064 = vld [vmem:[#allocation2 + $0x318] sm:$0xff]
    %v2065 = vld [vmem:[#allocation2 + $0x320] sm:$0xff]
    %v2066 = vld [vmem:[#allocation2 + $0x328] sm:$0x1]
    %v2067 = vmax.f32 %v1965, 0.0
    %v2068 = vmax.f32 %v1966, 0.0
    %v2069 = vmax.f32 %v1967, 0.0
    %v2070 = vmax.f32 %v1968, 0.0
    %v2071 = vmax.f32 %v1969, 0.0
    %v2072 = vmax.f32 %v1970, 0.0
    %v2073 = vmax.f32 %v1971, 0.0
    %v2074 = vmax.f32 %v1972, 0.0
    %v2075 = vmax.f32 %v1973, 0.0
    %v2076 = vmax.f32 %v1974, 0.0
    %v2077 = vmax.f32 %v1975, 0.0
    %v2078 = vmax.f32 %v1976, 0.0
    %v2079 = vmax.f32 %v1977, 0.0
    %v2080 = vmax.f32 %v1978, 0.0
    %v2081 = vmax.f32 %v1979, 0.0
    %v2082 = vmax.f32 %v1980, 0.0
    %v2083 = vmax.f32 %v1981, 0.0
    %v2084 = vmax.f32 %v1982, 0.0
    %v2085 = vmax.f32 %v1983, 0.0
    %v2086 = vmax.f32 %v1984, 0.0
    %v2087 = vmax.f32 %v1985, 0.0
    %v2088 = vmax.f32 %v1986, 0.0
    %v2089 = vmax.f32 %v1987, 0.0
    %v2090 = vmax.f32 %v1988, 0.0
    %v2091 = vmax.f32 %v1989, 0.0
    %v2092 = vmax.f32 %v1990, 0.0
    %v2093 = vmax.f32 %v1991, 0.0
    %v2094 = vmax.f32 %v1992, 0.0
    %v2095 = vmax.f32 %v1993, 0.0
    %v2096 = vmax.f32 %v1994, 0.0
    %v2097 = vmax.f32 %v1995, 0.0
    %v2098 = vmax.f32 %v1996, 0.0
    %v2099 = vmax.f32 %v1997, 0.0
    %v2100 = vmax.f32 %v1998, 0.0
    %v2101 = vmax.f32 %v1999, 0.0
    %v2102 = vmax.f32 %v2000, 0.0
    %v2103 = vmax.f32 %v2001, 0.0
    %v2104 = vmax.f32 %v2002, 0.0
    %v2105 = vmax.f32 %v2003, 0.0
    %v2106 = vmax.f32 %v2004, 0.0
    %v2107 = vmax.f32 %v2005, 0.0
    %v2108 = vmax.f32 %v2006, 0.0
    %v2109 = vmax.f32 %v2007, 0.0
    %v2110 = vmax.f32 %v2008, 0.0
    %v2111 = vmax.f32 %v2009, 0.0
    %v2112 = vmax.f32 %v2010, 0.0
    %v2113 = vmax.f32 %v2011, 0.0
    %v2114 = vmax.f32 %v2012, 0.0
    %v2115 = vmax.f32 %v2013, 0.0
    %v2116 = vmax.f32 %v2014, 0.0
    %v2117 = vmax.f32 %v2015, 0.0
    %v2118 = vmax.f32 %v2016, 0.0
    %v2119 = vmax.f32 %v2017, 0.0
    %v2120 = vmax.f32 %v2018, 0.0
    %v2121 = vmax.f32 %v2019, 0.0
    %v2122 = vmax.f32 %v2020, 0.0
    %v2123 = vmax.f32 %v2021, 0.0
    %v2124 = vmax.f32 %v2022, 0.0
    %v2125 = vmax.f32 %v2023, 0.0
    %v2126 = vmax.f32 %v2024, 0.0
    %v2127 = vmax.f32 %v2025, 0.0
    %v2128 = vmax.f32 %v2026, 0.0
    %v2129 = vmax.f32 %v2027, 0.0
    %v2130 = vmax.f32 %v2028, 0.0
    %v2131 = vmax.f32 %v2029, 0.0
    %v2132 = vmax.f32 %v2030, 0.0
    %v2133 = vmax.f32 %v2031, 0.0
    %v2134 = vmax.f32 %v2032, 0.0
    %v2135 = vmax.f32 %v2033, 0.0
    %v2136 = vmax.f32 %v2034, 0.0
    %v2137 = vmax.f32 %v2035, 0.0
    %v2138 = vmax.f32 %v2036, 0.0
    %v2139 = vmax.f32 %v2037, 0.0
    %v2140 = vmax.f32 %v2038, 0.0
    %v2141 = vmax.f32 %v2039, 0.0
    %v2142 = vmax.f32 %v2040, 0.0
    %v2143 = vmax.f32 %v2041, 0.0
    %v2144 = vmax.f32 %v2042, 0.0
    %v2145 = vmax.f32 %v2043, 0.0
    %v2146 = vmax.f32 %v2044, 0.0
    %v2147 = vmax.f32 %v2045, 0.0
    %v2148 = vmax.f32 %v2046, 0.0
    %v2149 = vmax.f32 %v2047, 0.0
    %v2150 = vmax.f32 %v2048, 0.0
    %v2151 = vmax.f32 %v2049, 0.0
    %v2152 = vmax.f32 %v2050, 0.0
    %v2153 = vmax.f32 %v2051, 0.0
    %v2154 = vmax.f32 %v2052, 0.0
    %v2155 = vmax.f32 %v2053, 0.0
    %v2156 = vmax.f32 %v2054, 0.0
    %v2157 = vmax.f32 %v2055, 0.0
    %v2158 = vmax.f32 %v2056, 0.0
    %v2159 = vmax.f32 %v2057, 0.0
    %v2160 = vmax.f32 %v2058, 0.0
    %v2161 = vmax.f32 %v2059, 0.0
    %v2162 = vmax.f32 %v2060, 0.0
    %v2163 = vmax.f32 %v2061, 0.0
    %v2164 = vmax.f32 %v2062, 0.0
    %v2165 = vmax.f32 %v2063, 0.0
    %v2166 = vmax.f32 %v2064, 0.0
    %v2167 = vmax.f32 %v2065, 0.0
    %v2168 = vmax.f32 %v2066, 0.0
    %v2169 = vmax.f32 %v2067, %v2070
    %v2170 = vmax.f32 %v2068, %v2071
    %v2171 = vmax.f32 %v2070, %v2073
    %v2172 = vmax.f32 %v2071, %v2074
    %v2173 = vmax.f32 %v2073, %v2076
    %v2174 = vmax.f32 %v2074, %v2077
    %v2175 = vmax.f32 %v2076, %v2079
    %v2176 = vmax.f32 %v2077, %v2080
    %v2177 = vmax.f32 %v2079, %v2082
    %v2178 = vmax.f32 %v2080, %v2083
    %v2179 = vmax.f32 %v2082, %v2085
    %v2180 = vmax.f32 %v2083, %v2086
    %v2181 = vmax.f32 %v2085, %v2088
    %v2182 = vmax.f32 %v2086, %v2089
    %v2183 = vmax.f32 %v2088, %v2091
    %v2184 = vmax.f32 %v2089, %v2092
    %v2185 = vmax.f32 %v2091, %v2094
    %v2186 = vmax.f32 %v2092, %v2095
    %v2187 = vmax.f32 %v2094, %v2097
    %v2188 = vmax.f32 %v2095, %v2098
    %v2189 = vmax.f32 %v2097, %v2100
    %v2190 = vmax.f32 %v2098, %v2101
    %v2191 = vmax.f32 %v2100, %v2103
    %v2192 = vmax.f32 %v2101, %v2104
    %v2193 = vmax.f32 %v2103, %v2106
    %v2194 = vmax.f32 %v2104, %v2107
    %v2195 = vmax.f32 %v2106, %v2109
    %v2196 = vmax.f32 %v2107, %v2110
    %v2197 = vmax.f32 %v2109, %v2112
    %v2198 = vmax.f32 %v2110, %v2113
    %v2199 = vmax.f32 %v2112, %v2115
    %v2200 = vmax.f32 %v2113, %v2116
    %v2201 = vmax.f32 %v2118, %v2121
    %v2202 = vmax.f32 %v2119, %v2122
    %v2203 = vmax.f32 %v2121, %v2124
    %v2204 = vmax.f32 %v2122, %v2125
    %v2205 = vmax.f32 %v2124, %v2127
    %v2206 = vmax.f32 %v2125, %v2128
    %v2207 = vmax.f32 %v2127, %v2130
    %v2208 = vmax.f32 %v2128, %v2131
    %v2209 = vmax.f32 %v2130, %v2133
    %v2210 = vmax.f32 %v2131, %v2134
    %v2211 = vmax.f32 %v2133, %v2136
    %v2212 = vmax.f32 %v2134, %v2137
    %v2213 = vmax.f32 %v2136, %v2139
    %v2214 = vmax.f32 %v2137, %v2140
    %v2215 = vmax.f32 %v2139, %v2142
    %v2216 = vmax.f32 %v2140, %v2143
    %v2217 = vmax.f32 %v2142, %v2145
    %v2218 = vmax.f32 %v2143, %v2146
    %v2219 = vmax.f32 %v2145, %v2148
    %v2220 = vmax.f32 %v2146, %v2149
    %v2221 = vmax.f32 %v2148, %v2151
    %v2222 = vmax.f32 %v2149, %v2152
    %v2223 = vmax.f32 %v2151, %v2154
    %v2224 = vmax.f32 %v2152, %v2155
    %v2225 = vmax.f32 %v2154, %v2157
    %v2226 = vmax.f32 %v2155, %v2158
    %v2227 = vmax.f32 %v2157, %v2160
    %v2228 = vmax.f32 %v2158, %v2161
    %v2229 = vmax.f32 %v2160, %v2163
    %v2230 = vmax.f32 %v2161, %v2164
    %v2231 = vmax.f32 %v2163, %v2166
    %v2232 = vmax.f32 %v2164, %v2167
    %v2233 = vmax.f32 %v2069, %v2072
    %v2234 = vmax.f32 %v2072, %v2075
    %v2235 = vmax.f32 %v2075, %v2078
    %v2236 = vmax.f32 %v2078, %v2081
    %v2237 = vmax.f32 %v2081, %v2084
    %v2238 = vmax.f32 %v2084, %v2087
    %v2239 = vmax.f32 %v2087, %v2090
    %v2240 = vmax.f32 %v2090, %v2093
    %v2241 = vmax.f32 %v2093, %v2096
    %v2242 = vmax.f32 %v2096, %v2099
    %v2243 = vmax.f32 %v2099, %v2102
    %v2244 = vmax.f32 %v2102, %v2105
    %v2245 = vmax.f32 %v2105, %v2108
    %v2246 = vmax.f32 %v2108, %v2111
    %v2247 = vmax.f32 %v2111, %v2114
    %v2248 = vmax.f32 %v2114, %v2117
    %v2249 = vmax.f32 %v2120, %v2123
    %v2250 = vmax.f32 %v2123, %v2126
    %v2251 = vmax.f32 %v2126, %v2129
    %v2252 = vmax.f32 %v2129, %v2132
    %v2253 = vmax.f32 %v2132, %v2135
    %v2254 = vmax.f32 %v2135, %v2138
    %v2255 = vmax.f32 %v2138, %v2141
    %v2256 = vmax.f32 %v2141, %v2144
    %v2257 = vmax.f32 %v2144, %v2147
    %v2258 = vmax.f32 %v2147, %v2150
    %v2259 = vmax.f32 %v2150, %v2153
    %v2260 = vmax.f32 %v2153, %v2156
    %v2261 = vmax.f32 %v2156, %v2159
    %v2262 = vmax.f32 %v2159, %v2162
    %v2263 = vmax.f32 %v2162, %v2165
    %v2264 = vmax.f32 %v2165, %v2168
    %vm2361 = vcmask 1046528
    %v2362 = vrot.slane %v2169, 1
    %v2363 = vrot.slane %v2170, 1
    %v2364 = vsel %vm2361, %v2362, %v2363
    %v2365 = vrot.slane %v2233, 1
    %v2366 = vsel %vm2361, %v2363, %v2365
    %v2367 = vrot.slane %v2171, 1
    %v2368 = vrot.slane %v2172, 1
    %v2369 = vsel %vm2361, %v2367, %v2368
    %v2370 = vrot.slane %v2234, 1
    %v2371 = vsel %vm2361, %v2368, %v2370
    %v2372 = vrot.slane %v2173, 1
    %v2373 = vrot.slane %v2174, 1
    %v2374 = vsel %vm2361, %v2372, %v2373
    %v2375 = vrot.slane %v2235, 1
    %v2376 = vsel %vm2361, %v2373, %v2375
    %v2377 = vrot.slane %v2175, 1
    %v2378 = vrot.slane %v2176, 1
    %v2379 = vsel %vm2361, %v2377, %v2378
    %v2380 = vrot.slane %v2236, 1
    %v2381 = vsel %vm2361, %v2378, %v2380
    %v2382 = vrot.slane %v2177, 1
    %v2383 = vrot.slane %v2178, 1
    %v2384 = vsel %vm2361, %v2382, %v2383
    %v2385 = vrot.slane %v2237, 1
    %v2386 = vsel %vm2361, %v2383, %v2385
    %v2387 = vrot.slane %v2179, 1
    %v2388 = vrot.slane %v2180, 1
    %v2389 = vsel %vm2361, %v2387, %v2388
    %v2390 = vrot.slane %v2238, 1
    %v2391 = vsel %vm2361, %v2388, %v2390
    %v2392 = vrot.slane %v2181, 1
    %v2393 = vrot.slane %v2182, 1
    %v2394 = vsel %vm2361, %v2392, %v2393
    %v2395 = vrot.slane %v2239, 1
    %v2396 = vsel %vm2361, %v2393, %v2395
    %v2397 = vrot.slane %v2183, 1
    %v2398 = vrot.slane %v2184, 1
    %v2399 = vsel %vm2361, %v2397, %v2398
    %v2400 = vrot.slane %v2240, 1
    %v2401 = vsel %vm2361, %v2398, %v2400
    %v2402 = vrot.slane %v2185, 1
    %v2403 = vrot.slane %v2186, 1
    %v2404 = vsel %vm2361, %v2402, %v2403
    %v2405 = vrot.slane %v2241, 1
    %v2406 = vsel %vm2361, %v2403, %v2405
    %v2407 = vrot.slane %v2187, 1
    %v2408 = vrot.slane %v2188, 1
    %v2409 = vsel %vm2361, %v2407, %v2408
    %v2410 = vrot.slane %v2242, 1
    %v2411 = vsel %vm2361, %v2408, %v2410
    %v2412 = vrot.slane %v2189, 1
    %v2413 = vrot.slane %v2190, 1
    %v2414 = vsel %vm2361, %v2412, %v2413
    %v2415 = vrot.slane %v2243, 1
    %v2416 = vsel %vm2361, %v2413, %v2415
    %v2417 = vrot.slane %v2191, 1
    %v2418 = vrot.slane %v2192, 1
    %v2419 = vsel %vm2361, %v2417, %v2418
    %v2420 = vrot.slane %v2244, 1
    %v2421 = vsel %vm2361, %v2418, %v2420
    %v2422 = vrot.slane %v2193, 1
    %v2423 = vrot.slane %v2194, 1
    %v2424 = vsel %vm2361, %v2422, %v2423
    %v2425 = vrot.slane %v2245, 1
    %v2426 = vsel %vm2361, %v2423, %v2425
    %v2427 = vrot.slane %v2195, 1
    %v2428 = vrot.slane %v2196, 1
    %v2429 = vsel %vm2361, %v2427, %v2428
    %v2430 = vrot.slane %v2246, 1
    %v2431 = vsel %vm2361, %v2428, %v2430
    %v2432 = vrot.slane %v2197, 1
    %v2433 = vrot.slane %v2198, 1
    %v2434 = vsel %vm2361, %v2432, %v2433
    %v2435 = vrot.slane %v2247, 1
    %v2436 = vsel %vm2361, %v2433, %v2435
    %v2437 = vrot.slane %v2199, 1
    %v2438 = vrot.slane %v2200, 1
    %v2439 = vsel %vm2361, %v2437, %v2438
    %v2440 = vrot.slane %v2248, 1
    %v2441 = vsel %vm2361, %v2438, %v2440
    %v2442 = vrot.slane %v2201, 1
    %v2443 = vrot.slane %v2202, 1
    %v2444 = vsel %vm2361, %v2442, %v2443
    %v2445 = vrot.slane %v2249, 1
    %v2446 = vsel %vm2361, %v2443, %v2445
    %v2447 = vrot.slane %v2203, 1
    %v2448 = vrot.slane %v2204, 1
    %v2449 = vsel %vm2361, %v2447, %v2448
    %v2450 = vrot.slane %v2250, 1
    %v2451 = vsel %vm2361, %v2448, %v2450
    %v2452 = vrot.slane %v2205, 1
    %v2453 = vrot.slane %v2206, 1
    %v2454 = vsel %vm2361, %v2452, %v2453
    %v2455 = vrot.slane %v2251, 1
    %v2456 = vsel %vm2361, %v2453, %v2455
    %v2457 = vrot.slane %v2207, 1
    %v2458 = vrot.slane %v2208, 1
    %v2459 = vsel %vm2361, %v2457, %v2458
    %v2460 = vrot.slane %v2252, 1
    %v2461 = vsel %vm2361, %v2458, %v2460
    %v2462 = vrot.slane %v2209, 1
    %v2463 = vrot.slane %v2210, 1
    %v2464 = vsel %vm2361, %v2462, %v2463
    %v2465 = vrot.slane %v2253, 1
    %v2466 = vsel %vm2361, %v2463, %v2465
    %v2467 = vrot.slane %v2211, 1
    %v2468 = vrot.slane %v2212, 1
    %v2469 = vsel %vm2361, %v2467, %v2468
    %v2470 = vrot.slane %v2254, 1
    %v2471 = vsel %vm2361, %v2468, %v2470
    %v2472 = vrot.slane %v2213, 1
    %v2473 = vrot.slane %v2214, 1
    %v2474 = vsel %vm2361, %v2472, %v2473
    %v2475 = vrot.slane %v2255, 1
    %v2476 = vsel %vm2361, %v2473, %v2475
    %v2477 = vrot.slane %v2215, 1
    %v2478 = vrot.slane %v2216, 1
    %v2479 = vsel %vm2361, %v2477, %v2478
    %v2480 = vrot.slane %v2256, 1
    %v2481 = vsel %vm2361, %v2478, %v2480
    %v2482 = vrot.slane %v2217, 1
    %v2483 = vrot.slane %v2218, 1
    %v2484 = vsel %vm2361, %v2482, %v2483
    %v2485 = vrot.slane %v2257, 1
    %v2486 = vsel %vm2361, %v2483, %v2485
    %v2487 = vrot.slane %v2219, 1
    %v2488 = vrot.slane %v2220, 1
    %v2489 = vsel %vm2361, %v2487, %v2488
    %v2490 = vrot.slane %v2258, 1
    %v2491 = vsel %vm2361, %v2488, %v2490
    %v2492 = vrot.slane %v2221, 1
    %v2493 = vrot.slane %v2222, 1
    %v2494 = vsel %vm2361, %v2492, %v2493
    %v2495 = vrot.slane %v2259, 1
    %v2496 = vsel %vm2361, %v2493, %v2495
    %v2497 = vrot.slane %v2223, 1
    %v2498 = vrot.slane %v2224, 1
    %v2499 = vsel %vm2361, %v2497, %v2498
    %v2500 = vrot.slane %v2260, 1
    %v2501 = vsel %vm2361, %v2498, %v2500
    %v2502 = vrot.slane %v2225, 1
    %v2503 = vrot.slane %v2226, 1
    %v2504 = vsel %vm2361, %v2502, %v2503
    %v2505 = vrot.slane %v2261, 1
    %v2506 = vsel %vm2361, %v2503, %v2505
    %v2507 = vrot.slane %v2227, 1
    %v2508 = vrot.slane %v2228, 1
    %v2509 = vsel %vm2361, %v2507, %v2508
    %v2510 = vrot.slane %v2262, 1
    %v2511 = vsel %vm2361, %v2508, %v2510
    %v2512 = vrot.slane %v2229, 1
    %v2513 = vrot.slane %v2230, 1
    %v2514 = vsel %vm2361, %v2512, %v2513
    %v2515 = vrot.slane %v2263, 1
    %v2516 = vsel %vm2361, %v2513, %v2515
    %v2517 = vrot.slane %v2231, 1
    %v2518 = vrot.slane %v2232, 1
    %v2519 = vsel %vm2361, %v2517, %v2518
    %v2520 = vrot.slane %v2264, 1
    %v2521 = vsel %vm2361, %v2518, %v2520
    %v2586 = vmax.f32 %v2169, %v2364
    %v2587 = vmax.f32 %v2170, %v2366
    %v2588 = vmax.f32 %v2171, %v2369
    %v2589 = vmax.f32 %v2172, %v2371
    %v2590 = vmax.f32 %v2173, %v2374
    %v2591 = vmax.f32 %v2174, %v2376
    %v2592 = vmax.f32 %v2175, %v2379
    %v2593 = vmax.f32 %v2176, %v2381
    %v2594 = vmax.f32 %v2177, %v2384
    %v2595 = vmax.f32 %v2178, %v2386
    %v2596 = vmax.f32 %v2179, %v2389
    %v2597 = vmax.f32 %v2180, %v2391
    %v2598 = vmax.f32 %v2181, %v2394
    %v2599 = vmax.f32 %v2182, %v2396
    %v2600 = vmax.f32 %v2183, %v2399
    %v2601 = vmax.f32 %v2184, %v2401
    %v2602 = vmax.f32 %v2185, %v2404
    %v2603 = vmax.f32 %v2186, %v2406
    %v2604 = vmax.f32 %v2187, %v2409
    %v2605 = vmax.f32 %v2188, %v2411
    %v2606 = vmax.f32 %v2189, %v2414
    %v2607 = vmax.f32 %v2190, %v2416
    %v2608 = vmax.f32 %v2191, %v2419
    %v2609 = vmax.f32 %v2192, %v2421
    %v2610 = vmax.f32 %v2193, %v2424
    %v2611 = vmax.f32 %v2194, %v2426
    %v2612 = vmax.f32 %v2195, %v2429
    %v2613 = vmax.f32 %v2196, %v2431
    %v2614 = vmax.f32 %v2197, %v2434
    %v2615 = vmax.f32 %v2198, %v2436
    %v2616 = vmax.f32 %v2199, %v2439
    %v2617 = vmax.f32 %v2200, %v2441
    %v2618 = vmax.f32 %v2201, %v2444
    %v2619 = vmax.f32 %v2202, %v2446
    %v2620 = vmax.f32 %v2203, %v2449
    %v2621 = vmax.f32 %v2204, %v2451
    %v2622 = vmax.f32 %v2205, %v2454
    %v2623 = vmax.f32 %v2206, %v2456
    %v2624 = vmax.f32 %v2207, %v2459
    %v2625 = vmax.f32 %v2208, %v2461
    %v2626 = vmax.f32 %v2209, %v2464
    %v2627 = vmax.f32 %v2210, %v2466
    %v2628 = vmax.f32 %v2211, %v2469
    %v2629 = vmax.f32 %v2212, %v2471
    %v2630 = vmax.f32 %v2213, %v2474
    %v2631 = vmax.f32 %v2214, %v2476
    %v2632 = vmax.f32 %v2215, %v2479
    %v2633 = vmax.f32 %v2216, %v2481
    %v2634 = vmax.f32 %v2217, %v2484
    %v2635 = vmax.f32 %v2218, %v2486
    %v2636 = vmax.f32 %v2219, %v2489
    %v2637 = vmax.f32 %v2220, %v2491
    %v2638 = vmax.f32 %v2221, %v2494
    %v2639 = vmax.f32 %v2222, %v2496
    %v2640 = vmax.f32 %v2223, %v2499
    %v2641 = vmax.f32 %v2224, %v2501
    %v2642 = vmax.f32 %v2225, %v2504
    %v2643 = vmax.f32 %v2226, %v2506
    %v2644 = vmax.f32 %v2227, %v2509
    %v2645 = vmax.f32 %v2228, %v2511
    %v2646 = vmax.f32 %v2229, %v2514
    %v2647 = vmax.f32 %v2230, %v2516
    %v2648 = vmax.f32 %v2231, %v2519
    %v2649 = vmax.f32 %v2232, %v2521
    %v2650 = vpack.c.bf16 %v2587, %v2586
    %v2651 = vpack.c.bf16 %v2589, %v2588
    %v2652 = vpack.c.bf16 %v2591, %v2590
    %v2653 = vpack.c.bf16 %v2593, %v2592
    %v2654 = vpack.c.bf16 %v2595, %v2594
    %v2655 = vpack.c.bf16 %v2597, %v2596
    %v2656 = vpack.c.bf16 %v2599, %v2598
    %v2657 = vpack.c.bf16 %v2601, %v2600
    %v2658 = vpack.c.bf16 %v2603, %v2602
    %v2659 = vpack.c.bf16 %v2605, %v2604
    %v2660 = vpack.c.bf16 %v2607, %v2606
    %v2661 = vpack.c.bf16 %v2609, %v2608
    %v2662 = vpack.c.bf16 %v2611, %v2610
    %v2663 = vpack.c.bf16 %v2613, %v2612
    %v2664 = vpack.c.bf16 %v2615, %v2614
    %v2665 = vpack.c.bf16 %v2617, %v2616
    %v2666 = vpack.c.bf16 %v2619, %v2618
    %v2667 = vpack.c.bf16 %v2621, %v2620
    %v2668 = vpack.c.bf16 %v2623, %v2622
    %v2669 = vpack.c.bf16 %v2625, %v2624
    %v2670 = vpack.c.bf16 %v2627, %v2626
    %v2671 = vpack.c.bf16 %v2629, %v2628
    %v2672 = vpack.c.bf16 %v2631, %v2630
    %v2673 = vpack.c.bf16 %v2633, %v2632
    %v2674 = vpack.c.bf16 %v2635, %v2634
    %v2675 = vpack.c.bf16 %v2637, %v2636
    %v2676 = vpack.c.bf16 %v2639, %v2638
    %v2677 = vpack.c.bf16 %v2641, %v2640
    %v2678 = vpack.c.bf16 %v2643, %v2642
    %v2679 = vpack.c.bf16 %v2645, %v2644
    %v2680 = vpack.c.bf16 %v2647, %v2646
    %v2681 = vpack.c.bf16 %v2649, %v2648
    %v2682 = vld [vmem:[#allocation7] sm:$0xf]
    %v2683 = vld [vmem:[#allocation7 + $0x4] sm:$0xf]
    %v2684 = vld [vmem:[#allocation7 + $0x8] sm:$0xf]
    %v2685 = vld [vmem:[#allocation7 + $0xc] sm:$0xf]
    %v2690 = vunpack.c.l.b16 %v2682
    %v2691 = vunpack.c.l.b16 %v2683
    %v2692 = vunpack.c.l.b16 %v2684
    %v2693 = vunpack.c.l.b16 %v2685
    %v2694 = vpack.c.b16 %v2691, %v2690
    %v2695 = vpack.c.b16 %v2693, %v2692
    %v2699 = vsel %vm452, %v2650, 0
    %v2702 = vsel %vm452, %v2651, 0
    %v2705 = vsel %vm452, %v2652, 0
    %v2708 = vsel %vm452, %v2653, 0
    %v2711 = vsel %vm452, %v2654, 0
    %v2714 = vsel %vm452, %v2655, 0
    %v2717 = vsel %vm452, %v2656, 0
    %v2720 = vsel %vm452, %v2657, 0
    %v2723 = vsel %vm452, %v2658, 0
    %v2726 = vsel %vm452, %v2659, 0
    %v2729 = vsel %vm452, %v2660, 0
    %v2732 = vsel %vm452, %v2661, 0
    %v2735 = vsel %vm452, %v2662, 0
    %v2738 = vsel %vm452, %v2663, 0
    %v2741 = vsel %vm452, %v2664, 0
    %v2744 = vsel %vm452, %v2665, 0
    %v2747 = vsel %vm452, %v2666, 0
    %v2750 = vsel %vm452, %v2667, 0
    %v2753 = vsel %vm452, %v2668, 0
    %v2756 = vsel %vm452, %v2669, 0
    %v2759 = vsel %vm452, %v2670, 0
    %v2762 = vsel %vm452, %v2671, 0
    %v2765 = vsel %vm452, %v2672, 0
    %v2768 = vsel %vm452, %v2673, 0
    %v2771 = vsel %vm452, %v2674, 0
    %v2774 = vsel %vm452, %v2675, 0
    %v2777 = vsel %vm452, %v2676, 0
    %v2780 = vsel %vm452, %v2677, 0
    %v2783 = vsel %vm452, %v2678, 0
    %v2786 = vsel %vm452, %v2679, 0
    %v2789 = vsel %vm452, %v2680, 0
    %v2792 = vsel %vm452, %v2681, 0
    %2794 = vmatpush.bf16.msra.mxu0 0
    %2795 = vmatpush.bf16.msra.mxu0 0
    %2796 = vmatpush.bf16.msra.mxu0 0
    %2797 = vmatpush.bf16.msra.mxu0 0
    %2798 = vmatpush.bf16.msra.mxu0 0
    %2799 = vmatpush.bf16.msra.mxu0 0
    %2800 = vmatpush.bf16.msra.mxu0 %v2695
    %2801 = vmatpush.bf16.msra.mxu0 %v2694
    %2802 = vmatmul.bf16.gmra.mxu0 %v2699
    %v2803 = vpop.f32.mrf.mxu0
    %v2804 = vadd.f32 0.0, %v2803
    %v2805 = vpop.f32.mrf.mxu0
    %v2806 = vadd.f32 0.0, %v2805
    %2807 = vmatmul.bf16.gmra.mxu0 %v2702
    %v2808 = vpop.f32.mrf.mxu0
    %v2809 = vadd.f32 0.0, %v2808
    %v2810 = vpop.f32.mrf.mxu0
    %v2811 = vadd.f32 0.0, %v2810
    %2812 = vmatmul.bf16.gmra.mxu0 %v2705
    %v2813 = vpop.f32.mrf.mxu0
    %v2814 = vadd.f32 0.0, %v2813
    %v2815 = vpop.f32.mrf.mxu0
    %v2816 = vadd.f32 0.0, %v2815
    %2817 = vmatmul.bf16.gmra.mxu0 %v2708
    %v2818 = vpop.f32.mrf.mxu0
    %v2819 = vadd.f32 0.0, %v2818
    %v2820 = vpop.f32.mrf.mxu0
    %v2821 = vadd.f32 0.0, %v2820
    %2822 = vmatmul.bf16.gmra.mxu0 %v2711
    %v2823 = vpop.f32.mrf.mxu0
    %v2824 = vadd.f32 0.0, %v2823
    %v2825 = vpop.f32.mrf.mxu0
    %v2826 = vadd.f32 0.0, %v2825
    %2827 = vmatmul.bf16.gmra.mxu0 %v2714
    %v2828 = vpop.f32.mrf.mxu0
    %v2829 = vadd.f32 0.0, %v2828
    %v2830 = vpop.f32.mrf.mxu0
    %v2831 = vadd.f32 0.0, %v2830
    %2832 = vmatmul.bf16.gmra.mxu0 %v2717
    %v2833 = vpop.f32.mrf.mxu0
    %v2834 = vadd.f32 0.0, %v2833
    %v2835 = vpop.f32.mrf.mxu0
    %v2836 = vadd.f32 0.0, %v2835
    %2837 = vmatmul.bf16.gmra.mxu0 %v2720
    %v2838 = vpop.f32.mrf.mxu0
    %v2839 = vadd.f32 0.0, %v2838
    %v2840 = vpop.f32.mrf.mxu0
    %v2841 = vadd.f32 0.0, %v2840
    %2842 = vmatmul.bf16.gmra.mxu0 %v2723
    %v2843 = vpop.f32.mrf.mxu0
    %v2844 = vadd.f32 0.0, %v2843
    %v2845 = vpop.f32.mrf.mxu0
    %v2846 = vadd.f32 0.0, %v2845
    %2847 = vmatmul.bf16.gmra.mxu0 %v2726
    %v2848 = vpop.f32.mrf.mxu0
    %v2849 = vadd.f32 0.0, %v2848
    %v2850 = vpop.f32.mrf.mxu0
    %v2851 = vadd.f32 0.0, %v2850
    %2852 = vmatmul.bf16.gmra.mxu0 %v2729
    %v2853 = vpop.f32.mrf.mxu0
    %v2854 = vadd.f32 0.0, %v2853
    %v2855 = vpop.f32.mrf.mxu0
    %v2856 = vadd.f32 0.0, %v2855
    %2857 = vmatmul.bf16.gmra.mxu0 %v2732
    %v2858 = vpop.f32.mrf.mxu0
    %v2859 = vadd.f32 0.0, %v2858
    %v2860 = vpop.f32.mrf.mxu0
    %v2861 = vadd.f32 0.0, %v2860
    %2862 = vmatmul.bf16.gmra.mxu0 %v2735
    %v2863 = vpop.f32.mrf.mxu0
    %v2864 = vadd.f32 0.0, %v2863
    %v2865 = vpop.f32.mrf.mxu0
    %v2866 = vadd.f32 0.0, %v2865
    %2867 = vmatmul.bf16.gmra.mxu0 %v2738
    %v2868 = vpop.f32.mrf.mxu0
    %v2869 = vadd.f32 0.0, %v2868
    %v2870 = vpop.f32.mrf.mxu0
    %v2871 = vadd.f32 0.0, %v2870
    %2872 = vmatmul.bf16.gmra.mxu0 %v2741
    %v2873 = vpop.f32.mrf.mxu0
    %v2874 = vadd.f32 0.0, %v2873
    %v2875 = vpop.f32.mrf.mxu0
    %v2876 = vadd.f32 0.0, %v2875
    %2877 = vmatmul.bf16.gmra.mxu0 %v2744
    %v2878 = vpop.f32.mrf.mxu0
    %v2879 = vadd.f32 0.0, %v2878
    %v2880 = vpop.f32.mrf.mxu0
    %v2881 = vadd.f32 0.0, %v2880
    %2882 = vmatmul.bf16.gmra.mxu0 %v2747
    %v2883 = vpop.f32.mrf.mxu0
    %v2884 = vadd.f32 0.0, %v2883
    %v2885 = vpop.f32.mrf.mxu0
    %v2886 = vadd.f32 0.0, %v2885
    %2887 = vmatmul.bf16.gmra.mxu0 %v2750
    %v2888 = vpop.f32.mrf.mxu0
    %v2889 = vadd.f32 0.0, %v2888
    %v2890 = vpop.f32.mrf.mxu0
    %v2891 = vadd.f32 0.0, %v2890
    %2892 = vmatmul.bf16.gmra.mxu0 %v2753
    %v2893 = vpop.f32.mrf.mxu0
    %v2894 = vadd.f32 0.0, %v2893
    %v2895 = vpop.f32.mrf.mxu0
    %v2896 = vadd.f32 0.0, %v2895
    %2897 = vmatmul.bf16.gmra.mxu0 %v2756
    %v2898 = vpop.f32.mrf.mxu0
    %v2899 = vadd.f32 0.0, %v2898
    %v2900 = vpop.f32.mrf.mxu0
    %v2901 = vadd.f32 0.0, %v2900
    %2902 = vmatmul.bf16.gmra.mxu0 %v2759
    %v2903 = vpop.f32.mrf.mxu0
    %v2904 = vadd.f32 0.0, %v2903
    %v2905 = vpop.f32.mrf.mxu0
    %v2906 = vadd.f32 0.0, %v2905
    %2907 = vmatmul.bf16.gmra.mxu0 %v2762
    %v2908 = vpop.f32.mrf.mxu0
    %v2909 = vadd.f32 0.0, %v2908
    %v2910 = vpop.f32.mrf.mxu0
    %v2911 = vadd.f32 0.0, %v2910
    %2912 = vmatmul.bf16.gmra.mxu0 %v2765
    %v2913 = vpop.f32.mrf.mxu0
    %v2914 = vadd.f32 0.0, %v2913
    %v2915 = vpop.f32.mrf.mxu0
    %v2916 = vadd.f32 0.0, %v2915
    %2917 = vmatmul.bf16.gmra.mxu0 %v2768
    %v2918 = vpop.f32.mrf.mxu0
    %v2919 = vadd.f32 0.0, %v2918
    %v2920 = vpop.f32.mrf.mxu0
    %v2921 = vadd.f32 0.0, %v2920
    %2922 = vmatmul.bf16.gmra.mxu0 %v2771
    %v2923 = vpop.f32.mrf.mxu0
    %v2924 = vadd.f32 0.0, %v2923
    %v2925 = vpop.f32.mrf.mxu0
    %v2926 = vadd.f32 0.0, %v2925
    %2927 = vmatmul.bf16.gmra.mxu0 %v2774
    %v2928 = vpop.f32.mrf.mxu0
    %v2929 = vadd.f32 0.0, %v2928
    %v2930 = vpop.f32.mrf.mxu0
    %v2931 = vadd.f32 0.0, %v2930
    %2932 = vmatmul.bf16.gmra.mxu0 %v2777
    %v2933 = vpop.f32.mrf.mxu0
    %v2934 = vadd.f32 0.0, %v2933
    %v2935 = vpop.f32.mrf.mxu0
    %v2936 = vadd.f32 0.0, %v2935
    %2937 = vmatmul.bf16.gmra.mxu0 %v2780
    %v2938 = vpop.f32.mrf.mxu0
    %v2939 = vadd.f32 0.0, %v2938
    %v2940 = vpop.f32.mrf.mxu0
    %v2941 = vadd.f32 0.0, %v2940
    %2942 = vmatmul.bf16.gmra.mxu0 %v2783
    %v2943 = vpop.f32.mrf.mxu0
    %v2944 = vadd.f32 0.0, %v2943
    %v2945 = vpop.f32.mrf.mxu0
    %v2946 = vadd.f32 0.0, %v2945
    %2947 = vmatmul.bf16.gmra.mxu0 %v2786
    %v2948 = vpop.f32.mrf.mxu0
    %v2949 = vadd.f32 0.0, %v2948
    %v2950 = vpop.f32.mrf.mxu0
    %v2951 = vadd.f32 0.0, %v2950
    %2952 = vmatmul.bf16.gmra.mxu0 %v2789
    %v2953 = vpop.f32.mrf.mxu0
    %v2954 = vadd.f32 0.0, %v2953
    %v2955 = vpop.f32.mrf.mxu0
    %v2956 = vadd.f32 0.0, %v2955
    %2957 = vmatmul.bf16.gmra.mxu0 %v2792
    %v2958 = vpop.f32.mrf.mxu0
    %v2959 = vadd.f32 0.0, %v2958
    %v2960 = vpop.f32.mrf.mxu0
    %v2961 = vadd.f32 0.0, %v2960
    %2962 = vdwg.mxu0
    %v2963 = vld [vmem:[#allocation8] sm:$0x1]
    %v2965 = vperm.slane %v2963, 0
    %2967 = vst.msk [vmem:[#allocation2] sm:$0xff] %vm452, %v2965
    %2968 = vst.msk [vmem:[#allocation2 + $0x8] sm:$0xff] %vm452, %v2965
    %2969 = vst.msk [vmem:[#allocation2 + $0x10] sm:$0x1] %vm455, %v2965
    %2970 = vst.msk [vmem:[#allocation2 + $0x18] sm:$0xff] %vm452, %v2965
    %2971 = vst.msk [vmem:[#allocation2 + $0x20] sm:$0xff] %vm452, %v2965
    %2972 = vst.msk [vmem:[#allocation2 + $0x28] sm:$0x1] %vm455, %v2965
    %2973 = vst.msk [vmem:[#allocation2 + $0x30] sm:$0xff] %vm452, %v2965
    %2974 = vst.msk [vmem:[#allocation2 + $0x38] sm:$0xff] %vm452, %v2965
    %2975 = vst.msk [vmem:[#allocation2 + $0x40] sm:$0x1] %vm455, %v2965
    %2976 = vst.msk [vmem:[#allocation2 + $0x48] sm:$0xff] %vm452, %v2965
    %2977 = vst.msk [vmem:[#allocation2 + $0x50] sm:$0xff] %vm452, %v2965
    %2978 = vst.msk [vmem:[#allocation2 + $0x58] sm:$0x1] %vm455, %v2965
    %2979 = vst.msk [vmem:[#allocation2 + $0x60] sm:$0xff] %vm452, %v2965
    %2980 = vst.msk [vmem:[#allocation2 + $0x68] sm:$0xff] %vm452, %v2965
    %2981 = vst.msk [vmem:[#allocation2 + $0x70] sm:$0x1] %vm455, %v2965
    %2982 = vst.msk [vmem:[#allocation2 + $0x78] sm:$0xff] %vm452, %v2965
    %2983 = vst.msk [vmem:[#allocation2 + $0x80] sm:$0xff] %vm452, %v2965
    %2984 = vst.msk [vmem:[#allocation2 + $0x88] sm:$0x1] %vm455, %v2965
    %2985 = vst.msk [vmem:[#allocation2 + $0x90] sm:$0xff] %vm452, %v2965
    %2986 = vst.msk [vmem:[#allocation2 + $0x98] sm:$0xff] %vm452, %v2965
    %2987 = vst.msk [vmem:[#allocation2 + $0xa0] sm:$0x1] %vm455, %v2965
    %2988 = vst.msk [vmem:[#allocation2 + $0xa8] sm:$0xff] %vm452, %v2965
    %2989 = vst.msk [vmem:[#allocation2 + $0xb0] sm:$0xff] %vm452, %v2965
    %2990 = vst.msk [vmem:[#allocation2 + $0xb8] sm:$0x1] %vm455, %v2965
    %2991 = vst.msk [vmem:[#allocation2 + $0xc0] sm:$0xff] %vm452, %v2965
    %2992 = vst.msk [vmem:[#allocation2 + $0xc8] sm:$0xff] %vm452, %v2965
    %2993 = vst.msk [vmem:[#allocation2 + $0xd0] sm:$0x1] %vm455, %v2965
    %2994 = vst.msk [vmem:[#allocation2 + $0xd8] sm:$0xff] %vm452, %v2965
    %2995 = vst.msk [vmem:[#allocation2 + $0xe0] sm:$0xff] %vm452, %v2965
    %2996 = vst.msk [vmem:[#allocation2 + $0xe8] sm:$0x1] %vm455, %v2965
    %2997 = vst.msk [vmem:[#allocation2 + $0xf0] sm:$0xff] %vm452, %v2965
    %2998 = vst.msk [vmem:[#allocation2 + $0xf8] sm:$0xff] %vm452, %v2965
    %2999 = vst.msk [vmem:[#allocation2 + $0x100] sm:$0x1] %vm455, %v2965
    %3000 = vst.msk [vmem:[#allocation2 + $0x108] sm:$0xff] %vm452, %v2965
    %3001 = vst.msk [vmem:[#allocation2 + $0x110] sm:$0xff] %vm452, %v2965
    %3002 = vst.msk [vmem:[#allocation2 + $0x118] sm:$0x1] %vm455, %v2965
    %3003 = vst.msk [vmem:[#allocation2 + $0x120] sm:$0xff] %vm452, %v2965
    %3004 = vst.msk [vmem:[#allocation2 + $0x128] sm:$0xff] %vm452, %v2965
    %3005 = vst.msk [vmem:[#allocation2 + $0x130] sm:$0x1] %vm455, %v2965
    %3006 = vst.msk [vmem:[#allocation2 + $0x138] sm:$0xff] %vm452, %v2965
    %3007 = vst.msk [vmem:[#allocation2 + $0x140] sm:$0xff] %vm452, %v2965
    %3008 = vst.msk [vmem:[#allocation2 + $0x148] sm:$0x1] %vm455, %v2965
    %3009 = vst.msk [vmem:[#allocation2 + $0x150] sm:$0xff] %vm452, %v2965
    %3010 = vst.msk [vmem:[#allocation2 + $0x158] sm:$0xff] %vm452, %v2965
    %3011 = vst.msk [vmem:[#allocation2 + $0x160] sm:$0x1] %vm455, %v2965
    %3012 = vst.msk [vmem:[#allocation2 + $0x168] sm:$0xff] %vm452, %v2965
    %3013 = vst.msk [vmem:[#allocation2 + $0x170] sm:$0xff] %vm452, %v2965
    %3014 = vst.msk [vmem:[#allocation2 + $0x178] sm:$0x1] %vm455, %v2965
    %3015 = vst.msk [vmem:[#allocation2 + $0x180] sm:$0xff] %vm452, %v2965
    %3016 = vst.msk [vmem:[#allocation2 + $0x188] sm:$0xff] %vm452, %v2965
    %3017 = vst.msk [vmem:[#allocation2 + $0x190] sm:$0x1] %vm455, %v2965
    %3018 = vst.msk [vmem:[#allocation2 + $0x198] sm:$0xff] %vm452, %v2965
    %3019 = vst.msk [vmem:[#allocation2 + $0x1a0] sm:$0xff] %vm452, %v2965
    %3020 = vst.msk [vmem:[#allocation2 + $0x1a8] sm:$0x1] %vm455, %v2965
    %3021 = vst.msk [vmem:[#allocation2 + $0x1b0] sm:$0xff] %vm452, %v2965
    %3022 = vst.msk [vmem:[#allocation2 + $0x1b8] sm:$0xff] %vm452, %v2965
    %3023 = vst.msk [vmem:[#allocation2 + $0x1c0] sm:$0x1] %vm455, %v2965
    %3024 = vst.msk [vmem:[#allocation2 + $0x1c8] sm:$0xff] %vm452, %v2965
    %3025 = vst.msk [vmem:[#allocation2 + $0x1d0] sm:$0xff] %vm452, %v2965
    %3026 = vst.msk [vmem:[#allocation2 + $0x1d8] sm:$0x1] %vm455, %v2965
    %3027 = vst.msk [vmem:[#allocation2 + $0x1e0] sm:$0xff] %vm452, %v2965
    %3028 = vst.msk [vmem:[#allocation2 + $0x1e8] sm:$0xff] %vm452, %v2965
    %3029 = vst.msk [vmem:[#allocation2 + $0x1f0] sm:$0x1] %vm455, %v2965
    %3030 = vst.msk [vmem:[#allocation2 + $0x1f8] sm:$0xff] %vm452, %v2965
    %3031 = vst.msk [vmem:[#allocation2 + $0x200] sm:$0xff] %vm452, %v2965
    %3032 = vst.msk [vmem:[#allocation2 + $0x208] sm:$0x1] %vm455, %v2965
    %3033 = vst.msk [vmem:[#allocation2 + $0x210] sm:$0xff] %vm452, %v2965
    %3034 = vst.msk [vmem:[#allocation2 + $0x218] sm:$0xff] %vm452, %v2965
    %3035 = vst.msk [vmem:[#allocation2 + $0x220] sm:$0x1] %vm455, %v2965
    %3036 = vst.msk [vmem:[#allocation2 + $0x228] sm:$0xff] %vm452, %v2965
    %3037 = vst.msk [vmem:[#allocation2 + $0x230] sm:$0xff] %vm452, %v2965
    %3038 = vst.msk [vmem:[#allocation2 + $0x238] sm:$0x1] %vm455, %v2965
    %3039 = vst.msk [vmem:[#allocation2 + $0x240] sm:$0xff] %vm452, %v2965
    %3040 = vst.msk [vmem:[#allocation2 + $0x248] sm:$0xff] %vm452, %v2965
    %3041 = vst.msk [vmem:[#allocation2 + $0x250] sm:$0x1] %vm455, %v2965
    %3042 = vst.msk [vmem:[#allocation2 + $0x258] sm:$0xff] %vm452, %v2965
    %3043 = vst.msk [vmem:[#allocation2 + $0x260] sm:$0xff] %vm452, %v2965
    %3044 = vst.msk [vmem:[#allocation2 + $0x268] sm:$0x1] %vm455, %v2965
    %3045 = vst.msk [vmem:[#allocation2 + $0x270] sm:$0xff] %vm452, %v2965
    %3046 = vst.msk [vmem:[#allocation2 + $0x278] sm:$0xff] %vm452, %v2965
    %3047 = vst.msk [vmem:[#allocation2 + $0x280] sm:$0x1] %vm455, %v2965
    %3048 = vst.msk [vmem:[#allocation2 + $0x288] sm:$0xff] %vm452, %v2965
    %3049 = vst.msk [vmem:[#allocation2 + $0x290] sm:$0xff] %vm452, %v2965
    %3050 = vst.msk [vmem:[#allocation2 + $0x298] sm:$0x1] %vm455, %v2965
    %3051 = vst.msk [vmem:[#allocation2 + $0x2a0] sm:$0xff] %vm452, %v2965
    %3052 = vst.msk [vmem:[#allocation2 + $0x2a8] sm:$0xff] %vm452, %v2965
    %3053 = vst.msk [vmem:[#allocation2 + $0x2b0] sm:$0x1] %vm455, %v2965
    %3054 = vst.msk [vmem:[#allocation2 + $0x2b8] sm:$0xff] %vm452, %v2965
    %3055 = vst.msk [vmem:[#allocation2 + $0x2c0] sm:$0xff] %vm452, %v2965
    %3056 = vst.msk [vmem:[#allocation2 + $0x2c8] sm:$0x1] %vm455, %v2965
    %3057 = vst.msk [vmem:[#allocation2 + $0x2d0] sm:$0xff] %vm452, %v2965
    %3058 = vst.msk [vmem:[#allocation2 + $0x2d8] sm:$0xff] %vm452, %v2965
    %3059 = vst.msk [vmem:[#allocation2 + $0x2e0] sm:$0x1] %vm455, %v2965
    %3060 = vst.msk [vmem:[#allocation2 + $0x2e8] sm:$0xff] %vm452, %v2965
    %3061 = vst.msk [vmem:[#allocation2 + $0x2f0] sm:$0xff] %vm452, %v2965
    %3062 = vst.msk [vmem:[#allocation2 + $0x2f8] sm:$0x1] %vm455, %v2965
    %3063 = vst.msk [vmem:[#allocation2 + $0x300] sm:$0xff] %vm452, %v2965
    %3064 = vst.msk [vmem:[#allocation2 + $0x308] sm:$0xff] %vm452, %v2965
    %3065 = vst.msk [vmem:[#allocation2 + $0x310] sm:$0x1] %vm455, %v2965
    %3066 = vst.msk [vmem:[#allocation2 + $0x318] sm:$0xff] %vm452, %v2965
    %3067 = vst.msk [vmem:[#allocation2 + $0x320] sm:$0xff] %vm452, %v2965
    %3068 = vst.msk [vmem:[#allocation2 + $0x328] sm:$0x1] %vm455, %v2965
    %v3069 = vld [vmem:[%s556 + $0x1] sm:$0xff]
    %v3070 = vld [vmem:[%s556 + $0x9] sm:$0xff]
    %v3071 = vld [vmem:[%s556 + $0x19] sm:$0xff]
    %v3072 = vld [vmem:[%s556 + $0x21] sm:$0xff]
    %v3073 = vld [vmem:[%s556 + $0x31] sm:$0xff]
    %v3074 = vld [vmem:[%s556 + $0x39] sm:$0xff]
    %v3075 = vld [vmem:[%s556 + $0x49] sm:$0xff]
    %v3076 = vld [vmem:[%s556 + $0x51] sm:$0xff]
    %v3077 = vld [vmem:[%s556 + $0x61] sm:$0xff]
    %v3078 = vld [vmem:[%s556 + $0x69] sm:$0xff]
    %v3079 = vld [vmem:[%s556 + $0x79] sm:$0xff]
    %v3080 = vld [vmem:[%s556 + $0x81] sm:$0xff]
    %v3081 = vld [vmem:[%s556 + $0x91] sm:$0xff]
    %v3082 = vld [vmem:[%s556 + $0x99] sm:$0xff]
    %v3083 = vld [vmem:[%s556 + $0xa9] sm:$0xff]
    %v3084 = vld [vmem:[%s556 + $0xb1] sm:$0xff]
    %v3085 = vld [vmem:[%s556 + $0xc1] sm:$0xff]
    %v3086 = vld [vmem:[%s556 + $0xc9] sm:$0xff]
    %v3087 = vld [vmem:[%s556 + $0xd9] sm:$0xff]
    %v3088 = vld [vmem:[%s556 + $0xe1] sm:$0xff]
    %v3089 = vld [vmem:[%s556 + $0xf1] sm:$0xff]
    %v3090 = vld [vmem:[%s556 + $0xf9] sm:$0xff]
    %v3091 = vld [vmem:[%s556 + $0x109] sm:$0xff]
    %v3092 = vld [vmem:[%s556 + $0x111] sm:$0xff]
    %v3093 = vld [vmem:[%s556 + $0x121] sm:$0xff]
    %v3094 = vld [vmem:[%s556 + $0x129] sm:$0xff]
    %v3095 = vld [vmem:[%s556 + $0x139] sm:$0xff]
    %v3096 = vld [vmem:[%s556 + $0x141] sm:$0xff]
    %v3097 = vld [vmem:[%s556 + $0x151] sm:$0xff]
    %v3098 = vld [vmem:[%s556 + $0x159] sm:$0xff]
    %v3099 = vld [vmem:[%s556 + $0x169] sm:$0xff]
    %v3100 = vld [vmem:[%s556 + $0x171] sm:$0xff]
    %v3101 = vld [vmem:[%s556 + $0x199] sm:$0xff]
    %v3102 = vld [vmem:[%s556 + $0x1a1] sm:$0xff]
    %v3103 = vld [vmem:[%s556 + $0x1b1] sm:$0xff]
    %v3104 = vld [vmem:[%s556 + $0x1b9] sm:$0xff]
    %v3105 = vld [vmem:[%s556 + $0x1c9] sm:$0xff]
    %v3106 = vld [vmem:[%s556 + $0x1d1] sm:$0xff]
    %v3107 = vld [vmem:[%s556 + $0x1e1] sm:$0xff]
    %v3108 = vld [vmem:[%s556 + $0x1e9] sm:$0xff]
    %v3109 = vld [vmem:[%s556 + $0x1f9] sm:$0xff]
    %v3110 = vld [vmem:[%s556 + $0x201] sm:$0xff]
    %v3111 = vld [vmem:[%s556 + $0x211] sm:$0xff]
    %v3112 = vld [vmem:[%s556 + $0x219] sm:$0xff]
    %v3113 = vld [vmem:[%s556 + $0x229] sm:$0xff]
    %v3114 = vld [vmem:[%s556 + $0x231] sm:$0xff]
    %v3115 = vld [vmem:[%s556 + $0x241] sm:$0xff]
    %v3116 = vld [vmem:[%s556 + $0x249] sm:$0xff]
    %v3117 = vld [vmem:[%s556 + $0x259] sm:$0xff]
    %v3118 = vld [vmem:[%s556 + $0x261] sm:$0xff]
    %v3119 = vld [vmem:[%s556 + $0x271] sm:$0xff]
    %v3120 = vld [vmem:[%s556 + $0x279] sm:$0xff]
    %v3121 = vld [vmem:[%s556 + $0x289] sm:$0xff]
    %v3122 = vld [vmem:[%s556 + $0x291] sm:$0xff]
    %v3123 = vld [vmem:[%s556 + $0x2a1] sm:$0xff]
    %v3124 = vld [vmem:[%s556 + $0x2a9] sm:$0xff]
    %v3125 = vld [vmem:[%s556 + $0x2b9] sm:$0xff]
    %v3126 = vld [vmem:[%s556 + $0x2c1] sm:$0xff]
    %v3127 = vld [vmem:[%s556 + $0x2d1] sm:$0xff]
    %v3128 = vld [vmem:[%s556 + $0x2d9] sm:$0xff]
    %v3129 = vld [vmem:[%s556 + $0x2e9] sm:$0xff]
    %v3130 = vld [vmem:[%s556 + $0x2f1] sm:$0xff]
    %v3131 = vld [vmem:[%s556 + $0x301] sm:$0xff]
    %v3132 = vld [vmem:[%s556 + $0x309] sm:$0xff]
    %v3133 = vadd.f32 %v3069, %v2804
    %v3134 = vadd.f32 %v3070, %v2806
    %v3135 = vadd.f32 %v3071, %v2809
    %v3136 = vadd.f32 %v3072, %v2811
    %v3137 = vadd.f32 %v3073, %v2814
    %v3138 = vadd.f32 %v3074, %v2816
    %v3139 = vadd.f32 %v3075, %v2819
    %v3140 = vadd.f32 %v3076, %v2821
    %v3141 = vadd.f32 %v3077, %v2824
    %v3142 = vadd.f32 %v3078, %v2826
    %v3143 = vadd.f32 %v3079, %v2829
    %v3144 = vadd.f32 %v3080, %v2831
    %v3145 = vadd.f32 %v3081, %v2834
    %v3146 = vadd.f32 %v3082, %v2836
    %v3147 = vadd.f32 %v3083, %v2839
    %v3148 = vadd.f32 %v3084, %v2841
    %v3149 = vadd.f32 %v3085, %v2844
    %v3150 = vadd.f32 %v3086, %v2846
    %v3151 = vadd.f32 %v3087, %v2849
    %v3152 = vadd.f32 %v3088, %v2851
    %v3153 = vadd.f32 %v3089, %v2854
    %v3154 = vadd.f32 %v3090, %v2856
    %v3155 = vadd.f32 %v3091, %v2859
    %v3156 = vadd.f32 %v3092, %v2861
    %v3157 = vadd.f32 %v3093, %v2864
    %v3158 = vadd.f32 %v3094, %v2866
    %v3159 = vadd.f32 %v3095, %v2869
    %v3160 = vadd.f32 %v3096, %v2871
    %v3161 = vadd.f32 %v3097, %v2874
    %v3162 = vadd.f32 %v3098, %v2876
    %v3163 = vadd.f32 %v3099, %v2879
    %v3164 = vadd.f32 %v3100, %v2881
    %v3165 = vadd.f32 %v3101, %v2884
    %v3166 = vadd.f32 %v3102, %v2886
    %v3167 = vadd.f32 %v3103, %v2889
    %v3168 = vadd.f32 %v3104, %v2891
    %v3169 = vadd.f32 %v3105, %v2894
    %v3170 = vadd.f32 %v3106, %v2896
    %v3171 = vadd.f32 %v3107, %v2899
    %v3172 = vadd.f32 %v3108, %v2901
    %v3173 = vadd.f32 %v3109, %v2904
    %v3174 = vadd.f32 %v3110, %v2906
    %v3175 = vadd.f32 %v3111, %v2909
    %v3176 = vadd.f32 %v3112, %v2911
    %v3177 = vadd.f32 %v3113, %v2914
    %v3178 = vadd.f32 %v3114, %v2916
    %v3179 = vadd.f32 %v3115, %v2919
    %v3180 = vadd.f32 %v3116, %v2921
    %v3181 = vadd.f32 %v3117, %v2924
    %v3182 = vadd.f32 %v3118, %v2926
    %v3183 = vadd.f32 %v3119, %v2929
    %v3184 = vadd.f32 %v3120, %v2931
    %v3185 = vadd.f32 %v3121, %v2934
    %v3186 = vadd.f32 %v3122, %v2936
    %v3187 = vadd.f32 %v3123, %v2939
    %v3188 = vadd.f32 %v3124, %v2941
    %v3189 = vadd.f32 %v3125, %v2944
    %v3190 = vadd.f32 %v3126, %v2946
    %v3191 = vadd.f32 %v3127, %v2949
    %v3192 = vadd.f32 %v3128, %v2951
    %v3193 = vadd.f32 %v3129, %v2954
    %v3194 = vadd.f32 %v3130, %v2956
    %v3195 = vadd.f32 %v3131, %v2959
    %v3196 = vadd.f32 %v3132, %v2961
    %3197 = vst.msk [vmem:[%s556 + $0x1] sm:$0xff] %vm452, %v3133
    %3198 = vst.msk [vmem:[%s556 + $0x9] sm:$0xff] %vm452, %v3134
    %3199 = vst.msk [vmem:[%s556 + $0x19] sm:$0xff] %vm452, %v3135
    %3200 = vst.msk [vmem:[%s556 + $0x21] sm:$0xff] %vm452, %v3136
    %3201 = vst.msk [vmem:[%s556 + $0x31] sm:$0xff] %vm452, %v3137
    %3202 = vst.msk [vmem:[%s556 + $0x39] sm:$0xff] %vm452, %v3138
    %3203 = vst.msk [vmem:[%s556 + $0x49] sm:$0xff] %vm452, %v3139
    %3204 = vst.msk [vmem:[%s556 + $0x51] sm:$0xff] %vm452, %v3140
    %3205 = vst.msk [vmem:[%s556 + $0x61] sm:$0xff] %vm452, %v3141
    %3206 = vst.msk [vmem:[%s556 + $0x69] sm:$0xff] %vm452, %v3142
    %3207 = vst.msk [vmem:[%s556 + $0x79] sm:$0xff] %vm452, %v3143
    %3208 = vst.msk [vmem:[%s556 + $0x81] sm:$0xff] %vm452, %v3144
    %3209 = vst.msk [vmem:[%s556 + $0x91] sm:$0xff] %vm452, %v3145
    %3210 = vst.msk [vmem:[%s556 + $0x99] sm:$0xff] %vm452, %v3146
    %3211 = vst.msk [vmem:[%s556 + $0xa9] sm:$0xff] %vm452, %v3147
    %3212 = vst.msk [vmem:[%s556 + $0xb1] sm:$0xff] %vm452, %v3148
    %3213 = vst.msk [vmem:[%s556 + $0xc1] sm:$0xff] %vm452, %v3149
    %3214 = vst.msk [vmem:[%s556 + $0xc9] sm:$0xff] %vm452, %v3150
    %3215 = vst.msk [vmem:[%s556 + $0xd9] sm:$0xff] %vm452, %v3151
    %3216 = vst.msk [vmem:[%s556 + $0xe1] sm:$0xff] %vm452, %v3152
    %3217 = vst.msk [vmem:[%s556 + $0xf1] sm:$0xff] %vm452, %v3153
    %3218 = vst.msk [vmem:[%s556 + $0xf9] sm:$0xff] %vm452, %v3154
    %3219 = vst.msk [vmem:[%s556 + $0x109] sm:$0xff] %vm452, %v3155
    %3220 = vst.msk [vmem:[%s556 + $0x111] sm:$0xff] %vm452, %v3156
    %3221 = vst.msk [vmem:[%s556 + $0x121] sm:$0xff] %vm452, %v3157
    %3222 = vst.msk [vmem:[%s556 + $0x129] sm:$0xff] %vm452, %v3158
    %3223 = vst.msk [vmem:[%s556 + $0x139] sm:$0xff] %vm452, %v3159
    %3224 = vst.msk [vmem:[%s556 + $0x141] sm:$0xff] %vm452, %v3160
    %3225 = vst.msk [vmem:[%s556 + $0x151] sm:$0xff] %vm452, %v3161
    %3226 = vst.msk [vmem:[%s556 + $0x159] sm:$0xff] %vm452, %v3162
    %3227 = vst.msk [vmem:[%s556 + $0x169] sm:$0xff] %vm452, %v3163
    %3228 = vst.msk [vmem:[%s556 + $0x171] sm:$0xff] %vm452, %v3164
    %3229 = vst.msk [vmem:[%s556 + $0x199] sm:$0xff] %vm452, %v3165
    %3230 = vst.msk [vmem:[%s556 + $0x1a1] sm:$0xff] %vm452, %v3166
    %3231 = vst.msk [vmem:[%s556 + $0x1b1] sm:$0xff] %vm452, %v3167
    %3232 = vst.msk [vmem:[%s556 + $0x1b9] sm:$0xff] %vm452, %v3168
    %3233 = vst.msk [vmem:[%s556 + $0x1c9] sm:$0xff] %vm452, %v3169
    %3234 = vst.msk [vmem:[%s556 + $0x1d1] sm:$0xff] %vm452, %v3170
    %3235 = vst.msk [vmem:[%s556 + $0x1e1] sm:$0xff] %vm452, %v3171
    %3236 = vst.msk [vmem:[%s556 + $0x1e9] sm:$0xff] %vm452, %v3172
    %3237 = vst.msk [vmem:[%s556 + $0x1f9] sm:$0xff] %vm452, %v3173
    %3238 = vst.msk [vmem:[%s556 + $0x201] sm:$0xff] %vm452, %v3174
    %3239 = vst.msk [vmem:[%s556 + $0x211] sm:$0xff] %vm452, %v3175
    %3240 = vst.msk [vmem:[%s556 + $0x219] sm:$0xff] %vm452, %v3176
    %3241 = vst.msk [vmem:[%s556 + $0x229] sm:$0xff] %vm452, %v3177
    %3242 = vst.msk [vmem:[%s556 + $0x231] sm:$0xff] %vm452, %v3178
    %3243 = vst.msk [vmem:[%s556 + $0x241] sm:$0xff] %vm452, %v3179
    %3244 = vst.msk [vmem:[%s556 + $0x249] sm:$0xff] %vm452, %v3180
    %3245 = vst.msk [vmem:[%s556 + $0x259] sm:$0xff] %vm452, %v3181
    %3246 = vst.msk [vmem:[%s556 + $0x261] sm:$0xff] %vm452, %v3182
    %3247 = vst.msk [vmem:[%s556 + $0x271] sm:$0xff] %vm452, %v3183
    %3248 = vst.msk [vmem:[%s556 + $0x279] sm:$0xff] %vm452, %v3184
    %3249 = vst.msk [vmem:[%s556 + $0x289] sm:$0xff] %vm452, %v3185
    %3250 = vst.msk [vmem:[%s556 + $0x291] sm:$0xff] %vm452, %v3186
    %3251 = vst.msk [vmem:[%s556 + $0x2a1] sm:$0xff] %vm452, %v3187
    %3252 = vst.msk [vmem:[%s556 + $0x2a9] sm:$0xff] %vm452, %v3188
    %3253 = vst.msk [vmem:[%s556 + $0x2b9] sm:$0xff] %vm452, %v3189
    %3254 = vst.msk [vmem:[%s556 + $0x2c1] sm:$0xff] %vm452, %v3190
    %3255 = vst.msk [vmem:[%s556 + $0x2d1] sm:$0xff] %vm452, %v3191
    %3256 = vst.msk [vmem:[%s556 + $0x2d9] sm:$0xff] %vm452, %v3192
    %3257 = vst.msk [vmem:[%s556 + $0x2e9] sm:$0xff] %vm452, %v3193
    %3258 = vst.msk [vmem:[%s556 + $0x2f1] sm:$0xff] %vm452, %v3194
    %3259 = vst.msk [vmem:[%s556 + $0x301] sm:$0xff] %vm452, %v3195
    %3260 = vst.msk [vmem:[%s556 + $0x309] sm:$0xff] %vm452, %v3196
    %v3261 = vld [vmem:[%s556] sm:$0xff]
    %v3262 = vld [vmem:[%s556 + $0x8] sm:$0xff]
    %v3263 = vld [vmem:[%s556 + $0x18] sm:$0xff]
    %v3264 = vld [vmem:[%s556 + $0x20] sm:$0xff]
    %v3265 = vld [vmem:[%s556 + $0x30] sm:$0xff]
    %v3266 = vld [vmem:[%s556 + $0x38] sm:$0xff]
    %v3267 = vld [vmem:[%s556 + $0x48] sm:$0xff]
    %v3268 = vld [vmem:[%s556 + $0x50] sm:$0xff]
    %v3269 = vld [vmem:[%s556 + $0x60] sm:$0xff]
    %v3270 = vld [vmem:[%s556 + $0x68] sm:$0xff]
    %v3271 = vld [vmem:[%s556 + $0x78] sm:$0xff]
    %v3272 = vld [vmem:[%s556 + $0x80] sm:$0xff]
    %v3273 = vld [vmem:[%s556 + $0x90] sm:$0xff]
    %v3274 = vld [vmem:[%s556 + $0x98] sm:$0xff]
    %v3275 = vld [vmem:[%s556 + $0xa8] sm:$0xff]
    %v3276 = vld [vmem:[%s556 + $0xb0] sm:$0xff]
    %v3277 = vld [vmem:[%s556 + $0xc0] sm:$0xff]
    %v3278 = vld [vmem:[%s556 + $0xc8] sm:$0xff]
    %v3279 = vld [vmem:[%s556 + $0xd8] sm:$0xff]
    %v3280 = vld [vmem:[%s556 + $0xe0] sm:$0xff]
    %v3281 = vld [vmem:[%s556 + $0xf0] sm:$0xff]
    %v3282 = vld [vmem:[%s556 + $0xf8] sm:$0xff]
    %v3283 = vld [vmem:[%s556 + $0x108] sm:$0xff]
    %v3284 = vld [vmem:[%s556 + $0x110] sm:$0xff]
    %v3285 = vld [vmem:[%s556 + $0x120] sm:$0xff]
    %v3286 = vld [vmem:[%s556 + $0x128] sm:$0xff]
    %v3287 = vld [vmem:[%s556 + $0x138] sm:$0xff]
    %v3288 = vld [vmem:[%s556 + $0x140] sm:$0xff]
    %v3289 = vld [vmem:[%s556 + $0x150] sm:$0xff]
    %v3290 = vld [vmem:[%s556 + $0x158] sm:$0xff]
    %v3291 = vld [vmem:[%s556 + $0x168] sm:$0xff]
    %v3292 = vld [vmem:[%s556 + $0x170] sm:$0xff]
    %v3293 = vld [vmem:[%s556 + $0x198] sm:$0xff]
    %v3294 = vld [vmem:[%s556 + $0x1a0] sm:$0xff]
    %v3295 = vld [vmem:[%s556 + $0x1b0] sm:$0xff]
    %v3296 = vld [vmem:[%s556 + $0x1b8] sm:$0xff]
    %v3297 = vld [vmem:[%s556 + $0x1c8] sm:$0xff]
    %v3298 = vld [vmem:[%s556 + $0x1d0] sm:$0xff]
    %v3299 = vld [vmem:[%s556 + $0x1e0] sm:$0xff]
    %v3300 = vld [vmem:[%s556 + $0x1e8] sm:$0xff]
    %v3301 = vld [vmem:[%s556 + $0x1f8] sm:$0xff]
    %v3302 = vld [vmem:[%s556 + $0x200] sm:$0xff]
    %v3303 = vld [vmem:[%s556 + $0x210] sm:$0xff]
    %v3304 = vld [vmem:[%s556 + $0x218] sm:$0xff]
    %v3305 = vld [vmem:[%s556 + $0x228] sm:$0xff]
    %v3306 = vld [vmem:[%s556 + $0x230] sm:$0xff]
    %v3307 = vld [vmem:[%s556 + $0x240] sm:$0xff]
    %v3308 = vld [vmem:[%s556 + $0x248] sm:$0xff]
    %v3309 = vld [vmem:[%s556 + $0x258] sm:$0xff]
    %v3310 = vld [vmem:[%s556 + $0x260] sm:$0xff]
    %v3311 = vld [vmem:[%s556 + $0x270] sm:$0xff]
    %v3312 = vld [vmem:[%s556 + $0x278] sm:$0xff]
    %v3313 = vld [vmem:[%s556 + $0x288] sm:$0xff]
    %v3314 = vld [vmem:[%s556 + $0x290] sm:$0xff]
    %v3315 = vld [vmem:[%s556 + $0x2a0] sm:$0xff]
    %v3316 = vld [vmem:[%s556 + $0x2a8] sm:$0xff]
    %v3317 = vld [vmem:[%s556 + $0x2b8] sm:$0xff]
    %v3318 = vld [vmem:[%s556 + $0x2c0] sm:$0xff]
    %v3319 = vld [vmem:[%s556 + $0x2d0] sm:$0xff]
    %v3320 = vld [vmem:[%s556 + $0x2d8] sm:$0xff]
    %v3321 = vld [vmem:[%s556 + $0x2e8] sm:$0xff]
    %v3322 = vld [vmem:[%s556 + $0x2f0] sm:$0xff]
    %v3323 = vld [vmem:[%s556 + $0x300] sm:$0xff]
    %v3324 = vld [vmem:[%s556 + $0x308] sm:$0xff]
    %3389 = vrot.lane.b32.xlu0 %v2804, 96
    %v3390 = vpop.permute.xlu0 %3389
    %3391 = vrot.lane.b32.xlu0 %v2806, 96
    %v3392 = vpop.permute.xlu0 %3391
    %3393 = vrot.lane.b32.xlu0 %v2809, 96
    %v3394 = vpop.permute.xlu0 %3393
    %3395 = vrot.lane.b32.xlu0 %v2811, 96
    %v3396 = vpop.permute.xlu0 %3395
    %3397 = vrot.lane.b32.xlu0 %v2814, 96
    %v3398 = vpop.permute.xlu0 %3397
    %3399 = vrot.lane.b32.xlu0 %v2816, 96
    %v3400 = vpop.permute.xlu0 %3399
    %3401 = vrot.lane.b32.xlu0 %v2819, 96
    %v3402 = vpop.permute.xlu0 %3401
    %3403 = vrot.lane.b32.xlu0 %v2821, 96
    %v3404 = vpop.permute.xlu0 %3403
    %3405 = vrot.lane.b32.xlu0 %v2824, 96
    %v3406 = vpop.permute.xlu0 %3405
    %3407 = vrot.lane.b32.xlu0 %v2826, 96
    %v3408 = vpop.permute.xlu0 %3407
    %3409 = vrot.lane.b32.xlu0 %v2829, 96
    %v3410 = vpop.permute.xlu0 %3409
    %3411 = vrot.lane.b32.xlu0 %v2831, 96
    %v3412 = vpop.permute.xlu0 %3411
    %3413 = vrot.lane.b32.xlu0 %v2834, 96
    %v3414 = vpop.permute.xlu0 %3413
    %3415 = vrot.lane.b32.xlu0 %v2836, 96
    %v3416 = vpop.permute.xlu0 %3415
    %3417 = vrot.lane.b32.xlu0 %v2839, 96
    %v3418 = vpop.permute.xlu0 %3417
    %3419 = vrot.lane.b32.xlu0 %v2841, 96
    %v3420 = vpop.permute.xlu0 %3419
    %3421 = vrot.lane.b32.xlu0 %v2844, 96
    %v3422 = vpop.permute.xlu0 %3421
    %3423 = vrot.lane.b32.xlu0 %v2846, 96
    %v3424 = vpop.permute.xlu0 %3423
    %3425 = vrot.lane.b32.xlu0 %v2849, 96
    %v3426 = vpop.permute.xlu0 %3425
    %3427 = vrot.lane.b32.xlu0 %v2851, 96
    %v3428 = vpop.permute.xlu0 %3427
    %3429 = vrot.lane.b32.xlu0 %v2854, 96
    %v3430 = vpop.permute.xlu0 %3429
    %3431 = vrot.lane.b32.xlu0 %v2856, 96
    %v3432 = vpop.permute.xlu0 %3431
    %3433 = vrot.lane.b32.xlu0 %v2859, 96
    %v3434 = vpop.permute.xlu0 %3433
    %3435 = vrot.lane.b32.xlu0 %v2861, 96
    %v3436 = vpop.permute.xlu0 %3435
    %3437 = vrot.lane.b32.xlu0 %v2864, 96
    %v3438 = vpop.permute.xlu0 %3437
    %3439 = vrot.lane.b32.xlu0 %v2866, 96
    %v3440 = vpop.permute.xlu0 %3439
    %3441 = vrot.lane.b32.xlu0 %v2869, 96
    %v3442 = vpop.permute.xlu0 %3441
    %3443 = vrot.lane.b32.xlu0 %v2871, 96
    %v3444 = vpop.permute.xlu0 %3443
    %3445 = vrot.lane.b32.xlu0 %v2874, 96
    %v3446 = vpop.permute.xlu0 %3445
    %3447 = vrot.lane.b32.xlu0 %v2876, 96
    %v3448 = vpop.permute.xlu0 %3447
    %3449 = vrot.lane.b32.xlu0 %v2879, 96
    %v3450 = vpop.permute.xlu0 %3449
    %3451 = vrot.lane.b32.xlu0 %v2881, 96
    %v3452 = vpop.permute.xlu0 %3451
    %3453 = vrot.lane.b32.xlu0 %v2884, 96
    %v3454 = vpop.permute.xlu0 %3453
    %3455 = vrot.lane.b32.xlu0 %v2886, 96
    %v3456 = vpop.permute.xlu0 %3455
    %3457 = vrot.lane.b32.xlu0 %v2889, 96
    %v3458 = vpop.permute.xlu0 %3457
    %3459 = vrot.lane.b32.xlu0 %v2891, 96
    %v3460 = vpop.permute.xlu0 %3459
    %3461 = vrot.lane.b32.xlu0 %v2894, 96
    %v3462 = vpop.permute.xlu0 %3461
    %3463 = vrot.lane.b32.xlu0 %v2896, 96
    %v3464 = vpop.permute.xlu0 %3463
    %3465 = vrot.lane.b32.xlu0 %v2899, 96
    %v3466 = vpop.permute.xlu0 %3465
    %3467 = vrot.lane.b32.xlu0 %v2901, 96
    %v3468 = vpop.permute.xlu0 %3467
    %3469 = vrot.lane.b32.xlu0 %v2904, 96
    %v3470 = vpop.permute.xlu0 %3469
    %3471 = vrot.lane.b32.xlu0 %v2906, 96
    %v3472 = vpop.permute.xlu0 %3471
    %3473 = vrot.lane.b32.xlu0 %v2909, 96
    %v3474 = vpop.permute.xlu0 %3473
    %3475 = vrot.lane.b32.xlu0 %v2911, 96
    %v3476 = vpop.permute.xlu0 %3475
    %3477 = vrot.lane.b32.xlu0 %v2914, 96
    %v3478 = vpop.permute.xlu0 %3477
    %3479 = vrot.lane.b32.xlu0 %v2916, 96
    %v3480 = vpop.permute.xlu0 %3479
    %3481 = vrot.lane.b32.xlu0 %v2919, 96
    %v3482 = vpop.permute.xlu0 %3481
    %3483 = vrot.lane.b32.xlu0 %v2921, 96
    %v3484 = vpop.permute.xlu0 %3483
    %3485 = vrot.lane.b32.xlu0 %v2924, 96
    %v3486 = vpop.permute.xlu0 %3485
    %3487 = vrot.lane.b32.xlu0 %v2926, 96
    %v3488 = vpop.permute.xlu0 %3487
    %3489 = vrot.lane.b32.xlu0 %v2929, 96
    %v3490 = vpop.permute.xlu0 %3489
    %3491 = vrot.lane.b32.xlu0 %v2931, 96
    %v3492 = vpop.permute.xlu0 %3491
    %3493 = vrot.lane.b32.xlu0 %v2934, 96
    %v3494 = vpop.permute.xlu0 %3493
    %3495 = vrot.lane.b32.xlu0 %v2936, 96
    %v3496 = vpop.permute.xlu0 %3495
    %3497 = vrot.lane.b32.xlu0 %v2939, 96
    %v3498 = vpop.permute.xlu0 %3497
    %3499 = vrot.lane.b32.xlu0 %v2941, 96
    %v3500 = vpop.permute.xlu0 %3499
    %3501 = vrot.lane.b32.xlu0 %v2944, 96
    %v3502 = vpop.permute.xlu0 %3501
    %3503 = vrot.lane.b32.xlu0 %v2946, 96
    %v3504 = vpop.permute.xlu0 %3503
    %3505 = vrot.lane.b32.xlu0 %v2949, 96
    %v3506 = vpop.permute.xlu0 %3505
    %3507 = vrot.lane.b32.xlu0 %v2951, 96
    %v3508 = vpop.permute.xlu0 %3507
    %3509 = vrot.lane.b32.xlu0 %v2954, 96
    %v3510 = vpop.permute.xlu0 %3509
    %3511 = vrot.lane.b32.xlu0 %v2956, 96
    %v3512 = vpop.permute.xlu0 %3511
    %3513 = vrot.lane.b32.xlu0 %v2959, 96
    %v3514 = vpop.permute.xlu0 %3513
    %3515 = vrot.lane.b32.xlu0 %v2961, 96
    %v3516 = vpop.permute.xlu0 %3515
    %v3581 = vadd.f32 %v3261, %v3390
    %v3582 = vadd.f32 %v3262, %v3392
    %v3583 = vadd.f32 %v3263, %v3394
    %v3584 = vadd.f32 %v3264, %v3396
    %v3585 = vadd.f32 %v3265, %v3398
    %v3586 = vadd.f32 %v3266, %v3400
    %v3587 = vadd.f32 %v3267, %v3402
    %v3588 = vadd.f32 %v3268, %v3404
    %v3589 = vadd.f32 %v3269, %v3406
    %v3590 = vadd.f32 %v3270, %v3408
    %v3591 = vadd.f32 %v3271, %v3410
    %v3592 = vadd.f32 %v3272, %v3412
    %v3593 = vadd.f32 %v3273, %v3414
    %v3594 = vadd.f32 %v3274, %v3416
    %v3595 = vadd.f32 %v3275, %v3418
    %v3596 = vadd.f32 %v3276, %v3420
    %v3597 = vadd.f32 %v3277, %v3422
    %v3598 = vadd.f32 %v3278, %v3424
    %v3599 = vadd.f32 %v3279, %v3426
    %v3600 = vadd.f32 %v3280, %v3428
    %v3601 = vadd.f32 %v3281, %v3430
    %v3602 = vadd.f32 %v3282, %v3432
    %v3603 = vadd.f32 %v3283, %v3434
    %v3604 = vadd.f32 %v3284, %v3436
    %v3605 = vadd.f32 %v3285, %v3438
    %v3606 = vadd.f32 %v3286, %v3440
    %v3607 = vadd.f32 %v3287, %v3442
    %v3608 = vadd.f32 %v3288, %v3444
    %v3609 = vadd.f32 %v3289, %v3446
    %v3610 = vadd.f32 %v3290, %v3448
    %v3611 = vadd.f32 %v3291, %v3450
    %v3612 = vadd.f32 %v3292, %v3452
    %v3613 = vadd.f32 %v3293, %v3454
    %v3614 = vadd.f32 %v3294, %v3456
    %v3615 = vadd.f32 %v3295, %v3458
    %v3616 = vadd.f32 %v3296, %v3460
    %v3617 = vadd.f32 %v3297, %v3462
    %v3618 = vadd.f32 %v3298, %v3464
    %v3619 = vadd.f32 %v3299, %v3466
    %v3620 = vadd.f32 %v3300, %v3468
    %v3621 = vadd.f32 %v3301, %v3470
    %v3622 = vadd.f32 %v3302, %v3472
    %v3623 = vadd.f32 %v3303, %v3474
    %v3624 = vadd.f32 %v3304, %v3476
    %v3625 = vadd.f32 %v3305, %v3478
    %v3626 = vadd.f32 %v3306, %v3480
    %v3627 = vadd.f32 %v3307, %v3482
    %v3628 = vadd.f32 %v3308, %v3484
    %v3629 = vadd.f32 %v3309, %v3486
    %v3630 = vadd.f32 %v3310, %v3488
    %v3631 = vadd.f32 %v3311, %v3490
    %v3632 = vadd.f32 %v3312, %v3492
    %v3633 = vadd.f32 %v3313, %v3494
    %v3634 = vadd.f32 %v3314, %v3496
    %v3635 = vadd.f32 %v3315, %v3498
    %v3636 = vadd.f32 %v3316, %v3500
    %v3637 = vadd.f32 %v3317, %v3502
    %v3638 = vadd.f32 %v3318, %v3504
    %v3639 = vadd.f32 %v3319, %v3506
    %v3640 = vadd.f32 %v3320, %v3508
    %v3641 = vadd.f32 %v3321, %v3510
    %v3642 = vadd.f32 %v3322, %v3512
    %v3643 = vadd.f32 %v3323, %v3514
    %v3644 = vadd.f32 %v3324, %v3516
    %3645 = vst.msk [vmem:[%s556] sm:$0xff] %vm452, %v3581
    %3646 = vst.msk [vmem:[%s556 + $0x8] sm:$0xff] %vm452, %v3582
    %3647 = vst.msk [vmem:[%s556 + $0x18] sm:$0xff] %vm452, %v3583
    %3648 = vst.msk [vmem:[%s556 + $0x20] sm:$0xff] %vm452, %v3584
    %3649 = vst.msk [vmem:[%s556 + $0x30] sm:$0xff] %vm452, %v3585
    %3650 = vst.msk [vmem:[%s556 + $0x38] sm:$0xff] %vm452, %v3586
    %3651 = vst.msk [vmem:[%s556 + $0x48] sm:$0xff] %vm452, %v3587
    %3652 = vst.msk [vmem:[%s556 + $0x50] sm:$0xff] %vm452, %v3588
    %3653 = vst.msk [vmem:[%s556 + $0x60] sm:$0xff] %vm452, %v3589
    %3654 = vst.msk [vmem:[%s556 + $0x68] sm:$0xff] %vm452, %v3590
    %3655 = vst.msk [vmem:[%s556 + $0x78] sm:$0xff] %vm452, %v3591
    %3656 = vst.msk [vmem:[%s556 + $0x80] sm:$0xff] %vm452, %v3592
    %3657 = vst.msk [vmem:[%s556 + $0x90] sm:$0xff] %vm452, %v3593
    %3658 = vst.msk [vmem:[%s556 + $0x98] sm:$0xff] %vm452, %v3594
    %3659 = vst.msk [vmem:[%s556 + $0xa8] sm:$0xff] %vm452, %v3595
    %3660 = vst.msk [vmem:[%s556 + $0xb0] sm:$0xff] %vm452, %v3596
    %3661 = vst.msk [vmem:[%s556 + $0xc0] sm:$0xff] %vm452, %v3597
    %3662 = vst.msk [vmem:[%s556 + $0xc8] sm:$0xff] %vm452, %v3598
    %3663 = vst.msk [vmem:[%s556 + $0xd8] sm:$0xff] %vm452, %v3599
    %3664 = vst.msk [vmem:[%s556 + $0xe0] sm:$0xff] %vm452, %v3600
    %3665 = vst.msk [vmem:[%s556 + $0xf0] sm:$0xff] %vm452, %v3601
    %3666 = vst.msk [vmem:[%s556 + $0xf8] sm:$0xff] %vm452, %v3602
    %3667 = vst.msk [vmem:[%s556 + $0x108] sm:$0xff] %vm452, %v3603
    %3668 = vst.msk [vmem:[%s556 + $0x110] sm:$0xff] %vm452, %v3604
    %3669 = vst.msk [vmem:[%s556 + $0x120] sm:$0xff] %vm452, %v3605
    %3670 = vst.msk [vmem:[%s556 + $0x128] sm:$0xff] %vm452, %v3606
    %3671 = vst.msk [vmem:[%s556 + $0x138] sm:$0xff] %vm452, %v3607
    %3672 = vst.msk [vmem:[%s556 + $0x140] sm:$0xff] %vm452, %v3608
    %3673 = vst.msk [vmem:[%s556 + $0x150] sm:$0xff] %vm452, %v3609
    %3674 = vst.msk [vmem:[%s556 + $0x158] sm:$0xff] %vm452, %v3610
    %3675 = vst.msk [vmem:[%s556 + $0x168] sm:$0xff] %vm452, %v3611
    %3676 = vst.msk [vmem:[%s556 + $0x170] sm:$0xff] %vm452, %v3612
    %3677 = vst.msk [vmem:[%s556 + $0x198] sm:$0xff] %vm452, %v3613
    %3678 = vst.msk [vmem:[%s556 + $0x1a0] sm:$0xff] %vm452, %v3614
    %3679 = vst.msk [vmem:[%s556 + $0x1b0] sm:$0xff] %vm452, %v3615
    %3680 = vst.msk [vmem:[%s556 + $0x1b8] sm:$0xff] %vm452, %v3616
    %3681 = vst.msk [vmem:[%s556 + $0x1c8] sm:$0xff] %vm452, %v3617
    %3682 = vst.msk [vmem:[%s556 + $0x1d0] sm:$0xff] %vm452, %v3618
    %3683 = vst.msk [vmem:[%s556 + $0x1e0] sm:$0xff] %vm452, %v3619
    %3684 = vst.msk [vmem:[%s556 + $0x1e8] sm:$0xff] %vm452, %v3620
    %3685 = vst.msk [vmem:[%s556 + $0x1f8] sm:$0xff] %vm452, %v3621
    %3686 = vst.msk [vmem:[%s556 + $0x200] sm:$0xff] %vm452, %v3622
    %3687 = vst.msk [vmem:[%s556 + $0x210] sm:$0xff] %vm452, %v3623
    %3688 = vst.msk [vmem:[%s556 + $0x218] sm:$0xff] %vm452, %v3624
    %3689 = vst.msk [vmem:[%s556 + $0x228] sm:$0xff] %vm452, %v3625
    %3690 = vst.msk [vmem:[%s556 + $0x230] sm:$0xff] %vm452, %v3626
    %3691 = vst.msk [vmem:[%s556 + $0x240] sm:$0xff] %vm452, %v3627
    %3692 = vst.msk [vmem:[%s556 + $0x248] sm:$0xff] %vm452, %v3628
    %3693 = vst.msk [vmem:[%s556 + $0x258] sm:$0xff] %vm452, %v3629
    %3694 = vst.msk [vmem:[%s556 + $0x260] sm:$0xff] %vm452, %v3630
    %3695 = vst.msk [vmem:[%s556 + $0x270] sm:$0xff] %vm452, %v3631
    %3696 = vst.msk [vmem:[%s556 + $0x278] sm:$0xff] %vm452, %v3632
    %3697 = vst.msk [vmem:[%s556 + $0x288] sm:$0xff] %vm452, %v3633
    %3698 = vst.msk [vmem:[%s556 + $0x290] sm:$0xff] %vm452, %v3634
    %3699 = vst.msk [vmem:[%s556 + $0x2a0] sm:$0xff] %vm452, %v3635
    %3700 = vst.msk [vmem:[%s556 + $0x2a8] sm:$0xff] %vm452, %v3636
    %3701 = vst.msk [vmem:[%s556 + $0x2b8] sm:$0xff] %vm452, %v3637
    %3702 = vst.msk [vmem:[%s556 + $0x2c0] sm:$0xff] %vm452, %v3638
    %3703 = vst.msk [vmem:[%s556 + $0x2d0] sm:$0xff] %vm452, %v3639
    %3704 = vst.msk [vmem:[%s556 + $0x2d8] sm:$0xff] %vm452, %v3640
    %3705 = vst.msk [vmem:[%s556 + $0x2e8] sm:$0xff] %vm452, %v3641
    %3706 = vst.msk [vmem:[%s556 + $0x2f0] sm:$0xff] %vm452, %v3642
    %3707 = vst.msk [vmem:[%s556 + $0x300] sm:$0xff] %vm452, %v3643
    %3708 = vst.msk [vmem:[%s556 + $0x308] sm:$0xff] %vm452, %v3644
    %v3709 = vld [vmem:[#allocation2 + $0x1] sm:$0xff]
    %v3710 = vld [vmem:[#allocation2 + $0x9] sm:$0xff]
    %v3711 = vld [vmem:[#allocation2 + $0x19] sm:$0xff]
    %v3712 = vld [vmem:[#allocation2 + $0x21] sm:$0xff]
    %v3713 = vld [vmem:[#allocation2 + $0x31] sm:$0xff]
    %v3714 = vld [vmem:[#allocation2 + $0x39] sm:$0xff]
    %v3715 = vld [vmem:[#allocation2 + $0x49] sm:$0xff]
    %v3716 = vld [vmem:[#allocation2 + $0x51] sm:$0xff]
    %v3717 = vld [vmem:[#allocation2 + $0x61] sm:$0xff]
    %v3718 = vld [vmem:[#allocation2 + $0x69] sm:$0xff]
    %v3719 = vld [vmem:[#allocation2 + $0x79] sm:$0xff]
    %v3720 = vld [vmem:[#allocation2 + $0x81] sm:$0xff]
    %v3721 = vld [vmem:[#allocation2 + $0x91] sm:$0xff]
    %v3722 = vld [vmem:[#allocation2 + $0x99] sm:$0xff]
    %v3723 = vld [vmem:[#allocation2 + $0xa9] sm:$0xff]
    %v3724 = vld [vmem:[#allocation2 + $0xb1] sm:$0xff]
    %v3725 = vld [vmem:[#allocation2 + $0xc1] sm:$0xff]
    %v3726 = vld [vmem:[#allocation2 + $0xc9] sm:$0xff]
    %v3727 = vld [vmem:[#allocation2 + $0xd9] sm:$0xff]
    %v3728 = vld [vmem:[#allocation2 + $0xe1] sm:$0xff]
    %v3729 = vld [vmem:[#allocation2 + $0xf1] sm:$0xff]
    %v3730 = vld [vmem:[#allocation2 + $0xf9] sm:$0xff]
    %v3731 = vld [vmem:[#allocation2 + $0x109] sm:$0xff]
    %v3732 = vld [vmem:[#allocation2 + $0x111] sm:$0xff]
    %v3733 = vld [vmem:[#allocation2 + $0x121] sm:$0xff]
    %v3734 = vld [vmem:[#allocation2 + $0x129] sm:$0xff]
    %v3735 = vld [vmem:[#allocation2 + $0x139] sm:$0xff]
    %v3736 = vld [vmem:[#allocation2 + $0x141] sm:$0xff]
    %v3737 = vld [vmem:[#allocation2 + $0x151] sm:$0xff]
    %v3738 = vld [vmem:[#allocation2 + $0x159] sm:$0xff]
    %v3739 = vld [vmem:[#allocation2 + $0x169] sm:$0xff]
    %v3740 = vld [vmem:[#allocation2 + $0x171] sm:$0xff]
    %v3741 = vld [vmem:[#allocation2 + $0x199] sm:$0xff]
    %v3742 = vld [vmem:[#allocation2 + $0x1a1] sm:$0xff]
    %v3743 = vld [vmem:[#allocation2 + $0x1b1] sm:$0xff]
    %v3744 = vld [vmem:[#allocation2 + $0x1b9] sm:$0xff]
    %v3745 = vld [vmem:[#allocation2 + $0x1c9] sm:$0xff]
    %v3746 = vld [vmem:[#allocation2 + $0x1d1] sm:$0xff]
    %v3747 = vld [vmem:[#allocation2 + $0x1e1] sm:$0xff]
    %v3748 = vld [vmem:[#allocation2 + $0x1e9] sm:$0xff]
    %v3749 = vld [vmem:[#allocation2 + $0x1f9] sm:$0xff]
    %v3750 = vld [vmem:[#allocation2 + $0x201] sm:$0xff]
    %v3751 = vld [vmem:[#allocation2 + $0x211] sm:$0xff]
    %v3752 = vld [vmem:[#allocation2 + $0x219] sm:$0xff]
    %v3753 = vld [vmem:[#allocation2 + $0x229] sm:$0xff]
    %v3754 = vld [vmem:[#allocation2 + $0x231] sm:$0xff]
    %v3755 = vld [vmem:[#allocation2 + $0x241] sm:$0xff]
    %v3756 = vld [vmem:[#allocation2 + $0x249] sm:$0xff]
    %v3757 = vld [vmem:[#allocation2 + $0x259] sm:$0xff]
    %v3758 = vld [vmem:[#allocation2 + $0x261] sm:$0xff]
    %v3759 = vld [vmem:[#allocation2 + $0x271] sm:$0xff]
    %v3760 = vld [vmem:[#allocation2 + $0x279] sm:$0xff]
    %v3761 = vld [vmem:[#allocation2 + $0x289] sm:$0xff]
    %v3762 = vld [vmem:[#allocation2 + $0x291] sm:$0xff]
    %v3763 = vld [vmem:[#allocation2 + $0x2a1] sm:$0xff]
    %v3764 = vld [vmem:[#allocation2 + $0x2a9] sm:$0xff]
    %v3765 = vld [vmem:[#allocation2 + $0x2b9] sm:$0xff]
    %v3766 = vld [vmem:[#allocation2 + $0x2c1] sm:$0xff]
    %v3767 = vld [vmem:[#allocation2 + $0x2d1] sm:$0xff]
    %v3768 = vld [vmem:[#allocation2 + $0x2d9] sm:$0xff]
    %v3769 = vld [vmem:[#allocation2 + $0x2e9] sm:$0xff]
    %v3770 = vld [vmem:[#allocation2 + $0x2f1] sm:$0xff]
    %v3771 = vld [vmem:[#allocation2 + $0x301] sm:$0xff]
    %v3772 = vld [vmem:[#allocation2 + $0x309] sm:$0xff]
    %3773 = vrot.lane.b32.xlu0 %v2804, 64
    %v3774 = vpop.permute.xlu0 %3773
    %3775 = vrot.lane.b32.xlu0 %v2806, 64
    %v3776 = vpop.permute.xlu0 %3775
    %3777 = vrot.lane.b32.xlu0 %v2809, 64
    %v3778 = vpop.permute.xlu0 %3777
    %3779 = vrot.lane.b32.xlu0 %v2811, 64
    %v3780 = vpop.permute.xlu0 %3779
    %3781 = vrot.lane.b32.xlu0 %v2814, 64
    %v3782 = vpop.permute.xlu0 %3781
    %3783 = vrot.lane.b32.xlu0 %v2816, 64
    %v3784 = vpop.permute.xlu0 %3783
    %3785 = vrot.lane.b32.xlu0 %v2819, 64
    %v3786 = vpop.permute.xlu0 %3785
    %3787 = vrot.lane.b32.xlu0 %v2821, 64
    %v3788 = vpop.permute.xlu0 %3787
    %3789 = vrot.lane.b32.xlu0 %v2824, 64
    %v3790 = vpop.permute.xlu0 %3789
    %3791 = vrot.lane.b32.xlu0 %v2826, 64
    %v3792 = vpop.permute.xlu0 %3791
    %3793 = vrot.lane.b32.xlu0 %v2829, 64
    %v3794 = vpop.permute.xlu0 %3793
    %3795 = vrot.lane.b32.xlu0 %v2831, 64
    %v3796 = vpop.permute.xlu0 %3795
    %3797 = vrot.lane.b32.xlu0 %v2834, 64
    %v3798 = vpop.permute.xlu0 %3797
    %3799 = vrot.lane.b32.xlu0 %v2836, 64
    %v3800 = vpop.permute.xlu0 %3799
    %3801 = vrot.lane.b32.xlu0 %v2839, 64
    %v3802 = vpop.permute.xlu0 %3801
    %3803 = vrot.lane.b32.xlu0 %v2841, 64
    %v3804 = vpop.permute.xlu0 %3803
    %3805 = vrot.lane.b32.xlu0 %v2844, 64
    %v3806 = vpop.permute.xlu0 %3805
    %3807 = vrot.lane.b32.xlu0 %v2846, 64
    %v3808 = vpop.permute.xlu0 %3807
    %3809 = vrot.lane.b32.xlu0 %v2849, 64
    %v3810 = vpop.permute.xlu0 %3809
    %3811 = vrot.lane.b32.xlu0 %v2851, 64
    %v3812 = vpop.permute.xlu0 %3811
    %3813 = vrot.lane.b32.xlu0 %v2854, 64
    %v3814 = vpop.permute.xlu0 %3813
    %3815 = vrot.lane.b32.xlu0 %v2856, 64
    %v3816 = vpop.permute.xlu0 %3815
    %3817 = vrot.lane.b32.xlu0 %v2859, 64
    %v3818 = vpop.permute.xlu0 %3817
    %3819 = vrot.lane.b32.xlu0 %v2861, 64
    %v3820 = vpop.permute.xlu0 %3819
    %3821 = vrot.lane.b32.xlu0 %v2864, 64
    %v3822 = vpop.permute.xlu0 %3821
    %3823 = vrot.lane.b32.xlu0 %v2866, 64
    %v3824 = vpop.permute.xlu0 %3823
    %3825 = vrot.lane.b32.xlu0 %v2869, 64
    %v3826 = vpop.permute.xlu0 %3825
    %3827 = vrot.lane.b32.xlu0 %v2871, 64
    %v3828 = vpop.permute.xlu0 %3827
    %3829 = vrot.lane.b32.xlu0 %v2874, 64
    %v3830 = vpop.permute.xlu0 %3829
    %3831 = vrot.lane.b32.xlu0 %v2876, 64
    %v3832 = vpop.permute.xlu0 %3831
    %3833 = vrot.lane.b32.xlu0 %v2879, 64
    %v3834 = vpop.permute.xlu0 %3833
    %3835 = vrot.lane.b32.xlu0 %v2881, 64
    %v3836 = vpop.permute.xlu0 %3835
    %3837 = vrot.lane.b32.xlu0 %v2884, 64
    %v3838 = vpop.permute.xlu0 %3837
    %3839 = vrot.lane.b32.xlu0 %v2886, 64
    %v3840 = vpop.permute.xlu0 %3839
    %3841 = vrot.lane.b32.xlu0 %v2889, 64
    %v3842 = vpop.permute.xlu0 %3841
    %3843 = vrot.lane.b32.xlu0 %v2891, 64
    %v3844 = vpop.permute.xlu0 %3843
    %3845 = vrot.lane.b32.xlu0 %v2894, 64
    %v3846 = vpop.permute.xlu0 %3845
    %3847 = vrot.lane.b32.xlu0 %v2896, 64
    %v3848 = vpop.permute.xlu0 %3847
    %3849 = vrot.lane.b32.xlu0 %v2899, 64
    %v3850 = vpop.permute.xlu0 %3849
    %3851 = vrot.lane.b32.xlu0 %v2901, 64
    %v3852 = vpop.permute.xlu0 %3851
    %3853 = vrot.lane.b32.xlu0 %v2904, 64
    %v3854 = vpop.permute.xlu0 %3853
    %3855 = vrot.lane.b32.xlu0 %v2906, 64
    %v3856 = vpop.permute.xlu0 %3855
    %3857 = vrot.lane.b32.xlu0 %v2909, 64
    %v3858 = vpop.permute.xlu0 %3857
    %3859 = vrot.lane.b32.xlu0 %v2911, 64
    %v3860 = vpop.permute.xlu0 %3859
    %3861 = vrot.lane.b32.xlu0 %v2914, 64
    %v3862 = vpop.permute.xlu0 %3861
    %3863 = vrot.lane.b32.xlu0 %v2916, 64
    %v3864 = vpop.permute.xlu0 %3863
    %3865 = vrot.lane.b32.xlu0 %v2919, 64
    %v3866 = vpop.permute.xlu0 %3865
    %3867 = vrot.lane.b32.xlu0 %v2921, 64
    %v3868 = vpop.permute.xlu0 %3867
    %3869 = vrot.lane.b32.xlu0 %v2924, 64
    %v3870 = vpop.permute.xlu0 %3869
    %3871 = vrot.lane.b32.xlu0 %v2926, 64
    %v3872 = vpop.permute.xlu0 %3871
    %3873 = vrot.lane.b32.xlu0 %v2929, 64
    %v3874 = vpop.permute.xlu0 %3873
    %3875 = vrot.lane.b32.xlu0 %v2931, 64
    %v3876 = vpop.permute.xlu0 %3875
    %3877 = vrot.lane.b32.xlu0 %v2934, 64
    %v3878 = vpop.permute.xlu0 %3877
    %3879 = vrot.lane.b32.xlu0 %v2936, 64
    %v3880 = vpop.permute.xlu0 %3879
    %3881 = vrot.lane.b32.xlu0 %v2939, 64
    %v3882 = vpop.permute.xlu0 %3881
    %3883 = vrot.lane.b32.xlu0 %v2941, 64
    %v3884 = vpop.permute.xlu0 %3883
    %3885 = vrot.lane.b32.xlu0 %v2944, 64
    %v3886 = vpop.permute.xlu0 %3885
    %3887 = vrot.lane.b32.xlu0 %v2946, 64
    %v3888 = vpop.permute.xlu0 %3887
    %3889 = vrot.lane.b32.xlu0 %v2949, 64
    %v3890 = vpop.permute.xlu0 %3889
    %3891 = vrot.lane.b32.xlu0 %v2951, 64
    %v3892 = vpop.permute.xlu0 %3891
    %3893 = vrot.lane.b32.xlu0 %v2954, 64
    %v3894 = vpop.permute.xlu0 %3893
    %3895 = vrot.lane.b32.xlu0 %v2956, 64
    %v3896 = vpop.permute.xlu0 %3895
    %3897 = vrot.lane.b32.xlu0 %v2959, 64
    %v3898 = vpop.permute.xlu0 %3897
    %3899 = vrot.lane.b32.xlu0 %v2961, 64
    %v3900 = vpop.permute.xlu0 %3899
    %v3965 = vadd.f32 %v3709, %v3774
    %v3966 = vadd.f32 %v3710, %v3776
    %v3967 = vadd.f32 %v3711, %v3778
    %v3968 = vadd.f32 %v3712, %v3780
    %v3969 = vadd.f32 %v3713, %v3782
    %v3970 = vadd.f32 %v3714, %v3784
    %v3971 = vadd.f32 %v3715, %v3786
    %v3972 = vadd.f32 %v3716, %v3788
    %v3973 = vadd.f32 %v3717, %v3790
    %v3974 = vadd.f32 %v3718, %v3792
    %v3975 = vadd.f32 %v3719, %v3794
    %v3976 = vadd.f32 %v3720, %v3796
    %v3977 = vadd.f32 %v3721, %v3798
    %v3978 = vadd.f32 %v3722, %v3800
    %v3979 = vadd.f32 %v3723, %v3802
    %v3980 = vadd.f32 %v3724, %v3804
    %v3981 = vadd.f32 %v3725, %v3806
    %v3982 = vadd.f32 %v3726, %v3808
    %v3983 = vadd.f32 %v3727, %v3810
    %v3984 = vadd.f32 %v3728, %v3812
    %v3985 = vadd.f32 %v3729, %v3814
    %v3986 = vadd.f32 %v3730, %v3816
    %v3987 = vadd.f32 %v3731, %v3818
    %v3988 = vadd.f32 %v3732, %v3820
    %v3989 = vadd.f32 %v3733, %v3822
    %v3990 = vadd.f32 %v3734, %v3824
    %v3991 = vadd.f32 %v3735, %v3826
    %v3992 = vadd.f32 %v3736, %v3828
    %v3993 = vadd.f32 %v3737, %v3830
    %v3994 = vadd.f32 %v3738, %v3832
    %v3995 = vadd.f32 %v3739, %v3834
    %v3996 = vadd.f32 %v3740, %v3836
    %v3997 = vadd.f32 %v3741, %v3838
    %v3998 = vadd.f32 %v3742, %v3840
    %v3999 = vadd.f32 %v3743, %v3842
    %v4000 = vadd.f32 %v3744, %v3844
    %v4001 = vadd.f32 %v3745, %v3846
    %v4002 = vadd.f32 %v3746, %v3848
    %v4003 = vadd.f32 %v3747, %v3850
    %v4004 = vadd.f32 %v3748, %v3852
    %v4005 = vadd.f32 %v3749, %v3854
    %v4006 = vadd.f32 %v3750, %v3856
    %v4007 = vadd.f32 %v3751, %v3858
    %v4008 = vadd.f32 %v3752, %v3860
    %v4009 = vadd.f32 %v3753, %v3862
    %v4010 = vadd.f32 %v3754, %v3864
    %v4011 = vadd.f32 %v3755, %v3866
    %v4012 = vadd.f32 %v3756, %v3868
    %v4013 = vadd.f32 %v3757, %v3870
    %v4014 = vadd.f32 %v3758, %v3872
    %v4015 = vadd.f32 %v3759, %v3874
    %v4016 = vadd.f32 %v3760, %v3876
    %v4017 = vadd.f32 %v3761, %v3878
    %v4018 = vadd.f32 %v3762, %v3880
    %v4019 = vadd.f32 %v3763, %v3882
    %v4020 = vadd.f32 %v3764, %v3884
    %v4021 = vadd.f32 %v3765, %v3886
    %v4022 = vadd.f32 %v3766, %v3888
    %v4023 = vadd.f32 %v3767, %v3890
    %v4024 = vadd.f32 %v3768, %v3892
    %v4025 = vadd.f32 %v3769, %v3894
    %v4026 = vadd.f32 %v3770, %v3896
    %v4027 = vadd.f32 %v3771, %v3898
    %v4028 = vadd.f32 %v3772, %v3900
    %4029 = vst.msk [vmem:[#allocation2 + $0x1] sm:$0xff] %vm452, %v3965
    %4030 = vst.msk [vmem:[#allocation2 + $0x9] sm:$0xff] %vm452, %v3966
    %4031 = vst.msk [vmem:[#allocation2 + $0x19] sm:$0xff] %vm452, %v3967
    %4032 = vst.msk [vmem:[#allocation2 + $0x21] sm:$0xff] %vm452, %v3968
    %4033 = vst.msk [vmem:[#allocation2 + $0x31] sm:$0xff] %vm452, %v3969
    %4034 = vst.msk [vmem:[#allocation2 + $0x39] sm:$0xff] %vm452, %v3970
    %4035 = vst.msk [vmem:[#allocation2 + $0x49] sm:$0xff] %vm452, %v3971
    %4036 = vst.msk [vmem:[#allocation2 + $0x51] sm:$0xff] %vm452, %v3972
    %4037 = vst.msk [vmem:[#allocation2 + $0x61] sm:$0xff] %vm452, %v3973
    %4038 = vst.msk [vmem:[#allocation2 + $0x69] sm:$0xff] %vm452, %v3974
    %4039 = vst.msk [vmem:[#allocation2 + $0x79] sm:$0xff] %vm452, %v3975
    %4040 = vst.msk [vmem:[#allocation2 + $0x81] sm:$0xff] %vm452, %v3976
    %4041 = vst.msk [vmem:[#allocation2 + $0x91] sm:$0xff] %vm452, %v3977
    %4042 = vst.msk [vmem:[#allocation2 + $0x99] sm:$0xff] %vm452, %v3978
    %4043 = vst.msk [vmem:[#allocation2 + $0xa9] sm:$0xff] %vm452, %v3979
    %4044 = vst.msk [vmem:[#allocation2 + $0xb1] sm:$0xff] %vm452, %v3980
    %4045 = vst.msk [vmem:[#allocation2 + $0xc1] sm:$0xff] %vm452, %v3981
    %4046 = vst.msk [vmem:[#allocation2 + $0xc9] sm:$0xff] %vm452, %v3982
    %4047 = vst.msk [vmem:[#allocation2 + $0xd9] sm:$0xff] %vm452, %v3983
    %4048 = vst.msk [vmem:[#allocation2 + $0xe1] sm:$0xff] %vm452, %v3984
    %4049 = vst.msk [vmem:[#allocation2 + $0xf1] sm:$0xff] %vm452, %v3985
    %4050 = vst.msk [vmem:[#allocation2 + $0xf9] sm:$0xff] %vm452, %v3986
    %4051 = vst.msk [vmem:[#allocation2 + $0x109] sm:$0xff] %vm452, %v3987
    %4052 = vst.msk [vmem:[#allocation2 + $0x111] sm:$0xff] %vm452, %v3988
    %4053 = vst.msk [vmem:[#allocation2 + $0x121] sm:$0xff] %vm452, %v3989
    %4054 = vst.msk [vmem:[#allocation2 + $0x129] sm:$0xff] %vm452, %v3990
    %4055 = vst.msk [vmem:[#allocation2 + $0x139] sm:$0xff] %vm452, %v3991
    %4056 = vst.msk [vmem:[#allocation2 + $0x141] sm:$0xff] %vm452, %v3992
    %4057 = vst.msk [vmem:[#allocation2 + $0x151] sm:$0xff] %vm452, %v3993
    %4058 = vst.msk [vmem:[#allocation2 + $0x159] sm:$0xff] %vm452, %v3994
    %4059 = vst.msk [vmem:[#allocation2 + $0x169] sm:$0xff] %vm452, %v3995
    %4060 = vst.msk [vmem:[#allocation2 + $0x171] sm:$0xff] %vm452, %v3996
    %4061 = vst.msk [vmem:[#allocation2 + $0x199] sm:$0xff] %vm452, %v3997
    %4062 = vst.msk [vmem:[#allocation2 + $0x1a1] sm:$0xff] %vm452, %v3998
    %4063 = vst.msk [vmem:[#allocation2 + $0x1b1] sm:$0xff] %vm452, %v3999
    %4064 = vst.msk [vmem:[#allocation2 + $0x1b9] sm:$0xff] %vm452, %v4000
    %4065 = vst.msk [vmem:[#allocation2 + $0x1c9] sm:$0xff] %vm452, %v4001
    %4066 = vst.msk [vmem:[#allocation2 + $0x1d1] sm:$0xff] %vm452, %v4002
    %4067 = vst.msk [vmem:[#allocation2 + $0x1e1] sm:$0xff] %vm452, %v4003
    %4068 = vst.msk [vmem:[#allocation2 + $0x1e9] sm:$0xff] %vm452, %v4004
    %4069 = vst.msk [vmem:[#allocation2 + $0x1f9] sm:$0xff] %vm452, %v4005
    %4070 = vst.msk [vmem:[#allocation2 + $0x201] sm:$0xff] %vm452, %v4006
    %4071 = vst.msk [vmem:[#allocation2 + $0x211] sm:$0xff] %vm452, %v4007
    %4072 = vst.msk [vmem:[#allocation2 + $0x219] sm:$0xff] %vm452, %v4008
    %4073 = vst.msk [vmem:[#allocation2 + $0x229] sm:$0xff] %vm452, %v4009
    %4074 = vst.msk [vmem:[#allocation2 + $0x231] sm:$0xff] %vm452, %v4010
    %4075 = vst.msk [vmem:[#allocation2 + $0x241] sm:$0xff] %vm452, %v4011
    %4076 = vst.msk [vmem:[#allocation2 + $0x249] sm:$0xff] %vm452, %v4012
    %4077 = vst.msk [vmem:[#allocation2 + $0x259] sm:$0xff] %vm452, %v4013
    %4078 = vst.msk [vmem:[#allocation2 + $0x261] sm:$0xff] %vm452, %v4014
    %4079 = vst.msk [vmem:[#allocation2 + $0x271] sm:$0xff] %vm452, %v4015
    %4080 = vst.msk [vmem:[#allocation2 + $0x279] sm:$0xff] %vm452, %v4016
    %4081 = vst.msk [vmem:[#allocation2 + $0x289] sm:$0xff] %vm452, %v4017
    %4082 = vst.msk [vmem:[#allocation2 + $0x291] sm:$0xff] %vm452, %v4018
    %4083 = vst.msk [vmem:[#allocation2 + $0x2a1] sm:$0xff] %vm452, %v4019
    %4084 = vst.msk [vmem:[#allocation2 + $0x2a9] sm:$0xff] %vm452, %v4020
    %4085 = vst.msk [vmem:[#allocation2 + $0x2b9] sm:$0xff] %vm452, %v4021
    %4086 = vst.msk [vmem:[#allocation2 + $0x2c1] sm:$0xff] %vm452, %v4022
    %4087 = vst.msk [vmem:[#allocation2 + $0x2d1] sm:$0xff] %vm452, %v4023
    %4088 = vst.msk [vmem:[#allocation2 + $0x2d9] sm:$0xff] %vm452, %v4024
    %4089 = vst.msk [vmem:[#allocation2 + $0x2e9] sm:$0xff] %vm452, %v4025
    %4090 = vst.msk [vmem:[#allocation2 + $0x2f1] sm:$0xff] %vm452, %v4026
    %4091 = vst.msk [vmem:[#allocation2 + $0x301] sm:$0xff] %vm452, %v4027
    %4092 = vst.msk [vmem:[#allocation2 + $0x309] sm:$0xff] %vm452, %v4028
    %v4093 = vld [vmem:[#allocation2] sm:$0xff]
    %v4094 = vld [vmem:[#allocation2 + $0x8] sm:$0xff]
    %v4095 = vld [vmem:[#allocation2 + $0x18] sm:$0xff]
    %v4096 = vld [vmem:[#allocation2 + $0x20] sm:$0xff]
    %v4097 = vld [vmem:[#allocation2 + $0x30] sm:$0xff]
    %v4098 = vld [vmem:[#allocation2 + $0x38] sm:$0xff]
    %v4099 = vld [vmem:[#allocation2 + $0x48] sm:$0xff]
    %v4100 = vld [vmem:[#allocation2 + $0x50] sm:$0xff]
    %v4101 = vld [vmem:[#allocation2 + $0x60] sm:$0xff]
    %v4102 = vld [vmem:[#allocation2 + $0x68] sm:$0xff]
    %v4103 = vld [vmem:[#allocation2 + $0x78] sm:$0xff]
    %v4104 = vld [vmem:[#allocation2 + $0x80] sm:$0xff]
    %v4105 = vld [vmem:[#allocation2 + $0x90] sm:$0xff]
    %v4106 = vld [vmem:[#allocation2 + $0x98] sm:$0xff]
    %v4107 = vld [vmem:[#allocation2 + $0xa8] sm:$0xff]
    %v4108 = vld [vmem:[#allocation2 + $0xb0] sm:$0xff]
    %v4109 = vld [vmem:[#allocation2 + $0xc0] sm:$0xff]
    %v4110 = vld [vmem:[#allocation2 + $0xc8] sm:$0xff]
    %v4111 = vld [vmem:[#allocation2 + $0xd8] sm:$0xff]
    %v4112 = vld [vmem:[#allocation2 + $0xe0] sm:$0xff]
    %v4113 = vld [vmem:[#allocation2 + $0xf0] sm:$0xff]
    %v4114 = vld [vmem:[#allocation2 + $0xf8] sm:$0xff]
    %v4115 = vld [vmem:[#allocation2 + $0x108] sm:$0xff]
    %v4116 = vld [vmem:[#allocation2 + $0x110] sm:$0xff]
    %v4117 = vld [vmem:[#allocation2 + $0x120] sm:$0xff]
    %v4118 = vld [vmem:[#allocation2 + $0x128] sm:$0xff]
    %v4119 = vld [vmem:[#allocation2 + $0x138] sm:$0xff]
    %v4120 = vld [vmem:[#allocation2 + $0x140] sm:$0xff]
    %v4121 = vld [vmem:[#allocation2 + $0x150] sm:$0xff]
    %v4122 = vld [vmem:[#allocation2 + $0x158] sm:$0xff]
    %v4123 = vld [vmem:[#allocation2 + $0x168] sm:$0xff]
    %v4124 = vld [vmem:[#allocation2 + $0x170] sm:$0xff]
    %v4125 = vld [vmem:[#allocation2 + $0x198] sm:$0xff]
    %v4126 = vld [vmem:[#allocation2 + $0x1a0] sm:$0xff]
    %v4127 = vld [vmem:[#allocation2 + $0x1b0] sm:$0xff]
    %v4128 = vld [vmem:[#allocation2 + $0x1b8] sm:$0xff]
    %v4129 = vld [vmem:[#allocation2 + $0x1c8] sm:$0xff]
    %v4130 = vld [vmem:[#allocation2 + $0x1d0] sm:$0xff]
    %v4131 = vld [vmem:[#allocation2 + $0x1e0] sm:$0xff]
    %v4132 = vld [vmem:[#allocation2 + $0x1e8] sm:$0xff]
    %v4133 = vld [vmem:[#allocation2 + $0x1f8] sm:$0xff]
    %v4134 = vld [vmem:[#allocation2 + $0x200] sm:$0xff]
    %v4135 = vld [vmem:[#allocation2 + $0x210] sm:$0xff]
    %v4136 = vld [vmem:[#allocation2 + $0x218] sm:$0xff]
    %v4137 = vld [vmem:[#allocation2 + $0x228] sm:$0xff]
    %v4138 = vld [vmem:[#allocation2 + $0x230] sm:$0xff]
    %v4139 = vld [vmem:[#allocation2 + $0x240] sm:$0xff]
    %v4140 = vld [vmem:[#allocation2 + $0x248] sm:$0xff]
    %v4141 = vld [vmem:[#allocation2 + $0x258] sm:$0xff]
    %v4142 = vld [vmem:[#allocation2 + $0x260] sm:$0xff]
    %v4143 = vld [vmem:[#allocation2 + $0x270] sm:$0xff]
    %v4144 = vld [vmem:[#allocation2 + $0x278] sm:$0xff]
    %v4145 = vld [vmem:[#allocation2 + $0x288] sm:$0xff]
    %v4146 = vld [vmem:[#allocation2 + $0x290] sm:$0xff]
    %v4147 = vld [vmem:[#allocation2 + $0x2a0] sm:$0xff]
    %v4148 = vld [vmem:[#allocation2 + $0x2a8] sm:$0xff]
    %v4149 = vld [vmem:[#allocation2 + $0x2b8] sm:$0xff]
    %v4150 = vld [vmem:[#allocation2 + $0x2c0] sm:$0xff]
    %v4151 = vld [vmem:[#allocation2 + $0x2d0] sm:$0xff]
    %v4152 = vld [vmem:[#allocation2 + $0x2d8] sm:$0xff]
    %v4153 = vld [vmem:[#allocation2 + $0x2e8] sm:$0xff]
    %v4154 = vld [vmem:[#allocation2 + $0x2f0] sm:$0xff]
    %v4155 = vld [vmem:[#allocation2 + $0x300] sm:$0xff]
    %v4156 = vld [vmem:[#allocation2 + $0x308] sm:$0xff]
    %4157 = vrot.lane.b32.xlu0 %v2804, 32
    %v4158 = vpop.permute.xlu0 %4157
    %4159 = vrot.lane.b32.xlu0 %v2806, 32
    %v4160 = vpop.permute.xlu0 %4159
    %4161 = vrot.lane.b32.xlu0 %v2809, 32
    %v4162 = vpop.permute.xlu0 %4161
    %4163 = vrot.lane.b32.xlu0 %v2811, 32
    %v4164 = vpop.permute.xlu0 %4163
    %4165 = vrot.lane.b32.xlu0 %v2814, 32
    %v4166 = vpop.permute.xlu0 %4165
    %4167 = vrot.lane.b32.xlu0 %v2816, 32
    %v4168 = vpop.permute.xlu0 %4167
    %4169 = vrot.lane.b32.xlu0 %v2819, 32
    %v4170 = vpop.permute.xlu0 %4169
    %4171 = vrot.lane.b32.xlu0 %v2821, 32
    %v4172 = vpop.permute.xlu0 %4171
    %4173 = vrot.lane.b32.xlu0 %v2824, 32
    %v4174 = vpop.permute.xlu0 %4173
    %4175 = vrot.lane.b32.xlu0 %v2826, 32
    %v4176 = vpop.permute.xlu0 %4175
    %4177 = vrot.lane.b32.xlu0 %v2829, 32
    %v4178 = vpop.permute.xlu0 %4177
    %4179 = vrot.lane.b32.xlu0 %v2831, 32
    %v4180 = vpop.permute.xlu0 %4179
    %4181 = vrot.lane.b32.xlu0 %v2834, 32
    %v4182 = vpop.permute.xlu0 %4181
    %4183 = vrot.lane.b32.xlu0 %v2836, 32
    %v4184 = vpop.permute.xlu0 %4183
    %4185 = vrot.lane.b32.xlu0 %v2839, 32
    %v4186 = vpop.permute.xlu0 %4185
    %4187 = vrot.lane.b32.xlu0 %v2841, 32
    %v4188 = vpop.permute.xlu0 %4187
    %4189 = vrot.lane.b32.xlu0 %v2844, 32
    %v4190 = vpop.permute.xlu0 %4189
    %4191 = vrot.lane.b32.xlu0 %v2846, 32
    %v4192 = vpop.permute.xlu0 %4191
    %4193 = vrot.lane.b32.xlu0 %v2849, 32
    %v4194 = vpop.permute.xlu0 %4193
    %4195 = vrot.lane.b32.xlu0 %v2851, 32
    %v4196 = vpop.permute.xlu0 %4195
    %4197 = vrot.lane.b32.xlu0 %v2854, 32
    %v4198 = vpop.permute.xlu0 %4197
    %4199 = vrot.lane.b32.xlu0 %v2856, 32
    %v4200 = vpop.permute.xlu0 %4199
    %4201 = vrot.lane.b32.xlu0 %v2859, 32
    %v4202 = vpop.permute.xlu0 %4201
    %4203 = vrot.lane.b32.xlu0 %v2861, 32
    %v4204 = vpop.permute.xlu0 %4203
    %4205 = vrot.lane.b32.xlu0 %v2864, 32
    %v4206 = vpop.permute.xlu0 %4205
    %4207 = vrot.lane.b32.xlu0 %v2866, 32
    %v4208 = vpop.permute.xlu0 %4207
    %4209 = vrot.lane.b32.xlu0 %v2869, 32
    %v4210 = vpop.permute.xlu0 %4209
    %4211 = vrot.lane.b32.xlu0 %v2871, 32
    %v4212 = vpop.permute.xlu0 %4211
    %4213 = vrot.lane.b32.xlu0 %v2874, 32
    %v4214 = vpop.permute.xlu0 %4213
    %4215 = vrot.lane.b32.xlu0 %v2876, 32
    %v4216 = vpop.permute.xlu0 %4215
    %4217 = vrot.lane.b32.xlu0 %v2879, 32
    %v4218 = vpop.permute.xlu0 %4217
    %4219 = vrot.lane.b32.xlu0 %v2881, 32
    %v4220 = vpop.permute.xlu0 %4219
    %4221 = vrot.lane.b32.xlu0 %v2884, 32
    %v4222 = vpop.permute.xlu0 %4221
    %4223 = vrot.lane.b32.xlu0 %v2886, 32
    %v4224 = vpop.permute.xlu0 %4223
    %4225 = vrot.lane.b32.xlu0 %v2889, 32
    %v4226 = vpop.permute.xlu0 %4225
    %4227 = vrot.lane.b32.xlu0 %v2891, 32
    %v4228 = vpop.permute.xlu0 %4227
    %4229 = vrot.lane.b32.xlu0 %v2894, 32
    %v4230 = vpop.permute.xlu0 %4229
    %4231 = vrot.lane.b32.xlu0 %v2896, 32
    %v4232 = vpop.permute.xlu0 %4231
    %4233 = vrot.lane.b32.xlu0 %v2899, 32
    %v4234 = vpop.permute.xlu0 %4233
    %4235 = vrot.lane.b32.xlu0 %v2901, 32
    %v4236 = vpop.permute.xlu0 %4235
    %4237 = vrot.lane.b32.xlu0 %v2904, 32
    %v4238 = vpop.permute.xlu0 %4237
    %4239 = vrot.lane.b32.xlu0 %v2906, 32
    %v4240 = vpop.permute.xlu0 %4239
    %4241 = vrot.lane.b32.xlu0 %v2909, 32
    %v4242 = vpop.permute.xlu0 %4241
    %4243 = vrot.lane.b32.xlu0 %v2911, 32
    %v4244 = vpop.permute.xlu0 %4243
    %4245 = vrot.lane.b32.xlu0 %v2914, 32
    %v4246 = vpop.permute.xlu0 %4245
    %4247 = vrot.lane.b32.xlu0 %v2916, 32
    %v4248 = vpop.permute.xlu0 %4247
    %4249 = vrot.lane.b32.xlu0 %v2919, 32
    %v4250 = vpop.permute.xlu0 %4249
    %4251 = vrot.lane.b32.xlu0 %v2921, 32
    %v4252 = vpop.permute.xlu0 %4251
    %4253 = vrot.lane.b32.xlu0 %v2924, 32
    %v4254 = vpop.permute.xlu0 %4253
    %4255 = vrot.lane.b32.xlu0 %v2926, 32
    %v4256 = vpop.permute.xlu0 %4255
    %4257 = vrot.lane.b32.xlu0 %v2929, 32
    %v4258 = vpop.permute.xlu0 %4257
    %4259 = vrot.lane.b32.xlu0 %v2931, 32
    %v4260 = vpop.permute.xlu0 %4259
    %4261 = vrot.lane.b32.xlu0 %v2934, 32
    %v4262 = vpop.permute.xlu0 %4261
    %4263 = vrot.lane.b32.xlu0 %v2936, 32
    %v4264 = vpop.permute.xlu0 %4263
    %4265 = vrot.lane.b32.xlu0 %v2939, 32
    %v4266 = vpop.permute.xlu0 %4265
    %4267 = vrot.lane.b32.xlu0 %v2941, 32
    %v4268 = vpop.permute.xlu0 %4267
    %4269 = vrot.lane.b32.xlu0 %v2944, 32
    %v4270 = vpop.permute.xlu0 %4269
    %4271 = vrot.lane.b32.xlu0 %v2946, 32
    %v4272 = vpop.permute.xlu0 %4271
    %4273 = vrot.lane.b32.xlu0 %v2949, 32
    %v4274 = vpop.permute.xlu0 %4273
    %4275 = vrot.lane.b32.xlu0 %v2951, 32
    %v4276 = vpop.permute.xlu0 %4275
    %4277 = vrot.lane.b32.xlu0 %v2954, 32
    %v4278 = vpop.permute.xlu0 %4277
    %4279 = vrot.lane.b32.xlu0 %v2956, 32
    %v4280 = vpop.permute.xlu0 %4279
    %4281 = vrot.lane.b32.xlu0 %v2959, 32
    %v4282 = vpop.permute.xlu0 %4281
    %4283 = vrot.lane.b32.xlu0 %v2961, 32
    %v4284 = vpop.permute.xlu0 %4283
    %v4349 = vadd.f32 %v4093, %v4158
    %v4350 = vadd.f32 %v4094, %v4160
    %v4351 = vadd.f32 %v4095, %v4162
    %v4352 = vadd.f32 %v4096, %v4164
    %v4353 = vadd.f32 %v4097, %v4166
    %v4354 = vadd.f32 %v4098, %v4168
    %v4355 = vadd.f32 %v4099, %v4170
    %v4356 = vadd.f32 %v4100, %v4172
    %v4357 = vadd.f32 %v4101, %v4174
    %v4358 = vadd.f32 %v4102, %v4176
    %v4359 = vadd.f32 %v4103, %v4178
    %v4360 = vadd.f32 %v4104, %v4180
    %v4361 = vadd.f32 %v4105, %v4182
    %v4362 = vadd.f32 %v4106, %v4184
    %v4363 = vadd.f32 %v4107, %v4186
    %v4364 = vadd.f32 %v4108, %v4188
    %v4365 = vadd.f32 %v4109, %v4190
    %v4366 = vadd.f32 %v4110, %v4192
    %v4367 = vadd.f32 %v4111, %v4194
    %v4368 = vadd.f32 %v4112, %v4196
    %v4369 = vadd.f32 %v4113, %v4198
    %v4370 = vadd.f32 %v4114, %v4200
    %v4371 = vadd.f32 %v4115, %v4202
    %v4372 = vadd.f32 %v4116, %v4204
    %v4373 = vadd.f32 %v4117, %v4206
    %v4374 = vadd.f32 %v4118, %v4208
    %v4375 = vadd.f32 %v4119, %v4210
    %v4376 = vadd.f32 %v4120, %v4212
    %v4377 = vadd.f32 %v4121, %v4214
    %v4378 = vadd.f32 %v4122, %v4216
    %v4379 = vadd.f32 %v4123, %v4218
    %v4380 = vadd.f32 %v4124, %v4220
    %v4381 = vadd.f32 %v4125, %v4222
    %v4382 = vadd.f32 %v4126, %v4224
    %v4383 = vadd.f32 %v4127, %v4226
    %v4384 = vadd.f32 %v4128, %v4228
    %v4385 = vadd.f32 %v4129, %v4230
    %v4386 = vadd.f32 %v4130, %v4232
    %v4387 = vadd.f32 %v4131, %v4234
    %v4388 = vadd.f32 %v4132, %v4236
    %v4389 = vadd.f32 %v4133, %v4238
    %v4390 = vadd.f32 %v4134, %v4240
    %v4391 = vadd.f32 %v4135, %v4242
    %v4392 = vadd.f32 %v4136, %v4244
    %v4393 = vadd.f32 %v4137, %v4246
    %v4394 = vadd.f32 %v4138, %v4248
    %v4395 = vadd.f32 %v4139, %v4250
    %v4396 = vadd.f32 %v4140, %v4252
    %v4397 = vadd.f32 %v4141, %v4254
    %v4398 = vadd.f32 %v4142, %v4256
    %v4399 = vadd.f32 %v4143, %v4258
    %v4400 = vadd.f32 %v4144, %v4260
    %v4401 = vadd.f32 %v4145, %v4262
    %v4402 = vadd.f32 %v4146, %v4264
    %v4403 = vadd.f32 %v4147, %v4266
    %v4404 = vadd.f32 %v4148, %v4268
    %v4405 = vadd.f32 %v4149, %v4270
    %v4406 = vadd.f32 %v4150, %v4272
    %v4407 = vadd.f32 %v4151, %v4274
    %v4408 = vadd.f32 %v4152, %v4276
    %v4409 = vadd.f32 %v4153, %v4278
    %v4410 = vadd.f32 %v4154, %v4280
    %v4411 = vadd.f32 %v4155, %v4282
    %v4412 = vadd.f32 %v4156, %v4284
    %4413 = vst.msk [vmem:[#allocation2] sm:$0xff] %vm452, %v4349
    %4414 = vst.msk [vmem:[#allocation2 + $0x8] sm:$0xff] %vm452, %v4350
    %4415 = vst.msk [vmem:[#allocation2 + $0x18] sm:$0xff] %vm452, %v4351
    %4416 = vst.msk [vmem:[#allocation2 + $0x20] sm:$0xff] %vm452, %v4352
    %4417 = vst.msk [vmem:[#allocation2 + $0x30] sm:$0xff] %vm452, %v4353
    %4418 = vst.msk [vmem:[#allocation2 + $0x38] sm:$0xff] %vm452, %v4354
    %4419 = vst.msk [vmem:[#allocation2 + $0x48] sm:$0xff] %vm452, %v4355
    %4420 = vst.msk [vmem:[#allocation2 + $0x50] sm:$0xff] %vm452, %v4356
    %4421 = vst.msk [vmem:[#allocation2 + $0x60] sm:$0xff] %vm452, %v4357
    %4422 = vst.msk [vmem:[#allocation2 + $0x68] sm:$0xff] %vm452, %v4358
    %4423 = vst.msk [vmem:[#allocation2 + $0x78] sm:$0xff] %vm452, %v4359
    %4424 = vst.msk [vmem:[#allocation2 + $0x80] sm:$0xff] %vm452, %v4360
    %4425 = vst.msk [vmem:[#allocation2 + $0x90] sm:$0xff] %vm452, %v4361
    %4426 = vst.msk [vmem:[#allocation2 + $0x98] sm:$0xff] %vm452, %v4362
    %4427 = vst.msk [vmem:[#allocation2 + $0xa8] sm:$0xff] %vm452, %v4363
    %4428 = vst.msk [vmem:[#allocation2 + $0xb0] sm:$0xff] %vm452, %v4364
    %4429 = vst.msk [vmem:[#allocation2 + $0xc0] sm:$0xff] %vm452, %v4365
    %4430 = vst.msk [vmem:[#allocation2 + $0xc8] sm:$0xff] %vm452, %v4366
    %4431 = vst.msk [vmem:[#allocation2 + $0xd8] sm:$0xff] %vm452, %v4367
    %4432 = vst.msk [vmem:[#allocation2 + $0xe0] sm:$0xff] %vm452, %v4368
    %4433 = vst.msk [vmem:[#allocation2 + $0xf0] sm:$0xff] %vm452, %v4369
    %4434 = vst.msk [vmem:[#allocation2 + $0xf8] sm:$0xff] %vm452, %v4370
    %4435 = vst.msk [vmem:[#allocation2 + $0x108] sm:$0xff] %vm452, %v4371
    %4436 = vst.msk [vmem:[#allocation2 + $0x110] sm:$0xff] %vm452, %v4372
    %4437 = vst.msk [vmem:[#allocation2 + $0x120] sm:$0xff] %vm452, %v4373
    %4438 = vst.msk [vmem:[#allocation2 + $0x128] sm:$0xff] %vm452, %v4374
    %4439 = vst.msk [vmem:[#allocation2 + $0x138] sm:$0xff] %vm452, %v4375
    %4440 = vst.msk [vmem:[#allocation2 + $0x140] sm:$0xff] %vm452, %v4376
    %4441 = vst.msk [vmem:[#allocation2 + $0x150] sm:$0xff] %vm452, %v4377
    %4442 = vst.msk [vmem:[#allocation2 + $0x158] sm:$0xff] %vm452, %v4378
    %4443 = vst.msk [vmem:[#allocation2 + $0x168] sm:$0xff] %vm452, %v4379
    %4444 = vst.msk [vmem:[#allocation2 + $0x170] sm:$0xff] %vm452, %v4380
    %4445 = vst.msk [vmem:[#allocation2 + $0x198] sm:$0xff] %vm452, %v4381
    %4446 = vst.msk [vmem:[#allocation2 + $0x1a0] sm:$0xff] %vm452, %v4382
    %4447 = vst.msk [vmem:[#allocation2 + $0x1b0] sm:$0xff] %vm452, %v4383
    %4448 = vst.msk [vmem:[#allocation2 + $0x1b8] sm:$0xff] %vm452, %v4384
    %4449 = vst.msk [vmem:[#allocation2 + $0x1c8] sm:$0xff] %vm452, %v4385
    %4450 = vst.msk [vmem:[#allocation2 + $0x1d0] sm:$0xff] %vm452, %v4386
    %4451 = vst.msk [vmem:[#allocation2 + $0x1e0] sm:$0xff] %vm452, %v4387
    %4452 = vst.msk [vmem:[#allocation2 + $0x1e8] sm:$0xff] %vm452, %v4388
    %4453 = vst.msk [vmem:[#allocation2 + $0x1f8] sm:$0xff] %vm452, %v4389
    %4454 = vst.msk [vmem:[#allocation2 + $0x200] sm:$0xff] %vm452, %v4390
    %4455 = vst.msk [vmem:[#allocation2 + $0x210] sm:$0xff] %vm452, %v4391
    %4456 = vst.msk [vmem:[#allocation2 + $0x218] sm:$0xff] %vm452, %v4392
    %4457 = vst.msk [vmem:[#allocation2 + $0x228] sm:$0xff] %vm452, %v4393
    %4458 = vst.msk [vmem:[#allocation2 + $0x230] sm:$0xff] %vm452, %v4394
    %4459 = vst.msk [vmem:[#allocation2 + $0x240] sm:$0xff] %vm452, %v4395
    %4460 = vst.msk [vmem:[#allocation2 + $0x248] sm:$0xff] %vm452, %v4396
    %4461 = vst.msk [vmem:[#allocation2 + $0x258] sm:$0xff] %vm452, %v4397
    %4462 = vst.msk [vmem:[#allocation2 + $0x260] sm:$0xff] %vm452, %v4398
    %4463 = vst.msk [vmem:[#allocation2 + $0x270] sm:$0xff] %vm452, %v4399
    %4464 = vst.msk [vmem:[#allocation2 + $0x278] sm:$0xff] %vm452, %v4400
    %4465 = vst.msk [vmem:[#allocation2 + $0x288] sm:$0xff] %vm452, %v4401
    %4466 = vst.msk [vmem:[#allocation2 + $0x290] sm:$0xff] %vm452, %v4402
    %4467 = vst.msk [vmem:[#allocation2 + $0x2a0] sm:$0xff] %vm452, %v4403
    %4468 = vst.msk [vmem:[#allocation2 + $0x2a8] sm:$0xff] %vm452, %v4404
    %4469 = vst.msk [vmem:[#allocation2 + $0x2b8] sm:$0xff] %vm452, %v4405
    %4470 = vst.msk [vmem:[#allocation2 + $0x2c0] sm:$0xff] %vm452, %v4406
    %4471 = vst.msk [vmem:[#allocation2 + $0x2d0] sm:$0xff] %vm452, %v4407
    %4472 = vst.msk [vmem:[#allocation2 + $0x2d8] sm:$0xff] %vm452, %v4408
    %4473 = vst.msk [vmem:[#allocation2 + $0x2e8] sm:$0xff] %vm452, %v4409
    %4474 = vst.msk [vmem:[#allocation2 + $0x2f0] sm:$0xff] %vm452, %v4410
    %4475 = vst.msk [vmem:[#allocation2 + $0x300] sm:$0xff] %vm452, %v4411
    %4476 = vst.msk [vmem:[#allocation2 + $0x308] sm:$0xff] %vm452, %v4412
    %v4477 = vld [vmem:[#allocation2] sm:$0xff]
    %v4478 = vld [vmem:[#allocation2 + $0x8] sm:$0xff]
    %v4479 = vld [vmem:[#allocation2 + $0x10] sm:$0x1]
    %v4480 = vld [vmem:[#allocation2 + $0x18] sm:$0xff]
    %v4481 = vld [vmem:[#allocation2 + $0x20] sm:$0xff]
    %v4482 = vld [vmem:[#allocation2 + $0x28] sm:$0x1]
    %v4483 = vld [vmem:[#allocation2 + $0x30] sm:$0xff]
    %v4484 = vld [vmem:[#allocation2 + $0x38] sm:$0xff]
    %v4485 = vld [vmem:[#allocation2 + $0x40] sm:$0x1]
    %v4486 = vld [vmem:[#allocation2 + $0x48] sm:$0xff]
    %v4487 = vld [vmem:[#allocation2 + $0x50] sm:$0xff]
    %v4488 = vld [vmem:[#allocation2 + $0x58] sm:$0x1]
    %v4489 = vld [vmem:[#allocation2 + $0x60] sm:$0xff]
    %v4490 = vld [vmem:[#allocation2 + $0x68] sm:$0xff]
    %v4491 = vld [vmem:[#allocation2 + $0x70] sm:$0x1]
    %v4492 = vld [vmem:[#allocation2 + $0x78] sm:$0xff]
    %v4493 = vld [vmem:[#allocation2 + $0x80] sm:$0xff]
    %v4494 = vld [vmem:[#allocation2 + $0x88] sm:$0x1]
    %v4495 = vld [vmem:[#allocation2 + $0x90] sm:$0xff]
    %v4496 = vld [vmem:[#allocation2 + $0x98] sm:$0xff]
    %v4497 = vld [vmem:[#allocation2 + $0xa0] sm:$0x1]
    %v4498 = vld [vmem:[#allocation2 + $0xa8] sm:$0xff]
    %v4499 = vld [vmem:[#allocation2 + $0xb0] sm:$0xff]
    %v4500 = vld [vmem:[#allocation2 + $0xb8] sm:$0x1]
    %v4501 = vld [vmem:[#allocation2 + $0xc0] sm:$0xff]
    %v4502 = vld [vmem:[#allocation2 + $0xc8] sm:$0xff]
    %v4503 = vld [vmem:[#allocation2 + $0xd0] sm:$0x1]
    %v4504 = vld [vmem:[#allocation2 + $0xd8] sm:$0xff]
    %v4505 = vld [vmem:[#allocation2 + $0xe0] sm:$0xff]
    %v4506 = vld [vmem:[#allocation2 + $0xe8] sm:$0x1]
    %v4507 = vld [vmem:[#allocation2 + $0xf0] sm:$0xff]
    %v4508 = vld [vmem:[#allocation2 + $0xf8] sm:$0xff]
    %v4509 = vld [vmem:[#allocation2 + $0x100] sm:$0x1]
    %v4510 = vld [vmem:[#allocation2 + $0x108] sm:$0xff]
    %v4511 = vld [vmem:[#allocation2 + $0x110] sm:$0xff]
    %v4512 = vld [vmem:[#allocation2 + $0x118] sm:$0x1]
    %v4513 = vld [vmem:[#allocation2 + $0x120] sm:$0xff]
    %v4514 = vld [vmem:[#allocation2 + $0x128] sm:$0xff]
    %v4515 = vld [vmem:[#allocation2 + $0x130] sm:$0x1]
    %v4516 = vld [vmem:[#allocation2 + $0x138] sm:$0xff]
    %v4517 = vld [vmem:[#allocation2 + $0x140] sm:$0xff]
    %v4518 = vld [vmem:[#allocation2 + $0x148] sm:$0x1]
    %v4519 = vld [vmem:[#allocation2 + $0x150] sm:$0xff]
    %v4520 = vld [vmem:[#allocation2 + $0x158] sm:$0xff]
    %v4521 = vld [vmem:[#allocation2 + $0x160] sm:$0x1]
    %v4522 = vld [vmem:[#allocation2 + $0x168] sm:$0xff]
    %v4523 = vld [vmem:[#allocation2 + $0x170] sm:$0xff]
    %v4524 = vld [vmem:[#allocation2 + $0x178] sm:$0x1]
    %v4525 = vld [vmem:[#allocation2 + $0x180] sm:$0xff]
    %v4526 = vld [vmem:[#allocation2 + $0x188] sm:$0xff]
    %v4527 = vld [vmem:[#allocation2 + $0x190] sm:$0x1]
    %v4528 = vld [vmem:[#allocation2 + $0x198] sm:$0xff]
    %v4529 = vld [vmem:[#allocation2 + $0x1a0] sm:$0xff]
    %v4530 = vld [vmem:[#allocation2 + $0x1a8] sm:$0x1]
    %v4531 = vld [vmem:[#allocation2 + $0x1b0] sm:$0xff]
    %v4532 = vld [vmem:[#allocation2 + $0x1b8] sm:$0xff]
    %v4533 = vld [vmem:[#allocation2 + $0x1c0] sm:$0x1]
    %v4534 = vld [vmem:[#allocation2 + $0x1c8] sm:$0xff]
    %v4535 = vld [vmem:[#allocation2 + $0x1d0] sm:$0xff]
    %v4536 = vld [vmem:[#allocation2 + $0x1d8] sm:$0x1]
    %v4537 = vld [vmem:[#allocation2 + $0x1e0] sm:$0xff]
    %v4538 = vld [vmem:[#allocation2 + $0x1e8] sm:$0xff]
    %v4539 = vld [vmem:[#allocation2 + $0x1f0] sm:$0x1]
    %v4540 = vld [vmem:[#allocation2 + $0x1f8] sm:$0xff]
    %v4541 = vld [vmem:[#allocation2 + $0x200] sm:$0xff]
    %v4542 = vld [vmem:[#allocation2 + $0x208] sm:$0x1]
    %v4543 = vld [vmem:[#allocation2 + $0x210] sm:$0xff]
    %v4544 = vld [vmem:[#allocation2 + $0x218] sm:$0xff]
    %v4545 = vld [vmem:[#allocation2 + $0x220] sm:$0x1]
    %v4546 = vld [vmem:[#allocation2 + $0x228] sm:$0xff]
    %v4547 = vld [vmem:[#allocation2 + $0x230] sm:$0xff]
    %v4548 = vld [vmem:[#allocation2 + $0x238] sm:$0x1]
    %v4549 = vld [vmem:[#allocation2 + $0x240] sm:$0xff]
    %v4550 = vld [vmem:[#allocation2 + $0x248] sm:$0xff]
    %v4551 = vld [vmem:[#allocation2 + $0x250] sm:$0x1]
    %v4552 = vld [vmem:[#allocation2 + $0x258] sm:$0xff]
    %v4553 = vld [vmem:[#allocation2 + $0x260] sm:$0xff]
    %v4554 = vld [vmem:[#allocation2 + $0x268] sm:$0x1]
    %v4555 = vld [vmem:[#allocation2 + $0x270] sm:$0xff]
    %v4556 = vld [vmem:[#allocation2 + $0x278] sm:$0xff]
    %v4557 = vld [vmem:[#allocation2 + $0x280] sm:$0x1]
    %v4558 = vld [vmem:[#allocation2 + $0x288] sm:$0xff]
    %v4559 = vld [vmem:[#allocation2 + $0x290] sm:$0xff]
    %v4560 = vld [vmem:[#allocation2 + $0x298] sm:$0x1]
    %v4561 = vld [vmem:[#allocation2 + $0x2a0] sm:$0xff]
    %v4562 = vld [vmem:[#allocation2 + $0x2a8] sm:$0xff]
    %v4563 = vld [vmem:[#allocation2 + $0x2b0] sm:$0x1]
    %v4564 = vld [vmem:[#allocation2 + $0x2b8] sm:$0xff]
    %v4565 = vld [vmem:[#allocation2 + $0x2c0] sm:$0xff]
    %v4566 = vld [vmem:[#allocation2 + $0x2c8] sm:$0x1]
    %v4567 = vld [vmem:[#allocation2 + $0x2d0] sm:$0xff]
    %v4568 = vld [vmem:[#allocation2 + $0x2d8] sm:$0xff]
    %v4569 = vld [vmem:[#allocation2 + $0x2e0] sm:$0x1]
    %v4570 = vld [vmem:[#allocation2 + $0x2e8] sm:$0xff]
    %v4571 = vld [vmem:[#allocation2 + $0x2f0] sm:$0xff]
    %v4572 = vld [vmem:[#allocation2 + $0x2f8] sm:$0x1]
    %v4573 = vld [vmem:[#allocation2 + $0x300] sm:$0xff]
    %v4574 = vld [vmem:[#allocation2 + $0x308] sm:$0xff]
    %v4575 = vld [vmem:[#allocation2 + $0x310] sm:$0x1]
    %v4576 = vld [vmem:[#allocation2 + $0x318] sm:$0xff]
    %v4577 = vld [vmem:[#allocation2 + $0x320] sm:$0xff]
    %v4578 = vld [vmem:[#allocation2 + $0x328] sm:$0x1]
    %v4579 = vmax.f32 %v4477, 0.0
    %v4580 = vmax.f32 %v4478, 0.0
    %v4581 = vmax.f32 %v4479, 0.0
    %v4582 = vmax.f32 %v4480, 0.0
    %v4583 = vmax.f32 %v4481, 0.0
    %v4584 = vmax.f32 %v4482, 0.0
    %v4585 = vmax.f32 %v4483, 0.0
    %v4586 = vmax.f32 %v4484, 0.0
    %v4587 = vmax.f32 %v4485, 0.0
    %v4588 = vmax.f32 %v4486, 0.0
    %v4589 = vmax.f32 %v4487, 0.0
    %v4590 = vmax.f32 %v4488, 0.0
    %v4591 = vmax.f32 %v4489, 0.0
    %v4592 = vmax.f32 %v4490, 0.0
    %v4593 = vmax.f32 %v4491, 0.0
    %v4594 = vmax.f32 %v4492, 0.0
    %v4595 = vmax.f32 %v4493, 0.0
    %v4596 = vmax.f32 %v4494, 0.0
    %v4597 = vmax.f32 %v4495, 0.0
    %v4598 = vmax.f32 %v4496, 0.0
    %v4599 = vmax.f32 %v4497, 0.0
    %v4600 = vmax.f32 %v4498, 0.0
    %v4601 = vmax.f32 %v4499, 0.0
    %v4602 = vmax.f32 %v4500, 0.0
    %v4603 = vmax.f32 %v4501, 0.0
    %v4604 = vmax.f32 %v4502, 0.0
    %v4605 = vmax.f32 %v4503, 0.0
    %v4606 = vmax.f32 %v4504, 0.0
    %v4607 = vmax.f32 %v4505, 0.0
    %v4608 = vmax.f32 %v4506, 0.0
    %v4609 = vmax.f32 %v4507, 0.0
    %v4610 = vmax.f32 %v4508, 0.0
    %v4611 = vmax.f32 %v4509, 0.0
    %v4612 = vmax.f32 %v4510, 0.0
    %v4613 = vmax.f32 %v4511, 0.0
    %v4614 = vmax.f32 %v4512, 0.0
    %v4615 = vmax.f32 %v4513, 0.0
    %v4616 = vmax.f32 %v4514, 0.0
    %v4617 = vmax.f32 %v4515, 0.0
    %v4618 = vmax.f32 %v4516, 0.0
    %v4619 = vmax.f32 %v4517, 0.0
    %v4620 = vmax.f32 %v4518, 0.0
    %v4621 = vmax.f32 %v4519, 0.0
    %v4622 = vmax.f32 %v4520, 0.0
    %v4623 = vmax.f32 %v4521, 0.0
    %v4624 = vmax.f32 %v4522, 0.0
    %v4625 = vmax.f32 %v4523, 0.0
    %v4626 = vmax.f32 %v4524, 0.0
    %v4627 = vmax.f32 %v4525, 0.0
    %v4628 = vmax.f32 %v4526, 0.0
    %v4629 = vmax.f32 %v4527, 0.0
    %v4630 = vmax.f32 %v4528, 0.0
    %v4631 = vmax.f32 %v4529, 0.0
    %v4632 = vmax.f32 %v4530, 0.0
    %v4633 = vmax.f32 %v4531, 0.0
    %v4634 = vmax.f32 %v4532, 0.0
    %v4635 = vmax.f32 %v4533, 0.0
    %v4636 = vmax.f32 %v4534, 0.0
    %v4637 = vmax.f32 %v4535, 0.0
    %v4638 = vmax.f32 %v4536, 0.0
    %v4639 = vmax.f32 %v4537, 0.0
    %v4640 = vmax.f32 %v4538, 0.0
    %v4641 = vmax.f32 %v4539, 0.0
    %v4642 = vmax.f32 %v4540, 0.0
    %v4643 = vmax.f32 %v4541, 0.0
    %v4644 = vmax.f32 %v4542, 0.0
    %v4645 = vmax.f32 %v4543, 0.0
    %v4646 = vmax.f32 %v4544, 0.0
    %v4647 = vmax.f32 %v4545, 0.0
    %v4648 = vmax.f32 %v4546, 0.0
    %v4649 = vmax.f32 %v4547, 0.0
    %v4650 = vmax.f32 %v4548, 0.0
    %v4651 = vmax.f32 %v4549, 0.0
    %v4652 = vmax.f32 %v4550, 0.0
    %v4653 = vmax.f32 %v4551, 0.0
    %v4654 = vmax.f32 %v4552, 0.0
    %v4655 = vmax.f32 %v4553, 0.0
    %v4656 = vmax.f32 %v4554, 0.0
    %v4657 = vmax.f32 %v4555, 0.0
    %v4658 = vmax.f32 %v4556, 0.0
    %v4659 = vmax.f32 %v4557, 0.0
    %v4660 = vmax.f32 %v4558, 0.0
    %v4661 = vmax.f32 %v4559, 0.0
    %v4662 = vmax.f32 %v4560, 0.0
    %v4663 = vmax.f32 %v4561, 0.0
    %v4664 = vmax.f32 %v4562, 0.0
    %v4665 = vmax.f32 %v4563, 0.0
    %v4666 = vmax.f32 %v4564, 0.0
    %v4667 = vmax.f32 %v4565, 0.0
    %v4668 = vmax.f32 %v4566, 0.0
    %v4669 = vmax.f32 %v4567, 0.0
    %v4670 = vmax.f32 %v4568, 0.0
    %v4671 = vmax.f32 %v4569, 0.0
    %v4672 = vmax.f32 %v4570, 0.0
    %v4673 = vmax.f32 %v4571, 0.0
    %v4674 = vmax.f32 %v4572, 0.0
    %v4675 = vmax.f32 %v4573, 0.0
    %v4676 = vmax.f32 %v4574, 0.0
    %v4677 = vmax.f32 %v4575, 0.0
    %v4678 = vmax.f32 %v4576, 0.0
    %v4679 = vmax.f32 %v4577, 0.0
    %v4680 = vmax.f32 %v4578, 0.0
    %v4681 = vmax.f32 %v4579, %v4582
    %v4682 = vmax.f32 %v4580, %v4583
    %v4683 = vmax.f32 %v4582, %v4585
    %v4684 = vmax.f32 %v4583, %v4586
    %v4685 = vmax.f32 %v4585, %v4588
    %v4686 = vmax.f32 %v4586, %v4589
    %v4687 = vmax.f32 %v4588, %v4591
    %v4688 = vmax.f32 %v4589, %v4592
    %v4689 = vmax.f32 %v4591, %v4594
    %v4690 = vmax.f32 %v4592, %v4595
    %v4691 = vmax.f32 %v4594, %v4597
    %v4692 = vmax.f32 %v4595, %v4598
    %v4693 = vmax.f32 %v4597, %v4600
    %v4694 = vmax.f32 %v4598, %v4601
    %v4695 = vmax.f32 %v4600, %v4603
    %v4696 = vmax.f32 %v4601, %v4604
    %v4697 = vmax.f32 %v4603, %v4606
    %v4698 = vmax.f32 %v4604, %v4607
    %v4699 = vmax.f32 %v4606, %v4609
    %v4700 = vmax.f32 %v4607, %v4610
    %v4701 = vmax.f32 %v4609, %v4612
    %v4702 = vmax.f32 %v4610, %v4613
    %v4703 = vmax.f32 %v4612, %v4615
    %v4704 = vmax.f32 %v4613, %v4616
    %v4705 = vmax.f32 %v4615, %v4618
    %v4706 = vmax.f32 %v4616, %v4619
    %v4707 = vmax.f32 %v4618, %v4621
    %v4708 = vmax.f32 %v4619, %v4622
    %v4709 = vmax.f32 %v4621, %v4624
    %v4710 = vmax.f32 %v4622, %v4625
    %v4711 = vmax.f32 %v4624, %v4627
    %v4712 = vmax.f32 %v4625, %v4628
    %v4713 = vmax.f32 %v4630, %v4633
    %v4714 = vmax.f32 %v4631, %v4634
    %v4715 = vmax.f32 %v4633, %v4636
    %v4716 = vmax.f32 %v4634, %v4637
    %v4717 = vmax.f32 %v4636, %v4639
    %v4718 = vmax.f32 %v4637, %v4640
    %v4719 = vmax.f32 %v4639, %v4642
    %v4720 = vmax.f32 %v4640, %v4643
    %v4721 = vmax.f32 %v4642, %v4645
    %v4722 = vmax.f32 %v4643, %v4646
    %v4723 = vmax.f32 %v4645, %v4648
    %v4724 = vmax.f32 %v4646, %v4649
    %v4725 = vmax.f32 %v4648, %v4651
    %v4726 = vmax.f32 %v4649, %v4652
    %v4727 = vmax.f32 %v4651, %v4654
    %v4728 = vmax.f32 %v4652, %v4655
    %v4729 = vmax.f32 %v4654, %v4657
    %v4730 = vmax.f32 %v4655, %v4658
    %v4731 = vmax.f32 %v4657, %v4660
    %v4732 = vmax.f32 %v4658, %v4661
    %v4733 = vmax.f32 %v4660, %v4663
    %v4734 = vmax.f32 %v4661, %v4664
    %v4735 = vmax.f32 %v4663, %v4666
    %v4736 = vmax.f32 %v4664, %v4667
    %v4737 = vmax.f32 %v4666, %v4669
    %v4738 = vmax.f32 %v4667, %v4670
    %v4739 = vmax.f32 %v4669, %v4672
    %v4740 = vmax.f32 %v4670, %v4673
    %v4741 = vmax.f32 %v4672, %v4675
    %v4742 = vmax.f32 %v4673, %v4676
    %v4743 = vmax.f32 %v4675, %v4678
    %v4744 = vmax.f32 %v4676, %v4679
    %v4745 = vmax.f32 %v4581, %v4584
    %v4746 = vmax.f32 %v4584, %v4587
    %v4747 = vmax.f32 %v4587, %v4590
    %v4748 = vmax.f32 %v4590, %v4593
    %v4749 = vmax.f32 %v4593, %v4596
    %v4750 = vmax.f32 %v4596, %v4599
    %v4751 = vmax.f32 %v4599, %v4602
    %v4752 = vmax.f32 %v4602, %v4605
    %v4753 = vmax.f32 %v4605, %v4608
    %v4754 = vmax.f32 %v4608, %v4611
    %v4755 = vmax.f32 %v4611, %v4614
    %v4756 = vmax.f32 %v4614, %v4617
    %v4757 = vmax.f32 %v4617, %v4620
    %v4758 = vmax.f32 %v4620, %v4623
    %v4759 = vmax.f32 %v4623, %v4626
    %v4760 = vmax.f32 %v4626, %v4629
    %v4761 = vmax.f32 %v4632, %v4635
    %v4762 = vmax.f32 %v4635, %v4638
    %v4763 = vmax.f32 %v4638, %v4641
    %v4764 = vmax.f32 %v4641, %v4644
    %v4765 = vmax.f32 %v4644, %v4647
    %v4766 = vmax.f32 %v4647, %v4650
    %v4767 = vmax.f32 %v4650, %v4653
    %v4768 = vmax.f32 %v4653, %v4656
    %v4769 = vmax.f32 %v4656, %v4659
    %v4770 = vmax.f32 %v4659, %v4662
    %v4771 = vmax.f32 %v4662, %v4665
    %v4772 = vmax.f32 %v4665, %v4668
    %v4773 = vmax.f32 %v4668, %v4671
    %v4774 = vmax.f32 %v4671, %v4674
    %v4775 = vmax.f32 %v4674, %v4677
    %v4776 = vmax.f32 %v4677, %v4680
    %v4873 = vrot.slane %v4681, 1
    %v4874 = vrot.slane %v4682, 1
    %v4875 = vsel %vm2361, %v4873, %v4874
    %v4876 = vrot.slane %v4745, 1
    %v4877 = vsel %vm2361, %v4874, %v4876
    %v4878 = vrot.slane %v4683, 1
    %v4879 = vrot.slane %v4684, 1
    %v4880 = vsel %vm2361, %v4878, %v4879
    %v4881 = vrot.slane %v4746, 1
    %v4882 = vsel %vm2361, %v4879, %v4881
    %v4883 = vrot.slane %v4685, 1
    %v4884 = vrot.slane %v4686, 1
    %v4885 = vsel %vm2361, %v4883, %v4884
    %v4886 = vrot.slane %v4747, 1
    %v4887 = vsel %vm2361, %v4884, %v4886
    %v4888 = vrot.slane %v4687, 1
    %v4889 = vrot.slane %v4688, 1
    %v4890 = vsel %vm2361, %v4888, %v4889
    %v4891 = vrot.slane %v4748, 1
    %v4892 = vsel %vm2361, %v4889, %v4891
    %v4893 = vrot.slane %v4689, 1
    %v4894 = vrot.slane %v4690, 1
    %v4895 = vsel %vm2361, %v4893, %v4894
    %v4896 = vrot.slane %v4749, 1
    %v4897 = vsel %vm2361, %v4894, %v4896
    %v4898 = vrot.slane %v4691, 1
    %v4899 = vrot.slane %v4692, 1
    %v4900 = vsel %vm2361, %v4898, %v4899
    %v4901 = vrot.slane %v4750, 1
    %v4902 = vsel %vm2361, %v4899, %v4901
    %v4903 = vrot.slane %v4693, 1
    %v4904 = vrot.slane %v4694, 1
    %v4905 = vsel %vm2361, %v4903, %v4904
    %v4906 = vrot.slane %v4751, 1
    %v4907 = vsel %vm2361, %v4904, %v4906
    %v4908 = vrot.slane %v4695, 1
    %v4909 = vrot.slane %v4696, 1
    %v4910 = vsel %vm2361, %v4908, %v4909
    %v4911 = vrot.slane %v4752, 1
    %v4912 = vsel %vm2361, %v4909, %v4911
    %v4913 = vrot.slane %v4697, 1
    %v4914 = vrot.slane %v4698, 1
    %v4915 = vsel %vm2361, %v4913, %v4914
    %v4916 = vrot.slane %v4753, 1
    %v4917 = vsel %vm2361, %v4914, %v4916
    %v4918 = vrot.slane %v4699, 1
    %v4919 = vrot.slane %v4700, 1
    %v4920 = vsel %vm2361, %v4918, %v4919
    %v4921 = vrot.slane %v4754, 1
    %v4922 = vsel %vm2361, %v4919, %v4921
    %v4923 = vrot.slane %v4701, 1
    %v4924 = vrot.slane %v4702, 1
    %v4925 = vsel %vm2361, %v4923, %v4924
    %v4926 = vrot.slane %v4755, 1
    %v4927 = vsel %vm2361, %v4924, %v4926
    %v4928 = vrot.slane %v4703, 1
    %v4929 = vrot.slane %v4704, 1
    %v4930 = vsel %vm2361, %v4928, %v4929
    %v4931 = vrot.slane %v4756, 1
    %v4932 = vsel %vm2361, %v4929, %v4931
    %v4933 = vrot.slane %v4705, 1
    %v4934 = vrot.slane %v4706, 1
    %v4935 = vsel %vm2361, %v4933, %v4934
    %v4936 = vrot.slane %v4757, 1
    %v4937 = vsel %vm2361, %v4934, %v4936
    %v4938 = vrot.slane %v4707, 1
    %v4939 = vrot.slane %v4708, 1
    %v4940 = vsel %vm2361, %v4938, %v4939
    %v4941 = vrot.slane %v4758, 1
    %v4942 = vsel %vm2361, %v4939, %v4941
    %v4943 = vrot.slane %v4709, 1
    %v4944 = vrot.slane %v4710, 1
    %v4945 = vsel %vm2361, %v4943, %v4944
    %v4946 = vrot.slane %v4759, 1
    %v4947 = vsel %vm2361, %v4944, %v4946
    %v4948 = vrot.slane %v4711, 1
    %v4949 = vrot.slane %v4712, 1
    %v4950 = vsel %vm2361, %v4948, %v4949
    %v4951 = vrot.slane %v4760, 1
    %v4952 = vsel %vm2361, %v4949, %v4951
    %v4953 = vrot.slane %v4713, 1
    %v4954 = vrot.slane %v4714, 1
    %v4955 = vsel %vm2361, %v4953, %v4954
    %v4956 = vrot.slane %v4761, 1
    %v4957 = vsel %vm2361, %v4954, %v4956
    %v4958 = vrot.slane %v4715, 1
    %v4959 = vrot.slane %v4716, 1
    %v4960 = vsel %vm2361, %v4958, %v4959
    %v4961 = vrot.slane %v4762, 1
    %v4962 = vsel %vm2361, %v4959, %v4961
    %v4963 = vrot.slane %v4717, 1
    %v4964 = vrot.slane %v4718, 1
    %v4965 = vsel %vm2361, %v4963, %v4964
    %v4966 = vrot.slane %v4763, 1
    %v4967 = vsel %vm2361, %v4964, %v4966
    %v4968 = vrot.slane %v4719, 1
    %v4969 = vrot.slane %v4720, 1
    %v4970 = vsel %vm2361, %v4968, %v4969
    %v4971 = vrot.slane %v4764, 1
    %v4972 = vsel %vm2361, %v4969, %v4971
    %v4973 = vrot.slane %v4721, 1
    %v4974 = vrot.slane %v4722, 1
    %v4975 = vsel %vm2361, %v4973, %v4974
    %v4976 = vrot.slane %v4765, 1
    %v4977 = vsel %vm2361, %v4974, %v4976
    %v4978 = vrot.slane %v4723, 1
    %v4979 = vrot.slane %v4724, 1
    %v4980 = vsel %vm2361, %v4978, %v4979
    %v4981 = vrot.slane %v4766, 1
    %v4982 = vsel %vm2361, %v4979, %v4981
    %v4983 = vrot.slane %v4725, 1
    %v4984 = vrot.slane %v4726, 1
    %v4985 = vsel %vm2361, %v4983, %v4984
    %v4986 = vrot.slane %v4767, 1
    %v4987 = vsel %vm2361, %v4984, %v4986
    %v4988 = vrot.slane %v4727, 1
    %v4989 = vrot.slane %v4728, 1
    %v4990 = vsel %vm2361, %v4988, %v4989
    %v4991 = vrot.slane %v4768, 1
    %v4992 = vsel %vm2361, %v4989, %v4991
    %v4993 = vrot.slane %v4729, 1
    %v4994 = vrot.slane %v4730, 1
    %v4995 = vsel %vm2361, %v4993, %v4994
    %v4996 = vrot.slane %v4769, 1
    %v4997 = vsel %vm2361, %v4994, %v4996
    %v4998 = vrot.slane %v4731, 1
    %v4999 = vrot.slane %v4732, 1
    %v5000 = vsel %vm2361, %v4998, %v4999
    %v5001 = vrot.slane %v4770, 1
    %v5002 = vsel %vm2361, %v4999, %v5001
    %v5003 = vrot.slane %v4733, 1
    %v5004 = vrot.slane %v4734, 1
    %v5005 = vsel %vm2361, %v5003, %v5004
    %v5006 = vrot.slane %v4771, 1
    %v5007 = vsel %vm2361, %v5004, %v5006
    %v5008 = vrot.slane %v4735, 1
    %v5009 = vrot.slane %v4736, 1
    %v5010 = vsel %vm2361, %v5008, %v5009
    %v5011 = vrot.slane %v4772, 1
    %v5012 = vsel %vm2361, %v5009, %v5011
    %v5013 = vrot.slane %v4737, 1
    %v5014 = vrot.slane %v4738, 1
    %v5015 = vsel %vm2361, %v5013, %v5014
    %v5016 = vrot.slane %v4773, 1
    %v5017 = vsel %vm2361, %v5014, %v5016
    %v5018 = vrot.slane %v4739, 1
    %v5019 = vrot.slane %v4740, 1
    %v5020 = vsel %vm2361, %v5018, %v5019
    %v5021 = vrot.slane %v4774, 1
    %v5022 = vsel %vm2361, %v5019, %v5021
    %v5023 = vrot.slane %v4741, 1
    %v5024 = vrot.slane %v4742, 1
    %v5025 = vsel %vm2361, %v5023, %v5024
    %v5026 = vrot.slane %v4775, 1
    %v5027 = vsel %vm2361, %v5024, %v5026
    %v5028 = vrot.slane %v4743, 1
    %v5029 = vrot.slane %v4744, 1
    %v5030 = vsel %vm2361, %v5028, %v5029
    %v5031 = vrot.slane %v4776, 1
    %v5032 = vsel %vm2361, %v5029, %v5031
    %v5097 = vmax.f32 %v4681, %v4875
    %v5098 = vmax.f32 %v4682, %v4877
    %v5099 = vmax.f32 %v4683, %v4880
    %v5100 = vmax.f32 %v4684, %v4882
    %v5101 = vmax.f32 %v4685, %v4885
    %v5102 = vmax.f32 %v4686, %v4887
    %v5103 = vmax.f32 %v4687, %v4890
    %v5104 = vmax.f32 %v4688, %v4892
    %v5105 = vmax.f32 %v4689, %v4895
    %v5106 = vmax.f32 %v4690, %v4897
    %v5107 = vmax.f32 %v4691, %v4900
    %v5108 = vmax.f32 %v4692, %v4902
    %v5109 = vmax.f32 %v4693, %v4905
    %v5110 = vmax.f32 %v4694, %v4907
    %v5111 = vmax.f32 %v4695, %v4910
    %v5112 = vmax.f32 %v4696, %v4912
    %v5113 = vmax.f32 %v4697, %v4915
    %v5114 = vmax.f32 %v4698, %v4917
    %v5115 = vmax.f32 %v4699, %v4920
    %v5116 = vmax.f32 %v4700, %v4922
    %v5117 = vmax.f32 %v4701, %v4925
    %v5118 = vmax.f32 %v4702, %v4927
    %v5119 = vmax.f32 %v4703, %v4930
    %v5120 = vmax.f32 %v4704, %v4932
    %v5121 = vmax.f32 %v4705, %v4935
    %v5122 = vmax.f32 %v4706, %v4937
    %v5123 = vmax.f32 %v4707, %v4940
    %v5124 = vmax.f32 %v4708, %v4942
    %v5125 = vmax.f32 %v4709, %v4945
    %v5126 = vmax.f32 %v4710, %v4947
    %v5127 = vmax.f32 %v4711, %v4950
    %v5128 = vmax.f32 %v4712, %v4952
    %v5129 = vmax.f32 %v4713, %v4955
    %v5130 = vmax.f32 %v4714, %v4957
    %v5131 = vmax.f32 %v4715, %v4960
    %v5132 = vmax.f32 %v4716, %v4962
    %v5133 = vmax.f32 %v4717, %v4965
    %v5134 = vmax.f32 %v4718, %v4967
    %v5135 = vmax.f32 %v4719, %v4970
    %v5136 = vmax.f32 %v4720, %v4972
    %v5137 = vmax.f32 %v4721, %v4975
    %v5138 = vmax.f32 %v4722, %v4977
    %v5139 = vmax.f32 %v4723, %v4980
    %v5140 = vmax.f32 %v4724, %v4982
    %v5141 = vmax.f32 %v4725, %v4985
    %v5142 = vmax.f32 %v4726, %v4987
    %v5143 = vmax.f32 %v4727, %v4990
    %v5144 = vmax.f32 %v4728, %v4992
    %v5145 = vmax.f32 %v4729, %v4995
    %v5146 = vmax.f32 %v4730, %v4997
    %v5147 = vmax.f32 %v4731, %v5000
    %v5148 = vmax.f32 %v4732, %v5002
    %v5149 = vmax.f32 %v4733, %v5005
    %v5150 = vmax.f32 %v4734, %v5007
    %v5151 = vmax.f32 %v4735, %v5010
    %v5152 = vmax.f32 %v4736, %v5012
    %v5153 = vmax.f32 %v4737, %v5015
    %v5154 = vmax.f32 %v4738, %v5017
    %v5155 = vmax.f32 %v4739, %v5020
    %v5156 = vmax.f32 %v4740, %v5022
    %v5157 = vmax.f32 %v4741, %v5025
    %v5158 = vmax.f32 %v4742, %v5027
    %v5159 = vmax.f32 %v4743, %v5030
    %v5160 = vmax.f32 %v4744, %v5032
    %v5161 = vpack.c.bf16 %v5097, %v5097
    %v5162 = vpack.c.bf16 %v5098, %v5098
    %v5163 = vpack.c.bf16 %v5099, %v5099
    %v5164 = vpack.c.bf16 %v5100, %v5100
    %v5165 = vpack.c.bf16 %v5101, %v5101
    %v5166 = vpack.c.bf16 %v5102, %v5102
    %v5167 = vpack.c.bf16 %v5103, %v5103
    %v5168 = vpack.c.bf16 %v5104, %v5104
    %v5169 = vpack.c.bf16 %v5105, %v5105
    %v5170 = vpack.c.bf16 %v5106, %v5106
    %v5171 = vpack.c.bf16 %v5107, %v5107
    %v5172 = vpack.c.bf16 %v5108, %v5108
    %v5173 = vpack.c.bf16 %v5109, %v5109
    %v5174 = vpack.c.bf16 %v5110, %v5110
    %v5175 = vpack.c.bf16 %v5111, %v5111
    %v5176 = vpack.c.bf16 %v5112, %v5112
    %v5177 = vpack.c.bf16 %v5113, %v5113
    %v5178 = vpack.c.bf16 %v5114, %v5114
    %v5179 = vpack.c.bf16 %v5115, %v5115
    %v5180 = vpack.c.bf16 %v5116, %v5116
    %v5181 = vpack.c.bf16 %v5117, %v5117
    %v5182 = vpack.c.bf16 %v5118, %v5118
    %v5183 = vpack.c.bf16 %v5119, %v5119
    %v5184 = vpack.c.bf16 %v5120, %v5120
    %v5185 = vpack.c.bf16 %v5121, %v5121
    %v5186 = vpack.c.bf16 %v5122, %v5122
    %v5187 = vpack.c.bf16 %v5123, %v5123
    %v5188 = vpack.c.bf16 %v5124, %v5124
    %v5189 = vpack.c.bf16 %v5125, %v5125
    %v5190 = vpack.c.bf16 %v5126, %v5126
    %v5191 = vpack.c.bf16 %v5127, %v5127
    %v5192 = vpack.c.bf16 %v5128, %v5128
    %v5193 = vpack.c.bf16 %v5129, %v5129
    %v5194 = vpack.c.bf16 %v5130, %v5130
    %v5195 = vpack.c.bf16 %v5131, %v5131
    %v5196 = vpack.c.bf16 %v5132, %v5132
    %v5197 = vpack.c.bf16 %v5133, %v5133
    %v5198 = vpack.c.bf16 %v5134, %v5134
    %v5199 = vpack.c.bf16 %v5135, %v5135
    %v5200 = vpack.c.bf16 %v5136, %v5136
    %v5201 = vpack.c.bf16 %v5137, %v5137
    %v5202 = vpack.c.bf16 %v5138, %v5138
    %v5203 = vpack.c.bf16 %v5139, %v5139
    %v5204 = vpack.c.bf16 %v5140, %v5140
    %v5205 = vpack.c.bf16 %v5141, %v5141
    %v5206 = vpack.c.bf16 %v5142, %v5142
    %v5207 = vpack.c.bf16 %v5143, %v5143
    %v5208 = vpack.c.bf16 %v5144, %v5144
    %v5209 = vpack.c.bf16 %v5145, %v5145
    %v5210 = vpack.c.bf16 %v5146, %v5146
    %v5211 = vpack.c.bf16 %v5147, %v5147
    %v5212 = vpack.c.bf16 %v5148, %v5148
    %v5213 = vpack.c.bf16 %v5149, %v5149
    %v5214 = vpack.c.bf16 %v5150, %v5150
    %v5215 = vpack.c.bf16 %v5151, %v5151
    %v5216 = vpack.c.bf16 %v5152, %v5152
    %v5217 = vpack.c.bf16 %v5153, %v5153
    %v5218 = vpack.c.bf16 %v5154, %v5154
    %v5219 = vpack.c.bf16 %v5155, %v5155
    %v5220 = vpack.c.bf16 %v5156, %v5156
    %v5221 = vpack.c.bf16 %v5157, %v5157
    %v5222 = vpack.c.bf16 %v5158, %v5158
    %v5223 = vpack.c.bf16 %v5159, %v5159
    %v5224 = vpack.c.bf16 %v5160, %v5160
    %vm5225 = vcmask 257024
    %5226 = vst.msk [vmem:[%s5] sm:$0xf] %vm5225, %v5161
    %5227 = vst.msk [vmem:[%s5 + $0x4] sm:$0xf] %vm5225, %v5162
    %5228 = vst.msk [vmem:[%s5 + $0x8] sm:$0xf] %vm5225, %v5163
    %5229 = vst.msk [vmem:[%s5 + $0xc] sm:$0xf] %vm5225, %v5164
    %5230 = vst.msk [vmem:[%s5 + $0x10] sm:$0xf] %vm5225, %v5165
    %5231 = vst.msk [vmem:[%s5 + $0x14] sm:$0xf] %vm5225, %v5166
    %5232 = vst.msk [vmem:[%s5 + $0x18] sm:$0xf] %vm5225, %v5167
    %5233 = vst.msk [vmem:[%s5 + $0x1c] sm:$0xf] %vm5225, %v5168
    %5234 = vst.msk [vmem:[%s5 + $0x20] sm:$0xf] %vm5225, %v5169
    %5235 = vst.msk [vmem:[%s5 + $0x24] sm:$0xf] %vm5225, %v5170
    %5236 = vst.msk [vmem:[%s5 + $0x28] sm:$0xf] %vm5225, %v5171
    %5237 = vst.msk [vmem:[%s5 + $0x2c] sm:$0xf] %vm5225, %v5172
    %5238 = vst.msk [vmem:[%s5 + $0x30] sm:$0xf] %vm5225, %v5173
    %5239 = vst.msk [vmem:[%s5 + $0x34] sm:$0xf] %vm5225, %v5174
    %5240 = vst.msk [vmem:[%s5 + $0x38] sm:$0xf] %vm5225, %v5175
    %5241 = vst.msk [vmem:[%s5 + $0x3c] sm:$0xf] %vm5225, %v5176
    %5242 = vst.msk [vmem:[%s5 + $0x40] sm:$0xf] %vm5225, %v5177
    %5243 = vst.msk [vmem:[%s5 + $0x44] sm:$0xf] %vm5225, %v5178
    %5244 = vst.msk [vmem:[%s5 + $0x48] sm:$0xf] %vm5225, %v5179
    %5245 = vst.msk [vmem:[%s5 + $0x4c] sm:$0xf] %vm5225, %v5180
    %5246 = vst.msk [vmem:[%s5 + $0x50] sm:$0xf] %vm5225, %v5181
    %5247 = vst.msk [vmem:[%s5 + $0x54] sm:$0xf] %vm5225, %v5182
    %5248 = vst.msk [vmem:[%s5 + $0x58] sm:$0xf] %vm5225, %v5183
    %5249 = vst.msk [vmem:[%s5 + $0x5c] sm:$0xf] %vm5225, %v5184
    %5250 = vst.msk [vmem:[%s5 + $0x60] sm:$0xf] %vm5225, %v5185
    %5251 = vst.msk [vmem:[%s5 + $0x64] sm:$0xf] %vm5225, %v5186
    %5252 = vst.msk [vmem:[%s5 + $0x68] sm:$0xf] %vm5225, %v5187
    %5253 = vst.msk [vmem:[%s5 + $0x6c] sm:$0xf] %vm5225, %v5188
    %5254 = vst.msk [vmem:[%s5 + $0x70] sm:$0xf] %vm5225, %v5189
    %5255 = vst.msk [vmem:[%s5 + $0x74] sm:$0xf] %vm5225, %v5190
    %5256 = vst.msk [vmem:[%s5 + $0x78] sm:$0xf] %vm5225, %v5191
    %5257 = vst.msk [vmem:[%s5 + $0x7c] sm:$0xf] %vm5225, %v5192
    %5258 = vst.msk [vmem:[%s5 + $0x80] sm:$0xf] %vm5225, %v5193
    %5259 = vst.msk [vmem:[%s5 + $0x84] sm:$0xf] %vm5225, %v5194
    %5260 = vst.msk [vmem:[%s5 + $0x88] sm:$0xf] %vm5225, %v5195
    %5261 = vst.msk [vmem:[%s5 + $0x8c] sm:$0xf] %vm5225, %v5196
    %5262 = vst.msk [vmem:[%s5 + $0x90] sm:$0xf] %vm5225, %v5197
    %5263 = vst.msk [vmem:[%s5 + $0x94] sm:$0xf] %vm5225, %v5198
    %5264 = vst.msk [vmem:[%s5 + $0x98] sm:$0xf] %vm5225, %v5199
    %5265 = vst.msk [vmem:[%s5 + $0x9c] sm:$0xf] %vm5225, %v5200
    %5266 = vst.msk [vmem:[%s5 + $0xa0] sm:$0xf] %vm5225, %v5201
    %5267 = vst.msk [vmem:[%s5 + $0xa4] sm:$0xf] %vm5225, %v5202
    %5268 = vst.msk [vmem:[%s5 + $0xa8] sm:$0xf] %vm5225, %v5203
    %5269 = vst.msk [vmem:[%s5 + $0xac] sm:$0xf] %vm5225, %v5204
    %5270 = vst.msk [vmem:[%s5 + $0xb0] sm:$0xf] %vm5225, %v5205
    %5271 = vst.msk [vmem:[%s5 + $0xb4] sm:$0xf] %vm5225, %v5206
    %5272 = vst.msk [vmem:[%s5 + $0xb8] sm:$0xf] %vm5225, %v5207
    %5273 = vst.msk [vmem:[%s5 + $0xbc] sm:$0xf] %vm5225, %v5208
    %5274 = vst.msk [vmem:[%s5 + $0xc0] sm:$0xf] %vm5225, %v5209
    %5275 = vst.msk [vmem:[%s5 + $0xc4] sm:$0xf] %vm5225, %v5210
    %5276 = vst.msk [vmem:[%s5 + $0xc8] sm:$0xf] %vm5225, %v5211
    %5277 = vst.msk [vmem:[%s5 + $0xcc] sm:$0xf] %vm5225, %v5212
    %5278 = vst.msk [vmem:[%s5 + $0xd0] sm:$0xf] %vm5225, %v5213
    %5279 = vst.msk [vmem:[%s5 + $0xd4] sm:$0xf] %vm5225, %v5214
    %5280 = vst.msk [vmem:[%s5 + $0xd8] sm:$0xf] %vm5225, %v5215
    %5281 = vst.msk [vmem:[%s5 + $0xdc] sm:$0xf] %vm5225, %v5216
    %5282 = vst.msk [vmem:[%s5 + $0xe0] sm:$0xf] %vm5225, %v5217
    %5283 = vst.msk [vmem:[%s5 + $0xe4] sm:$0xf] %vm5225, %v5218
    %5284 = vst.msk [vmem:[%s5 + $0xe8] sm:$0xf] %vm5225, %v5219
    %5285 = vst.msk [vmem:[%s5 + $0xec] sm:$0xf] %vm5225, %v5220
    %5286 = vst.msk [vmem:[%s5 + $0xf0] sm:$0xf] %vm5225, %v5221
    %5287 = vst.msk [vmem:[%s5 + $0xf4] sm:$0xf] %vm5225, %v5222
    %5288 = vst.msk [vmem:[%s5 + $0xf8] sm:$0xf] %vm5225, %v5223
    %5289 = vst.msk [vmem:[%s5 + $0xfc] sm:$0xf] %vm5225, %v5224
    // Predicated region
    $region38: #{currency_model_forward.2} parent=1 // pred_check
      _
    $region39: #{currency_model_forward.2} parent=1 // pred_check_branch
      %5291 = sbr.rel (0) target = $region41
    $region40: #{currency_model_forward.2} parent=1 // pred_region
      _
    $region41: #{currency_model_forward.2} parent=1 // pred_fallthru
      _
    // Predicated region
    $region42: #{currency_model_forward.2} parent=1 // pred_check
      _
    $region43: #{currency_model_forward.2} parent=1 // pred_check_branch
      %5293 = sbr.rel (0) target = $region45
    $region44: #{currency_model_forward.2} parent=1 // pred_region
      _
    $region45: #{currency_model_forward.2} parent=1 // pred_fallthru
      _
    %5294 = vsyncpa [#allocation4], 1
    %5295 = vsyncpa [#allocation6], 1
    %5296 = vsyncpa [#allocation9], 1

</llo_original>
